<compile_context>
chip_gen: v5e
topology: v5e:2x2
jax: 0.10.0
libtpu: 0.0.40
codegen_flags: <defaults>
</compile_context>

<pallas_src>
import functools

import numpy as np
import jax
import jax.numpy as jnp
from jax.experimental import pallas as pl
from jax.experimental.pallas import tpu as pltpu


# ------------------------------------------------------------------ utilities
def round_up(x, m):
    return (x + m - 1) // m * m


# --------------------------------------------------------------- Pallas: matmul
def _matmul_kernel(a_ref, w_ref, b_ref, o_ref, acc_ref, *, relu):
    @pl.when(pl.program_id(2) == 0)
    def _():
        acc_ref[...] = jnp.zeros_like(acc_ref)

    acc_ref[...] += jnp.dot(a_ref[...], w_ref[...],
                            preferred_element_type=jnp.float32)

    @pl.when(pl.program_id(2) == pl.num_programs(2) - 1)
    def _():
        r = acc_ref[...] + b_ref[...]            # (tm,tn) + (1,tn) broadcast, f32
        if relu:
            r = jnp.maximum(r, 0.0)
        o_ref[...] = r.astype(o_ref.dtype)


_VMEM_BUDGET = 24 * 1024 * 1024    # working-set target (well under 64 MiB v7x VMEM)
_TM_CAP = 4096


def _choose_tk(kp):
    """Full-K tile when small; otherwise largest 128-multiple divisor in [1024,2560]."""
    if kp <= 2560:
        return kp
    for cand in range(2560, 1023, -128):
        if kp % cand == 0:
            return cand
    return 2048


def _choose_tiles(M, N, K, out_bytes):
    np_ = round_up(N, 128)
    kp = round_up(K, 128)
    tn = min(np_, 512)
    np_ = round_up(np_, tn)
    tk = _choose_tk(kp)
    kp = round_up(kp, tk)
    # VMEM estimate: bf16 A (x2 buf) + bf16 W (x2 buf) + f32 acc + out (x2 buf) + bias
    fixed = 2 * tk * tn * 2 + 4 * tn
    per_row = 2 * tk * 2 + tn * 4 + 2 * tn * out_bytes
    tm_budget = max(16, ((_VMEM_BUDGET - fixed) // per_row) // 16 * 16)
    tm = min(_TM_CAP, round_up(M, 16), tm_budget)
    mp = round_up(M, tm)
    return tm, tn, tk, mp, np_, kp


def pallas_matmul(a, w, bias, relu, out_dtype=jnp.bfloat16):
    """a:(M,K) @ w:(K,N) + bias:(N,), optional ReLU. bf16 operands, f32 accum."""
    M, K = a.shape
    Kw, N = w.shape
    assert K == Kw, (K, Kw)
    tm, tn, tk, Mp, Np, Kp = _choose_tiles(M, N, K, jnp.dtype(out_dtype).itemsize)

    a_p = jnp.pad(a.astype(jnp.bfloat16), ((0, Mp - M), (0, Kp - K)))
    w_p = jnp.pad(w.astype(jnp.bfloat16), ((0, Kp - K), (0, Np - N)))
    b_p = jnp.pad(bias.astype(jnp.float32), (0, Np - N)).reshape(1, Np)

    out = pl.pallas_call(
        functools.partial(_matmul_kernel, relu=relu),
        out_shape=jax.ShapeDtypeStruct((Mp, Np), out_dtype),
        grid_spec=pltpu.PrefetchScalarGridSpec(
            num_scalar_prefetch=0,
            grid=(Mp // tm, Np // tn, Kp // tk),
            in_specs=[
                pl.BlockSpec((tm, tk), lambda i, j, k: (i, k)),
                pl.BlockSpec((tk, tn), lambda i, j, k: (k, j)),
                pl.BlockSpec((1, tn), lambda i, j, k: (0, j)),
            ],
            out_specs=pl.BlockSpec((tm, tn), lambda i, j, k: (i, j)),
            scratch_shapes=[pltpu.VMEM((tm, tn), jnp.float32)],
        ),
        compiler_params=pltpu.CompilerParams(
            dimension_semantics=("parallel", "parallel", "arbitrary"),
            vmem_limit_bytes=48 * 1024 * 1024),
    )(a_p, w_p, b_p)
    return out[:M, :N]


# ------------------------------------------------------------ Pallas: maxpool
def _max4_kernel(a_ref, b_ref, c_ref, d_ref, o_ref):
    o_ref[...] = jnp.maximum(jnp.maximum(a_ref[...], b_ref[...]),
                             jnp.maximum(c_ref[...], d_ref[...]))


def pallas_maxpool2x2_ceil(x):
    """MaxPool2d(kernel=2, stride=2, ceil_mode=True) on NHWC input."""
    N, H, W, C = x.shape
    OH, OW = -(-H // 2), -(-W // 2)
    neg = float(jnp.finfo(x.dtype).min)
    xp = jnp.pad(x, ((0, 0), (0, 2 * OH - H), (0, 2 * OW - W), (0, 0)),
                 constant_values=neg)
    parts = [xp[:, 0::2, 0::2, :], xp[:, 0::2, 1::2, :],
             xp[:, 1::2, 0::2, :], xp[:, 1::2, 1::2, :]]
    parts = [p.reshape(-1, C) for p in parts]
    R = parts[0].shape[0]
    tr = min(4096, round_up(R, 16))
    Rp = round_up(R, tr)
    parts = [jnp.pad(p, ((0, Rp - R), (0, 0)), constant_values=neg) for p in parts]

    out = pl.pallas_call(
        _max4_kernel,
        out_shape=jax.ShapeDtypeStruct((Rp, C), x.dtype),
        grid=(Rp // tr,),
        in_specs=[pl.BlockSpec((tr, C), lambda i: (i, 0))] * 4,
        out_specs=pl.BlockSpec((tr, C), lambda i: (i, 0)),
        compiler_params=pltpu.CompilerParams(
            dimension_semantics=("parallel",)),
    )(*parts)
    return out[:R].reshape(N, OH, OW, C)


# ------------------------------------------------------------- conv wrappers
def _im2col(x, kh, kw, pad):
    """x: NHWC -> patches (N*OH*OW, kh*kw*C), kernel-position-major ordering."""
    if pad:
        x = jnp.pad(x, ((0, 0), (pad, pad), (pad, pad), (0, 0)))
    N, Hp, Wp, C = x.shape
    OH, OW = Hp - kh + 1, Wp - kw + 1
    if kh == 1 and kw == 1:
        return x.reshape(N * OH * OW, C), (N, OH, OW)
    # TODO(synk): fuse im2col into the matmul K-axis via index_map to avoid
    # materializing the 9x patch matrix in HBM for the 3x3 conv layers.
    cols = [x[:, i:i + OH, j:j + OW, :] for i in range(kh) for j in range(kw)]
    patches = jnp.stack(cols, axis=3)            # (N, OH, OW, kh*kw, C)
    return patches.reshape(N * OH * OW, kh * kw * C), (N, OH, OW)


def conv2d(x, w_mat, b, kh, kw, padding=0, relu=False, out_dtype=jnp.bfloat16):
    """x: NHWC bf16; w_mat: (kh*kw*Cin, Cout) bf16 (pre-transposed); b: (Cout,) f32."""
    Cout = w_mat.shape[1]
    patches, (N, OH, OW) = _im2col(x, kh, kw, padding)
    out = pallas_matmul(patches, w_mat, b, relu, out_dtype=out_dtype)
    return out.reshape(N, OH, OW, Cout)


def conv_transpose2d(x, w_mat, k, stride, out_dtype=jnp.bfloat16):
    """x: NHWC; w_mat: pre-flipped/reshaped (k*k*Cin, Cout) bf16; no bias."""
    # TODO(synk): phase-decomposed (subpixel) formulation would avoid the
    # zero-insertion waste; negligible at n_class=1.
    N, H, W, C = x.shape
    Cout = w_mat.shape[1]
    UH, UW = (H - 1) * stride + 1, (W - 1) * stride + 1
    up = jnp.zeros((N, UH, UW, C), x.dtype).at[:, ::stride, ::stride, :].set(x)
    zero_b = jnp.zeros((Cout,), jnp.float32)
    return conv2d(up, w_mat, zero_b, k, k, padding=k - 1, relu=False,
                  out_dtype=out_dtype)


# ------------------------------------------------------------- parameter init
def get_upsample_filter(size):
    factor = (size + 1) // 2
    center = factor - 1 if size % 2 == 1 else factor - 0.5
    og = np.ogrid[:size, :size]
    filt = (1 - abs(og[0] - center) / factor) * (1 - abs(og[1] - center) / factor)
    return np.asarray(filt, np.float32)


def _conv_param(key, cout, cin, kh, kw):
    fan_in = cin * kh * kw
    # Generated directly in (kh*kw*Cin, Cout) matmul layout, stored as bf16.
    w = (jax.random.normal(key, (kh * kw * cin, cout), jnp.float32)
         * np.sqrt(2.0 / fan_in)).astype(jnp.bfloat16)
    b = jnp.zeros((cout,), jnp.float32)
    return {"w": w, "b": b, "kh": kh, "kw": kw}


def init_fcn8s_params(seed=0, n_class=1):
    key = jax.random.PRNGKey(seed)
    shapes = {
        "conv1_1": (64, 3, 3, 3),   "conv1_2": (64, 64, 3, 3),
        "conv2_1": (128, 64, 3, 3), "conv2_2": (128, 128, 3, 3),
        "conv3_1": (256, 128, 3, 3), "conv3_2": (256, 256, 3, 3),
        "conv3_3": (256, 256, 3, 3),
        "conv4_1": (512, 256, 3, 3), "conv4_2": (512, 512, 3, 3),
        "conv4_3": (512, 512, 3, 3),
        "conv5_1": (512, 512, 3, 3), "conv5_2": (512, 512, 3, 3),
        "conv5_3": (512, 512, 3, 3),
        "fc6": (4096, 512, 7, 7), "fc7": (4096, 4096, 1, 1),
        "score_fr": (n_class, 4096, 1, 1),
        "score_feat3": (n_class, 256, 1, 1),
        "score_feat4": (n_class, 512, 1, 1),
    }
    params = {}
    keys = jax.random.split(key, len(shapes))
    for k_rng, (name, (co, ci, kh, kw)) in zip(keys, shapes.items()):
        params[name] = _conv_param(k_rng, co, ci, kh, kw)
    # Transposed-conv weights: deterministic bilinear upsampling filter
    # (torch layout (Cin=n_class, Cout=n_class, k, k), bias=False), pre-flipped
    # and pre-reshaped into conv matmul layout once at init.
    for name, k, s in (("upscore", 16, 8), ("upscore_4", 4, 2), ("upscore_5", 4, 2)):
        filt = get_upsample_filter(k)
        w = np.tile(filt[None, None], (n_class, n_class, 1, 1))   # (Cin,Cout,k,k)
        w_flip = w[:, :, ::-1, ::-1]
        w_mat = np.transpose(w_flip, (2, 3, 0, 1)).reshape(k * k * n_class, n_class)
        params[name] = {"w": jnp.asarray(w_mat, jnp.bfloat16), "k": k, "s": s}
    return params


# ------------------------------------------------------------------- forward
def _conv_layer(x, p, padding, relu):
    return conv2d(x, p["w"], p["b"], p["kh"], p["kw"], padding=padding, relu=relu)


def fcn8s_forward(params, x_nchw):
    x = jnp.transpose(x_nchw, (0, 2, 3, 1)).astype(jnp.bfloat16)   # -> NHWC

    # features_123
    h = _conv_layer(x, params["conv1_1"], 100, True)
    h = _conv_layer(h, params["conv1_2"], 1, True)
    h = pallas_maxpool2x2_ceil(h)
    h = _conv_layer(h, params["conv2_1"], 1, True)
    h = _conv_layer(h, params["conv2_2"], 1, True)
    h = pallas_maxpool2x2_ceil(h)
    h = _conv_layer(h, params["conv3_1"], 1, True)
    h = _conv_layer(h, params["conv3_2"], 1, True)
    h = _conv_layer(h, params["conv3_3"], 1, True)
    feat3 = pallas_maxpool2x2_ceil(h)

    # features_4
    h = _conv_layer(feat3, params["conv4_1"], 1, True)
    h = _conv_layer(h, params["conv4_2"], 1, True)
    h = _conv_layer(h, params["conv4_3"], 1, True)
    feat4 = pallas_maxpool2x2_ceil(h)

    # features_5
    h = _conv_layer(feat4, params["conv5_1"], 1, True)
    h = _conv_layer(h, params["conv5_2"], 1, True)
    h = _conv_layer(h, params["conv5_3"], 1, True)
    feat5 = pallas_maxpool2x2_ceil(h)

    # classifier
    # TODO(synk): Dropout2d is stochastic (torch-RNG dependent); eval-mode
    # identity semantics are used here.
    h = _conv_layer(feat5, params["fc6"], 0, True)
    h = _conv_layer(h, params["fc7"], 0, True)
    score5 = _conv_layer(h, params["score_fr"], 0, False)

    upscore5 = conv_transpose2d(score5, params["upscore_5"]["w"],
                                params["upscore_5"]["k"], params["upscore_5"]["s"])
    score4 = _conv_layer(feat4, params["score_feat4"], 0, False)
    score4 = score4[:, 5:5 + upscore5.shape[1], 5:5 + upscore5.shape[2], :] + upscore5

    score3 = _conv_layer(feat3, params["score_feat3"], 0, False)
    upscore4 = conv_transpose2d(score4, params["upscore_4"]["w"],
                                params["upscore_4"]["k"], params["upscore_4"]["s"])
    score3 = score3[:, 9:9 + upscore4.shape[1], 9:9 + upscore4.shape[2], :] + upscore4

    h = conv_transpose2d(score3, params["upscore"]["w"],
                         params["upscore"]["k"], params["upscore"]["s"])
    h = h[:, 28:28 + x.shape[1], 28:28 + x.shape[2], :]
    return jnp.transpose(h, (0, 3, 1, 2)).astype(jnp.float32)   # back to NCHW, f32


# ----------------------------------------------------------------------- main
if __name__ == "__main__":
    n_class = 1
    params = init_fcn8s_params(seed=0, n_class=n_class)

    key = jax.random.PRNGKey(0)
    x = jax.random.normal(key, (2, 3, 16, 16), jnp.float32)   # NCHW like PyTorch

    out = fcn8s_forward(params, x)
    out = jax.block_until_ready(out)

    assert out.shape == (2, n_class, 16, 16), out.shape
    assert bool(jnp.all(jnp.isfinite(out)))
    print("KERNEL_OK")
</pallas_src>

<mosaic_0001>
module attributes {stable_mosaic.version = 11 : i64} {
  func.func @_matmul_kernel(%arg0: i32, %arg1: i32, %arg2: i32, %arg3: memref<4096x128xbf16, #tpu.memory_space<vmem>>, %arg4: memref<128x128xbf16, #tpu.memory_space<vmem>>, %arg5: memref<1x128xf32, #tpu.memory_space<vmem>>, %arg6: memref<4096x128xbf16, #tpu.memory_space<vmem>>, %arg7: memref<4096x128xf32, #tpu.memory_space<vmem>>) attributes {dimension_semantics = [#tpu.dimension_semantics<parallel>, #tpu.dimension_semantics<parallel>, #tpu.dimension_semantics<arbitrary>], iteration_bounds = array<i64: 23, 1, 1>, scalar_prefetch = 0 : i64, scratch_operands = 1 : i64, tpu.core_type = #tpu.core_type<tc>, window_params = [{transform_indices = @transform_0, window_bounds = array<i64: 4096, 128>}, {transform_indices = @transform_1, window_bounds = array<i64: 128, 128>}, {transform_indices = @transform_2, window_bounds = array<i64: 1, 128>}, {transform_indices = @transform_3, window_bounds = array<i64: 4096, 128>}]} {
    %c0_i32 = arith.constant 0 : i32
    %0 = arith.cmpi eq, %arg2, %c0_i32 : i32
    %1 = arith.extui %0 : i1 to i32
    %c0_i32_0 = arith.constant 0 : i32
    %2 = arith.cmpi ne, %1, %c0_i32_0 : i32
    scf.if %2 {
      %cst_10 = arith.constant 0.000000e+00 : f32
      %12 = vector.broadcast %cst_10 : f32 to vector<4096x128xf32>
      %c0_11 = arith.constant 0 : index
      %c0_12 = arith.constant 0 : index
      %13 = vector.load %arg7[%c0_11, %c0_12] : memref<4096x128xf32, #tpu.memory_space<vmem>>, vector<4096x128xf32>
      tpu.vector_store %arg7[%c0_11, %c0_12], %12 {strides = array<i32>} : memref<4096x128xf32, #tpu.memory_space<vmem>>, vector<4096x128xf32>,
    } else {
    }
    %c0 = arith.constant 0 : index
    %c0_1 = arith.constant 0 : index
    %3 = vector.load %arg7[%c0, %c0_1] : memref<4096x128xf32, #tpu.memory_space<vmem>>, vector<4096x128xf32>
    %c0_2 = arith.constant 0 : index
    %c0_3 = arith.constant 0 : index
    %4 = vector.load %arg3[%c0_2, %c0_3] : memref<4096x128xbf16, #tpu.memory_space<vmem>>, vector<4096x128xbf16>
    %c0_4 = arith.constant 0 : index
    %c0_5 = arith.constant 0 : index
    %5 = vector.load %arg4[%c0_4, %c0_5] : memref<128x128xbf16, #tpu.memory_space<vmem>>, vector<128x128xbf16>
    %cst = arith.constant dense<0.000000e+00> : vector<4096x128xf32>
    %6 = tpu.matmul %4, %5, %cst {dimension_numbers = #tpu.dot_dimension_numbers<[1], [0], [0], [1], [0, 0, 1, 1], [], []>} : vector<4096x128xbf16>, vector<128x128xbf16>, vector<4096x128xf32> -> vector<4096x128xf32>
    %7 = arith.addf %3, %6 : vector<4096x128xf32>
    %c0_6 = arith.constant 0 : index
    %c0_7 = arith.constant 0 : index
    %8 = vector.load %arg7[%c0_6, %c0_7] : memref<4096x128xf32, #tpu.memory_space<vmem>>, vector<4096x128xf32>
    tpu.vector_store %arg7[%c0_6, %c0_7], %7 {strides = array<i32>} : memref<4096x128xf32, #tpu.memory_space<vmem>>, vector<4096x128xf32>,
    %c0_i32_8 = arith.constant 0 : i32
    %9 = arith.cmpi eq, %arg2, %c0_i32_8 : i32
    %10 = arith.extui %9 : i1 to i32
    %c0_i32_9 = arith.constant 0 : i32
    %11 = arith.cmpi ne, %10, %c0_i32_9 : i32
    scf.if %11 {
      %c0_10 = arith.constant 0 : index
      %c0_11 = arith.constant 0 : index
      %12 = vector.load %arg7[%c0_10, %c0_11] : memref<4096x128xf32, #tpu.memory_space<vmem>>, vector<4096x128xf32>
      %c0_12 = arith.constant 0 : index
      %c0_13 = arith.constant 0 : index
      %13 = vector.load %arg5[%c0_12, %c0_13] : memref<1x128xf32, #tpu.memory_space<vmem>>, vector<1x128xf32>
      %14 = vector.broadcast %13 : vector<1x128xf32> to vector<4096x128xf32>
      %15 = arith.addf %12, %14 : vector<4096x128xf32>
      %cst_14 = arith.constant 0.000000e+00 : f32
      %16 = vector.broadcast %cst_14 : f32 to vector<4096x128xf32>
      %17 = arith.maximumf %15, %16 : vector<4096x128xf32>
      %18 = arith.truncf %17 : vector<4096x128xf32> to vector<4096x128xbf16>
      %c0_15 = arith.constant 0 : index
      %c0_16 = arith.constant 0 : index
      %19 = vector.load %arg6[%c0_15, %c0_16] : memref<4096x128xbf16, #tpu.memory_space<vmem>>, vector<4096x128xbf16>
      tpu.vector_store %arg6[%c0_15, %c0_16], %18 {strides = array<i32>} : memref<4096x128xbf16, #tpu.memory_space<vmem>>, vector<4096x128xbf16>,
    } else {
    }
    return
  }
  func.func @transform_0(%arg0: i32, %arg1: i32, %arg2: i32) -> (i32, i32) {
    %c0_i32 = arith.constant 0 : i32
    return %arg0, %arg2 : i32, i32
  }
  func.func @transform_1(%arg0: i32, %arg1: i32, %arg2: i32) -> (i32, i32) {
    %c0_i32 = arith.constant 0 : i32
    return %arg2, %arg1 : i32, i32
  }
  func.func @transform_2(%arg0: i32, %arg1: i32, %arg2: i32) -> (i32, i32) {
    %c0_i32 = arith.constant 0 : i32
    %c0_i32_0 = arith.constant 0 : i32
    return %c0_i32, %arg1 : i32, i32
  }
  func.func @transform_3(%arg0: i32, %arg1: i32, %arg2: i32) -> (i32, i32) {
    %c0_i32 = arith.constant 0 : i32
    return %arg0, %arg1 : i32, i32
  }
}

</mosaic_0001>

<llo_original>
// kernel: tpu_custom_call.1
$region0: #{tpu_custom_call.1}
  #allocation0 [shape = 'u32[]', space=smem, size = 0x4, offset = 0x4, fixed_abs, tag = 'smem constant byte address 0x4 - core index']
  #allocation1 [shape = 'u32[72,128]{1,0:T(1,128)}', space=vmem, size = 0x9000, scoped, tag = 'internal scratch']
  #allocation2 [shape = 'f32[4096,128]{1,0:T(8,128)}', space=vmem, size = 0x200000, scoped, tag = 'scratch operand']
  %s0 = inlined_call_operand.hbm [shape: bf16[94208,128], index: 0, kind: input, shape index: {}]
  %s1 = inlined_call_operand.hbm [shape: bf16[128,128], index: 1, kind: input, shape index: {}]
  %s2 = inlined_call_operand.hbm [shape: f32[1,128], index: 2, kind: input, shape index: {}]
  %s3 = inlined_call_operand.hbm [shape: bf16[94208,128], index: 3, kind: output, shape index: {}]
  %s4 = sld [smem:[#allocation0]]
  $region65: #{tpu_custom_call.1} parent=0
    _
  %s6 = ssub.s32 1, %s4
  %s7 = scalar_select 0, %s6, %s4
  $region1: #{tpu_custom_call.1} parent=0
    #allocation3 [shape = 'u8[2097152]{0}', space=vmem, size = 0x200000, scoped, tag = 'input window, operand 0']
    #allocation4 [shape = 's32[2]{0}', space=sflag, size = 0x8, scoped, tag = 'scoped memory for tpu_custom_call.1']
    #allocation5 [shape = 's32[2]{0}', space=sflag, size = 0x8, scoped, tag = 'scoped memory for tpu_custom_call.1']
    #allocation6 [shape = 'u8[32768]{0}', space=vmem, size = 0x8000, scoped, tag = 'input window, operand 1, single buffered']
    #allocation7 [shape = 's32[1]{0}', space=sflag, size = 0x4, scoped, tag = 'scoped memory for tpu_custom_call.1']
    #allocation8 [shape = 'u8[512]{0}', space=vmem, size = 0x400, scoped, tag = 'input window, operand 2, single buffered']
    #allocation9 [shape = 'u8[2097152]{0}', space=vmem, size = 0x200000, scoped, tag = 'output window, operand 0']
    %8 = vsyncpa [#allocation4], 0
    %s9 = scalar_lea.sflag [#allocation4], 1
    %10 = vsyncpa %s9, 0
    %11 = vsyncpa [#allocation7], 0
    %12 = vsyncpa [#allocation5], 0
    %s13 = scalar_lea.sflag [#allocation5], 1
    %14 = vsyncpa %s13, 0
    loop: start=0, step=1, limit=25
    $region2: #{tpu_custom_call.1} parent=1 // loop_pre_header
      _
    $region3: #{tpu_custom_call.1} parent=1 // loop_header
      %s16 = sphi 0, %s20
      %p17 = scmp.ge.s32.totalorder %s16, 25
      %s23 = sphi 0, %s42
      %s24 = sphi 0, %s38
      %s25 = sphi 0, %s34
      %s26 = sphi 0, %s23
      %s27 = sphi 0, %s24
      %s28 = sphi 0, %s25
      %s29 = sphi 0, %s26
      %s30 = sphi 0, %s27
      %s31 = sphi 0, %s28
      %s47 = sphi 0, %s49
      %s50 = sphi 0, %s47
      %s51 = sphi 0, %s50
      %s67 = sphi 0, %s51
      %s75 = sphi 0, %s77
      %s78 = sphi 0, %s75
      %s79 = sphi 0, %s78
      %s95 = sphi 0, %s79
      %s101 = sphi 0, %s103
      %s104 = sphi 0, %s101
      %s105 = sphi 0, %s104
      %s121 = sphi 0, %s105
      %s129 = sphi 0, %s131
      %s132 = sphi 0, %s129
      %s133 = sphi 0, %s132
      %s149 = sphi 0, %s133
    $region4: #{tpu_custom_call.1} parent=1 // loop_header_branch
      %19 = sbr.rel (%p17) target = $region8
    $region5: #{tpu_custom_call.1} parent=1 // loop_body
      %s21 = ssub.s32 %s16, 1
      %s22 = ssub.s32 %s16, 2
      %s32 = sadd.s32 1, %s25
      %p33 = scmp.ge.s32.totalorder %s32, 1
      %s34 = scalar_select %p33, 0, %s32
      %s35 = sadd.s32 1, %s24
      %s36 = scalar_select %p33, %s35, %s24
      %p37 = scmp.ge.s32.totalorder %s36, 1
      %s38 = scalar_select %p37, 0, %s36
      %s39 = sadd.s32 1, %s23
      %s40 = scalar_select %p37, %s39, %s23
      %p41 = scmp.ge.s32.totalorder %s40, 23
      %s42 = scalar_select %p41, 0, %s40
      %s43 = ssub.s32 %s23, %s42
      %s44 = ssub.s32 %s25, %s34
      %s45 = sor.u32 %s43, %s44
      %p46 = scmp.eq.s32.totalorder %s45, 0
      %s48 = sadd.s32 %s47, 1
      %s49 = scalar_select %p46, %s47, %s48
      %p52 = pneg %p46
      %p53 = scmp.eq.s32.totalorder %s16, 22
      %p54 = por %p52, %p53
      %p55 = scmp.ne.s32.totalorder %s47, %s50
      %p56 = scmp.eq.s32.totalorder %s16, 0
      %p57 = por %p55, %p56
      %p58 = scmp.ne.s32.totalorder %s47, %s50
      %p59 = scmp.eq.s32.totalorder %s21, 22
      %p60 = por %p58, %p59
      %p61 = scmp.ne.s32.totalorder %s50, %s51
      %p62 = scmp.eq.s32.totalorder %s21, 0
      %p63 = por %p61, %p62
      %p64 = scmp.ne.s32.totalorder %s50, %s51
      %p65 = scmp.eq.s32.totalorder %s22, 22
      %p66 = por %p64, %p65
      %p68 = scmp.ne.s32.totalorder %s51, %s67
      %p69 = scmp.eq.s32.totalorder %s22, 0
      %p70 = por %p68, %p69
      %s71 = ssub.s32 %s25, %s34
      %s72 = ssub.s32 %s24, %s38
      %s73 = sor.u32 %s71, %s72
      %p74 = scmp.eq.s32.totalorder %s73, 0
      %s76 = sadd.s32 %s75, 1
      %s77 = scalar_select %p74, %s75, %s76
      %p80 = pneg %p74
      %p81 = scmp.eq.s32.totalorder %s16, 22
      %p82 = por %p80, %p81
      %p83 = scmp.ne.s32.totalorder %s75, %s78
      %p84 = scmp.eq.s32.totalorder %s16, 0
      %p85 = por %p83, %p84
      %p86 = scmp.ne.s32.totalorder %s75, %s78
      %p87 = scmp.eq.s32.totalorder %s21, 22
      %p88 = por %p86, %p87
      %p89 = scmp.ne.s32.totalorder %s78, %s79
      %p90 = scmp.eq.s32.totalorder %s21, 0
      %p91 = por %p89, %p90
      %p92 = scmp.ne.s32.totalorder %s78, %s79
      %p93 = scmp.eq.s32.totalorder %s22, 22
      %p94 = por %p92, %p93
      %p96 = scmp.ne.s32.totalorder %s79, %s95
      %p97 = scmp.eq.s32.totalorder %s22, 0
      %p98 = por %p96, %p97
      %s99 = ssub.s32 %s24, %s38
      %p100 = scmp.eq.s32.totalorder %s99, 0
      %s102 = sadd.s32 %s101, 1
      %s103 = scalar_select %p100, %s101, %s102
      %p106 = pneg %p100
      %p107 = scmp.eq.s32.totalorder %s16, 22
      %p108 = por %p106, %p107
      %p109 = scmp.ne.s32.totalorder %s101, %s104
      %p110 = scmp.eq.s32.totalorder %s16, 0
      %p111 = por %p109, %p110
      %p112 = scmp.ne.s32.totalorder %s101, %s104
      %p113 = scmp.eq.s32.totalorder %s21, 22
      %p114 = por %p112, %p113
      %p115 = scmp.ne.s32.totalorder %s104, %s105
      %p116 = scmp.eq.s32.totalorder %s21, 0
      %p117 = por %p115, %p116
      %p118 = scmp.ne.s32.totalorder %s104, %s105
      %p119 = scmp.eq.s32.totalorder %s22, 22
      %p120 = por %p118, %p119
      %p122 = scmp.ne.s32.totalorder %s105, %s121
      %p123 = scmp.eq.s32.totalorder %s22, 0
      %p124 = por %p122, %p123
      %s125 = ssub.s32 %s23, %s42
      %s126 = ssub.s32 %s24, %s38
      %s127 = sor.u32 %s125, %s126
      %p128 = scmp.eq.s32.totalorder %s127, 0
      %s130 = sadd.s32 %s129, 1
      %s131 = scalar_select %p128, %s129, %s130
      %p134 = pneg %p128
      %p135 = scmp.eq.s32.totalorder %s16, 22
      %p136 = por %p134, %p135
      %p137 = scmp.ne.s32.totalorder %s129, %s132
      %p138 = scmp.eq.s32.totalorder %s16, 0
      %p139 = por %p137, %p138
      %p140 = scmp.ne.s32.totalorder %s129, %s132
      %p141 = scmp.eq.s32.totalorder %s21, 22
      %p142 = por %p140, %p141
      %p143 = scmp.ne.s32.totalorder %s132, %s133
      %p144 = scmp.eq.s32.totalorder %s21, 0
      %p145 = por %p143, %p144
      %p146 = scmp.ne.s32.totalorder %s132, %s133
      %p147 = scmp.eq.s32.totalorder %s22, 22
      %p148 = por %p146, %p147
      %p150 = scmp.ne.s32.totalorder %s133, %s149
      %p151 = scmp.eq.s32.totalorder %s22, 0
      %p152 = por %p150, %p151
      %p153 = scmp.le.s32.totalorder 1, %s16
      %p154 = scmp.lt.s32.totalorder %s16, 24
      %p155 = pnand %p153, %p154
      %p156 = pneg %p155
      // Predicated region
      $region9: #{tpu_custom_call.1} parent=5 // pred_check
        _
      $region10: #{tpu_custom_call.1} parent=5 // pred_check_branch
        %158 = sbr.rel (%p155) target = $region12
      $region11: #{tpu_custom_call.1} parent=5 // pred_region
        %s159 = ssub.s32 %s16, 1
        // Predicated region
        $region13: #{tpu_custom_call.1} parent=11 // pred_check
          %p160 = pneg %p91
        $region14: #{tpu_custom_call.1} parent=11 // pred_check_branch
          %162 = sbr.rel (%p160) target = $region16
        $region15: #{tpu_custom_call.1} parent=11 // pred_region
          %s163 = smul.u32 16, %s28
          %165 = vsyncadd [#allocation7], 0
          %s166 = sadd.s32 %s27, %s163
          %s167 = smul.addr %s166, 4
          %s168 = scalar_lea.hbm %s1, %s167
          %s169 = sshll.u32 %s168, 4
          %s170 = int_to_ptr.hbm [resolvable:$true] %s169
          %s171 = sshll.u32 [#allocation6], 4
          %s172 = int_to_ptr.vmem [resolvable:$true] %s171
          %177 = dma.hbm_to_vmem [thread:$0]  %s170, 1024, %s172, [#allocation7], 64, 64, 4
        $region16: #{tpu_custom_call.1} parent=11 // pred_fallthru
          _
        // Predicated region
        $region17: #{tpu_custom_call.1} parent=11 // pred_check
          %p178 = pneg %p117
        $region18: #{tpu_custom_call.1} parent=11 // pred_check_branch
          %180 = sbr.rel (%p178) target = $region20
        $region19: #{tpu_custom_call.1} parent=11 // pred_region
          %182 = vsyncadd [#allocation7], 0
          %s183 = scalar_lea.hbm %s2, %s27
          %s185 = sshll.u32 %s183, 4
          %s186 = int_to_ptr.hbm [resolvable:$true] %s185
          %s187 = sshll.u32 [#allocation8], 4
          %s188 = int_to_ptr.vmem [resolvable:$true] %s187
          %190 = dma.hbm_to_vmem [thread:$0]  %s186, 16, %s188, [#allocation7]
        $region20: #{tpu_custom_call.1} parent=11 // pred_fallthru
          _
      $region12: #{tpu_custom_call.1} parent=5 // pred_fallthru
        _
      %p191 = scmp.lt.s32.totalorder %s16, 23
      // Predicated region
      $region21: #{tpu_custom_call.1} parent=5 // pred_check
        %p192 = pneg %p191
      $region22: #{tpu_custom_call.1} parent=5 // pred_check_branch
        %194 = sbr.rel (%p192) target = $region24
      $region23: #{tpu_custom_call.1} parent=5 // pred_region
        // Predicated region
        $region25: #{tpu_custom_call.1} parent=23 // pred_check
          %p195 = pneg %p57
        $region26: #{tpu_custom_call.1} parent=23 // pred_check_branch
          %197 = sbr.rel (%p195) target = $region28
        $region27: #{tpu_custom_call.1} parent=23 // pred_region
          %s198 = sand.u32 %s47, 1
          %s199 = scalar_lea.sflag [#allocation4], %s198
          %s200 = sand.u32 %s47, 1
          %s201 = smul.addr %s200, 2048
          %s202 = scalar_lea.vmem [#allocation3], %s201
          %s203 = smul.u32 512, %s23
          %205 = vsyncadd %s199, 0
          %s206 = sadd.s32 %s25, %s203
          %s207 = smul.addr %s206, 4
          %s208 = scalar_lea.hbm %s0, %s207
          %s209 = sshll.u32 %s208, 4
          %s210 = int_to_ptr.hbm [resolvable:$true] %s209
          %s211 = sshll.u32 %s202, 4
          %s212 = int_to_ptr.vmem [resolvable:$true] %s211
          %217 = dma.hbm_to_vmem [thread:$0]  %s210, 32768, %s212, %s199, 64, 64, 4
        $region28: #{tpu_custom_call.1} parent=23 // pred_fallthru
          _
      $region24: #{tpu_custom_call.1} parent=5 // pred_fallthru
        _
      %p218 = scmp.le.s32.totalorder 1, %s16
      %p219 = scmp.lt.s32.totalorder %s16, 24
      %p220 = pnand %p218, %p219
      %p221 = pneg %p220
      // Predicated region
      $region29: #{tpu_custom_call.1} parent=5 // pred_check
        _
      $region30: #{tpu_custom_call.1} parent=5 // pred_check_branch
        %223 = sbr.rel (%p220) target = $region32
      $region31: #{tpu_custom_call.1} parent=5 // pred_region
        %s224 = ssub.s32 %s16, 1
        %s225 = sand.u32 %s50, 1
        %s226 = scalar_lea.sflag [#allocation4], %s225
        %s227 = sand.u32 %s50, 1
        %s228 = smul.addr %s227, 2048
        %s229 = scalar_lea.vmem [#allocation3], %s228
        // Predicated region
        $region33: #{tpu_custom_call.1} parent=31 // pred_check
          %p230 = pneg %p63
        $region34: #{tpu_custom_call.1} parent=31 // pred_check_branch
          %232 = sbr.rel (%p230) target = $region36
        $region35: #{tpu_custom_call.1} parent=31 // pred_region
          %234 = dma.done %s226, 32768
        $region36: #{tpu_custom_call.1} parent=31 // pred_fallthru
          _
        // Predicated region
        $region37: #{tpu_custom_call.1} parent=31 // pred_check
          %p235 = pneg %p91
        $region38: #{tpu_custom_call.1} parent=31 // pred_check_branch
          %237 = sbr.rel (%p235) target = $region40
        $region39: #{tpu_custom_call.1} parent=31 // pred_region
          %239 = dma.done [#allocation7], 1024
        $region40: #{tpu_custom_call.1} parent=31 // pred_fallthru
          _
        // Predicated region
        $region41: #{tpu_custom_call.1} parent=31 // pred_check
          %p240 = pneg %p117
        $region42: #{tpu_custom_call.1} parent=31 // pred_check_branch
          %242 = sbr.rel (%p240) target = $region44
        $region43: #{tpu_custom_call.1} parent=31 // pred_region
          %244 = dma.done [#allocation7], 16
        $region44: #{tpu_custom_call.1} parent=31 // pred_fallthru
          _
        %s245 = sand.u32 %s50, 1
        %s246 = scalar_lea.sflag [#allocation4], %s245
        %s247 = sand.u32 %s50, 1
        %s248 = smul.addr %s247, 2048
        %s249 = scalar_lea.vmem [#allocation3], %s248
        %p250 = pneg %p63
        %p251 = pneg %p60
        %p252 = pneg %p91
        %p253 = pneg %p88
        %p254 = pneg %p117
        %p255 = pneg %p114
        %p256 = pneg %p145
        %p257 = pneg %p142
        %s258 = sand.u32 %s132, 1
        %s259 = scalar_lea.sflag [#allocation5], %s258
        %s260 = sand.u32 %s132, 1
        %s261 = smul.addr %s260, 2048
        %s262 = scalar_lea.vmem [#allocation9], %s261
        %s263 = smul.u32 512, %s26
        %s264 = smul.u32 16, %s28
        %s265 = smul.u32 512, %s26
        %p266 = scmp.eq.s32.totalorder %s28, 0
        // Predicated region
        $region45: #{tpu_custom_call.1} parent=31 // pred_check
          %p267 = pneg %p266
        $region46: #{tpu_custom_call.1} parent=31 // pred_check_branch
          %269 = sbr.rel (%p267) target = $region48
        $region47: #{tpu_custom_call.1} parent=31 // pred_region
          %270 = vst [vmem:[#allocation2] sm:$0xff] 0.0
          %271 = vst [vmem:[#allocation2 + $0x8] sm:$0xff] 0.0
          %272 = vst [vmem:[#allocation2 + $0x10] sm:$0xff] 0.0
          %273 = vst [vmem:[#allocation2 + $0x18] sm:$0xff] 0.0
          %274 = vst [vmem:[#allocation2 + $0x20] sm:$0xff] 0.0
          %275 = vst [vmem:[#allocation2 + $0x28] sm:$0xff] 0.0
          %276 = vst [vmem:[#allocation2 + $0x30] sm:$0xff] 0.0
          %277 = vst [vmem:[#allocation2 + $0x38] sm:$0xff] 0.0
          %278 = vst [vmem:[#allocation2 + $0x40] sm:$0xff] 0.0
          %279 = vst [vmem:[#allocation2 + $0x48] sm:$0xff] 0.0
          %280 = vst [vmem:[#allocation2 + $0x50] sm:$0xff] 0.0
          %281 = vst [vmem:[#allocation2 + $0x58] sm:$0xff] 0.0
          %282 = vst [vmem:[#allocation2 + $0x60] sm:$0xff] 0.0
          %283 = vst [vmem:[#allocation2 + $0x68] sm:$0xff] 0.0
          %284 = vst [vmem:[#allocation2 + $0x70] sm:$0xff] 0.0
          %285 = vst [vmem:[#allocation2 + $0x78] sm:$0xff] 0.0
          %286 = vst [vmem:[#allocation2 + $0x80] sm:$0xff] 0.0
          %287 = vst [vmem:[#allocation2 + $0x88] sm:$0xff] 0.0
          %288 = vst [vmem:[#allocation2 + $0x90] sm:$0xff] 0.0
          %289 = vst [vmem:[#allocation2 + $0x98] sm:$0xff] 0.0
          %290 = vst [vmem:[#allocation2 + $0xa0] sm:$0xff] 0.0
          %291 = vst [vmem:[#allocation2 + $0xa8] sm:$0xff] 0.0
          %292 = vst [vmem:[#allocation2 + $0xb0] sm:$0xff] 0.0
          %293 = vst [vmem:[#allocation2 + $0xb8] sm:$0xff] 0.0
          %294 = vst [vmem:[#allocation2 + $0xc0] sm:$0xff] 0.0
          %295 = vst [vmem:[#allocation2 + $0xc8] sm:$0xff] 0.0
          %296 = vst [vmem:[#allocation2 + $0xd0] sm:$0xff] 0.0
          %297 = vst [vmem:[#allocation2 + $0xd8] sm:$0xff] 0.0
          %298 = vst [vmem:[#allocation2 + $0xe0] sm:$0xff] 0.0
          %299 = vst [vmem:[#allocation2 + $0xe8] sm:$0xff] 0.0
          %300 = vst [vmem:[#allocation2 + $0xf0] sm:$0xff] 0.0
          %301 = vst [vmem:[#allocation2 + $0xf8] sm:$0xff] 0.0
          %302 = vst [vmem:[#allocation2 + $0x100] sm:$0xff] 0.0
          %303 = vst [vmem:[#allocation2 + $0x108] sm:$0xff] 0.0
          %304 = vst [vmem:[#allocation2 + $0x110] sm:$0xff] 0.0
          %305 = vst [vmem:[#allocation2 + $0x118] sm:$0xff] 0.0
          %306 = vst [vmem:[#allocation2 + $0x120] sm:$0xff] 0.0
          %307 = vst [vmem:[#allocation2 + $0x128] sm:$0xff] 0.0
          %308 = vst [vmem:[#allocation2 + $0x130] sm:$0xff] 0.0
          %309 = vst [vmem:[#allocation2 + $0x138] sm:$0xff] 0.0
          %310 = vst [vmem:[#allocation2 + $0x140] sm:$0xff] 0.0
          %311 = vst [vmem:[#allocation2 + $0x148] sm:$0xff] 0.0
          %312 = vst [vmem:[#allocation2 + $0x150] sm:$0xff] 0.0
          %313 = vst [vmem:[#allocation2 + $0x158] sm:$0xff] 0.0
          %314 = vst [vmem:[#allocation2 + $0x160] sm:$0xff] 0.0
          %315 = vst [vmem:[#allocation2 + $0x168] sm:$0xff] 0.0
          %316 = vst [vmem:[#allocation2 + $0x170] sm:$0xff] 0.0
          %317 = vst [vmem:[#allocation2 + $0x178] sm:$0xff] 0.0
          %318 = vst [vmem:[#allocation2 + $0x180] sm:$0xff] 0.0
          %319 = vst [vmem:[#allocation2 + $0x188] sm:$0xff] 0.0
          %320 = vst [vmem:[#allocation2 + $0x190] sm:$0xff] 0.0
          %321 = vst [vmem:[#allocation2 + $0x198] sm:$0xff] 0.0
          %322 = vst [vmem:[#allocation2 + $0x1a0] sm:$0xff] 0.0
          %323 = vst [vmem:[#allocation2 + $0x1a8] sm:$0xff] 0.0
          %324 = vst [vmem:[#allocation2 + $0x1b0] sm:$0xff] 0.0
          %325 = vst [vmem:[#allocation2 + $0x1b8] sm:$0xff] 0.0
          %326 = vst [vmem:[#allocation2 + $0x1c0] sm:$0xff] 0.0
          %327 = vst [vmem:[#allocation2 + $0x1c8] sm:$0xff] 0.0
          %328 = vst [vmem:[#allocation2 + $0x1d0] sm:$0xff] 0.0
          %329 = vst [vmem:[#allocation2 + $0x1d8] sm:$0xff] 0.0
          %330 = vst [vmem:[#allocation2 + $0x1e0] sm:$0xff] 0.0
          %331 = vst [vmem:[#allocation2 + $0x1e8] sm:$0xff] 0.0
          %332 = vst [vmem:[#allocation2 + $0x1f0] sm:$0xff] 0.0
          %333 = vst [vmem:[#allocation2 + $0x1f8] sm:$0xff] 0.0
          %334 = vst [vmem:[#allocation2 + $0x200] sm:$0xff] 0.0
          %335 = vst [vmem:[#allocation2 + $0x208] sm:$0xff] 0.0
          %336 = vst [vmem:[#allocation2 + $0x210] sm:$0xff] 0.0
          %337 = vst [vmem:[#allocation2 + $0x218] sm:$0xff] 0.0
          %338 = vst [vmem:[#allocation2 + $0x220] sm:$0xff] 0.0
          %339 = vst [vmem:[#allocation2 + $0x228] sm:$0xff] 0.0
          %340 = vst [vmem:[#allocation2 + $0x230] sm:$0xff] 0.0
          %341 = vst [vmem:[#allocation2 + $0x238] sm:$0xff] 0.0
          %342 = vst [vmem:[#allocation2 + $0x240] sm:$0xff] 0.0
          %343 = vst [vmem:[#allocation2 + $0x248] sm:$0xff] 0.0
          %344 = vst [vmem:[#allocation2 + $0x250] sm:$0xff] 0.0
          %345 = vst [vmem:[#allocation2 + $0x258] sm:$0xff] 0.0
          %346 = vst [vmem:[#allocation2 + $0x260] sm:$0xff] 0.0
          %347 = vst [vmem:[#allocation2 + $0x268] sm:$0xff] 0.0
          %348 = vst [vmem:[#allocation2 + $0x270] sm:$0xff] 0.0
          %349 = vst [vmem:[#allocation2 + $0x278] sm:$0xff] 0.0
          %350 = vst [vmem:[#allocation2 + $0x280] sm:$0xff] 0.0
          %351 = vst [vmem:[#allocation2 + $0x288] sm:$0xff] 0.0
          %352 = vst [vmem:[#allocation2 + $0x290] sm:$0xff] 0.0
          %353 = vst [vmem:[#allocation2 + $0x298] sm:$0xff] 0.0
          %354 = vst [vmem:[#allocation2 + $0x2a0] sm:$0xff] 0.0
          %355 = vst [vmem:[#allocation2 + $0x2a8] sm:$0xff] 0.0
          %356 = vst [vmem:[#allocation2 + $0x2b0] sm:$0xff] 0.0
          %357 = vst [vmem:[#allocation2 + $0x2b8] sm:$0xff] 0.0
          %358 = vst [vmem:[#allocation2 + $0x2c0] sm:$0xff] 0.0
          %359 = vst [vmem:[#allocation2 + $0x2c8] sm:$0xff] 0.0
          %360 = vst [vmem:[#allocation2 + $0x2d0] sm:$0xff] 0.0
          %361 = vst [vmem:[#allocation2 + $0x2d8] sm:$0xff] 0.0
          %362 = vst [vmem:[#allocation2 + $0x2e0] sm:$0xff] 0.0
          %363 = vst [vmem:[#allocation2 + $0x2e8] sm:$0xff] 0.0
          %364 = vst [vmem:[#allocation2 + $0x2f0] sm:$0xff] 0.0
          %365 = vst [vmem:[#allocation2 + $0x2f8] sm:$0xff] 0.0
          %366 = vst [vmem:[#allocation2 + $0x300] sm:$0xff] 0.0
          %367 = vst [vmem:[#allocation2 + $0x308] sm:$0xff] 0.0
          %368 = vst [vmem:[#allocation2 + $0x310] sm:$0xff] 0.0
          %369 = vst [vmem:[#allocation2 + $0x318] sm:$0xff] 0.0
          %370 = vst [vmem:[#allocation2 + $0x320] sm:$0xff] 0.0
          %371 = vst [vmem:[#allocation2 + $0x328] sm:$0xff] 0.0
          %372 = vst [vmem:[#allocation2 + $0x330] sm:$0xff] 0.0
          %373 = vst [vmem:[#allocation2 + $0x338] sm:$0xff] 0.0
          %374 = vst [vmem:[#allocation2 + $0x340] sm:$0xff] 0.0
          %375 = vst [vmem:[#allocation2 + $0x348] sm:$0xff] 0.0
          %376 = vst [vmem:[#allocation2 + $0x350] sm:$0xff] 0.0
          %377 = vst [vmem:[#allocation2 + $0x358] sm:$0xff] 0.0
          %378 = vst [vmem:[#allocation2 + $0x360] sm:$0xff] 0.0
          %379 = vst [vmem:[#allocation2 + $0x368] sm:$0xff] 0.0
          %380 = vst [vmem:[#allocation2 + $0x370] sm:$0xff] 0.0
          %381 = vst [vmem:[#allocation2 + $0x378] sm:$0xff] 0.0
          %382 = vst [vmem:[#allocation2 + $0x380] sm:$0xff] 0.0
          %383 = vst [vmem:[#allocation2 + $0x388] sm:$0xff] 0.0
          %384 = vst [vmem:[#allocation2 + $0x390] sm:$0xff] 0.0
          %385 = vst [vmem:[#allocation2 + $0x398] sm:$0xff] 0.0
          %386 = vst [vmem:[#allocation2 + $0x3a0] sm:$0xff] 0.0
          %387 = vst [vmem:[#allocation2 + $0x3a8] sm:$0xff] 0.0
          %388 = vst [vmem:[#allocation2 + $0x3b0] sm:$0xff] 0.0
          %389 = vst [vmem:[#allocation2 + $0x3b8] sm:$0xff] 0.0
          %390 = vst [vmem:[#allocation2 + $0x3c0] sm:$0xff] 0.0
          %391 = vst [vmem:[#allocation2 + $0x3c8] sm:$0xff] 0.0
          %392 = vst [vmem:[#allocation2 + $0x3d0] sm:$0xff] 0.0
          %393 = vst [vmem:[#allocation2 + $0x3d8] sm:$0xff] 0.0
          %394 = vst [vmem:[#allocation2 + $0x3e0] sm:$0xff] 0.0
          %395 = vst [vmem:[#allocation2 + $0x3e8] sm:$0xff] 0.0
          %396 = vst [vmem:[#allocation2 + $0x3f0] sm:$0xff] 0.0
          %397 = vst [vmem:[#allocation2 + $0x3f8] sm:$0xff] 0.0
          %398 = vst [vmem:[#allocation2 + $0x400] sm:$0xff] 0.0
          %399 = vst [vmem:[#allocation2 + $0x408] sm:$0xff] 0.0
          %400 = vst [vmem:[#allocation2 + $0x410] sm:$0xff] 0.0
          %401 = vst [vmem:[#allocation2 + $0x418] sm:$0xff] 0.0
          %402 = vst [vmem:[#allocation2 + $0x420] sm:$0xff] 0.0
          %403 = vst [vmem:[#allocation2 + $0x428] sm:$0xff] 0.0
          %404 = vst [vmem:[#allocation2 + $0x430] sm:$0xff] 0.0
          %405 = vst [vmem:[#allocation2 + $0x438] sm:$0xff] 0.0
          %406 = vst [vmem:[#allocation2 + $0x440] sm:$0xff] 0.0
          %407 = vst [vmem:[#allocation2 + $0x448] sm:$0xff] 0.0
          %408 = vst [vmem:[#allocation2 + $0x450] sm:$0xff] 0.0
          %409 = vst [vmem:[#allocation2 + $0x458] sm:$0xff] 0.0
          %410 = vst [vmem:[#allocation2 + $0x460] sm:$0xff] 0.0
          %411 = vst [vmem:[#allocation2 + $0x468] sm:$0xff] 0.0
          %412 = vst [vmem:[#allocation2 + $0x470] sm:$0xff] 0.0
          %413 = vst [vmem:[#allocation2 + $0x478] sm:$0xff] 0.0
          %414 = vst [vmem:[#allocation2 + $0x480] sm:$0xff] 0.0
          %415 = vst [vmem:[#allocation2 + $0x488] sm:$0xff] 0.0
          %416 = vst [vmem:[#allocation2 + $0x490] sm:$0xff] 0.0
          %417 = vst [vmem:[#allocation2 + $0x498] sm:$0xff] 0.0
          %418 = vst [vmem:[#allocation2 + $0x4a0] sm:$0xff] 0.0
          %419 = vst [vmem:[#allocation2 + $0x4a8] sm:$0xff] 0.0
          %420 = vst [vmem:[#allocation2 + $0x4b0] sm:$0xff] 0.0
          %421 = vst [vmem:[#allocation2 + $0x4b8] sm:$0xff] 0.0
          %422 = vst [vmem:[#allocation2 + $0x4c0] sm:$0xff] 0.0
          %423 = vst [vmem:[#allocation2 + $0x4c8] sm:$0xff] 0.0
          %424 = vst [vmem:[#allocation2 + $0x4d0] sm:$0xff] 0.0
          %425 = vst [vmem:[#allocation2 + $0x4d8] sm:$0xff] 0.0
          %426 = vst [vmem:[#allocation2 + $0x4e0] sm:$0xff] 0.0
          %427 = vst [vmem:[#allocation2 + $0x4e8] sm:$0xff] 0.0
          %428 = vst [vmem:[#allocation2 + $0x4f0] sm:$0xff] 0.0
          %429 = vst [vmem:[#allocation2 + $0x4f8] sm:$0xff] 0.0
          %430 = vst [vmem:[#allocation2 + $0x500] sm:$0xff] 0.0
          %431 = vst [vmem:[#allocation2 + $0x508] sm:$0xff] 0.0
          %432 = vst [vmem:[#allocation2 + $0x510] sm:$0xff] 0.0
          %433 = vst [vmem:[#allocation2 + $0x518] sm:$0xff] 0.0
          %434 = vst [vmem:[#allocation2 + $0x520] sm:$0xff] 0.0
          %435 = vst [vmem:[#allocation2 + $0x528] sm:$0xff] 0.0
          %436 = vst [vmem:[#allocation2 + $0x530] sm:$0xff] 0.0
          %437 = vst [vmem:[#allocation2 + $0x538] sm:$0xff] 0.0
          %438 = vst [vmem:[#allocation2 + $0x540] sm:$0xff] 0.0
          %439 = vst [vmem:[#allocation2 + $0x548] sm:$0xff] 0.0
          %440 = vst [vmem:[#allocation2 + $0x550] sm:$0xff] 0.0
          %441 = vst [vmem:[#allocation2 + $0x558] sm:$0xff] 0.0
          %442 = vst [vmem:[#allocation2 + $0x560] sm:$0xff] 0.0
          %443 = vst [vmem:[#allocation2 + $0x568] sm:$0xff] 0.0
          %444 = vst [vmem:[#allocation2 + $0x570] sm:$0xff] 0.0
          %445 = vst [vmem:[#allocation2 + $0x578] sm:$0xff] 0.0
          %446 = vst [vmem:[#allocation2 + $0x580] sm:$0xff] 0.0
          %447 = vst [vmem:[#allocation2 + $0x588] sm:$0xff] 0.0
          %448 = vst [vmem:[#allocation2 + $0x590] sm:$0xff] 0.0
          %449 = vst [vmem:[#allocation2 + $0x598] sm:$0xff] 0.0
          %450 = vst [vmem:[#allocation2 + $0x5a0] sm:$0xff] 0.0
          %451 = vst [vmem:[#allocation2 + $0x5a8] sm:$0xff] 0.0
          %452 = vst [vmem:[#allocation2 + $0x5b0] sm:$0xff] 0.0
          %453 = vst [vmem:[#allocation2 + $0x5b8] sm:$0xff] 0.0
          %454 = vst [vmem:[#allocation2 + $0x5c0] sm:$0xff] 0.0
          %455 = vst [vmem:[#allocation2 + $0x5c8] sm:$0xff] 0.0
          %456 = vst [vmem:[#allocation2 + $0x5d0] sm:$0xff] 0.0
          %457 = vst [vmem:[#allocation2 + $0x5d8] sm:$0xff] 0.0
          %458 = vst [vmem:[#allocation2 + $0x5e0] sm:$0xff] 0.0
          %459 = vst [vmem:[#allocation2 + $0x5e8] sm:$0xff] 0.0
          %460 = vst [vmem:[#allocation2 + $0x5f0] sm:$0xff] 0.0
          %461 = vst [vmem:[#allocation2 + $0x5f8] sm:$0xff] 0.0
          %462 = vst [vmem:[#allocation2 + $0x600] sm:$0xff] 0.0
          %463 = vst [vmem:[#allocation2 + $0x608] sm:$0xff] 0.0
          %464 = vst [vmem:[#allocation2 + $0x610] sm:$0xff] 0.0
          %465 = vst [vmem:[#allocation2 + $0x618] sm:$0xff] 0.0
          %466 = vst [vmem:[#allocation2 + $0x620] sm:$0xff] 0.0
          %467 = vst [vmem:[#allocation2 + $0x628] sm:$0xff] 0.0
          %468 = vst [vmem:[#allocation2 + $0x630] sm:$0xff] 0.0
          %469 = vst [vmem:[#allocation2 + $0x638] sm:$0xff] 0.0
          %470 = vst [vmem:[#allocation2 + $0x640] sm:$0xff] 0.0
          %471 = vst [vmem:[#allocation2 + $0x648] sm:$0xff] 0.0
          %472 = vst [vmem:[#allocation2 + $0x650] sm:$0xff] 0.0
          %473 = vst [vmem:[#allocation2 + $0x658] sm:$0xff] 0.0
          %474 = vst [vmem:[#allocation2 + $0x660] sm:$0xff] 0.0
          %475 = vst [vmem:[#allocation2 + $0x668] sm:$0xff] 0.0
          %476 = vst [vmem:[#allocation2 + $0x670] sm:$0xff] 0.0
          %477 = vst [vmem:[#allocation2 + $0x678] sm:$0xff] 0.0
          %478 = vst [vmem:[#allocation2 + $0x680] sm:$0xff] 0.0
          %479 = vst [vmem:[#allocation2 + $0x688] sm:$0xff] 0.0
          %480 = vst [vmem:[#allocation2 + $0x690] sm:$0xff] 0.0
          %481 = vst [vmem:[#allocation2 + $0x698] sm:$0xff] 0.0
          %482 = vst [vmem:[#allocation2 + $0x6a0] sm:$0xff] 0.0
          %483 = vst [vmem:[#allocation2 + $0x6a8] sm:$0xff] 0.0
          %484 = vst [vmem:[#allocation2 + $0x6b0] sm:$0xff] 0.0
          %485 = vst [vmem:[#allocation2 + $0x6b8] sm:$0xff] 0.0
          %486 = vst [vmem:[#allocation2 + $0x6c0] sm:$0xff] 0.0
          %487 = vst [vmem:[#allocation2 + $0x6c8] sm:$0xff] 0.0
          %488 = vst [vmem:[#allocation2 + $0x6d0] sm:$0xff] 0.0
          %489 = vst [vmem:[#allocation2 + $0x6d8] sm:$0xff] 0.0
          %490 = vst [vmem:[#allocation2 + $0x6e0] sm:$0xff] 0.0
          %491 = vst [vmem:[#allocation2 + $0x6e8] sm:$0xff] 0.0
          %492 = vst [vmem:[#allocation2 + $0x6f0] sm:$0xff] 0.0
          %493 = vst [vmem:[#allocation2 + $0x6f8] sm:$0xff] 0.0
          %494 = vst [vmem:[#allocation2 + $0x700] sm:$0xff] 0.0
          %495 = vst [vmem:[#allocation2 + $0x708] sm:$0xff] 0.0
          %496 = vst [vmem:[#allocation2 + $0x710] sm:$0xff] 0.0
          %497 = vst [vmem:[#allocation2 + $0x718] sm:$0xff] 0.0
          %498 = vst [vmem:[#allocation2 + $0x720] sm:$0xff] 0.0
          %499 = vst [vmem:[#allocation2 + $0x728] sm:$0xff] 0.0
          %500 = vst [vmem:[#allocation2 + $0x730] sm:$0xff] 0.0
          %501 = vst [vmem:[#allocation2 + $0x738] sm:$0xff] 0.0
          %502 = vst [vmem:[#allocation2 + $0x740] sm:$0xff] 0.0
          %503 = vst [vmem:[#allocation2 + $0x748] sm:$0xff] 0.0
          %504 = vst [vmem:[#allocation2 + $0x750] sm:$0xff] 0.0
          %505 = vst [vmem:[#allocation2 + $0x758] sm:$0xff] 0.0
          %506 = vst [vmem:[#allocation2 + $0x760] sm:$0xff] 0.0
          %507 = vst [vmem:[#allocation2 + $0x768] sm:$0xff] 0.0
          %508 = vst [vmem:[#allocation2 + $0x770] sm:$0xff] 0.0
          %509 = vst [vmem:[#allocation2 + $0x778] sm:$0xff] 0.0
          %510 = vst [vmem:[#allocation2 + $0x780] sm:$0xff] 0.0
          %511 = vst [vmem:[#allocation2 + $0x788] sm:$0xff] 0.0
          %512 = vst [vmem:[#allocation2 + $0x790] sm:$0xff] 0.0
          %513 = vst [vmem:[#allocation2 + $0x798] sm:$0xff] 0.0
          %514 = vst [vmem:[#allocation2 + $0x7a0] sm:$0xff] 0.0
          %515 = vst [vmem:[#allocation2 + $0x7a8] sm:$0xff] 0.0
          %516 = vst [vmem:[#allocation2 + $0x7b0] sm:$0xff] 0.0
          %517 = vst [vmem:[#allocation2 + $0x7b8] sm:$0xff] 0.0
          %518 = vst [vmem:[#allocation2 + $0x7c0] sm:$0xff] 0.0
          %519 = vst [vmem:[#allocation2 + $0x7c8] sm:$0xff] 0.0
          %520 = vst [vmem:[#allocation2 + $0x7d0] sm:$0xff] 0.0
          %521 = vst [vmem:[#allocation2 + $0x7d8] sm:$0xff] 0.0
          %522 = vst [vmem:[#allocation2 + $0x7e0] sm:$0xff] 0.0
          %523 = vst [vmem:[#allocation2 + $0x7e8] sm:$0xff] 0.0
          %524 = vst [vmem:[#allocation2 + $0x7f0] sm:$0xff] 0.0
          %525 = vst [vmem:[#allocation2 + $0x7f8] sm:$0xff] 0.0
          %526 = vst [vmem:[#allocation2 + $0x800] sm:$0xff] 0.0
          %527 = vst [vmem:[#allocation2 + $0x808] sm:$0xff] 0.0
          %528 = vst [vmem:[#allocation2 + $0x810] sm:$0xff] 0.0
          %529 = vst [vmem:[#allocation2 + $0x818] sm:$0xff] 0.0
          %530 = vst [vmem:[#allocation2 + $0x820] sm:$0xff] 0.0
          %531 = vst [vmem:[#allocation2 + $0x828] sm:$0xff] 0.0
          %532 = vst [vmem:[#allocation2 + $0x830] sm:$0xff] 0.0
          %533 = vst [vmem:[#allocation2 + $0x838] sm:$0xff] 0.0
          %534 = vst [vmem:[#allocation2 + $0x840] sm:$0xff] 0.0
          %535 = vst [vmem:[#allocation2 + $0x848] sm:$0xff] 0.0
          %536 = vst [vmem:[#allocation2 + $0x850] sm:$0xff] 0.0
          %537 = vst [vmem:[#allocation2 + $0x858] sm:$0xff] 0.0
          %538 = vst [vmem:[#allocation2 + $0x860] sm:$0xff] 0.0
          %539 = vst [vmem:[#allocation2 + $0x868] sm:$0xff] 0.0
          %540 = vst [vmem:[#allocation2 + $0x870] sm:$0xff] 0.0
          %541 = vst [vmem:[#allocation2 + $0x878] sm:$0xff] 0.0
          %542 = vst [vmem:[#allocation2 + $0x880] sm:$0xff] 0.0
          %543 = vst [vmem:[#allocation2 + $0x888] sm:$0xff] 0.0
          %544 = vst [vmem:[#allocation2 + $0x890] sm:$0xff] 0.0
          %545 = vst [vmem:[#allocation2 + $0x898] sm:$0xff] 0.0
          %546 = vst [vmem:[#allocation2 + $0x8a0] sm:$0xff] 0.0
          %547 = vst [vmem:[#allocation2 + $0x8a8] sm:$0xff] 0.0
          %548 = vst [vmem:[#allocation2 + $0x8b0] sm:$0xff] 0.0
          %549 = vst [vmem:[#allocation2 + $0x8b8] sm:$0xff] 0.0
          %550 = vst [vmem:[#allocation2 + $0x8c0] sm:$0xff] 0.0
          %551 = vst [vmem:[#allocation2 + $0x8c8] sm:$0xff] 0.0
          %552 = vst [vmem:[#allocation2 + $0x8d0] sm:$0xff] 0.0
          %553 = vst [vmem:[#allocation2 + $0x8d8] sm:$0xff] 0.0
          %554 = vst [vmem:[#allocation2 + $0x8e0] sm:$0xff] 0.0
          %555 = vst [vmem:[#allocation2 + $0x8e8] sm:$0xff] 0.0
          %556 = vst [vmem:[#allocation2 + $0x8f0] sm:$0xff] 0.0
          %557 = vst [vmem:[#allocation2 + $0x8f8] sm:$0xff] 0.0
          %558 = vst [vmem:[#allocation2 + $0x900] sm:$0xff] 0.0
          %559 = vst [vmem:[#allocation2 + $0x908] sm:$0xff] 0.0
          %560 = vst [vmem:[#allocation2 + $0x910] sm:$0xff] 0.0
          %561 = vst [vmem:[#allocation2 + $0x918] sm:$0xff] 0.0
          %562 = vst [vmem:[#allocation2 + $0x920] sm:$0xff] 0.0
          %563 = vst [vmem:[#allocation2 + $0x928] sm:$0xff] 0.0
          %564 = vst [vmem:[#allocation2 + $0x930] sm:$0xff] 0.0
          %565 = vst [vmem:[#allocation2 + $0x938] sm:$0xff] 0.0
          %566 = vst [vmem:[#allocation2 + $0x940] sm:$0xff] 0.0
          %567 = vst [vmem:[#allocation2 + $0x948] sm:$0xff] 0.0
          %568 = vst [vmem:[#allocation2 + $0x950] sm:$0xff] 0.0
          %569 = vst [vmem:[#allocation2 + $0x958] sm:$0xff] 0.0
          %570 = vst [vmem:[#allocation2 + $0x960] sm:$0xff] 0.0
          %571 = vst [vmem:[#allocation2 + $0x968] sm:$0xff] 0.0
          %572 = vst [vmem:[#allocation2 + $0x970] sm:$0xff] 0.0
          %573 = vst [vmem:[#allocation2 + $0x978] sm:$0xff] 0.0
          %574 = vst [vmem:[#allocation2 + $0x980] sm:$0xff] 0.0
          %575 = vst [vmem:[#allocation2 + $0x988] sm:$0xff] 0.0
          %576 = vst [vmem:[#allocation2 + $0x990] sm:$0xff] 0.0
          %577 = vst [vmem:[#allocation2 + $0x998] sm:$0xff] 0.0
          %578 = vst [vmem:[#allocation2 + $0x9a0] sm:$0xff] 0.0
          %579 = vst [vmem:[#allocation2 + $0x9a8] sm:$0xff] 0.0
          %580 = vst [vmem:[#allocation2 + $0x9b0] sm:$0xff] 0.0
          %581 = vst [vmem:[#allocation2 + $0x9b8] sm:$0xff] 0.0
          %582 = vst [vmem:[#allocation2 + $0x9c0] sm:$0xff] 0.0
          %583 = vst [vmem:[#allocation2 + $0x9c8] sm:$0xff] 0.0
          %584 = vst [vmem:[#allocation2 + $0x9d0] sm:$0xff] 0.0
          %585 = vst [vmem:[#allocation2 + $0x9d8] sm:$0xff] 0.0
          %586 = vst [vmem:[#allocation2 + $0x9e0] sm:$0xff] 0.0
          %587 = vst [vmem:[#allocation2 + $0x9e8] sm:$0xff] 0.0
          %588 = vst [vmem:[#allocation2 + $0x9f0] sm:$0xff] 0.0
          %589 = vst [vmem:[#allocation2 + $0x9f8] sm:$0xff] 0.0
          %590 = vst [vmem:[#allocation2 + $0xa00] sm:$0xff] 0.0
          %591 = vst [vmem:[#allocation2 + $0xa08] sm:$0xff] 0.0
          %592 = vst [vmem:[#allocation2 + $0xa10] sm:$0xff] 0.0
          %593 = vst [vmem:[#allocation2 + $0xa18] sm:$0xff] 0.0
          %594 = vst [vmem:[#allocation2 + $0xa20] sm:$0xff] 0.0
          %595 = vst [vmem:[#allocation2 + $0xa28] sm:$0xff] 0.0
          %596 = vst [vmem:[#allocation2 + $0xa30] sm:$0xff] 0.0
          %597 = vst [vmem:[#allocation2 + $0xa38] sm:$0xff] 0.0
          %598 = vst [vmem:[#allocation2 + $0xa40] sm:$0xff] 0.0
          %599 = vst [vmem:[#allocation2 + $0xa48] sm:$0xff] 0.0
          %600 = vst [vmem:[#allocation2 + $0xa50] sm:$0xff] 0.0
          %601 = vst [vmem:[#allocation2 + $0xa58] sm:$0xff] 0.0
          %602 = vst [vmem:[#allocation2 + $0xa60] sm:$0xff] 0.0
          %603 = vst [vmem:[#allocation2 + $0xa68] sm:$0xff] 0.0
          %604 = vst [vmem:[#allocation2 + $0xa70] sm:$0xff] 0.0
          %605 = vst [vmem:[#allocation2 + $0xa78] sm:$0xff] 0.0
          %606 = vst [vmem:[#allocation2 + $0xa80] sm:$0xff] 0.0
          %607 = vst [vmem:[#allocation2 + $0xa88] sm:$0xff] 0.0
          %608 = vst [vmem:[#allocation2 + $0xa90] sm:$0xff] 0.0
          %609 = vst [vmem:[#allocation2 + $0xa98] sm:$0xff] 0.0
          %610 = vst [vmem:[#allocation2 + $0xaa0] sm:$0xff] 0.0
          %611 = vst [vmem:[#allocation2 + $0xaa8] sm:$0xff] 0.0
          %612 = vst [vmem:[#allocation2 + $0xab0] sm:$0xff] 0.0
          %613 = vst [vmem:[#allocation2 + $0xab8] sm:$0xff] 0.0
          %614 = vst [vmem:[#allocation2 + $0xac0] sm:$0xff] 0.0
          %615 = vst [vmem:[#allocation2 + $0xac8] sm:$0xff] 0.0
          %616 = vst [vmem:[#allocation2 + $0xad0] sm:$0xff] 0.0
          %617 = vst [vmem:[#allocation2 + $0xad8] sm:$0xff] 0.0
          %618 = vst [vmem:[#allocation2 + $0xae0] sm:$0xff] 0.0
          %619 = vst [vmem:[#allocation2 + $0xae8] sm:$0xff] 0.0
          %620 = vst [vmem:[#allocation2 + $0xaf0] sm:$0xff] 0.0
          %621 = vst [vmem:[#allocation2 + $0xaf8] sm:$0xff] 0.0
          %622 = vst [vmem:[#allocation2 + $0xb00] sm:$0xff] 0.0
          %623 = vst [vmem:[#allocation2 + $0xb08] sm:$0xff] 0.0
          %624 = vst [vmem:[#allocation2 + $0xb10] sm:$0xff] 0.0
          %625 = vst [vmem:[#allocation2 + $0xb18] sm:$0xff] 0.0
          %626 = vst [vmem:[#allocation2 + $0xb20] sm:$0xff] 0.0
          %627 = vst [vmem:[#allocation2 + $0xb28] sm:$0xff] 0.0
          %628 = vst [vmem:[#allocation2 + $0xb30] sm:$0xff] 0.0
          %629 = vst [vmem:[#allocation2 + $0xb38] sm:$0xff] 0.0
          %630 = vst [vmem:[#allocation2 + $0xb40] sm:$0xff] 0.0
          %631 = vst [vmem:[#allocation2 + $0xb48] sm:$0xff] 0.0
          %632 = vst [vmem:[#allocation2 + $0xb50] sm:$0xff] 0.0
          %633 = vst [vmem:[#allocation2 + $0xb58] sm:$0xff] 0.0
          %634 = vst [vmem:[#allocation2 + $0xb60] sm:$0xff] 0.0
          %635 = vst [vmem:[#allocation2 + $0xb68] sm:$0xff] 0.0
          %636 = vst [vmem:[#allocation2 + $0xb70] sm:$0xff] 0.0
          %637 = vst [vmem:[#allocation2 + $0xb78] sm:$0xff] 0.0
          %638 = vst [vmem:[#allocation2 + $0xb80] sm:$0xff] 0.0
          %639 = vst [vmem:[#allocation2 + $0xb88] sm:$0xff] 0.0
          %640 = vst [vmem:[#allocation2 + $0xb90] sm:$0xff] 0.0
          %641 = vst [vmem:[#allocation2 + $0xb98] sm:$0xff] 0.0
          %642 = vst [vmem:[#allocation2 + $0xba0] sm:$0xff] 0.0
          %643 = vst [vmem:[#allocation2 + $0xba8] sm:$0xff] 0.0
          %644 = vst [vmem:[#allocation2 + $0xbb0] sm:$0xff] 0.0
          %645 = vst [vmem:[#allocation2 + $0xbb8] sm:$0xff] 0.0
          %646 = vst [vmem:[#allocation2 + $0xbc0] sm:$0xff] 0.0
          %647 = vst [vmem:[#allocation2 + $0xbc8] sm:$0xff] 0.0
          %648 = vst [vmem:[#allocation2 + $0xbd0] sm:$0xff] 0.0
          %649 = vst [vmem:[#allocation2 + $0xbd8] sm:$0xff] 0.0
          %650 = vst [vmem:[#allocation2 + $0xbe0] sm:$0xff] 0.0
          %651 = vst [vmem:[#allocation2 + $0xbe8] sm:$0xff] 0.0
          %652 = vst [vmem:[#allocation2 + $0xbf0] sm:$0xff] 0.0
          %653 = vst [vmem:[#allocation2 + $0xbf8] sm:$0xff] 0.0
          %654 = vst [vmem:[#allocation2 + $0xc00] sm:$0xff] 0.0
          %655 = vst [vmem:[#allocation2 + $0xc08] sm:$0xff] 0.0
          %656 = vst [vmem:[#allocation2 + $0xc10] sm:$0xff] 0.0
          %657 = vst [vmem:[#allocation2 + $0xc18] sm:$0xff] 0.0
          %658 = vst [vmem:[#allocation2 + $0xc20] sm:$0xff] 0.0
          %659 = vst [vmem:[#allocation2 + $0xc28] sm:$0xff] 0.0
          %660 = vst [vmem:[#allocation2 + $0xc30] sm:$0xff] 0.0
          %661 = vst [vmem:[#allocation2 + $0xc38] sm:$0xff] 0.0
          %662 = vst [vmem:[#allocation2 + $0xc40] sm:$0xff] 0.0
          %663 = vst [vmem:[#allocation2 + $0xc48] sm:$0xff] 0.0
          %664 = vst [vmem:[#allocation2 + $0xc50] sm:$0xff] 0.0
          %665 = vst [vmem:[#allocation2 + $0xc58] sm:$0xff] 0.0
          %666 = vst [vmem:[#allocation2 + $0xc60] sm:$0xff] 0.0
          %667 = vst [vmem:[#allocation2 + $0xc68] sm:$0xff] 0.0
          %668 = vst [vmem:[#allocation2 + $0xc70] sm:$0xff] 0.0
          %669 = vst [vmem:[#allocation2 + $0xc78] sm:$0xff] 0.0
          %670 = vst [vmem:[#allocation2 + $0xc80] sm:$0xff] 0.0
          %671 = vst [vmem:[#allocation2 + $0xc88] sm:$0xff] 0.0
          %672 = vst [vmem:[#allocation2 + $0xc90] sm:$0xff] 0.0
          %673 = vst [vmem:[#allocation2 + $0xc98] sm:$0xff] 0.0
          %674 = vst [vmem:[#allocation2 + $0xca0] sm:$0xff] 0.0
          %675 = vst [vmem:[#allocation2 + $0xca8] sm:$0xff] 0.0
          %676 = vst [vmem:[#allocation2 + $0xcb0] sm:$0xff] 0.0
          %677 = vst [vmem:[#allocation2 + $0xcb8] sm:$0xff] 0.0
          %678 = vst [vmem:[#allocation2 + $0xcc0] sm:$0xff] 0.0
          %679 = vst [vmem:[#allocation2 + $0xcc8] sm:$0xff] 0.0
          %680 = vst [vmem:[#allocation2 + $0xcd0] sm:$0xff] 0.0
          %681 = vst [vmem:[#allocation2 + $0xcd8] sm:$0xff] 0.0
          %682 = vst [vmem:[#allocation2 + $0xce0] sm:$0xff] 0.0
          %683 = vst [vmem:[#allocation2 + $0xce8] sm:$0xff] 0.0
          %684 = vst [vmem:[#allocation2 + $0xcf0] sm:$0xff] 0.0
          %685 = vst [vmem:[#allocation2 + $0xcf8] sm:$0xff] 0.0
          %686 = vst [vmem:[#allocation2 + $0xd00] sm:$0xff] 0.0
          %687 = vst [vmem:[#allocation2 + $0xd08] sm:$0xff] 0.0
          %688 = vst [vmem:[#allocation2 + $0xd10] sm:$0xff] 0.0
          %689 = vst [vmem:[#allocation2 + $0xd18] sm:$0xff] 0.0
          %690 = vst [vmem:[#allocation2 + $0xd20] sm:$0xff] 0.0
          %691 = vst [vmem:[#allocation2 + $0xd28] sm:$0xff] 0.0
          %692 = vst [vmem:[#allocation2 + $0xd30] sm:$0xff] 0.0
          %693 = vst [vmem:[#allocation2 + $0xd38] sm:$0xff] 0.0
          %694 = vst [vmem:[#allocation2 + $0xd40] sm:$0xff] 0.0
          %695 = vst [vmem:[#allocation2 + $0xd48] sm:$0xff] 0.0
          %696 = vst [vmem:[#allocation2 + $0xd50] sm:$0xff] 0.0
          %697 = vst [vmem:[#allocation2 + $0xd58] sm:$0xff] 0.0
          %698 = vst [vmem:[#allocation2 + $0xd60] sm:$0xff] 0.0
          %699 = vst [vmem:[#allocation2 + $0xd68] sm:$0xff] 0.0
          %700 = vst [vmem:[#allocation2 + $0xd70] sm:$0xff] 0.0
          %701 = vst [vmem:[#allocation2 + $0xd78] sm:$0xff] 0.0
          %702 = vst [vmem:[#allocation2 + $0xd80] sm:$0xff] 0.0
          %703 = vst [vmem:[#allocation2 + $0xd88] sm:$0xff] 0.0
          %704 = vst [vmem:[#allocation2 + $0xd90] sm:$0xff] 0.0
          %705 = vst [vmem:[#allocation2 + $0xd98] sm:$0xff] 0.0
          %706 = vst [vmem:[#allocation2 + $0xda0] sm:$0xff] 0.0
          %707 = vst [vmem:[#allocation2 + $0xda8] sm:$0xff] 0.0
          %708 = vst [vmem:[#allocation2 + $0xdb0] sm:$0xff] 0.0
          %709 = vst [vmem:[#allocation2 + $0xdb8] sm:$0xff] 0.0
          %710 = vst [vmem:[#allocation2 + $0xdc0] sm:$0xff] 0.0
          %711 = vst [vmem:[#allocation2 + $0xdc8] sm:$0xff] 0.0
          %712 = vst [vmem:[#allocation2 + $0xdd0] sm:$0xff] 0.0
          %713 = vst [vmem:[#allocation2 + $0xdd8] sm:$0xff] 0.0
          %714 = vst [vmem:[#allocation2 + $0xde0] sm:$0xff] 0.0
          %715 = vst [vmem:[#allocation2 + $0xde8] sm:$0xff] 0.0
          %716 = vst [vmem:[#allocation2 + $0xdf0] sm:$0xff] 0.0
          %717 = vst [vmem:[#allocation2 + $0xdf8] sm:$0xff] 0.0
          %718 = vst [vmem:[#allocation2 + $0xe00] sm:$0xff] 0.0
          %719 = vst [vmem:[#allocation2 + $0xe08] sm:$0xff] 0.0
          %720 = vst [vmem:[#allocation2 + $0xe10] sm:$0xff] 0.0
          %721 = vst [vmem:[#allocation2 + $0xe18] sm:$0xff] 0.0
          %722 = vst [vmem:[#allocation2 + $0xe20] sm:$0xff] 0.0
          %723 = vst [vmem:[#allocation2 + $0xe28] sm:$0xff] 0.0
          %724 = vst [vmem:[#allocation2 + $0xe30] sm:$0xff] 0.0
          %725 = vst [vmem:[#allocation2 + $0xe38] sm:$0xff] 0.0
          %726 = vst [vmem:[#allocation2 + $0xe40] sm:$0xff] 0.0
          %727 = vst [vmem:[#allocation2 + $0xe48] sm:$0xff] 0.0
          %728 = vst [vmem:[#allocation2 + $0xe50] sm:$0xff] 0.0
          %729 = vst [vmem:[#allocation2 + $0xe58] sm:$0xff] 0.0
          %730 = vst [vmem:[#allocation2 + $0xe60] sm:$0xff] 0.0
          %731 = vst [vmem:[#allocation2 + $0xe68] sm:$0xff] 0.0
          %732 = vst [vmem:[#allocation2 + $0xe70] sm:$0xff] 0.0
          %733 = vst [vmem:[#allocation2 + $0xe78] sm:$0xff] 0.0
          %734 = vst [vmem:[#allocation2 + $0xe80] sm:$0xff] 0.0
          %735 = vst [vmem:[#allocation2 + $0xe88] sm:$0xff] 0.0
          %736 = vst [vmem:[#allocation2 + $0xe90] sm:$0xff] 0.0
          %737 = vst [vmem:[#allocation2 + $0xe98] sm:$0xff] 0.0
          %738 = vst [vmem:[#allocation2 + $0xea0] sm:$0xff] 0.0
          %739 = vst [vmem:[#allocation2 + $0xea8] sm:$0xff] 0.0
          %740 = vst [vmem:[#allocation2 + $0xeb0] sm:$0xff] 0.0
          %741 = vst [vmem:[#allocation2 + $0xeb8] sm:$0xff] 0.0
          %742 = vst [vmem:[#allocation2 + $0xec0] sm:$0xff] 0.0
          %743 = vst [vmem:[#allocation2 + $0xec8] sm:$0xff] 0.0
          %744 = vst [vmem:[#allocation2 + $0xed0] sm:$0xff] 0.0
          %745 = vst [vmem:[#allocation2 + $0xed8] sm:$0xff] 0.0
          %746 = vst [vmem:[#allocation2 + $0xee0] sm:$0xff] 0.0
          %747 = vst [vmem:[#allocation2 + $0xee8] sm:$0xff] 0.0
          %748 = vst [vmem:[#allocation2 + $0xef0] sm:$0xff] 0.0
          %749 = vst [vmem:[#allocation2 + $0xef8] sm:$0xff] 0.0
          %750 = vst [vmem:[#allocation2 + $0xf00] sm:$0xff] 0.0
          %751 = vst [vmem:[#allocation2 + $0xf08] sm:$0xff] 0.0
          %752 = vst [vmem:[#allocation2 + $0xf10] sm:$0xff] 0.0
          %753 = vst [vmem:[#allocation2 + $0xf18] sm:$0xff] 0.0
          %754 = vst [vmem:[#allocation2 + $0xf20] sm:$0xff] 0.0
          %755 = vst [vmem:[#allocation2 + $0xf28] sm:$0xff] 0.0
          %756 = vst [vmem:[#allocation2 + $0xf30] sm:$0xff] 0.0
          %757 = vst [vmem:[#allocation2 + $0xf38] sm:$0xff] 0.0
          %758 = vst [vmem:[#allocation2 + $0xf40] sm:$0xff] 0.0
          %759 = vst [vmem:[#allocation2 + $0xf48] sm:$0xff] 0.0
          %760 = vst [vmem:[#allocation2 + $0xf50] sm:$0xff] 0.0
          %761 = vst [vmem:[#allocation2 + $0xf58] sm:$0xff] 0.0
          %762 = vst [vmem:[#allocation2 + $0xf60] sm:$0xff] 0.0
          %763 = vst [vmem:[#allocation2 + $0xf68] sm:$0xff] 0.0
          %764 = vst [vmem:[#allocation2 + $0xf70] sm:$0xff] 0.0
          %765 = vst [vmem:[#allocation2 + $0xf78] sm:$0xff] 0.0
          %766 = vst [vmem:[#allocation2 + $0xf80] sm:$0xff] 0.0
          %767 = vst [vmem:[#allocation2 + $0xf88] sm:$0xff] 0.0
          %768 = vst [vmem:[#allocation2 + $0xf90] sm:$0xff] 0.0
          %769 = vst [vmem:[#allocation2 + $0xf98] sm:$0xff] 0.0
          %770 = vst [vmem:[#allocation2 + $0xfa0] sm:$0xff] 0.0
          %771 = vst [vmem:[#allocation2 + $0xfa8] sm:$0xff] 0.0
          %772 = vst [vmem:[#allocation2 + $0xfb0] sm:$0xff] 0.0
          %773 = vst [vmem:[#allocation2 + $0xfb8] sm:$0xff] 0.0
          %774 = vst [vmem:[#allocation2 + $0xfc0] sm:$0xff] 0.0
          %775 = vst [vmem:[#allocation2 + $0xfc8] sm:$0xff] 0.0
          %776 = vst [vmem:[#allocation2 + $0xfd0] sm:$0xff] 0.0
          %777 = vst [vmem:[#allocation2 + $0xfd8] sm:$0xff] 0.0
          %778 = vst [vmem:[#allocation2 + $0xfe0] sm:$0xff] 0.0
          %779 = vst [vmem:[#allocation2 + $0xfe8] sm:$0xff] 0.0
          %780 = vst [vmem:[#allocation2 + $0xff0] sm:$0xff] 0.0
          %781 = vst [vmem:[#allocation2 + $0xff8] sm:$0xff] 0.0
        $region48: #{tpu_custom_call.1} parent=31 // pred_fallthru
          _
        %v782 = vld [vmem:[#allocation2] sm:$0xff]
        %v783 = vld [vmem:[#allocation2 + $0x8] sm:$0xff]
        %v784 = vld [vmem:[#allocation2 + $0x10] sm:$0xff]
        %v785 = vld [vmem:[#allocation2 + $0x18] sm:$0xff]
        %v786 = vld [vmem:[#allocation2 + $0x20] sm:$0xff]
        %v787 = vld [vmem:[#allocation2 + $0x28] sm:$0xff]
        %v788 = vld [vmem:[#allocation2 + $0x30] sm:$0xff]
        %v789 = vld [vmem:[#allocation2 + $0x38] sm:$0xff]
        %v790 = vld [vmem:[#allocation2 + $0x40] sm:$0xff]
        %v791 = vld [vmem:[#allocation2 + $0x48] sm:$0xff]
        %v792 = vld [vmem:[#allocation2 + $0x50] sm:$0xff]
        %v793 = vld [vmem:[#allocation2 + $0x58] sm:$0xff]
        %v794 = vld [vmem:[#allocation2 + $0x60] sm:$0xff]
        %v795 = vld [vmem:[#allocation2 + $0x68] sm:$0xff]
        %v796 = vld [vmem:[#allocation2 + $0x70] sm:$0xff]
        %v797 = vld [vmem:[#allocation2 + $0x78] sm:$0xff]
        %v798 = vld [vmem:[#allocation2 + $0x80] sm:$0xff]
        %v799 = vld [vmem:[#allocation2 + $0x88] sm:$0xff]
        %v800 = vld [vmem:[#allocation2 + $0x90] sm:$0xff]
        %v801 = vld [vmem:[#allocation2 + $0x98] sm:$0xff]
        %v802 = vld [vmem:[#allocation2 + $0xa0] sm:$0xff]
        %v803 = vld [vmem:[#allocation2 + $0xa8] sm:$0xff]
        %v804 = vld [vmem:[#allocation2 + $0xb0] sm:$0xff]
        %v805 = vld [vmem:[#allocation2 + $0xb8] sm:$0xff]
        %v806 = vld [vmem:[#allocation2 + $0xc0] sm:$0xff]
        %v807 = vld [vmem:[#allocation2 + $0xc8] sm:$0xff]
        %v808 = vld [vmem:[#allocation2 + $0xd0] sm:$0xff]
        %v809 = vld [vmem:[#allocation2 + $0xd8] sm:$0xff]
        %v810 = vld [vmem:[#allocation2 + $0xe0] sm:$0xff]
        %v811 = vld [vmem:[#allocation2 + $0xe8] sm:$0xff]
        %v812 = vld [vmem:[#allocation2 + $0xf0] sm:$0xff]
        %v813 = vld [vmem:[#allocation2 + $0xf8] sm:$0xff]
        %v814 = vld [vmem:[#allocation2 + $0x100] sm:$0xff]
        %v815 = vld [vmem:[#allocation2 + $0x108] sm:$0xff]
        %v816 = vld [vmem:[#allocation2 + $0x110] sm:$0xff]
        %v817 = vld [vmem:[#allocation2 + $0x118] sm:$0xff]
        %v818 = vld [vmem:[#allocation2 + $0x120] sm:$0xff]
        %v819 = vld [vmem:[#allocation2 + $0x128] sm:$0xff]
        %v820 = vld [vmem:[#allocation2 + $0x130] sm:$0xff]
        %v821 = vld [vmem:[#allocation2 + $0x138] sm:$0xff]
        %v822 = vld [vmem:[#allocation2 + $0x140] sm:$0xff]
        %v823 = vld [vmem:[#allocation2 + $0x148] sm:$0xff]
        %v824 = vld [vmem:[#allocation2 + $0x150] sm:$0xff]
        %v825 = vld [vmem:[#allocation2 + $0x158] sm:$0xff]
        %v826 = vld [vmem:[#allocation2 + $0x160] sm:$0xff]
        %v827 = vld [vmem:[#allocation2 + $0x168] sm:$0xff]
        %v828 = vld [vmem:[#allocation2 + $0x170] sm:$0xff]
        %v829 = vld [vmem:[#allocation2 + $0x178] sm:$0xff]
        %v830 = vld [vmem:[#allocation2 + $0x180] sm:$0xff]
        %v831 = vld [vmem:[#allocation2 + $0x188] sm:$0xff]
        %v832 = vld [vmem:[#allocation2 + $0x190] sm:$0xff]
        %v833 = vld [vmem:[#allocation2 + $0x198] sm:$0xff]
        %v834 = vld [vmem:[#allocation2 + $0x1a0] sm:$0xff]
        %v835 = vld [vmem:[#allocation2 + $0x1a8] sm:$0xff]
        %v836 = vld [vmem:[#allocation2 + $0x1b0] sm:$0xff]
        %v837 = vld [vmem:[#allocation2 + $0x1b8] sm:$0xff]
        %v838 = vld [vmem:[#allocation2 + $0x1c0] sm:$0xff]
        %v839 = vld [vmem:[#allocation2 + $0x1c8] sm:$0xff]
        %v840 = vld [vmem:[#allocation2 + $0x1d0] sm:$0xff]
        %v841 = vld [vmem:[#allocation2 + $0x1d8] sm:$0xff]
        %v842 = vld [vmem:[#allocation2 + $0x1e0] sm:$0xff]
        %v843 = vld [vmem:[#allocation2 + $0x1e8] sm:$0xff]
        %v844 = vld [vmem:[#allocation2 + $0x1f0] sm:$0xff]
        %v845 = vld [vmem:[#allocation2 + $0x1f8] sm:$0xff]
        %v846 = vld [vmem:[#allocation2 + $0x200] sm:$0xff]
        %v847 = vld [vmem:[#allocation2 + $0x208] sm:$0xff]
        %v848 = vld [vmem:[#allocation2 + $0x210] sm:$0xff]
        %v849 = vld [vmem:[#allocation2 + $0x218] sm:$0xff]
        %v850 = vld [vmem:[#allocation2 + $0x220] sm:$0xff]
        %v851 = vld [vmem:[#allocation2 + $0x228] sm:$0xff]
        %v852 = vld [vmem:[#allocation2 + $0x230] sm:$0xff]
        %v853 = vld [vmem:[#allocation2 + $0x238] sm:$0xff]
        %v854 = vld [vmem:[#allocation2 + $0x240] sm:$0xff]
        %v855 = vld [vmem:[#allocation2 + $0x248] sm:$0xff]
        %v856 = vld [vmem:[#allocation2 + $0x250] sm:$0xff]
        %v857 = vld [vmem:[#allocation2 + $0x258] sm:$0xff]
        %v858 = vld [vmem:[#allocation2 + $0x260] sm:$0xff]
        %v859 = vld [vmem:[#allocation2 + $0x268] sm:$0xff]
        %v860 = vld [vmem:[#allocation2 + $0x270] sm:$0xff]
        %v861 = vld [vmem:[#allocation2 + $0x278] sm:$0xff]
        %v862 = vld [vmem:[#allocation2 + $0x280] sm:$0xff]
        %v863 = vld [vmem:[#allocation2 + $0x288] sm:$0xff]
        %v864 = vld [vmem:[#allocation2 + $0x290] sm:$0xff]
        %v865 = vld [vmem:[#allocation2 + $0x298] sm:$0xff]
        %v866 = vld [vmem:[#allocation2 + $0x2a0] sm:$0xff]
        %v867 = vld [vmem:[#allocation2 + $0x2a8] sm:$0xff]
        %v868 = vld [vmem:[#allocation2 + $0x2b0] sm:$0xff]
        %v869 = vld [vmem:[#allocation2 + $0x2b8] sm:$0xff]
        %v870 = vld [vmem:[#allocation2 + $0x2c0] sm:$0xff]
        %v871 = vld [vmem:[#allocation2 + $0x2c8] sm:$0xff]
        %v872 = vld [vmem:[#allocation2 + $0x2d0] sm:$0xff]
        %v873 = vld [vmem:[#allocation2 + $0x2d8] sm:$0xff]
        %v874 = vld [vmem:[#allocation2 + $0x2e0] sm:$0xff]
        %v875 = vld [vmem:[#allocation2 + $0x2e8] sm:$0xff]
        %v876 = vld [vmem:[#allocation2 + $0x2f0] sm:$0xff]
        %v877 = vld [vmem:[#allocation2 + $0x2f8] sm:$0xff]
        %v878 = vld [vmem:[#allocation2 + $0x300] sm:$0xff]
        %v879 = vld [vmem:[#allocation2 + $0x308] sm:$0xff]
        %v880 = vld [vmem:[#allocation2 + $0x310] sm:$0xff]
        %v881 = vld [vmem:[#allocation2 + $0x318] sm:$0xff]
        %v882 = vld [vmem:[#allocation2 + $0x320] sm:$0xff]
        %v883 = vld [vmem:[#allocation2 + $0x328] sm:$0xff]
        %v884 = vld [vmem:[#allocation2 + $0x330] sm:$0xff]
        %v885 = vld [vmem:[#allocation2 + $0x338] sm:$0xff]
        %v886 = vld [vmem:[#allocation2 + $0x340] sm:$0xff]
        %v887 = vld [vmem:[#allocation2 + $0x348] sm:$0xff]
        %v888 = vld [vmem:[#allocation2 + $0x350] sm:$0xff]
        %v889 = vld [vmem:[#allocation2 + $0x358] sm:$0xff]
        %v890 = vld [vmem:[#allocation2 + $0x360] sm:$0xff]
        %v891 = vld [vmem:[#allocation2 + $0x368] sm:$0xff]
        %v892 = vld [vmem:[#allocation2 + $0x370] sm:$0xff]
        %v893 = vld [vmem:[#allocation2 + $0x378] sm:$0xff]
        %v894 = vld [vmem:[#allocation2 + $0x380] sm:$0xff]
        %v895 = vld [vmem:[#allocation2 + $0x388] sm:$0xff]
        %v896 = vld [vmem:[#allocation2 + $0x390] sm:$0xff]
        %v897 = vld [vmem:[#allocation2 + $0x398] sm:$0xff]
        %v898 = vld [vmem:[#allocation2 + $0x3a0] sm:$0xff]
        %v899 = vld [vmem:[#allocation2 + $0x3a8] sm:$0xff]
        %v900 = vld [vmem:[#allocation2 + $0x3b0] sm:$0xff]
        %v901 = vld [vmem:[#allocation2 + $0x3b8] sm:$0xff]
        %v902 = vld [vmem:[#allocation2 + $0x3c0] sm:$0xff]
        %v903 = vld [vmem:[#allocation2 + $0x3c8] sm:$0xff]
        %v904 = vld [vmem:[#allocation2 + $0x3d0] sm:$0xff]
        %v905 = vld [vmem:[#allocation2 + $0x3d8] sm:$0xff]
        %v906 = vld [vmem:[#allocation2 + $0x3e0] sm:$0xff]
        %v907 = vld [vmem:[#allocation2 + $0x3e8] sm:$0xff]
        %v908 = vld [vmem:[#allocation2 + $0x3f0] sm:$0xff]
        %v909 = vld [vmem:[#allocation2 + $0x3f8] sm:$0xff]
        %v910 = vld [vmem:[#allocation2 + $0x400] sm:$0xff]
        %v911 = vld [vmem:[#allocation2 + $0x408] sm:$0xff]
        %v912 = vld [vmem:[#allocation2 + $0x410] sm:$0xff]
        %v913 = vld [vmem:[#allocation2 + $0x418] sm:$0xff]
        %v914 = vld [vmem:[#allocation2 + $0x420] sm:$0xff]
        %v915 = vld [vmem:[#allocation2 + $0x428] sm:$0xff]
        %v916 = vld [vmem:[#allocation2 + $0x430] sm:$0xff]
        %v917 = vld [vmem:[#allocation2 + $0x438] sm:$0xff]
        %v918 = vld [vmem:[#allocation2 + $0x440] sm:$0xff]
        %v919 = vld [vmem:[#allocation2 + $0x448] sm:$0xff]
        %v920 = vld [vmem:[#allocation2 + $0x450] sm:$0xff]
        %v921 = vld [vmem:[#allocation2 + $0x458] sm:$0xff]
        %v922 = vld [vmem:[#allocation2 + $0x460] sm:$0xff]
        %v923 = vld [vmem:[#allocation2 + $0x468] sm:$0xff]
        %v924 = vld [vmem:[#allocation2 + $0x470] sm:$0xff]
        %v925 = vld [vmem:[#allocation2 + $0x478] sm:$0xff]
        %v926 = vld [vmem:[#allocation2 + $0x480] sm:$0xff]
        %v927 = vld [vmem:[#allocation2 + $0x488] sm:$0xff]
        %v928 = vld [vmem:[#allocation2 + $0x490] sm:$0xff]
        %v929 = vld [vmem:[#allocation2 + $0x498] sm:$0xff]
        %v930 = vld [vmem:[#allocation2 + $0x4a0] sm:$0xff]
        %v931 = vld [vmem:[#allocation2 + $0x4a8] sm:$0xff]
        %v932 = vld [vmem:[#allocation2 + $0x4b0] sm:$0xff]
        %v933 = vld [vmem:[#allocation2 + $0x4b8] sm:$0xff]
        %v934 = vld [vmem:[#allocation2 + $0x4c0] sm:$0xff]
        %v935 = vld [vmem:[#allocation2 + $0x4c8] sm:$0xff]
        %v936 = vld [vmem:[#allocation2 + $0x4d0] sm:$0xff]
        %v937 = vld [vmem:[#allocation2 + $0x4d8] sm:$0xff]
        %v938 = vld [vmem:[#allocation2 + $0x4e0] sm:$0xff]
        %v939 = vld [vmem:[#allocation2 + $0x4e8] sm:$0xff]
        %v940 = vld [vmem:[#allocation2 + $0x4f0] sm:$0xff]
        %v941 = vld [vmem:[#allocation2 + $0x4f8] sm:$0xff]
        %v942 = vld [vmem:[#allocation2 + $0x500] sm:$0xff]
        %v943 = vld [vmem:[#allocation2 + $0x508] sm:$0xff]
        %v944 = vld [vmem:[#allocation2 + $0x510] sm:$0xff]
        %v945 = vld [vmem:[#allocation2 + $0x518] sm:$0xff]
        %v946 = vld [vmem:[#allocation2 + $0x520] sm:$0xff]
        %v947 = vld [vmem:[#allocation2 + $0x528] sm:$0xff]
        %v948 = vld [vmem:[#allocation2 + $0x530] sm:$0xff]
        %v949 = vld [vmem:[#allocation2 + $0x538] sm:$0xff]
        %v950 = vld [vmem:[#allocation2 + $0x540] sm:$0xff]
        %v951 = vld [vmem:[#allocation2 + $0x548] sm:$0xff]
        %v952 = vld [vmem:[#allocation2 + $0x550] sm:$0xff]
        %v953 = vld [vmem:[#allocation2 + $0x558] sm:$0xff]
        %v954 = vld [vmem:[#allocation2 + $0x560] sm:$0xff]
        %v955 = vld [vmem:[#allocation2 + $0x568] sm:$0xff]
        %v956 = vld [vmem:[#allocation2 + $0x570] sm:$0xff]
        %v957 = vld [vmem:[#allocation2 + $0x578] sm:$0xff]
        %v958 = vld [vmem:[#allocation2 + $0x580] sm:$0xff]
        %v959 = vld [vmem:[#allocation2 + $0x588] sm:$0xff]
        %v960 = vld [vmem:[#allocation2 + $0x590] sm:$0xff]
        %v961 = vld [vmem:[#allocation2 + $0x598] sm:$0xff]
        %v962 = vld [vmem:[#allocation2 + $0x5a0] sm:$0xff]
        %v963 = vld [vmem:[#allocation2 + $0x5a8] sm:$0xff]
        %v964 = vld [vmem:[#allocation2 + $0x5b0] sm:$0xff]
        %v965 = vld [vmem:[#allocation2 + $0x5b8] sm:$0xff]
        %v966 = vld [vmem:[#allocation2 + $0x5c0] sm:$0xff]
        %v967 = vld [vmem:[#allocation2 + $0x5c8] sm:$0xff]
        %v968 = vld [vmem:[#allocation2 + $0x5d0] sm:$0xff]
        %v969 = vld [vmem:[#allocation2 + $0x5d8] sm:$0xff]
        %v970 = vld [vmem:[#allocation2 + $0x5e0] sm:$0xff]
        %v971 = vld [vmem:[#allocation2 + $0x5e8] sm:$0xff]
        %v972 = vld [vmem:[#allocation2 + $0x5f0] sm:$0xff]
        %v973 = vld [vmem:[#allocation2 + $0x5f8] sm:$0xff]
        %v974 = vld [vmem:[#allocation2 + $0x600] sm:$0xff]
        %v975 = vld [vmem:[#allocation2 + $0x608] sm:$0xff]
        %v976 = vld [vmem:[#allocation2 + $0x610] sm:$0xff]
        %v977 = vld [vmem:[#allocation2 + $0x618] sm:$0xff]
        %v978 = vld [vmem:[#allocation2 + $0x620] sm:$0xff]
        %v979 = vld [vmem:[#allocation2 + $0x628] sm:$0xff]
        %v980 = vld [vmem:[#allocation2 + $0x630] sm:$0xff]
        %v981 = vld [vmem:[#allocation2 + $0x638] sm:$0xff]
        %v982 = vld [vmem:[#allocation2 + $0x640] sm:$0xff]
        %v983 = vld [vmem:[#allocation2 + $0x648] sm:$0xff]
        %v984 = vld [vmem:[#allocation2 + $0x650] sm:$0xff]
        %v985 = vld [vmem:[#allocation2 + $0x658] sm:$0xff]
        %v986 = vld [vmem:[#allocation2 + $0x660] sm:$0xff]
        %v987 = vld [vmem:[#allocation2 + $0x668] sm:$0xff]
        %v988 = vld [vmem:[#allocation2 + $0x670] sm:$0xff]
        %v989 = vld [vmem:[#allocation2 + $0x678] sm:$0xff]
        %v990 = vld [vmem:[#allocation2 + $0x680] sm:$0xff]
        %v991 = vld [vmem:[#allocation2 + $0x688] sm:$0xff]
        %v992 = vld [vmem:[#allocation2 + $0x690] sm:$0xff]
        %v993 = vld [vmem:[#allocation2 + $0x698] sm:$0xff]
        %v994 = vld [vmem:[#allocation2 + $0x6a0] sm:$0xff]
        %v995 = vld [vmem:[#allocation2 + $0x6a8] sm:$0xff]
        %v996 = vld [vmem:[#allocation2 + $0x6b0] sm:$0xff]
        %v997 = vld [vmem:[#allocation2 + $0x6b8] sm:$0xff]
        %v998 = vld [vmem:[#allocation2 + $0x6c0] sm:$0xff]
        %v999 = vld [vmem:[#allocation2 + $0x6c8] sm:$0xff]
        %v1000 = vld [vmem:[#allocation2 + $0x6d0] sm:$0xff]
        %v1001 = vld [vmem:[#allocation2 + $0x6d8] sm:$0xff]
        %v1002 = vld [vmem:[#allocation2 + $0x6e0] sm:$0xff]
        %v1003 = vld [vmem:[#allocation2 + $0x6e8] sm:$0xff]
        %v1004 = vld [vmem:[#allocation2 + $0x6f0] sm:$0xff]
        %v1005 = vld [vmem:[#allocation2 + $0x6f8] sm:$0xff]
        %v1006 = vld [vmem:[#allocation2 + $0x700] sm:$0xff]
        %v1007 = vld [vmem:[#allocation2 + $0x708] sm:$0xff]
        %v1008 = vld [vmem:[#allocation2 + $0x710] sm:$0xff]
        %v1009 = vld [vmem:[#allocation2 + $0x718] sm:$0xff]
        %v1010 = vld [vmem:[#allocation2 + $0x720] sm:$0xff]
        %v1011 = vld [vmem:[#allocation2 + $0x728] sm:$0xff]
        %v1012 = vld [vmem:[#allocation2 + $0x730] sm:$0xff]
        %v1013 = vld [vmem:[#allocation2 + $0x738] sm:$0xff]
        %v1014 = vld [vmem:[#allocation2 + $0x740] sm:$0xff]
        %v1015 = vld [vmem:[#allocation2 + $0x748] sm:$0xff]
        %v1016 = vld [vmem:[#allocation2 + $0x750] sm:$0xff]
        %v1017 = vld [vmem:[#allocation2 + $0x758] sm:$0xff]
        %v1018 = vld [vmem:[#allocation2 + $0x760] sm:$0xff]
        %v1019 = vld [vmem:[#allocation2 + $0x768] sm:$0xff]
        %v1020 = vld [vmem:[#allocation2 + $0x770] sm:$0xff]
        %v1021 = vld [vmem:[#allocation2 + $0x778] sm:$0xff]
        %v1022 = vld [vmem:[#allocation2 + $0x780] sm:$0xff]
        %v1023 = vld [vmem:[#allocation2 + $0x788] sm:$0xff]
        %v1024 = vld [vmem:[#allocation2 + $0x790] sm:$0xff]
        %v1025 = vld [vmem:[#allocation2 + $0x798] sm:$0xff]
        %v1026 = vld [vmem:[#allocation2 + $0x7a0] sm:$0xff]
        %v1027 = vld [vmem:[#allocation2 + $0x7a8] sm:$0xff]
        %v1028 = vld [vmem:[#allocation2 + $0x7b0] sm:$0xff]
        %v1029 = vld [vmem:[#allocation2 + $0x7b8] sm:$0xff]
        %v1030 = vld [vmem:[#allocation2 + $0x7c0] sm:$0xff]
        %v1031 = vld [vmem:[#allocation2 + $0x7c8] sm:$0xff]
        %v1032 = vld [vmem:[#allocation2 + $0x7d0] sm:$0xff]
        %v1033 = vld [vmem:[#allocation2 + $0x7d8] sm:$0xff]
        %v1034 = vld [vmem:[#allocation2 + $0x7e0] sm:$0xff]
        %v1035 = vld [vmem:[#allocation2 + $0x7e8] sm:$0xff]
        %v1036 = vld [vmem:[#allocation2 + $0x7f0] sm:$0xff]
        %v1037 = vld [vmem:[#allocation2 + $0x7f8] sm:$0xff]
        %v1038 = vld [vmem:[#allocation2 + $0x800] sm:$0xff]
        %v1039 = vld [vmem:[#allocation2 + $0x808] sm:$0xff]
        %v1040 = vld [vmem:[#allocation2 + $0x810] sm:$0xff]
        %v1041 = vld [vmem:[#allocation2 + $0x818] sm:$0xff]
        %v1042 = vld [vmem:[#allocation2 + $0x820] sm:$0xff]
        %v1043 = vld [vmem:[#allocation2 + $0x828] sm:$0xff]
        %v1044 = vld [vmem:[#allocation2 + $0x830] sm:$0xff]
        %v1045 = vld [vmem:[#allocation2 + $0x838] sm:$0xff]
        %v1046 = vld [vmem:[#allocation2 + $0x840] sm:$0xff]
        %v1047 = vld [vmem:[#allocation2 + $0x848] sm:$0xff]
        %v1048 = vld [vmem:[#allocation2 + $0x850] sm:$0xff]
        %v1049 = vld [vmem:[#allocation2 + $0x858] sm:$0xff]
        %v1050 = vld [vmem:[#allocation2 + $0x860] sm:$0xff]
        %v1051 = vld [vmem:[#allocation2 + $0x868] sm:$0xff]
        %v1052 = vld [vmem:[#allocation2 + $0x870] sm:$0xff]
        %v1053 = vld [vmem:[#allocation2 + $0x878] sm:$0xff]
        %v1054 = vld [vmem:[#allocation2 + $0x880] sm:$0xff]
        %v1055 = vld [vmem:[#allocation2 + $0x888] sm:$0xff]
        %v1056 = vld [vmem:[#allocation2 + $0x890] sm:$0xff]
        %v1057 = vld [vmem:[#allocation2 + $0x898] sm:$0xff]
        %v1058 = vld [vmem:[#allocation2 + $0x8a0] sm:$0xff]
        %v1059 = vld [vmem:[#allocation2 + $0x8a8] sm:$0xff]
        %v1060 = vld [vmem:[#allocation2 + $0x8b0] sm:$0xff]
        %v1061 = vld [vmem:[#allocation2 + $0x8b8] sm:$0xff]
        %v1062 = vld [vmem:[#allocation2 + $0x8c0] sm:$0xff]
        %v1063 = vld [vmem:[#allocation2 + $0x8c8] sm:$0xff]
        %v1064 = vld [vmem:[#allocation2 + $0x8d0] sm:$0xff]
        %v1065 = vld [vmem:[#allocation2 + $0x8d8] sm:$0xff]
        %v1066 = vld [vmem:[#allocation2 + $0x8e0] sm:$0xff]
        %v1067 = vld [vmem:[#allocation2 + $0x8e8] sm:$0xff]
        %v1068 = vld [vmem:[#allocation2 + $0x8f0] sm:$0xff]
        %v1069 = vld [vmem:[#allocation2 + $0x8f8] sm:$0xff]
        %v1070 = vld [vmem:[#allocation2 + $0x900] sm:$0xff]
        %v1071 = vld [vmem:[#allocation2 + $0x908] sm:$0xff]
        %v1072 = vld [vmem:[#allocation2 + $0x910] sm:$0xff]
        %v1073 = vld [vmem:[#allocation2 + $0x918] sm:$0xff]
        %v1074 = vld [vmem:[#allocation2 + $0x920] sm:$0xff]
        %v1075 = vld [vmem:[#allocation2 + $0x928] sm:$0xff]
        %v1076 = vld [vmem:[#allocation2 + $0x930] sm:$0xff]
        %v1077 = vld [vmem:[#allocation2 + $0x938] sm:$0xff]
        %v1078 = vld [vmem:[#allocation2 + $0x940] sm:$0xff]
        %v1079 = vld [vmem:[#allocation2 + $0x948] sm:$0xff]
        %v1080 = vld [vmem:[#allocation2 + $0x950] sm:$0xff]
        %v1081 = vld [vmem:[#allocation2 + $0x958] sm:$0xff]
        %v1082 = vld [vmem:[#allocation2 + $0x960] sm:$0xff]
        %v1083 = vld [vmem:[#allocation2 + $0x968] sm:$0xff]
        %v1084 = vld [vmem:[#allocation2 + $0x970] sm:$0xff]
        %v1085 = vld [vmem:[#allocation2 + $0x978] sm:$0xff]
        %v1086 = vld [vmem:[#allocation2 + $0x980] sm:$0xff]
        %v1087 = vld [vmem:[#allocation2 + $0x988] sm:$0xff]
        %v1088 = vld [vmem:[#allocation2 + $0x990] sm:$0xff]
        %v1089 = vld [vmem:[#allocation2 + $0x998] sm:$0xff]
        %v1090 = vld [vmem:[#allocation2 + $0x9a0] sm:$0xff]
        %v1091 = vld [vmem:[#allocation2 + $0x9a8] sm:$0xff]
        %v1092 = vld [vmem:[#allocation2 + $0x9b0] sm:$0xff]
        %v1093 = vld [vmem:[#allocation2 + $0x9b8] sm:$0xff]
        %v1094 = vld [vmem:[#allocation2 + $0x9c0] sm:$0xff]
        %v1095 = vld [vmem:[#allocation2 + $0x9c8] sm:$0xff]
        %v1096 = vld [vmem:[#allocation2 + $0x9d0] sm:$0xff]
        %v1097 = vld [vmem:[#allocation2 + $0x9d8] sm:$0xff]
        %v1098 = vld [vmem:[#allocation2 + $0x9e0] sm:$0xff]
        %v1099 = vld [vmem:[#allocation2 + $0x9e8] sm:$0xff]
        %v1100 = vld [vmem:[#allocation2 + $0x9f0] sm:$0xff]
        %v1101 = vld [vmem:[#allocation2 + $0x9f8] sm:$0xff]
        %v1102 = vld [vmem:[#allocation2 + $0xa00] sm:$0xff]
        %v1103 = vld [vmem:[#allocation2 + $0xa08] sm:$0xff]
        %v1104 = vld [vmem:[#allocation2 + $0xa10] sm:$0xff]
        %v1105 = vld [vmem:[#allocation2 + $0xa18] sm:$0xff]
        %v1106 = vld [vmem:[#allocation2 + $0xa20] sm:$0xff]
        %v1107 = vld [vmem:[#allocation2 + $0xa28] sm:$0xff]
        %v1108 = vld [vmem:[#allocation2 + $0xa30] sm:$0xff]
        %v1109 = vld [vmem:[#allocation2 + $0xa38] sm:$0xff]
        %v1110 = vld [vmem:[#allocation2 + $0xa40] sm:$0xff]
        %v1111 = vld [vmem:[#allocation2 + $0xa48] sm:$0xff]
        %v1112 = vld [vmem:[#allocation2 + $0xa50] sm:$0xff]
        %v1113 = vld [vmem:[#allocation2 + $0xa58] sm:$0xff]
        %v1114 = vld [vmem:[#allocation2 + $0xa60] sm:$0xff]
        %v1115 = vld [vmem:[#allocation2 + $0xa68] sm:$0xff]
        %v1116 = vld [vmem:[#allocation2 + $0xa70] sm:$0xff]
        %v1117 = vld [vmem:[#allocation2 + $0xa78] sm:$0xff]
        %v1118 = vld [vmem:[#allocation2 + $0xa80] sm:$0xff]
        %v1119 = vld [vmem:[#allocation2 + $0xa88] sm:$0xff]
        %v1120 = vld [vmem:[#allocation2 + $0xa90] sm:$0xff]
        %v1121 = vld [vmem:[#allocation2 + $0xa98] sm:$0xff]
        %v1122 = vld [vmem:[#allocation2 + $0xaa0] sm:$0xff]
        %v1123 = vld [vmem:[#allocation2 + $0xaa8] sm:$0xff]
        %v1124 = vld [vmem:[#allocation2 + $0xab0] sm:$0xff]
        %v1125 = vld [vmem:[#allocation2 + $0xab8] sm:$0xff]
        %v1126 = vld [vmem:[#allocation2 + $0xac0] sm:$0xff]
        %v1127 = vld [vmem:[#allocation2 + $0xac8] sm:$0xff]
        %v1128 = vld [vmem:[#allocation2 + $0xad0] sm:$0xff]
        %v1129 = vld [vmem:[#allocation2 + $0xad8] sm:$0xff]
        %v1130 = vld [vmem:[#allocation2 + $0xae0] sm:$0xff]
        %v1131 = vld [vmem:[#allocation2 + $0xae8] sm:$0xff]
        %v1132 = vld [vmem:[#allocation2 + $0xaf0] sm:$0xff]
        %v1133 = vld [vmem:[#allocation2 + $0xaf8] sm:$0xff]
        %v1134 = vld [vmem:[#allocation2 + $0xb00] sm:$0xff]
        %v1135 = vld [vmem:[#allocation2 + $0xb08] sm:$0xff]
        %v1136 = vld [vmem:[#allocation2 + $0xb10] sm:$0xff]
        %v1137 = vld [vmem:[#allocation2 + $0xb18] sm:$0xff]
        %v1138 = vld [vmem:[#allocation2 + $0xb20] sm:$0xff]
        %v1139 = vld [vmem:[#allocation2 + $0xb28] sm:$0xff]
        %v1140 = vld [vmem:[#allocation2 + $0xb30] sm:$0xff]
        %v1141 = vld [vmem:[#allocation2 + $0xb38] sm:$0xff]
        %v1142 = vld [vmem:[#allocation2 + $0xb40] sm:$0xff]
        %v1143 = vld [vmem:[#allocation2 + $0xb48] sm:$0xff]
        %v1144 = vld [vmem:[#allocation2 + $0xb50] sm:$0xff]
        %v1145 = vld [vmem:[#allocation2 + $0xb58] sm:$0xff]
        %v1146 = vld [vmem:[#allocation2 + $0xb60] sm:$0xff]
        %v1147 = vld [vmem:[#allocation2 + $0xb68] sm:$0xff]
        %v1148 = vld [vmem:[#allocation2 + $0xb70] sm:$0xff]
        %v1149 = vld [vmem:[#allocation2 + $0xb78] sm:$0xff]
        %v1150 = vld [vmem:[#allocation2 + $0xb80] sm:$0xff]
        %v1151 = vld [vmem:[#allocation2 + $0xb88] sm:$0xff]
        %v1152 = vld [vmem:[#allocation2 + $0xb90] sm:$0xff]
        %v1153 = vld [vmem:[#allocation2 + $0xb98] sm:$0xff]
        %v1154 = vld [vmem:[#allocation2 + $0xba0] sm:$0xff]
        %v1155 = vld [vmem:[#allocation2 + $0xba8] sm:$0xff]
        %v1156 = vld [vmem:[#allocation2 + $0xbb0] sm:$0xff]
        %v1157 = vld [vmem:[#allocation2 + $0xbb8] sm:$0xff]
        %v1158 = vld [vmem:[#allocation2 + $0xbc0] sm:$0xff]
        %v1159 = vld [vmem:[#allocation2 + $0xbc8] sm:$0xff]
        %v1160 = vld [vmem:[#allocation2 + $0xbd0] sm:$0xff]
        %v1161 = vld [vmem:[#allocation2 + $0xbd8] sm:$0xff]
        %v1162 = vld [vmem:[#allocation2 + $0xbe0] sm:$0xff]
        %v1163 = vld [vmem:[#allocation2 + $0xbe8] sm:$0xff]
        %v1164 = vld [vmem:[#allocation2 + $0xbf0] sm:$0xff]
        %v1165 = vld [vmem:[#allocation2 + $0xbf8] sm:$0xff]
        %v1166 = vld [vmem:[#allocation2 + $0xc00] sm:$0xff]
        %v1167 = vld [vmem:[#allocation2 + $0xc08] sm:$0xff]
        %v1168 = vld [vmem:[#allocation2 + $0xc10] sm:$0xff]
        %v1169 = vld [vmem:[#allocation2 + $0xc18] sm:$0xff]
        %v1170 = vld [vmem:[#allocation2 + $0xc20] sm:$0xff]
        %v1171 = vld [vmem:[#allocation2 + $0xc28] sm:$0xff]
        %v1172 = vld [vmem:[#allocation2 + $0xc30] sm:$0xff]
        %v1173 = vld [vmem:[#allocation2 + $0xc38] sm:$0xff]
        %v1174 = vld [vmem:[#allocation2 + $0xc40] sm:$0xff]
        %v1175 = vld [vmem:[#allocation2 + $0xc48] sm:$0xff]
        %v1176 = vld [vmem:[#allocation2 + $0xc50] sm:$0xff]
        %v1177 = vld [vmem:[#allocation2 + $0xc58] sm:$0xff]
        %v1178 = vld [vmem:[#allocation2 + $0xc60] sm:$0xff]
        %v1179 = vld [vmem:[#allocation2 + $0xc68] sm:$0xff]
        %v1180 = vld [vmem:[#allocation2 + $0xc70] sm:$0xff]
        %v1181 = vld [vmem:[#allocation2 + $0xc78] sm:$0xff]
        %v1182 = vld [vmem:[#allocation2 + $0xc80] sm:$0xff]
        %v1183 = vld [vmem:[#allocation2 + $0xc88] sm:$0xff]
        %v1184 = vld [vmem:[#allocation2 + $0xc90] sm:$0xff]
        %v1185 = vld [vmem:[#allocation2 + $0xc98] sm:$0xff]
        %v1186 = vld [vmem:[#allocation2 + $0xca0] sm:$0xff]
        %v1187 = vld [vmem:[#allocation2 + $0xca8] sm:$0xff]
        %v1188 = vld [vmem:[#allocation2 + $0xcb0] sm:$0xff]
        %v1189 = vld [vmem:[#allocation2 + $0xcb8] sm:$0xff]
        %v1190 = vld [vmem:[#allocation2 + $0xcc0] sm:$0xff]
        %v1191 = vld [vmem:[#allocation2 + $0xcc8] sm:$0xff]
        %v1192 = vld [vmem:[#allocation2 + $0xcd0] sm:$0xff]
        %v1193 = vld [vmem:[#allocation2 + $0xcd8] sm:$0xff]
        %v1194 = vld [vmem:[#allocation2 + $0xce0] sm:$0xff]
        %v1195 = vld [vmem:[#allocation2 + $0xce8] sm:$0xff]
        %v1196 = vld [vmem:[#allocation2 + $0xcf0] sm:$0xff]
        %v1197 = vld [vmem:[#allocation2 + $0xcf8] sm:$0xff]
        %v1198 = vld [vmem:[#allocation2 + $0xd00] sm:$0xff]
        %v1199 = vld [vmem:[#allocation2 + $0xd08] sm:$0xff]
        %v1200 = vld [vmem:[#allocation2 + $0xd10] sm:$0xff]
        %v1201 = vld [vmem:[#allocation2 + $0xd18] sm:$0xff]
        %v1202 = vld [vmem:[#allocation2 + $0xd20] sm:$0xff]
        %v1203 = vld [vmem:[#allocation2 + $0xd28] sm:$0xff]
        %v1204 = vld [vmem:[#allocation2 + $0xd30] sm:$0xff]
        %v1205 = vld [vmem:[#allocation2 + $0xd38] sm:$0xff]
        %v1206 = vld [vmem:[#allocation2 + $0xd40] sm:$0xff]
        %v1207 = vld [vmem:[#allocation2 + $0xd48] sm:$0xff]
        %v1208 = vld [vmem:[#allocation2 + $0xd50] sm:$0xff]
        %v1209 = vld [vmem:[#allocation2 + $0xd58] sm:$0xff]
        %v1210 = vld [vmem:[#allocation2 + $0xd60] sm:$0xff]
        %v1211 = vld [vmem:[#allocation2 + $0xd68] sm:$0xff]
        %v1212 = vld [vmem:[#allocation2 + $0xd70] sm:$0xff]
        %v1213 = vld [vmem:[#allocation2 + $0xd78] sm:$0xff]
        %v1214 = vld [vmem:[#allocation2 + $0xd80] sm:$0xff]
        %v1215 = vld [vmem:[#allocation2 + $0xd88] sm:$0xff]
        %v1216 = vld [vmem:[#allocation2 + $0xd90] sm:$0xff]
        %v1217 = vld [vmem:[#allocation2 + $0xd98] sm:$0xff]
        %v1218 = vld [vmem:[#allocation2 + $0xda0] sm:$0xff]
        %v1219 = vld [vmem:[#allocation2 + $0xda8] sm:$0xff]
        %v1220 = vld [vmem:[#allocation2 + $0xdb0] sm:$0xff]
        %v1221 = vld [vmem:[#allocation2 + $0xdb8] sm:$0xff]
        %v1222 = vld [vmem:[#allocation2 + $0xdc0] sm:$0xff]
        %v1223 = vld [vmem:[#allocation2 + $0xdc8] sm:$0xff]
        %v1224 = vld [vmem:[#allocation2 + $0xdd0] sm:$0xff]
        %v1225 = vld [vmem:[#allocation2 + $0xdd8] sm:$0xff]
        %v1226 = vld [vmem:[#allocation2 + $0xde0] sm:$0xff]
        %v1227 = vld [vmem:[#allocation2 + $0xde8] sm:$0xff]
        %v1228 = vld [vmem:[#allocation2 + $0xdf0] sm:$0xff]
        %v1229 = vld [vmem:[#allocation2 + $0xdf8] sm:$0xff]
        %v1230 = vld [vmem:[#allocation2 + $0xe00] sm:$0xff]
        %v1231 = vld [vmem:[#allocation2 + $0xe08] sm:$0xff]
        %v1232 = vld [vmem:[#allocation2 + $0xe10] sm:$0xff]
        %v1233 = vld [vmem:[#allocation2 + $0xe18] sm:$0xff]
        %v1234 = vld [vmem:[#allocation2 + $0xe20] sm:$0xff]
        %v1235 = vld [vmem:[#allocation2 + $0xe28] sm:$0xff]
        %v1236 = vld [vmem:[#allocation2 + $0xe30] sm:$0xff]
        %v1237 = vld [vmem:[#allocation2 + $0xe38] sm:$0xff]
        %v1238 = vld [vmem:[#allocation2 + $0xe40] sm:$0xff]
        %v1239 = vld [vmem:[#allocation2 + $0xe48] sm:$0xff]
        %v1240 = vld [vmem:[#allocation2 + $0xe50] sm:$0xff]
        %v1241 = vld [vmem:[#allocation2 + $0xe58] sm:$0xff]
        %v1242 = vld [vmem:[#allocation2 + $0xe60] sm:$0xff]
        %v1243 = vld [vmem:[#allocation2 + $0xe68] sm:$0xff]
        %v1244 = vld [vmem:[#allocation2 + $0xe70] sm:$0xff]
        %v1245 = vld [vmem:[#allocation2 + $0xe78] sm:$0xff]
        %v1246 = vld [vmem:[#allocation2 + $0xe80] sm:$0xff]
        %v1247 = vld [vmem:[#allocation2 + $0xe88] sm:$0xff]
        %v1248 = vld [vmem:[#allocation2 + $0xe90] sm:$0xff]
        %v1249 = vld [vmem:[#allocation2 + $0xe98] sm:$0xff]
        %v1250 = vld [vmem:[#allocation2 + $0xea0] sm:$0xff]
        %v1251 = vld [vmem:[#allocation2 + $0xea8] sm:$0xff]
        %v1252 = vld [vmem:[#allocation2 + $0xeb0] sm:$0xff]
        %v1253 = vld [vmem:[#allocation2 + $0xeb8] sm:$0xff]
        %v1254 = vld [vmem:[#allocation2 + $0xec0] sm:$0xff]
        %v1255 = vld [vmem:[#allocation2 + $0xec8] sm:$0xff]
        %v1256 = vld [vmem:[#allocation2 + $0xed0] sm:$0xff]
        %v1257 = vld [vmem:[#allocation2 + $0xed8] sm:$0xff]
        %v1258 = vld [vmem:[#allocation2 + $0xee0] sm:$0xff]
        %v1259 = vld [vmem:[#allocation2 + $0xee8] sm:$0xff]
        %v1260 = vld [vmem:[#allocation2 + $0xef0] sm:$0xff]
        %v1261 = vld [vmem:[#allocation2 + $0xef8] sm:$0xff]
        %v1262 = vld [vmem:[#allocation2 + $0xf00] sm:$0xff]
        %v1263 = vld [vmem:[#allocation2 + $0xf08] sm:$0xff]
        %v1264 = vld [vmem:[#allocation2 + $0xf10] sm:$0xff]
        %v1265 = vld [vmem:[#allocation2 + $0xf18] sm:$0xff]
        %v1266 = vld [vmem:[#allocation2 + $0xf20] sm:$0xff]
        %v1267 = vld [vmem:[#allocation2 + $0xf28] sm:$0xff]
        %v1268 = vld [vmem:[#allocation2 + $0xf30] sm:$0xff]
        %v1269 = vld [vmem:[#allocation2 + $0xf38] sm:$0xff]
        %v1270 = vld [vmem:[#allocation2 + $0xf40] sm:$0xff]
        %v1271 = vld [vmem:[#allocation2 + $0xf48] sm:$0xff]
        %v1272 = vld [vmem:[#allocation2 + $0xf50] sm:$0xff]
        %v1273 = vld [vmem:[#allocation2 + $0xf58] sm:$0xff]
        %v1274 = vld [vmem:[#allocation2 + $0xf60] sm:$0xff]
        %v1275 = vld [vmem:[#allocation2 + $0xf68] sm:$0xff]
        %v1276 = vld [vmem:[#allocation2 + $0xf70] sm:$0xff]
        %v1277 = vld [vmem:[#allocation2 + $0xf78] sm:$0xff]
        %v1278 = vld [vmem:[#allocation2 + $0xf80] sm:$0xff]
        %v1279 = vld [vmem:[#allocation2 + $0xf88] sm:$0xff]
        %v1280 = vld [vmem:[#allocation2 + $0xf90] sm:$0xff]
        %v1281 = vld [vmem:[#allocation2 + $0xf98] sm:$0xff]
        %v1282 = vld [vmem:[#allocation2 + $0xfa0] sm:$0xff]
        %v1283 = vld [vmem:[#allocation2 + $0xfa8] sm:$0xff]
        %v1284 = vld [vmem:[#allocation2 + $0xfb0] sm:$0xff]
        %v1285 = vld [vmem:[#allocation2 + $0xfb8] sm:$0xff]
        %v1286 = vld [vmem:[#allocation2 + $0xfc0] sm:$0xff]
        %v1287 = vld [vmem:[#allocation2 + $0xfc8] sm:$0xff]
        %v1288 = vld [vmem:[#allocation2 + $0xfd0] sm:$0xff]
        %v1289 = vld [vmem:[#allocation2 + $0xfd8] sm:$0xff]
        %v1290 = vld [vmem:[#allocation2 + $0xfe0] sm:$0xff]
        %v1291 = vld [vmem:[#allocation2 + $0xfe8] sm:$0xff]
        %v1292 = vld [vmem:[#allocation2 + $0xff0] sm:$0xff]
        %v1293 = vld [vmem:[#allocation2 + $0xff8] sm:$0xff]
        %v1294 = vld [vmem:[%s229] sm:$0xf]
        %v1295 = vld [vmem:[%s229 + $0x4] sm:$0xf]
        %v1296 = vld [vmem:[%s229 + $0x8] sm:$0xf]
        %v1297 = vld [vmem:[%s229 + $0xc] sm:$0xf]
        %v1298 = vld [vmem:[%s229 + $0x10] sm:$0xf]
        %v1299 = vld [vmem:[%s229 + $0x14] sm:$0xf]
        %v1300 = vld [vmem:[%s229 + $0x18] sm:$0xf]
        %v1301 = vld [vmem:[%s229 + $0x1c] sm:$0xf]
        %v1302 = vld [vmem:[%s229 + $0x20] sm:$0xf]
        %v1303 = vld [vmem:[%s229 + $0x24] sm:$0xf]
        %v1304 = vld [vmem:[%s229 + $0x28] sm:$0xf]
        %v1305 = vld [vmem:[%s229 + $0x2c] sm:$0xf]
        %v1306 = vld [vmem:[%s229 + $0x30] sm:$0xf]
        %v1307 = vld [vmem:[%s229 + $0x34] sm:$0xf]
        %v1308 = vld [vmem:[%s229 + $0x38] sm:$0xf]
        %v1309 = vld [vmem:[%s229 + $0x3c] sm:$0xf]
        %v1310 = vld [vmem:[%s229 + $0x40] sm:$0xf]
        %v1311 = vld [vmem:[%s229 + $0x44] sm:$0xf]
        %v1312 = vld [vmem:[%s229 + $0x48] sm:$0xf]
        %v1313 = vld [vmem:[%s229 + $0x4c] sm:$0xf]
        %v1314 = vld [vmem:[%s229 + $0x50] sm:$0xf]
        %v1315 = vld [vmem:[%s229 + $0x54] sm:$0xf]
        %v1316 = vld [vmem:[%s229 + $0x58] sm:$0xf]
        %v1317 = vld [vmem:[%s229 + $0x5c] sm:$0xf]
        %v1318 = vld [vmem:[%s229 + $0x60] sm:$0xf]
        %v1319 = vld [vmem:[%s229 + $0x64] sm:$0xf]
        %v1320 = vld [vmem:[%s229 + $0x68] sm:$0xf]
        %v1321 = vld [vmem:[%s229 + $0x6c] sm:$0xf]
        %v1322 = vld [vmem:[%s229 + $0x70] sm:$0xf]
        %v1323 = vld [vmem:[%s229 + $0x74] sm:$0xf]
        %v1324 = vld [vmem:[%s229 + $0x78] sm:$0xf]
        %v1325 = vld [vmem:[%s229 + $0x7c] sm:$0xf]
        %v1326 = vld [vmem:[%s229 + $0x80] sm:$0xf]
        %v1327 = vld [vmem:[%s229 + $0x84] sm:$0xf]
        %v1328 = vld [vmem:[%s229 + $0x88] sm:$0xf]
        %v1329 = vld [vmem:[%s229 + $0x8c] sm:$0xf]
        %v1330 = vld [vmem:[%s229 + $0x90] sm:$0xf]
        %v1331 = vld [vmem:[%s229 + $0x94] sm:$0xf]
        %v1332 = vld [vmem:[%s229 + $0x98] sm:$0xf]
        %v1333 = vld [vmem:[%s229 + $0x9c] sm:$0xf]
        %v1334 = vld [vmem:[%s229 + $0xa0] sm:$0xf]
        %v1335 = vld [vmem:[%s229 + $0xa4] sm:$0xf]
        %v1336 = vld [vmem:[%s229 + $0xa8] sm:$0xf]
        %v1337 = vld [vmem:[%s229 + $0xac] sm:$0xf]
        %v1338 = vld [vmem:[%s229 + $0xb0] sm:$0xf]
        %v1339 = vld [vmem:[%s229 + $0xb4] sm:$0xf]
        %v1340 = vld [vmem:[%s229 + $0xb8] sm:$0xf]
        %v1341 = vld [vmem:[%s229 + $0xbc] sm:$0xf]
        %v1342 = vld [vmem:[%s229 + $0xc0] sm:$0xf]
        %v1343 = vld [vmem:[%s229 + $0xc4] sm:$0xf]
        %v1344 = vld [vmem:[%s229 + $0xc8] sm:$0xf]
        %v1345 = vld [vmem:[%s229 + $0xcc] sm:$0xf]
        %v1346 = vld [vmem:[%s229 + $0xd0] sm:$0xf]
        %v1347 = vld [vmem:[%s229 + $0xd4] sm:$0xf]
        %v1348 = vld [vmem:[%s229 + $0xd8] sm:$0xf]
        %v1349 = vld [vmem:[%s229 + $0xdc] sm:$0xf]
        %v1350 = vld [vmem:[%s229 + $0xe0] sm:$0xf]
        %v1351 = vld [vmem:[%s229 + $0xe4] sm:$0xf]
        %v1352 = vld [vmem:[%s229 + $0xe8] sm:$0xf]
        %v1353 = vld [vmem:[%s229 + $0xec] sm:$0xf]
        %v1354 = vld [vmem:[%s229 + $0xf0] sm:$0xf]
        %v1355 = vld [vmem:[%s229 + $0xf4] sm:$0xf]
        %v1356 = vld [vmem:[%s229 + $0xf8] sm:$0xf]
        %v1357 = vld [vmem:[%s229 + $0xfc] sm:$0xf]
        %v1358 = vld [vmem:[%s229 + $0x100] sm:$0xf]
        %v1359 = vld [vmem:[%s229 + $0x104] sm:$0xf]
        %v1360 = vld [vmem:[%s229 + $0x108] sm:$0xf]
        %v1361 = vld [vmem:[%s229 + $0x10c] sm:$0xf]
        %v1362 = vld [vmem:[%s229 + $0x110] sm:$0xf]
        %v1363 = vld [vmem:[%s229 + $0x114] sm:$0xf]
        %v1364 = vld [vmem:[%s229 + $0x118] sm:$0xf]
        %v1365 = vld [vmem:[%s229 + $0x11c] sm:$0xf]
        %v1366 = vld [vmem:[%s229 + $0x120] sm:$0xf]
        %v1367 = vld [vmem:[%s229 + $0x124] sm:$0xf]
        %v1368 = vld [vmem:[%s229 + $0x128] sm:$0xf]
        %v1369 = vld [vmem:[%s229 + $0x12c] sm:$0xf]
        %v1370 = vld [vmem:[%s229 + $0x130] sm:$0xf]
        %v1371 = vld [vmem:[%s229 + $0x134] sm:$0xf]
        %v1372 = vld [vmem:[%s229 + $0x138] sm:$0xf]
        %v1373 = vld [vmem:[%s229 + $0x13c] sm:$0xf]
        %v1374 = vld [vmem:[%s229 + $0x140] sm:$0xf]
        %v1375 = vld [vmem:[%s229 + $0x144] sm:$0xf]
        %v1376 = vld [vmem:[%s229 + $0x148] sm:$0xf]
        %v1377 = vld [vmem:[%s229 + $0x14c] sm:$0xf]
        %v1378 = vld [vmem:[%s229 + $0x150] sm:$0xf]
        %v1379 = vld [vmem:[%s229 + $0x154] sm:$0xf]
        %v1380 = vld [vmem:[%s229 + $0x158] sm:$0xf]
        %v1381 = vld [vmem:[%s229 + $0x15c] sm:$0xf]
        %v1382 = vld [vmem:[%s229 + $0x160] sm:$0xf]
        %v1383 = vld [vmem:[%s229 + $0x164] sm:$0xf]
        %v1384 = vld [vmem:[%s229 + $0x168] sm:$0xf]
        %v1385 = vld [vmem:[%s229 + $0x16c] sm:$0xf]
        %v1386 = vld [vmem:[%s229 + $0x170] sm:$0xf]
        %v1387 = vld [vmem:[%s229 + $0x174] sm:$0xf]
        %v1388 = vld [vmem:[%s229 + $0x178] sm:$0xf]
        %v1389 = vld [vmem:[%s229 + $0x17c] sm:$0xf]
        %v1390 = vld [vmem:[%s229 + $0x180] sm:$0xf]
        %v1391 = vld [vmem:[%s229 + $0x184] sm:$0xf]
        %v1392 = vld [vmem:[%s229 + $0x188] sm:$0xf]
        %v1393 = vld [vmem:[%s229 + $0x18c] sm:$0xf]
        %v1394 = vld [vmem:[%s229 + $0x190] sm:$0xf]
        %v1395 = vld [vmem:[%s229 + $0x194] sm:$0xf]
        %v1396 = vld [vmem:[%s229 + $0x198] sm:$0xf]
        %v1397 = vld [vmem:[%s229 + $0x19c] sm:$0xf]
        %v1398 = vld [vmem:[%s229 + $0x1a0] sm:$0xf]
        %v1399 = vld [vmem:[%s229 + $0x1a4] sm:$0xf]
        %v1400 = vld [vmem:[%s229 + $0x1a8] sm:$0xf]
        %v1401 = vld [vmem:[%s229 + $0x1ac] sm:$0xf]
        %v1402 = vld [vmem:[%s229 + $0x1b0] sm:$0xf]
        %v1403 = vld [vmem:[%s229 + $0x1b4] sm:$0xf]
        %v1404 = vld [vmem:[%s229 + $0x1b8] sm:$0xf]
        %v1405 = vld [vmem:[%s229 + $0x1bc] sm:$0xf]
        %v1406 = vld [vmem:[%s229 + $0x1c0] sm:$0xf]
        %v1407 = vld [vmem:[%s229 + $0x1c4] sm:$0xf]
        %v1408 = vld [vmem:[%s229 + $0x1c8] sm:$0xf]
        %v1409 = vld [vmem:[%s229 + $0x1cc] sm:$0xf]
        %v1410 = vld [vmem:[%s229 + $0x1d0] sm:$0xf]
        %v1411 = vld [vmem:[%s229 + $0x1d4] sm:$0xf]
        %v1412 = vld [vmem:[%s229 + $0x1d8] sm:$0xf]
        %v1413 = vld [vmem:[%s229 + $0x1dc] sm:$0xf]
        %v1414 = vld [vmem:[%s229 + $0x1e0] sm:$0xf]
        %v1415 = vld [vmem:[%s229 + $0x1e4] sm:$0xf]
        %v1416 = vld [vmem:[%s229 + $0x1e8] sm:$0xf]
        %v1417 = vld [vmem:[%s229 + $0x1ec] sm:$0xf]
        %v1418 = vld [vmem:[%s229 + $0x1f0] sm:$0xf]
        %v1419 = vld [vmem:[%s229 + $0x1f4] sm:$0xf]
        %v1420 = vld [vmem:[%s229 + $0x1f8] sm:$0xf]
        %v1421 = vld [vmem:[%s229 + $0x1fc] sm:$0xf]
        %v1422 = vld [vmem:[%s229 + $0x200] sm:$0xf]
        %v1423 = vld [vmem:[%s229 + $0x204] sm:$0xf]
        %v1424 = vld [vmem:[%s229 + $0x208] sm:$0xf]
        %v1425 = vld [vmem:[%s229 + $0x20c] sm:$0xf]
        %v1426 = vld [vmem:[%s229 + $0x210] sm:$0xf]
        %v1427 = vld [vmem:[%s229 + $0x214] sm:$0xf]
        %v1428 = vld [vmem:[%s229 + $0x218] sm:$0xf]
        %v1429 = vld [vmem:[%s229 + $0x21c] sm:$0xf]
        %v1430 = vld [vmem:[%s229 + $0x220] sm:$0xf]
        %v1431 = vld [vmem:[%s229 + $0x224] sm:$0xf]
        %v1432 = vld [vmem:[%s229 + $0x228] sm:$0xf]
        %v1433 = vld [vmem:[%s229 + $0x22c] sm:$0xf]
        %v1434 = vld [vmem:[%s229 + $0x230] sm:$0xf]
        %v1435 = vld [vmem:[%s229 + $0x234] sm:$0xf]
        %v1436 = vld [vmem:[%s229 + $0x238] sm:$0xf]
        %v1437 = vld [vmem:[%s229 + $0x23c] sm:$0xf]
        %v1438 = vld [vmem:[%s229 + $0x240] sm:$0xf]
        %v1439 = vld [vmem:[%s229 + $0x244] sm:$0xf]
        %v1440 = vld [vmem:[%s229 + $0x248] sm:$0xf]
        %v1441 = vld [vmem:[%s229 + $0x24c] sm:$0xf]
        %v1442 = vld [vmem:[%s229 + $0x250] sm:$0xf]
        %v1443 = vld [vmem:[%s229 + $0x254] sm:$0xf]
        %v1444 = vld [vmem:[%s229 + $0x258] sm:$0xf]
        %v1445 = vld [vmem:[%s229 + $0x25c] sm:$0xf]
        %v1446 = vld [vmem:[%s229 + $0x260] sm:$0xf]
        %v1447 = vld [vmem:[%s229 + $0x264] sm:$0xf]
        %v1448 = vld [vmem:[%s229 + $0x268] sm:$0xf]
        %v1449 = vld [vmem:[%s229 + $0x26c] sm:$0xf]
        %v1450 = vld [vmem:[%s229 + $0x270] sm:$0xf]
        %v1451 = vld [vmem:[%s229 + $0x274] sm:$0xf]
        %v1452 = vld [vmem:[%s229 + $0x278] sm:$0xf]
        %v1453 = vld [vmem:[%s229 + $0x27c] sm:$0xf]
        %v1454 = vld [vmem:[%s229 + $0x280] sm:$0xf]
        %v1455 = vld [vmem:[%s229 + $0x284] sm:$0xf]
        %v1456 = vld [vmem:[%s229 + $0x288] sm:$0xf]
        %v1457 = vld [vmem:[%s229 + $0x28c] sm:$0xf]
        %v1458 = vld [vmem:[%s229 + $0x290] sm:$0xf]
        %v1459 = vld [vmem:[%s229 + $0x294] sm:$0xf]
        %v1460 = vld [vmem:[%s229 + $0x298] sm:$0xf]
        %v1461 = vld [vmem:[%s229 + $0x29c] sm:$0xf]
        %v1462 = vld [vmem:[%s229 + $0x2a0] sm:$0xf]
        %v1463 = vld [vmem:[%s229 + $0x2a4] sm:$0xf]
        %v1464 = vld [vmem:[%s229 + $0x2a8] sm:$0xf]
        %v1465 = vld [vmem:[%s229 + $0x2ac] sm:$0xf]
        %v1466 = vld [vmem:[%s229 + $0x2b0] sm:$0xf]
        %v1467 = vld [vmem:[%s229 + $0x2b4] sm:$0xf]
        %v1468 = vld [vmem:[%s229 + $0x2b8] sm:$0xf]
        %v1469 = vld [vmem:[%s229 + $0x2bc] sm:$0xf]
        %v1470 = vld [vmem:[%s229 + $0x2c0] sm:$0xf]
        %v1471 = vld [vmem:[%s229 + $0x2c4] sm:$0xf]
        %v1472 = vld [vmem:[%s229 + $0x2c8] sm:$0xf]
        %v1473 = vld [vmem:[%s229 + $0x2cc] sm:$0xf]
        %v1474 = vld [vmem:[%s229 + $0x2d0] sm:$0xf]
        %v1475 = vld [vmem:[%s229 + $0x2d4] sm:$0xf]
        %v1476 = vld [vmem:[%s229 + $0x2d8] sm:$0xf]
        %v1477 = vld [vmem:[%s229 + $0x2dc] sm:$0xf]
        %v1478 = vld [vmem:[%s229 + $0x2e0] sm:$0xf]
        %v1479 = vld [vmem:[%s229 + $0x2e4] sm:$0xf]
        %v1480 = vld [vmem:[%s229 + $0x2e8] sm:$0xf]
        %v1481 = vld [vmem:[%s229 + $0x2ec] sm:$0xf]
        %v1482 = vld [vmem:[%s229 + $0x2f0] sm:$0xf]
        %v1483 = vld [vmem:[%s229 + $0x2f4] sm:$0xf]
        %v1484 = vld [vmem:[%s229 + $0x2f8] sm:$0xf]
        %v1485 = vld [vmem:[%s229 + $0x2fc] sm:$0xf]
        %v1486 = vld [vmem:[%s229 + $0x300] sm:$0xf]
        %v1487 = vld [vmem:[%s229 + $0x304] sm:$0xf]
        %v1488 = vld [vmem:[%s229 + $0x308] sm:$0xf]
        %v1489 = vld [vmem:[%s229 + $0x30c] sm:$0xf]
        %v1490 = vld [vmem:[%s229 + $0x310] sm:$0xf]
        %v1491 = vld [vmem:[%s229 + $0x314] sm:$0xf]
        %v1492 = vld [vmem:[%s229 + $0x318] sm:$0xf]
        %v1493 = vld [vmem:[%s229 + $0x31c] sm:$0xf]
        %v1494 = vld [vmem:[%s229 + $0x320] sm:$0xf]
        %v1495 = vld [vmem:[%s229 + $0x324] sm:$0xf]
        %v1496 = vld [vmem:[%s229 + $0x328] sm:$0xf]
        %v1497 = vld [vmem:[%s229 + $0x32c] sm:$0xf]
        %v1498 = vld [vmem:[%s229 + $0x330] sm:$0xf]
        %v1499 = vld [vmem:[%s229 + $0x334] sm:$0xf]
        %v1500 = vld [vmem:[%s229 + $0x338] sm:$0xf]
        %v1501 = vld [vmem:[%s229 + $0x33c] sm:$0xf]
        %v1502 = vld [vmem:[%s229 + $0x340] sm:$0xf]
        %v1503 = vld [vmem:[%s229 + $0x344] sm:$0xf]
        %v1504 = vld [vmem:[%s229 + $0x348] sm:$0xf]
        %v1505 = vld [vmem:[%s229 + $0x34c] sm:$0xf]
        %v1506 = vld [vmem:[%s229 + $0x350] sm:$0xf]
        %v1507 = vld [vmem:[%s229 + $0x354] sm:$0xf]
        %v1508 = vld [vmem:[%s229 + $0x358] sm:$0xf]
        %v1509 = vld [vmem:[%s229 + $0x35c] sm:$0xf]
        %v1510 = vld [vmem:[%s229 + $0x360] sm:$0xf]
        %v1511 = vld [vmem:[%s229 + $0x364] sm:$0xf]
        %v1512 = vld [vmem:[%s229 + $0x368] sm:$0xf]
        %v1513 = vld [vmem:[%s229 + $0x36c] sm:$0xf]
        %v1514 = vld [vmem:[%s229 + $0x370] sm:$0xf]
        %v1515 = vld [vmem:[%s229 + $0x374] sm:$0xf]
        %v1516 = vld [vmem:[%s229 + $0x378] sm:$0xf]
        %v1517 = vld [vmem:[%s229 + $0x37c] sm:$0xf]
        %v1518 = vld [vmem:[%s229 + $0x380] sm:$0xf]
        %v1519 = vld [vmem:[%s229 + $0x384] sm:$0xf]
        %v1520 = vld [vmem:[%s229 + $0x388] sm:$0xf]
        %v1521 = vld [vmem:[%s229 + $0x38c] sm:$0xf]
        %v1522 = vld [vmem:[%s229 + $0x390] sm:$0xf]
        %v1523 = vld [vmem:[%s229 + $0x394] sm:$0xf]
        %v1524 = vld [vmem:[%s229 + $0x398] sm:$0xf]
        %v1525 = vld [vmem:[%s229 + $0x39c] sm:$0xf]
        %v1526 = vld [vmem:[%s229 + $0x3a0] sm:$0xf]
        %v1527 = vld [vmem:[%s229 + $0x3a4] sm:$0xf]
        %v1528 = vld [vmem:[%s229 + $0x3a8] sm:$0xf]
        %v1529 = vld [vmem:[%s229 + $0x3ac] sm:$0xf]
        %v1530 = vld [vmem:[%s229 + $0x3b0] sm:$0xf]
        %v1531 = vld [vmem:[%s229 + $0x3b4] sm:$0xf]
        %v1532 = vld [vmem:[%s229 + $0x3b8] sm:$0xf]
        %v1533 = vld [vmem:[%s229 + $0x3bc] sm:$0xf]
        %v1534 = vld [vmem:[%s229 + $0x3c0] sm:$0xf]
        %v1535 = vld [vmem:[%s229 + $0x3c4] sm:$0xf]
        %v1536 = vld [vmem:[%s229 + $0x3c8] sm:$0xf]
        %v1537 = vld [vmem:[%s229 + $0x3cc] sm:$0xf]
        %v1538 = vld [vmem:[%s229 + $0x3d0] sm:$0xf]
        %v1539 = vld [vmem:[%s229 + $0x3d4] sm:$0xf]
        %v1540 = vld [vmem:[%s229 + $0x3d8] sm:$0xf]
        %v1541 = vld [vmem:[%s229 + $0x3dc] sm:$0xf]
        %v1542 = vld [vmem:[%s229 + $0x3e0] sm:$0xf]
        %v1543 = vld [vmem:[%s229 + $0x3e4] sm:$0xf]
        %v1544 = vld [vmem:[%s229 + $0x3e8] sm:$0xf]
        %v1545 = vld [vmem:[%s229 + $0x3ec] sm:$0xf]
        %v1546 = vld [vmem:[%s229 + $0x3f0] sm:$0xf]
        %v1547 = vld [vmem:[%s229 + $0x3f4] sm:$0xf]
        %v1548 = vld [vmem:[%s229 + $0x3f8] sm:$0xf]
        %v1549 = vld [vmem:[%s229 + $0x3fc] sm:$0xf]
        %v1550 = vld [vmem:[%s229 + $0x400] sm:$0xf]
        %v1551 = vld [vmem:[%s229 + $0x404] sm:$0xf]
        %v1552 = vld [vmem:[%s229 + $0x408] sm:$0xf]
        %v1553 = vld [vmem:[%s229 + $0x40c] sm:$0xf]
        %v1554 = vld [vmem:[%s229 + $0x410] sm:$0xf]
        %v1555 = vld [vmem:[%s229 + $0x414] sm:$0xf]
        %v1556 = vld [vmem:[%s229 + $0x418] sm:$0xf]
        %v1557 = vld [vmem:[%s229 + $0x41c] sm:$0xf]
        %v1558 = vld [vmem:[%s229 + $0x420] sm:$0xf]
        %v1559 = vld [vmem:[%s229 + $0x424] sm:$0xf]
        %v1560 = vld [vmem:[%s229 + $0x428] sm:$0xf]
        %v1561 = vld [vmem:[%s229 + $0x42c] sm:$0xf]
        %v1562 = vld [vmem:[%s229 + $0x430] sm:$0xf]
        %v1563 = vld [vmem:[%s229 + $0x434] sm:$0xf]
        %v1564 = vld [vmem:[%s229 + $0x438] sm:$0xf]
        %v1565 = vld [vmem:[%s229 + $0x43c] sm:$0xf]
        %v1566 = vld [vmem:[%s229 + $0x440] sm:$0xf]
        %v1567 = vld [vmem:[%s229 + $0x444] sm:$0xf]
        %v1568 = vld [vmem:[%s229 + $0x448] sm:$0xf]
        %v1569 = vld [vmem:[%s229 + $0x44c] sm:$0xf]
        %v1570 = vld [vmem:[%s229 + $0x450] sm:$0xf]
        %v1571 = vld [vmem:[%s229 + $0x454] sm:$0xf]
        %v1572 = vld [vmem:[%s229 + $0x458] sm:$0xf]
        %v1573 = vld [vmem:[%s229 + $0x45c] sm:$0xf]
        %v1574 = vld [vmem:[%s229 + $0x460] sm:$0xf]
        %v1575 = vld [vmem:[%s229 + $0x464] sm:$0xf]
        %v1576 = vld [vmem:[%s229 + $0x468] sm:$0xf]
        %v1577 = vld [vmem:[%s229 + $0x46c] sm:$0xf]
        %v1578 = vld [vmem:[%s229 + $0x470] sm:$0xf]
        %v1579 = vld [vmem:[%s229 + $0x474] sm:$0xf]
        %v1580 = vld [vmem:[%s229 + $0x478] sm:$0xf]
        %v1581 = vld [vmem:[%s229 + $0x47c] sm:$0xf]
        %v1582 = vld [vmem:[%s229 + $0x480] sm:$0xf]
        %v1583 = vld [vmem:[%s229 + $0x484] sm:$0xf]
        %v1584 = vld [vmem:[%s229 + $0x488] sm:$0xf]
        %v1585 = vld [vmem:[%s229 + $0x48c] sm:$0xf]
        %v1586 = vld [vmem:[%s229 + $0x490] sm:$0xf]
        %v1587 = vld [vmem:[%s229 + $0x494] sm:$0xf]
        %v1588 = vld [vmem:[%s229 + $0x498] sm:$0xf]
        %v1589 = vld [vmem:[%s229 + $0x49c] sm:$0xf]
        %v1590 = vld [vmem:[%s229 + $0x4a0] sm:$0xf]
        %v1591 = vld [vmem:[%s229 + $0x4a4] sm:$0xf]
        %v1592 = vld [vmem:[%s229 + $0x4a8] sm:$0xf]
        %v1593 = vld [vmem:[%s229 + $0x4ac] sm:$0xf]
        %v1594 = vld [vmem:[%s229 + $0x4b0] sm:$0xf]
        %v1595 = vld [vmem:[%s229 + $0x4b4] sm:$0xf]
        %v1596 = vld [vmem:[%s229 + $0x4b8] sm:$0xf]
        %v1597 = vld [vmem:[%s229 + $0x4bc] sm:$0xf]
        %v1598 = vld [vmem:[%s229 + $0x4c0] sm:$0xf]
        %v1599 = vld [vmem:[%s229 + $0x4c4] sm:$0xf]
        %v1600 = vld [vmem:[%s229 + $0x4c8] sm:$0xf]
        %v1601 = vld [vmem:[%s229 + $0x4cc] sm:$0xf]
        %v1602 = vld [vmem:[%s229 + $0x4d0] sm:$0xf]
        %v1603 = vld [vmem:[%s229 + $0x4d4] sm:$0xf]
        %v1604 = vld [vmem:[%s229 + $0x4d8] sm:$0xf]
        %v1605 = vld [vmem:[%s229 + $0x4dc] sm:$0xf]
        %v1606 = vld [vmem:[%s229 + $0x4e0] sm:$0xf]
        %v1607 = vld [vmem:[%s229 + $0x4e4] sm:$0xf]
        %v1608 = vld [vmem:[%s229 + $0x4e8] sm:$0xf]
        %v1609 = vld [vmem:[%s229 + $0x4ec] sm:$0xf]
        %v1610 = vld [vmem:[%s229 + $0x4f0] sm:$0xf]
        %v1611 = vld [vmem:[%s229 + $0x4f4] sm:$0xf]
        %v1612 = vld [vmem:[%s229 + $0x4f8] sm:$0xf]
        %v1613 = vld [vmem:[%s229 + $0x4fc] sm:$0xf]
        %v1614 = vld [vmem:[%s229 + $0x500] sm:$0xf]
        %v1615 = vld [vmem:[%s229 + $0x504] sm:$0xf]
        %v1616 = vld [vmem:[%s229 + $0x508] sm:$0xf]
        %v1617 = vld [vmem:[%s229 + $0x50c] sm:$0xf]
        %v1618 = vld [vmem:[%s229 + $0x510] sm:$0xf]
        %v1619 = vld [vmem:[%s229 + $0x514] sm:$0xf]
        %v1620 = vld [vmem:[%s229 + $0x518] sm:$0xf]
        %v1621 = vld [vmem:[%s229 + $0x51c] sm:$0xf]
        %v1622 = vld [vmem:[%s229 + $0x520] sm:$0xf]
        %v1623 = vld [vmem:[%s229 + $0x524] sm:$0xf]
        %v1624 = vld [vmem:[%s229 + $0x528] sm:$0xf]
        %v1625 = vld [vmem:[%s229 + $0x52c] sm:$0xf]
        %v1626 = vld [vmem:[%s229 + $0x530] sm:$0xf]
        %v1627 = vld [vmem:[%s229 + $0x534] sm:$0xf]
        %v1628 = vld [vmem:[%s229 + $0x538] sm:$0xf]
        %v1629 = vld [vmem:[%s229 + $0x53c] sm:$0xf]
        %v1630 = vld [vmem:[%s229 + $0x540] sm:$0xf]
        %v1631 = vld [vmem:[%s229 + $0x544] sm:$0xf]
        %v1632 = vld [vmem:[%s229 + $0x548] sm:$0xf]
        %v1633 = vld [vmem:[%s229 + $0x54c] sm:$0xf]
        %v1634 = vld [vmem:[%s229 + $0x550] sm:$0xf]
        %v1635 = vld [vmem:[%s229 + $0x554] sm:$0xf]
        %v1636 = vld [vmem:[%s229 + $0x558] sm:$0xf]
        %v1637 = vld [vmem:[%s229 + $0x55c] sm:$0xf]
        %v1638 = vld [vmem:[%s229 + $0x560] sm:$0xf]
        %v1639 = vld [vmem:[%s229 + $0x564] sm:$0xf]
        %v1640 = vld [vmem:[%s229 + $0x568] sm:$0xf]
        %v1641 = vld [vmem:[%s229 + $0x56c] sm:$0xf]
        %v1642 = vld [vmem:[%s229 + $0x570] sm:$0xf]
        %v1643 = vld [vmem:[%s229 + $0x574] sm:$0xf]
        %v1644 = vld [vmem:[%s229 + $0x578] sm:$0xf]
        %v1645 = vld [vmem:[%s229 + $0x57c] sm:$0xf]
        %v1646 = vld [vmem:[%s229 + $0x580] sm:$0xf]
        %v1647 = vld [vmem:[%s229 + $0x584] sm:$0xf]
        %v1648 = vld [vmem:[%s229 + $0x588] sm:$0xf]
        %v1649 = vld [vmem:[%s229 + $0x58c] sm:$0xf]
        %v1650 = vld [vmem:[%s229 + $0x590] sm:$0xf]
        %v1651 = vld [vmem:[%s229 + $0x594] sm:$0xf]
        %v1652 = vld [vmem:[%s229 + $0x598] sm:$0xf]
        %v1653 = vld [vmem:[%s229 + $0x59c] sm:$0xf]
        %v1654 = vld [vmem:[%s229 + $0x5a0] sm:$0xf]
        %v1655 = vld [vmem:[%s229 + $0x5a4] sm:$0xf]
        %v1656 = vld [vmem:[%s229 + $0x5a8] sm:$0xf]
        %v1657 = vld [vmem:[%s229 + $0x5ac] sm:$0xf]
        %v1658 = vld [vmem:[%s229 + $0x5b0] sm:$0xf]
        %v1659 = vld [vmem:[%s229 + $0x5b4] sm:$0xf]
        %v1660 = vld [vmem:[%s229 + $0x5b8] sm:$0xf]
        %v1661 = vld [vmem:[%s229 + $0x5bc] sm:$0xf]
        %v1662 = vld [vmem:[%s229 + $0x5c0] sm:$0xf]
        %v1663 = vld [vmem:[%s229 + $0x5c4] sm:$0xf]
        %v1664 = vld [vmem:[%s229 + $0x5c8] sm:$0xf]
        %v1665 = vld [vmem:[%s229 + $0x5cc] sm:$0xf]
        %v1666 = vld [vmem:[%s229 + $0x5d0] sm:$0xf]
        %v1667 = vld [vmem:[%s229 + $0x5d4] sm:$0xf]
        %v1668 = vld [vmem:[%s229 + $0x5d8] sm:$0xf]
        %v1669 = vld [vmem:[%s229 + $0x5dc] sm:$0xf]
        %v1670 = vld [vmem:[%s229 + $0x5e0] sm:$0xf]
        %v1671 = vld [vmem:[%s229 + $0x5e4] sm:$0xf]
        %v1672 = vld [vmem:[%s229 + $0x5e8] sm:$0xf]
        %v1673 = vld [vmem:[%s229 + $0x5ec] sm:$0xf]
        %v1674 = vld [vmem:[%s229 + $0x5f0] sm:$0xf]
        %v1675 = vld [vmem:[%s229 + $0x5f4] sm:$0xf]
        %v1676 = vld [vmem:[%s229 + $0x5f8] sm:$0xf]
        %v1677 = vld [vmem:[%s229 + $0x5fc] sm:$0xf]
        %v1678 = vld [vmem:[%s229 + $0x600] sm:$0xf]
        %v1679 = vld [vmem:[%s229 + $0x604] sm:$0xf]
        %v1680 = vld [vmem:[%s229 + $0x608] sm:$0xf]
        %v1681 = vld [vmem:[%s229 + $0x60c] sm:$0xf]
        %v1682 = vld [vmem:[%s229 + $0x610] sm:$0xf]
        %v1683 = vld [vmem:[%s229 + $0x614] sm:$0xf]
        %v1684 = vld [vmem:[%s229 + $0x618] sm:$0xf]
        %v1685 = vld [vmem:[%s229 + $0x61c] sm:$0xf]
        %v1686 = vld [vmem:[%s229 + $0x620] sm:$0xf]
        %v1687 = vld [vmem:[%s229 + $0x624] sm:$0xf]
        %v1688 = vld [vmem:[%s229 + $0x628] sm:$0xf]
        %v1689 = vld [vmem:[%s229 + $0x62c] sm:$0xf]
        %v1690 = vld [vmem:[%s229 + $0x630] sm:$0xf]
        %v1691 = vld [vmem:[%s229 + $0x634] sm:$0xf]
        %v1692 = vld [vmem:[%s229 + $0x638] sm:$0xf]
        %v1693 = vld [vmem:[%s229 + $0x63c] sm:$0xf]
        %v1694 = vld [vmem:[%s229 + $0x640] sm:$0xf]
        %v1695 = vld [vmem:[%s229 + $0x644] sm:$0xf]
        %v1696 = vld [vmem:[%s229 + $0x648] sm:$0xf]
        %v1697 = vld [vmem:[%s229 + $0x64c] sm:$0xf]
        %v1698 = vld [vmem:[%s229 + $0x650] sm:$0xf]
        %v1699 = vld [vmem:[%s229 + $0x654] sm:$0xf]
        %v1700 = vld [vmem:[%s229 + $0x658] sm:$0xf]
        %v1701 = vld [vmem:[%s229 + $0x65c] sm:$0xf]
        %v1702 = vld [vmem:[%s229 + $0x660] sm:$0xf]
        %v1703 = vld [vmem:[%s229 + $0x664] sm:$0xf]
        %v1704 = vld [vmem:[%s229 + $0x668] sm:$0xf]
        %v1705 = vld [vmem:[%s229 + $0x66c] sm:$0xf]
        %v1706 = vld [vmem:[%s229 + $0x670] sm:$0xf]
        %v1707 = vld [vmem:[%s229 + $0x674] sm:$0xf]
        %v1708 = vld [vmem:[%s229 + $0x678] sm:$0xf]
        %v1709 = vld [vmem:[%s229 + $0x67c] sm:$0xf]
        %v1710 = vld [vmem:[%s229 + $0x680] sm:$0xf]
        %v1711 = vld [vmem:[%s229 + $0x684] sm:$0xf]
        %v1712 = vld [vmem:[%s229 + $0x688] sm:$0xf]
        %v1713 = vld [vmem:[%s229 + $0x68c] sm:$0xf]
        %v1714 = vld [vmem:[%s229 + $0x690] sm:$0xf]
        %v1715 = vld [vmem:[%s229 + $0x694] sm:$0xf]
        %v1716 = vld [vmem:[%s229 + $0x698] sm:$0xf]
        %v1717 = vld [vmem:[%s229 + $0x69c] sm:$0xf]
        %v1718 = vld [vmem:[%s229 + $0x6a0] sm:$0xf]
        %v1719 = vld [vmem:[%s229 + $0x6a4] sm:$0xf]
        %v1720 = vld [vmem:[%s229 + $0x6a8] sm:$0xf]
        %v1721 = vld [vmem:[%s229 + $0x6ac] sm:$0xf]
        %v1722 = vld [vmem:[%s229 + $0x6b0] sm:$0xf]
        %v1723 = vld [vmem:[%s229 + $0x6b4] sm:$0xf]
        %v1724 = vld [vmem:[%s229 + $0x6b8] sm:$0xf]
        %v1725 = vld [vmem:[%s229 + $0x6bc] sm:$0xf]
        %v1726 = vld [vmem:[%s229 + $0x6c0] sm:$0xf]
        %v1727 = vld [vmem:[%s229 + $0x6c4] sm:$0xf]
        %v1728 = vld [vmem:[%s229 + $0x6c8] sm:$0xf]
        %v1729 = vld [vmem:[%s229 + $0x6cc] sm:$0xf]
        %v1730 = vld [vmem:[%s229 + $0x6d0] sm:$0xf]
        %v1731 = vld [vmem:[%s229 + $0x6d4] sm:$0xf]
        %v1732 = vld [vmem:[%s229 + $0x6d8] sm:$0xf]
        %v1733 = vld [vmem:[%s229 + $0x6dc] sm:$0xf]
        %v1734 = vld [vmem:[%s229 + $0x6e0] sm:$0xf]
        %v1735 = vld [vmem:[%s229 + $0x6e4] sm:$0xf]
        %v1736 = vld [vmem:[%s229 + $0x6e8] sm:$0xf]
        %v1737 = vld [vmem:[%s229 + $0x6ec] sm:$0xf]
        %v1738 = vld [vmem:[%s229 + $0x6f0] sm:$0xf]
        %v1739 = vld [vmem:[%s229 + $0x6f4] sm:$0xf]
        %v1740 = vld [vmem:[%s229 + $0x6f8] sm:$0xf]
        %v1741 = vld [vmem:[%s229 + $0x6fc] sm:$0xf]
        %v1742 = vld [vmem:[%s229 + $0x700] sm:$0xf]
        %v1743 = vld [vmem:[%s229 + $0x704] sm:$0xf]
        %v1744 = vld [vmem:[%s229 + $0x708] sm:$0xf]
        %v1745 = vld [vmem:[%s229 + $0x70c] sm:$0xf]
        %v1746 = vld [vmem:[%s229 + $0x710] sm:$0xf]
        %v1747 = vld [vmem:[%s229 + $0x714] sm:$0xf]
        %v1748 = vld [vmem:[%s229 + $0x718] sm:$0xf]
        %v1749 = vld [vmem:[%s229 + $0x71c] sm:$0xf]
        %v1750 = vld [vmem:[%s229 + $0x720] sm:$0xf]
        %v1751 = vld [vmem:[%s229 + $0x724] sm:$0xf]
        %v1752 = vld [vmem:[%s229 + $0x728] sm:$0xf]
        %v1753 = vld [vmem:[%s229 + $0x72c] sm:$0xf]
        %v1754 = vld [vmem:[%s229 + $0x730] sm:$0xf]
        %v1755 = vld [vmem:[%s229 + $0x734] sm:$0xf]
        %v1756 = vld [vmem:[%s229 + $0x738] sm:$0xf]
        %v1757 = vld [vmem:[%s229 + $0x73c] sm:$0xf]
        %v1758 = vld [vmem:[%s229 + $0x740] sm:$0xf]
        %v1759 = vld [vmem:[%s229 + $0x744] sm:$0xf]
        %v1760 = vld [vmem:[%s229 + $0x748] sm:$0xf]
        %v1761 = vld [vmem:[%s229 + $0x74c] sm:$0xf]
        %v1762 = vld [vmem:[%s229 + $0x750] sm:$0xf]
        %v1763 = vld [vmem:[%s229 + $0x754] sm:$0xf]
        %v1764 = vld [vmem:[%s229 + $0x758] sm:$0xf]
        %v1765 = vld [vmem:[%s229 + $0x75c] sm:$0xf]
        %v1766 = vld [vmem:[%s229 + $0x760] sm:$0xf]
        %v1767 = vld [vmem:[%s229 + $0x764] sm:$0xf]
        %v1768 = vld [vmem:[%s229 + $0x768] sm:$0xf]
        %v1769 = vld [vmem:[%s229 + $0x76c] sm:$0xf]
        %v1770 = vld [vmem:[%s229 + $0x770] sm:$0xf]
        %v1771 = vld [vmem:[%s229 + $0x774] sm:$0xf]
        %v1772 = vld [vmem:[%s229 + $0x778] sm:$0xf]
        %v1773 = vld [vmem:[%s229 + $0x77c] sm:$0xf]
        %v1774 = vld [vmem:[%s229 + $0x780] sm:$0xf]
        %v1775 = vld [vmem:[%s229 + $0x784] sm:$0xf]
        %v1776 = vld [vmem:[%s229 + $0x788] sm:$0xf]
        %v1777 = vld [vmem:[%s229 + $0x78c] sm:$0xf]
        %v1778 = vld [vmem:[%s229 + $0x790] sm:$0xf]
        %v1779 = vld [vmem:[%s229 + $0x794] sm:$0xf]
        %v1780 = vld [vmem:[%s229 + $0x798] sm:$0xf]
        %v1781 = vld [vmem:[%s229 + $0x79c] sm:$0xf]
        %v1782 = vld [vmem:[%s229 + $0x7a0] sm:$0xf]
        %v1783 = vld [vmem:[%s229 + $0x7a4] sm:$0xf]
        %v1784 = vld [vmem:[%s229 + $0x7a8] sm:$0xf]
        %v1785 = vld [vmem:[%s229 + $0x7ac] sm:$0xf]
        %v1786 = vld [vmem:[%s229 + $0x7b0] sm:$0xf]
        %v1787 = vld [vmem:[%s229 + $0x7b4] sm:$0xf]
        %v1788 = vld [vmem:[%s229 + $0x7b8] sm:$0xf]
        %v1789 = vld [vmem:[%s229 + $0x7bc] sm:$0xf]
        %v1790 = vld [vmem:[%s229 + $0x7c0] sm:$0xf]
        %v1791 = vld [vmem:[%s229 + $0x7c4] sm:$0xf]
        %v1792 = vld [vmem:[%s229 + $0x7c8] sm:$0xf]
        %v1793 = vld [vmem:[%s229 + $0x7cc] sm:$0xf]
        %v1794 = vld [vmem:[%s229 + $0x7d0] sm:$0xf]
        %v1795 = vld [vmem:[%s229 + $0x7d4] sm:$0xf]
        %v1796 = vld [vmem:[%s229 + $0x7d8] sm:$0xf]
        %v1797 = vld [vmem:[%s229 + $0x7dc] sm:$0xf]
        %v1798 = vld [vmem:[%s229 + $0x7e0] sm:$0xf]
        %v1799 = vld [vmem:[%s229 + $0x7e4] sm:$0xf]
        %v1800 = vld [vmem:[%s229 + $0x7e8] sm:$0xf]
        %v1801 = vld [vmem:[%s229 + $0x7ec] sm:$0xf]
        %v1802 = vld [vmem:[%s229 + $0x7f0] sm:$0xf]
        %v1803 = vld [vmem:[%s229 + $0x7f4] sm:$0xf]
        %v1804 = vld [vmem:[%s229 + $0x7f8] sm:$0xf]
        %v1805 = vld [vmem:[%s229 + $0x7fc] sm:$0xf]
        %v1806 = vld [vmem:[#allocation6] sm:$0xf]
        %v1807 = vld [vmem:[#allocation6 + $0x4] sm:$0xf]
        %v1808 = vld [vmem:[#allocation6 + $0x8] sm:$0xf]
        %v1809 = vld [vmem:[#allocation6 + $0xc] sm:$0xf]
        %v1810 = vld [vmem:[#allocation6 + $0x10] sm:$0xf]
        %v1811 = vld [vmem:[#allocation6 + $0x14] sm:$0xf]
        %v1812 = vld [vmem:[#allocation6 + $0x18] sm:$0xf]
        %v1813 = vld [vmem:[#allocation6 + $0x1c] sm:$0xf]
        %v1814 = vld [vmem:[#allocation6 + $0x20] sm:$0xf]
        %v1815 = vld [vmem:[#allocation6 + $0x24] sm:$0xf]
        %v1816 = vld [vmem:[#allocation6 + $0x28] sm:$0xf]
        %v1817 = vld [vmem:[#allocation6 + $0x2c] sm:$0xf]
        %v1818 = vld [vmem:[#allocation6 + $0x30] sm:$0xf]
        %v1819 = vld [vmem:[#allocation6 + $0x34] sm:$0xf]
        %v1820 = vld [vmem:[#allocation6 + $0x38] sm:$0xf]
        %v1821 = vld [vmem:[#allocation6 + $0x3c] sm:$0xf]
        %v2334 = vunpack.c.l.b16 %v1294
        %v2335 = vunpack.c.l.b16 %v1295
        %v2336 = vunpack.c.l.b16 %v1296
        %v2337 = vunpack.c.l.b16 %v1297
        %v2338 = vunpack.c.l.b16 %v1298
        %v2339 = vunpack.c.l.b16 %v1299
        %v2340 = vunpack.c.l.b16 %v1300
        %v2341 = vunpack.c.l.b16 %v1301
        %v2342 = vunpack.c.l.b16 %v1302
        %v2343 = vunpack.c.l.b16 %v1303
        %v2344 = vunpack.c.l.b16 %v1304
        %v2345 = vunpack.c.l.b16 %v1305
        %v2346 = vunpack.c.l.b16 %v1306
        %v2347 = vunpack.c.l.b16 %v1307
        %v2348 = vunpack.c.l.b16 %v1308
        %v2349 = vunpack.c.l.b16 %v1309
        %v2350 = vunpack.c.l.b16 %v1310
        %v2351 = vunpack.c.l.b16 %v1311
        %v2352 = vunpack.c.l.b16 %v1312
        %v2353 = vunpack.c.l.b16 %v1313
        %v2354 = vunpack.c.l.b16 %v1314
        %v2355 = vunpack.c.l.b16 %v1315
        %v2356 = vunpack.c.l.b16 %v1316
        %v2357 = vunpack.c.l.b16 %v1317
        %v2358 = vunpack.c.l.b16 %v1318
        %v2359 = vunpack.c.l.b16 %v1319
        %v2360 = vunpack.c.l.b16 %v1320
        %v2361 = vunpack.c.l.b16 %v1321
        %v2362 = vunpack.c.l.b16 %v1322
        %v2363 = vunpack.c.l.b16 %v1323
        %v2364 = vunpack.c.l.b16 %v1324
        %v2365 = vunpack.c.l.b16 %v1325
        %v2366 = vunpack.c.l.b16 %v1326
        %v2367 = vunpack.c.l.b16 %v1327
        %v2368 = vunpack.c.l.b16 %v1328
        %v2369 = vunpack.c.l.b16 %v1329
        %v2370 = vunpack.c.l.b16 %v1330
        %v2371 = vunpack.c.l.b16 %v1331
        %v2372 = vunpack.c.l.b16 %v1332
        %v2373 = vunpack.c.l.b16 %v1333
        %v2374 = vunpack.c.l.b16 %v1334
        %v2375 = vunpack.c.l.b16 %v1335
        %v2376 = vunpack.c.l.b16 %v1336
        %v2377 = vunpack.c.l.b16 %v1337
        %v2378 = vunpack.c.l.b16 %v1338
        %v2379 = vunpack.c.l.b16 %v1339
        %v2380 = vunpack.c.l.b16 %v1340
        %v2381 = vunpack.c.l.b16 %v1341
        %v2382 = vunpack.c.l.b16 %v1342
        %v2383 = vunpack.c.l.b16 %v1343
        %v2384 = vunpack.c.l.b16 %v1344
        %v2385 = vunpack.c.l.b16 %v1345
        %v2386 = vunpack.c.l.b16 %v1346
        %v2387 = vunpack.c.l.b16 %v1347
        %v2388 = vunpack.c.l.b16 %v1348
        %v2389 = vunpack.c.l.b16 %v1349
        %v2390 = vunpack.c.l.b16 %v1350
        %v2391 = vunpack.c.l.b16 %v1351
        %v2392 = vunpack.c.l.b16 %v1352
        %v2393 = vunpack.c.l.b16 %v1353
        %v2394 = vunpack.c.l.b16 %v1354
        %v2395 = vunpack.c.l.b16 %v1355
        %v2396 = vunpack.c.l.b16 %v1356
        %v2397 = vunpack.c.l.b16 %v1357
        %v2398 = vunpack.c.l.b16 %v1358
        %v2399 = vunpack.c.l.b16 %v1359
        %v2400 = vunpack.c.l.b16 %v1360
        %v2401 = vunpack.c.l.b16 %v1361
        %v2402 = vunpack.c.l.b16 %v1362
        %v2403 = vunpack.c.l.b16 %v1363
        %v2404 = vunpack.c.l.b16 %v1364
        %v2405 = vunpack.c.l.b16 %v1365
        %v2406 = vunpack.c.l.b16 %v1366
        %v2407 = vunpack.c.l.b16 %v1367
        %v2408 = vunpack.c.l.b16 %v1368
        %v2409 = vunpack.c.l.b16 %v1369
        %v2410 = vunpack.c.l.b16 %v1370
        %v2411 = vunpack.c.l.b16 %v1371
        %v2412 = vunpack.c.l.b16 %v1372
        %v2413 = vunpack.c.l.b16 %v1373
        %v2414 = vunpack.c.l.b16 %v1374
        %v2415 = vunpack.c.l.b16 %v1375
        %v2416 = vunpack.c.l.b16 %v1376
        %v2417 = vunpack.c.l.b16 %v1377
        %v2418 = vunpack.c.l.b16 %v1378
        %v2419 = vunpack.c.l.b16 %v1379
        %v2420 = vunpack.c.l.b16 %v1380
        %v2421 = vunpack.c.l.b16 %v1381
        %v2422 = vunpack.c.l.b16 %v1382
        %v2423 = vunpack.c.l.b16 %v1383
        %v2424 = vunpack.c.l.b16 %v1384
        %v2425 = vunpack.c.l.b16 %v1385
        %v2426 = vunpack.c.l.b16 %v1386
        %v2427 = vunpack.c.l.b16 %v1387
        %v2428 = vunpack.c.l.b16 %v1388
        %v2429 = vunpack.c.l.b16 %v1389
        %v2430 = vunpack.c.l.b16 %v1390
        %v2431 = vunpack.c.l.b16 %v1391
        %v2432 = vunpack.c.l.b16 %v1392
        %v2433 = vunpack.c.l.b16 %v1393
        %v2434 = vunpack.c.l.b16 %v1394
        %v2435 = vunpack.c.l.b16 %v1395
        %v2436 = vunpack.c.l.b16 %v1396
        %v2437 = vunpack.c.l.b16 %v1397
        %v2438 = vunpack.c.l.b16 %v1398
        %v2439 = vunpack.c.l.b16 %v1399
        %v2440 = vunpack.c.l.b16 %v1400
        %v2441 = vunpack.c.l.b16 %v1401
        %v2442 = vunpack.c.l.b16 %v1402
        %v2443 = vunpack.c.l.b16 %v1403
        %v2444 = vunpack.c.l.b16 %v1404
        %v2445 = vunpack.c.l.b16 %v1405
        %v2446 = vunpack.c.l.b16 %v1406
        %v2447 = vunpack.c.l.b16 %v1407
        %v2448 = vunpack.c.l.b16 %v1408
        %v2449 = vunpack.c.l.b16 %v1409
        %v2450 = vunpack.c.l.b16 %v1410
        %v2451 = vunpack.c.l.b16 %v1411
        %v2452 = vunpack.c.l.b16 %v1412
        %v2453 = vunpack.c.l.b16 %v1413
        %v2454 = vunpack.c.l.b16 %v1414
        %v2455 = vunpack.c.l.b16 %v1415
        %v2456 = vunpack.c.l.b16 %v1416
        %v2457 = vunpack.c.l.b16 %v1417
        %v2458 = vunpack.c.l.b16 %v1418
        %v2459 = vunpack.c.l.b16 %v1419
        %v2460 = vunpack.c.l.b16 %v1420
        %v2461 = vunpack.c.l.b16 %v1421
        %v2462 = vunpack.c.l.b16 %v1422
        %v2463 = vunpack.c.l.b16 %v1423
        %v2464 = vunpack.c.l.b16 %v1424
        %v2465 = vunpack.c.l.b16 %v1425
        %v2466 = vunpack.c.l.b16 %v1426
        %v2467 = vunpack.c.l.b16 %v1427
        %v2468 = vunpack.c.l.b16 %v1428
        %v2469 = vunpack.c.l.b16 %v1429
        %v2470 = vunpack.c.l.b16 %v1430
        %v2471 = vunpack.c.l.b16 %v1431
        %v2472 = vunpack.c.l.b16 %v1432
        %v2473 = vunpack.c.l.b16 %v1433
        %v2474 = vunpack.c.l.b16 %v1434
        %v2475 = vunpack.c.l.b16 %v1435
        %v2476 = vunpack.c.l.b16 %v1436
        %v2477 = vunpack.c.l.b16 %v1437
        %v2478 = vunpack.c.l.b16 %v1438
        %v2479 = vunpack.c.l.b16 %v1439
        %v2480 = vunpack.c.l.b16 %v1440
        %v2481 = vunpack.c.l.b16 %v1441
        %v2482 = vunpack.c.l.b16 %v1442
        %v2483 = vunpack.c.l.b16 %v1443
        %v2484 = vunpack.c.l.b16 %v1444
        %v2485 = vunpack.c.l.b16 %v1445
        %v2486 = vunpack.c.l.b16 %v1446
        %v2487 = vunpack.c.l.b16 %v1447
        %v2488 = vunpack.c.l.b16 %v1448
        %v2489 = vunpack.c.l.b16 %v1449
        %v2490 = vunpack.c.l.b16 %v1450
        %v2491 = vunpack.c.l.b16 %v1451
        %v2492 = vunpack.c.l.b16 %v1452
        %v2493 = vunpack.c.l.b16 %v1453
        %v2494 = vunpack.c.l.b16 %v1454
        %v2495 = vunpack.c.l.b16 %v1455
        %v2496 = vunpack.c.l.b16 %v1456
        %v2497 = vunpack.c.l.b16 %v1457
        %v2498 = vunpack.c.l.b16 %v1458
        %v2499 = vunpack.c.l.b16 %v1459
        %v2500 = vunpack.c.l.b16 %v1460
        %v2501 = vunpack.c.l.b16 %v1461
        %v2502 = vunpack.c.l.b16 %v1462
        %v2503 = vunpack.c.l.b16 %v1463
        %v2504 = vunpack.c.l.b16 %v1464
        %v2505 = vunpack.c.l.b16 %v1465
        %v2506 = vunpack.c.l.b16 %v1466
        %v2507 = vunpack.c.l.b16 %v1467
        %v2508 = vunpack.c.l.b16 %v1468
        %v2509 = vunpack.c.l.b16 %v1469
        %v2510 = vunpack.c.l.b16 %v1470
        %v2511 = vunpack.c.l.b16 %v1471
        %v2512 = vunpack.c.l.b16 %v1472
        %v2513 = vunpack.c.l.b16 %v1473
        %v2514 = vunpack.c.l.b16 %v1474
        %v2515 = vunpack.c.l.b16 %v1475
        %v2516 = vunpack.c.l.b16 %v1476
        %v2517 = vunpack.c.l.b16 %v1477
        %v2518 = vunpack.c.l.b16 %v1478
        %v2519 = vunpack.c.l.b16 %v1479
        %v2520 = vunpack.c.l.b16 %v1480
        %v2521 = vunpack.c.l.b16 %v1481
        %v2522 = vunpack.c.l.b16 %v1482
        %v2523 = vunpack.c.l.b16 %v1483
        %v2524 = vunpack.c.l.b16 %v1484
        %v2525 = vunpack.c.l.b16 %v1485
        %v2526 = vunpack.c.l.b16 %v1486
        %v2527 = vunpack.c.l.b16 %v1487
        %v2528 = vunpack.c.l.b16 %v1488
        %v2529 = vunpack.c.l.b16 %v1489
        %v2530 = vunpack.c.l.b16 %v1490
        %v2531 = vunpack.c.l.b16 %v1491
        %v2532 = vunpack.c.l.b16 %v1492
        %v2533 = vunpack.c.l.b16 %v1493
        %v2534 = vunpack.c.l.b16 %v1494
        %v2535 = vunpack.c.l.b16 %v1495
        %v2536 = vunpack.c.l.b16 %v1496
        %v2537 = vunpack.c.l.b16 %v1497
        %v2538 = vunpack.c.l.b16 %v1498
        %v2539 = vunpack.c.l.b16 %v1499
        %v2540 = vunpack.c.l.b16 %v1500
        %v2541 = vunpack.c.l.b16 %v1501
        %v2542 = vunpack.c.l.b16 %v1502
        %v2543 = vunpack.c.l.b16 %v1503
        %v2544 = vunpack.c.l.b16 %v1504
        %v2545 = vunpack.c.l.b16 %v1505
        %v2546 = vunpack.c.l.b16 %v1506
        %v2547 = vunpack.c.l.b16 %v1507
        %v2548 = vunpack.c.l.b16 %v1508
        %v2549 = vunpack.c.l.b16 %v1509
        %v2550 = vunpack.c.l.b16 %v1510
        %v2551 = vunpack.c.l.b16 %v1511
        %v2552 = vunpack.c.l.b16 %v1512
        %v2553 = vunpack.c.l.b16 %v1513
        %v2554 = vunpack.c.l.b16 %v1514
        %v2555 = vunpack.c.l.b16 %v1515
        %v2556 = vunpack.c.l.b16 %v1516
        %v2557 = vunpack.c.l.b16 %v1517
        %v2558 = vunpack.c.l.b16 %v1518
        %v2559 = vunpack.c.l.b16 %v1519
        %v2560 = vunpack.c.l.b16 %v1520
        %v2561 = vunpack.c.l.b16 %v1521
        %v2562 = vunpack.c.l.b16 %v1522
        %v2563 = vunpack.c.l.b16 %v1523
        %v2564 = vunpack.c.l.b16 %v1524
        %v2565 = vunpack.c.l.b16 %v1525
        %v2566 = vunpack.c.l.b16 %v1526
        %v2567 = vunpack.c.l.b16 %v1527
        %v2568 = vunpack.c.l.b16 %v1528
        %v2569 = vunpack.c.l.b16 %v1529
        %v2570 = vunpack.c.l.b16 %v1530
        %v2571 = vunpack.c.l.b16 %v1531
        %v2572 = vunpack.c.l.b16 %v1532
        %v2573 = vunpack.c.l.b16 %v1533
        %v2574 = vunpack.c.l.b16 %v1534
        %v2575 = vunpack.c.l.b16 %v1535
        %v2576 = vunpack.c.l.b16 %v1536
        %v2577 = vunpack.c.l.b16 %v1537
        %v2578 = vunpack.c.l.b16 %v1538
        %v2579 = vunpack.c.l.b16 %v1539
        %v2580 = vunpack.c.l.b16 %v1540
        %v2581 = vunpack.c.l.b16 %v1541
        %v2582 = vunpack.c.l.b16 %v1542
        %v2583 = vunpack.c.l.b16 %v1543
        %v2584 = vunpack.c.l.b16 %v1544
        %v2585 = vunpack.c.l.b16 %v1545
        %v2586 = vunpack.c.l.b16 %v1546
        %v2587 = vunpack.c.l.b16 %v1547
        %v2588 = vunpack.c.l.b16 %v1548
        %v2589 = vunpack.c.l.b16 %v1549
        %v2590 = vunpack.c.l.b16 %v1550
        %v2591 = vunpack.c.l.b16 %v1551
        %v2592 = vunpack.c.l.b16 %v1552
        %v2593 = vunpack.c.l.b16 %v1553
        %v2594 = vunpack.c.l.b16 %v1554
        %v2595 = vunpack.c.l.b16 %v1555
        %v2596 = vunpack.c.l.b16 %v1556
        %v2597 = vunpack.c.l.b16 %v1557
        %v2598 = vunpack.c.l.b16 %v1558
        %v2599 = vunpack.c.l.b16 %v1559
        %v2600 = vunpack.c.l.b16 %v1560
        %v2601 = vunpack.c.l.b16 %v1561
        %v2602 = vunpack.c.l.b16 %v1562
        %v2603 = vunpack.c.l.b16 %v1563
        %v2604 = vunpack.c.l.b16 %v1564
        %v2605 = vunpack.c.l.b16 %v1565
        %v2606 = vunpack.c.l.b16 %v1566
        %v2607 = vunpack.c.l.b16 %v1567
        %v2608 = vunpack.c.l.b16 %v1568
        %v2609 = vunpack.c.l.b16 %v1569
        %v2610 = vunpack.c.l.b16 %v1570
        %v2611 = vunpack.c.l.b16 %v1571
        %v2612 = vunpack.c.l.b16 %v1572
        %v2613 = vunpack.c.l.b16 %v1573
        %v2614 = vunpack.c.l.b16 %v1574
        %v2615 = vunpack.c.l.b16 %v1575
        %v2616 = vunpack.c.l.b16 %v1576
        %v2617 = vunpack.c.l.b16 %v1577
        %v2618 = vunpack.c.l.b16 %v1578
        %v2619 = vunpack.c.l.b16 %v1579
        %v2620 = vunpack.c.l.b16 %v1580
        %v2621 = vunpack.c.l.b16 %v1581
        %v2622 = vunpack.c.l.b16 %v1582
        %v2623 = vunpack.c.l.b16 %v1583
        %v2624 = vunpack.c.l.b16 %v1584
        %v2625 = vunpack.c.l.b16 %v1585
        %v2626 = vunpack.c.l.b16 %v1586
        %v2627 = vunpack.c.l.b16 %v1587
        %v2628 = vunpack.c.l.b16 %v1588
        %v2629 = vunpack.c.l.b16 %v1589
        %v2630 = vunpack.c.l.b16 %v1590
        %v2631 = vunpack.c.l.b16 %v1591
        %v2632 = vunpack.c.l.b16 %v1592
        %v2633 = vunpack.c.l.b16 %v1593
        %v2634 = vunpack.c.l.b16 %v1594
        %v2635 = vunpack.c.l.b16 %v1595
        %v2636 = vunpack.c.l.b16 %v1596
        %v2637 = vunpack.c.l.b16 %v1597
        %v2638 = vunpack.c.l.b16 %v1598
        %v2639 = vunpack.c.l.b16 %v1599
        %v2640 = vunpack.c.l.b16 %v1600
        %v2641 = vunpack.c.l.b16 %v1601
        %v2642 = vunpack.c.l.b16 %v1602
        %v2643 = vunpack.c.l.b16 %v1603
        %v2644 = vunpack.c.l.b16 %v1604
        %v2645 = vunpack.c.l.b16 %v1605
        %v2646 = vunpack.c.l.b16 %v1606
        %v2647 = vunpack.c.l.b16 %v1607
        %v2648 = vunpack.c.l.b16 %v1608
        %v2649 = vunpack.c.l.b16 %v1609
        %v2650 = vunpack.c.l.b16 %v1610
        %v2651 = vunpack.c.l.b16 %v1611
        %v2652 = vunpack.c.l.b16 %v1612
        %v2653 = vunpack.c.l.b16 %v1613
        %v2654 = vunpack.c.l.b16 %v1614
        %v2655 = vunpack.c.l.b16 %v1615
        %v2656 = vunpack.c.l.b16 %v1616
        %v2657 = vunpack.c.l.b16 %v1617
        %v2658 = vunpack.c.l.b16 %v1618
        %v2659 = vunpack.c.l.b16 %v1619
        %v2660 = vunpack.c.l.b16 %v1620
        %v2661 = vunpack.c.l.b16 %v1621
        %v2662 = vunpack.c.l.b16 %v1622
        %v2663 = vunpack.c.l.b16 %v1623
        %v2664 = vunpack.c.l.b16 %v1624
        %v2665 = vunpack.c.l.b16 %v1625
        %v2666 = vunpack.c.l.b16 %v1626
        %v2667 = vunpack.c.l.b16 %v1627
        %v2668 = vunpack.c.l.b16 %v1628
        %v2669 = vunpack.c.l.b16 %v1629
        %v2670 = vunpack.c.l.b16 %v1630
        %v2671 = vunpack.c.l.b16 %v1631
        %v2672 = vunpack.c.l.b16 %v1632
        %v2673 = vunpack.c.l.b16 %v1633
        %v2674 = vunpack.c.l.b16 %v1634
        %v2675 = vunpack.c.l.b16 %v1635
        %v2676 = vunpack.c.l.b16 %v1636
        %v2677 = vunpack.c.l.b16 %v1637
        %v2678 = vunpack.c.l.b16 %v1638
        %v2679 = vunpack.c.l.b16 %v1639
        %v2680 = vunpack.c.l.b16 %v1640
        %v2681 = vunpack.c.l.b16 %v1641
        %v2682 = vunpack.c.l.b16 %v1642
        %v2683 = vunpack.c.l.b16 %v1643
        %v2684 = vunpack.c.l.b16 %v1644
        %v2685 = vunpack.c.l.b16 %v1645
        %v2686 = vunpack.c.l.b16 %v1646
        %v2687 = vunpack.c.l.b16 %v1647
        %v2688 = vunpack.c.l.b16 %v1648
        %v2689 = vunpack.c.l.b16 %v1649
        %v2690 = vunpack.c.l.b16 %v1650
        %v2691 = vunpack.c.l.b16 %v1651
        %v2692 = vunpack.c.l.b16 %v1652
        %v2693 = vunpack.c.l.b16 %v1653
        %v2694 = vunpack.c.l.b16 %v1654
        %v2695 = vunpack.c.l.b16 %v1655
        %v2696 = vunpack.c.l.b16 %v1656
        %v2697 = vunpack.c.l.b16 %v1657
        %v2698 = vunpack.c.l.b16 %v1658
        %v2699 = vunpack.c.l.b16 %v1659
        %v2700 = vunpack.c.l.b16 %v1660
        %v2701 = vunpack.c.l.b16 %v1661
        %v2702 = vunpack.c.l.b16 %v1662
        %v2703 = vunpack.c.l.b16 %v1663
        %v2704 = vunpack.c.l.b16 %v1664
        %v2705 = vunpack.c.l.b16 %v1665
        %v2706 = vunpack.c.l.b16 %v1666
        %v2707 = vunpack.c.l.b16 %v1667
        %v2708 = vunpack.c.l.b16 %v1668
        %v2709 = vunpack.c.l.b16 %v1669
        %v2710 = vunpack.c.l.b16 %v1670
        %v2711 = vunpack.c.l.b16 %v1671
        %v2712 = vunpack.c.l.b16 %v1672
        %v2713 = vunpack.c.l.b16 %v1673
        %v2714 = vunpack.c.l.b16 %v1674
        %v2715 = vunpack.c.l.b16 %v1675
        %v2716 = vunpack.c.l.b16 %v1676
        %v2717 = vunpack.c.l.b16 %v1677
        %v2718 = vunpack.c.l.b16 %v1678
        %v2719 = vunpack.c.l.b16 %v1679
        %v2720 = vunpack.c.l.b16 %v1680
        %v2721 = vunpack.c.l.b16 %v1681
        %v2722 = vunpack.c.l.b16 %v1682
        %v2723 = vunpack.c.l.b16 %v1683
        %v2724 = vunpack.c.l.b16 %v1684
        %v2725 = vunpack.c.l.b16 %v1685
        %v2726 = vunpack.c.l.b16 %v1686
        %v2727 = vunpack.c.l.b16 %v1687
        %v2728 = vunpack.c.l.b16 %v1688
        %v2729 = vunpack.c.l.b16 %v1689
        %v2730 = vunpack.c.l.b16 %v1690
        %v2731 = vunpack.c.l.b16 %v1691
        %v2732 = vunpack.c.l.b16 %v1692
        %v2733 = vunpack.c.l.b16 %v1693
        %v2734 = vunpack.c.l.b16 %v1694
        %v2735 = vunpack.c.l.b16 %v1695
        %v2736 = vunpack.c.l.b16 %v1696
        %v2737 = vunpack.c.l.b16 %v1697
        %v2738 = vunpack.c.l.b16 %v1698
        %v2739 = vunpack.c.l.b16 %v1699
        %v2740 = vunpack.c.l.b16 %v1700
        %v2741 = vunpack.c.l.b16 %v1701
        %v2742 = vunpack.c.l.b16 %v1702
        %v2743 = vunpack.c.l.b16 %v1703
        %v2744 = vunpack.c.l.b16 %v1704
        %v2745 = vunpack.c.l.b16 %v1705
        %v2746 = vunpack.c.l.b16 %v1706
        %v2747 = vunpack.c.l.b16 %v1707
        %v2748 = vunpack.c.l.b16 %v1708
        %v2749 = vunpack.c.l.b16 %v1709
        %v2750 = vunpack.c.l.b16 %v1710
        %v2751 = vunpack.c.l.b16 %v1711
        %v2752 = vunpack.c.l.b16 %v1712
        %v2753 = vunpack.c.l.b16 %v1713
        %v2754 = vunpack.c.l.b16 %v1714
        %v2755 = vunpack.c.l.b16 %v1715
        %v2756 = vunpack.c.l.b16 %v1716
        %v2757 = vunpack.c.l.b16 %v1717
        %v2758 = vunpack.c.l.b16 %v1718
        %v2759 = vunpack.c.l.b16 %v1719
        %v2760 = vunpack.c.l.b16 %v1720
        %v2761 = vunpack.c.l.b16 %v1721
        %v2762 = vunpack.c.l.b16 %v1722
        %v2763 = vunpack.c.l.b16 %v1723
        %v2764 = vunpack.c.l.b16 %v1724
        %v2765 = vunpack.c.l.b16 %v1725
        %v2766 = vunpack.c.l.b16 %v1726
        %v2767 = vunpack.c.l.b16 %v1727
        %v2768 = vunpack.c.l.b16 %v1728
        %v2769 = vunpack.c.l.b16 %v1729
        %v2770 = vunpack.c.l.b16 %v1730
        %v2771 = vunpack.c.l.b16 %v1731
        %v2772 = vunpack.c.l.b16 %v1732
        %v2773 = vunpack.c.l.b16 %v1733
        %v2774 = vunpack.c.l.b16 %v1734
        %v2775 = vunpack.c.l.b16 %v1735
        %v2776 = vunpack.c.l.b16 %v1736
        %v2777 = vunpack.c.l.b16 %v1737
        %v2778 = vunpack.c.l.b16 %v1738
        %v2779 = vunpack.c.l.b16 %v1739
        %v2780 = vunpack.c.l.b16 %v1740
        %v2781 = vunpack.c.l.b16 %v1741
        %v2782 = vunpack.c.l.b16 %v1742
        %v2783 = vunpack.c.l.b16 %v1743
        %v2784 = vunpack.c.l.b16 %v1744
        %v2785 = vunpack.c.l.b16 %v1745
        %v2786 = vunpack.c.l.b16 %v1746
        %v2787 = vunpack.c.l.b16 %v1747
        %v2788 = vunpack.c.l.b16 %v1748
        %v2789 = vunpack.c.l.b16 %v1749
        %v2790 = vunpack.c.l.b16 %v1750
        %v2791 = vunpack.c.l.b16 %v1751
        %v2792 = vunpack.c.l.b16 %v1752
        %v2793 = vunpack.c.l.b16 %v1753
        %v2794 = vunpack.c.l.b16 %v1754
        %v2795 = vunpack.c.l.b16 %v1755
        %v2796 = vunpack.c.l.b16 %v1756
        %v2797 = vunpack.c.l.b16 %v1757
        %v2798 = vunpack.c.l.b16 %v1758
        %v2799 = vunpack.c.l.b16 %v1759
        %v2800 = vunpack.c.l.b16 %v1760
        %v2801 = vunpack.c.l.b16 %v1761
        %v2802 = vunpack.c.l.b16 %v1762
        %v2803 = vunpack.c.l.b16 %v1763
        %v2804 = vunpack.c.l.b16 %v1764
        %v2805 = vunpack.c.l.b16 %v1765
        %v2806 = vunpack.c.l.b16 %v1766
        %v2807 = vunpack.c.l.b16 %v1767
        %v2808 = vunpack.c.l.b16 %v1768
        %v2809 = vunpack.c.l.b16 %v1769
        %v2810 = vunpack.c.l.b16 %v1770
        %v2811 = vunpack.c.l.b16 %v1771
        %v2812 = vunpack.c.l.b16 %v1772
        %v2813 = vunpack.c.l.b16 %v1773
        %v2814 = vunpack.c.l.b16 %v1774
        %v2815 = vunpack.c.l.b16 %v1775
        %v2816 = vunpack.c.l.b16 %v1776
        %v2817 = vunpack.c.l.b16 %v1777
        %v2818 = vunpack.c.l.b16 %v1778
        %v2819 = vunpack.c.l.b16 %v1779
        %v2820 = vunpack.c.l.b16 %v1780
        %v2821 = vunpack.c.l.b16 %v1781
        %v2822 = vunpack.c.l.b16 %v1782
        %v2823 = vunpack.c.l.b16 %v1783
        %v2824 = vunpack.c.l.b16 %v1784
        %v2825 = vunpack.c.l.b16 %v1785
        %v2826 = vunpack.c.l.b16 %v1786
        %v2827 = vunpack.c.l.b16 %v1787
        %v2828 = vunpack.c.l.b16 %v1788
        %v2829 = vunpack.c.l.b16 %v1789
        %v2830 = vunpack.c.l.b16 %v1790
        %v2831 = vunpack.c.l.b16 %v1791
        %v2832 = vunpack.c.l.b16 %v1792
        %v2833 = vunpack.c.l.b16 %v1793
        %v2834 = vunpack.c.l.b16 %v1794
        %v2835 = vunpack.c.l.b16 %v1795
        %v2836 = vunpack.c.l.b16 %v1796
        %v2837 = vunpack.c.l.b16 %v1797
        %v2838 = vunpack.c.l.b16 %v1798
        %v2839 = vunpack.c.l.b16 %v1799
        %v2840 = vunpack.c.l.b16 %v1800
        %v2841 = vunpack.c.l.b16 %v1801
        %v2842 = vunpack.c.l.b16 %v1802
        %v2843 = vunpack.c.l.b16 %v1803
        %v2844 = vunpack.c.l.b16 %v1804
        %v2845 = vunpack.c.l.b16 %v1805
        %v2846 = vpack.c.b16 %v2335, %v2334
        %v2847 = vpack.c.b16 %v2337, %v2336
        %v2848 = vpack.c.b16 %v2339, %v2338
        %v2849 = vpack.c.b16 %v2341, %v2340
        %v2850 = vpack.c.b16 %v2343, %v2342
        %v2851 = vpack.c.b16 %v2345, %v2344
        %v2852 = vpack.c.b16 %v2347, %v2346
        %v2853 = vpack.c.b16 %v2349, %v2348
        %v2854 = vpack.c.b16 %v2351, %v2350
        %v2855 = vpack.c.b16 %v2353, %v2352
        %v2856 = vpack.c.b16 %v2355, %v2354
        %v2857 = vpack.c.b16 %v2357, %v2356
        %v2858 = vpack.c.b16 %v2359, %v2358
        %v2859 = vpack.c.b16 %v2361, %v2360
        %v2860 = vpack.c.b16 %v2363, %v2362
        %v2861 = vpack.c.b16 %v2365, %v2364
        %v2862 = vpack.c.b16 %v2367, %v2366
        %v2863 = vpack.c.b16 %v2369, %v2368
        %v2864 = vpack.c.b16 %v2371, %v2370
        %v2865 = vpack.c.b16 %v2373, %v2372
        %v2866 = vpack.c.b16 %v2375, %v2374
        %v2867 = vpack.c.b16 %v2377, %v2376
        %v2868 = vpack.c.b16 %v2379, %v2378
        %v2869 = vpack.c.b16 %v2381, %v2380
        %v2870 = vpack.c.b16 %v2383, %v2382
        %v2871 = vpack.c.b16 %v2385, %v2384
        %v2872 = vpack.c.b16 %v2387, %v2386
        %v2873 = vpack.c.b16 %v2389, %v2388
        %v2874 = vpack.c.b16 %v2391, %v2390
        %v2875 = vpack.c.b16 %v2393, %v2392
        %v2876 = vpack.c.b16 %v2395, %v2394
        %v2877 = vpack.c.b16 %v2397, %v2396
        %v2878 = vpack.c.b16 %v2399, %v2398
        %v2879 = vpack.c.b16 %v2401, %v2400
        %v2880 = vpack.c.b16 %v2403, %v2402
        %v2881 = vpack.c.b16 %v2405, %v2404
        %v2882 = vpack.c.b16 %v2407, %v2406
        %v2883 = vpack.c.b16 %v2409, %v2408
        %v2884 = vpack.c.b16 %v2411, %v2410
        %v2885 = vpack.c.b16 %v2413, %v2412
        %v2886 = vpack.c.b16 %v2415, %v2414
        %v2887 = vpack.c.b16 %v2417, %v2416
        %v2888 = vpack.c.b16 %v2419, %v2418
        %v2889 = vpack.c.b16 %v2421, %v2420
        %v2890 = vpack.c.b16 %v2423, %v2422
        %v2891 = vpack.c.b16 %v2425, %v2424
        %v2892 = vpack.c.b16 %v2427, %v2426
        %v2893 = vpack.c.b16 %v2429, %v2428
        %v2894 = vpack.c.b16 %v2431, %v2430
        %v2895 = vpack.c.b16 %v2433, %v2432
        %v2896 = vpack.c.b16 %v2435, %v2434
        %v2897 = vpack.c.b16 %v2437, %v2436
        %v2898 = vpack.c.b16 %v2439, %v2438
        %v2899 = vpack.c.b16 %v2441, %v2440
        %v2900 = vpack.c.b16 %v2443, %v2442
        %v2901 = vpack.c.b16 %v2445, %v2444
        %v2902 = vpack.c.b16 %v2447, %v2446
        %v2903 = vpack.c.b16 %v2449, %v2448
        %v2904 = vpack.c.b16 %v2451, %v2450
        %v2905 = vpack.c.b16 %v2453, %v2452
        %v2906 = vpack.c.b16 %v2455, %v2454
        %v2907 = vpack.c.b16 %v2457, %v2456
        %v2908 = vpack.c.b16 %v2459, %v2458
        %v2909 = vpack.c.b16 %v2461, %v2460
        %v2910 = vpack.c.b16 %v2463, %v2462
        %v2911 = vpack.c.b16 %v2465, %v2464
        %v2912 = vpack.c.b16 %v2467, %v2466
        %v2913 = vpack.c.b16 %v2469, %v2468
        %v2914 = vpack.c.b16 %v2471, %v2470
        %v2915 = vpack.c.b16 %v2473, %v2472
        %v2916 = vpack.c.b16 %v2475, %v2474
        %v2917 = vpack.c.b16 %v2477, %v2476
        %v2918 = vpack.c.b16 %v2479, %v2478
        %v2919 = vpack.c.b16 %v2481, %v2480
        %v2920 = vpack.c.b16 %v2483, %v2482
        %v2921 = vpack.c.b16 %v2485, %v2484
        %v2922 = vpack.c.b16 %v2487, %v2486
        %v2923 = vpack.c.b16 %v2489, %v2488
        %v2924 = vpack.c.b16 %v2491, %v2490
        %v2925 = vpack.c.b16 %v2493, %v2492
        %v2926 = vpack.c.b16 %v2495, %v2494
        %v2927 = vpack.c.b16 %v2497, %v2496
        %v2928 = vpack.c.b16 %v2499, %v2498
        %v2929 = vpack.c.b16 %v2501, %v2500
        %v2930 = vpack.c.b16 %v2503, %v2502
        %v2931 = vpack.c.b16 %v2505, %v2504
        %v2932 = vpack.c.b16 %v2507, %v2506
        %v2933 = vpack.c.b16 %v2509, %v2508
        %v2934 = vpack.c.b16 %v2511, %v2510
        %v2935 = vpack.c.b16 %v2513, %v2512
        %v2936 = vpack.c.b16 %v2515, %v2514
        %v2937 = vpack.c.b16 %v2517, %v2516
        %v2938 = vpack.c.b16 %v2519, %v2518
        %v2939 = vpack.c.b16 %v2521, %v2520
        %v2940 = vpack.c.b16 %v2523, %v2522
        %v2941 = vpack.c.b16 %v2525, %v2524
        %v2942 = vpack.c.b16 %v2527, %v2526
        %v2943 = vpack.c.b16 %v2529, %v2528
        %v2944 = vpack.c.b16 %v2531, %v2530
        %v2945 = vpack.c.b16 %v2533, %v2532
        %v2946 = vpack.c.b16 %v2535, %v2534
        %v2947 = vpack.c.b16 %v2537, %v2536
        %v2948 = vpack.c.b16 %v2539, %v2538
        %v2949 = vpack.c.b16 %v2541, %v2540
        %v2950 = vpack.c.b16 %v2543, %v2542
        %v2951 = vpack.c.b16 %v2545, %v2544
        %v2952 = vpack.c.b16 %v2547, %v2546
        %v2953 = vpack.c.b16 %v2549, %v2548
        %v2954 = vpack.c.b16 %v2551, %v2550
        %v2955 = vpack.c.b16 %v2553, %v2552
        %v2956 = vpack.c.b16 %v2555, %v2554
        %v2957 = vpack.c.b16 %v2557, %v2556
        %v2958 = vpack.c.b16 %v2559, %v2558
        %v2959 = vpack.c.b16 %v2561, %v2560
        %v2960 = vpack.c.b16 %v2563, %v2562
        %v2961 = vpack.c.b16 %v2565, %v2564
        %v2962 = vpack.c.b16 %v2567, %v2566
        %v2963 = vpack.c.b16 %v2569, %v2568
        %v2964 = vpack.c.b16 %v2571, %v2570
        %v2965 = vpack.c.b16 %v2573, %v2572
        %v2966 = vpack.c.b16 %v2575, %v2574
        %v2967 = vpack.c.b16 %v2577, %v2576
        %v2968 = vpack.c.b16 %v2579, %v2578
        %v2969 = vpack.c.b16 %v2581, %v2580
        %v2970 = vpack.c.b16 %v2583, %v2582
        %v2971 = vpack.c.b16 %v2585, %v2584
        %v2972 = vpack.c.b16 %v2587, %v2586
        %v2973 = vpack.c.b16 %v2589, %v2588
        %v2974 = vpack.c.b16 %v2591, %v2590
        %v2975 = vpack.c.b16 %v2593, %v2592
        %v2976 = vpack.c.b16 %v2595, %v2594
        %v2977 = vpack.c.b16 %v2597, %v2596
        %v2978 = vpack.c.b16 %v2599, %v2598
        %v2979 = vpack.c.b16 %v2601, %v2600
        %v2980 = vpack.c.b16 %v2603, %v2602
        %v2981 = vpack.c.b16 %v2605, %v2604
        %v2982 = vpack.c.b16 %v2607, %v2606
        %v2983 = vpack.c.b16 %v2609, %v2608
        %v2984 = vpack.c.b16 %v2611, %v2610
        %v2985 = vpack.c.b16 %v2613, %v2612
        %v2986 = vpack.c.b16 %v2615, %v2614
        %v2987 = vpack.c.b16 %v2617, %v2616
        %v2988 = vpack.c.b16 %v2619, %v2618
        %v2989 = vpack.c.b16 %v2621, %v2620
        %v2990 = vpack.c.b16 %v2623, %v2622
        %v2991 = vpack.c.b16 %v2625, %v2624
        %v2992 = vpack.c.b16 %v2627, %v2626
        %v2993 = vpack.c.b16 %v2629, %v2628
        %v2994 = vpack.c.b16 %v2631, %v2630
        %v2995 = vpack.c.b16 %v2633, %v2632
        %v2996 = vpack.c.b16 %v2635, %v2634
        %v2997 = vpack.c.b16 %v2637, %v2636
        %v2998 = vpack.c.b16 %v2639, %v2638
        %v2999 = vpack.c.b16 %v2641, %v2640
        %v3000 = vpack.c.b16 %v2643, %v2642
        %v3001 = vpack.c.b16 %v2645, %v2644
        %v3002 = vpack.c.b16 %v2647, %v2646
        %v3003 = vpack.c.b16 %v2649, %v2648
        %v3004 = vpack.c.b16 %v2651, %v2650
        %v3005 = vpack.c.b16 %v2653, %v2652
        %v3006 = vpack.c.b16 %v2655, %v2654
        %v3007 = vpack.c.b16 %v2657, %v2656
        %v3008 = vpack.c.b16 %v2659, %v2658
        %v3009 = vpack.c.b16 %v2661, %v2660
        %v3010 = vpack.c.b16 %v2663, %v2662
        %v3011 = vpack.c.b16 %v2665, %v2664
        %v3012 = vpack.c.b16 %v2667, %v2666
        %v3013 = vpack.c.b16 %v2669, %v2668
        %v3014 = vpack.c.b16 %v2671, %v2670
        %v3015 = vpack.c.b16 %v2673, %v2672
        %v3016 = vpack.c.b16 %v2675, %v2674
        %v3017 = vpack.c.b16 %v2677, %v2676
        %v3018 = vpack.c.b16 %v2679, %v2678
        %v3019 = vpack.c.b16 %v2681, %v2680
        %v3020 = vpack.c.b16 %v2683, %v2682
        %v3021 = vpack.c.b16 %v2685, %v2684
        %v3022 = vpack.c.b16 %v2687, %v2686
        %v3023 = vpack.c.b16 %v2689, %v2688
        %v3024 = vpack.c.b16 %v2691, %v2690
        %v3025 = vpack.c.b16 %v2693, %v2692
        %v3026 = vpack.c.b16 %v2695, %v2694
        %v3027 = vpack.c.b16 %v2697, %v2696
        %v3028 = vpack.c.b16 %v2699, %v2698
        %v3029 = vpack.c.b16 %v2701, %v2700
        %v3030 = vpack.c.b16 %v2703, %v2702
        %v3031 = vpack.c.b16 %v2705, %v2704
        %v3032 = vpack.c.b16 %v2707, %v2706
        %v3033 = vpack.c.b16 %v2709, %v2708
        %v3034 = vpack.c.b16 %v2711, %v2710
        %v3035 = vpack.c.b16 %v2713, %v2712
        %v3036 = vpack.c.b16 %v2715, %v2714
        %v3037 = vpack.c.b16 %v2717, %v2716
        %v3038 = vpack.c.b16 %v2719, %v2718
        %v3039 = vpack.c.b16 %v2721, %v2720
        %v3040 = vpack.c.b16 %v2723, %v2722
        %v3041 = vpack.c.b16 %v2725, %v2724
        %v3042 = vpack.c.b16 %v2727, %v2726
        %v3043 = vpack.c.b16 %v2729, %v2728
        %v3044 = vpack.c.b16 %v2731, %v2730
        %v3045 = vpack.c.b16 %v2733, %v2732
        %v3046 = vpack.c.b16 %v2735, %v2734
        %v3047 = vpack.c.b16 %v2737, %v2736
        %v3048 = vpack.c.b16 %v2739, %v2738
        %v3049 = vpack.c.b16 %v2741, %v2740
        %v3050 = vpack.c.b16 %v2743, %v2742
        %v3051 = vpack.c.b16 %v2745, %v2744
        %v3052 = vpack.c.b16 %v2747, %v2746
        %v3053 = vpack.c.b16 %v2749, %v2748
        %v3054 = vpack.c.b16 %v2751, %v2750
        %v3055 = vpack.c.b16 %v2753, %v2752
        %v3056 = vpack.c.b16 %v2755, %v2754
        %v3057 = vpack.c.b16 %v2757, %v2756
        %v3058 = vpack.c.b16 %v2759, %v2758
        %v3059 = vpack.c.b16 %v2761, %v2760
        %v3060 = vpack.c.b16 %v2763, %v2762
        %v3061 = vpack.c.b16 %v2765, %v2764
        %v3062 = vpack.c.b16 %v2767, %v2766
        %v3063 = vpack.c.b16 %v2769, %v2768
        %v3064 = vpack.c.b16 %v2771, %v2770
        %v3065 = vpack.c.b16 %v2773, %v2772
        %v3066 = vpack.c.b16 %v2775, %v2774
        %v3067 = vpack.c.b16 %v2777, %v2776
        %v3068 = vpack.c.b16 %v2779, %v2778
        %v3069 = vpack.c.b16 %v2781, %v2780
        %v3070 = vpack.c.b16 %v2783, %v2782
        %v3071 = vpack.c.b16 %v2785, %v2784
        %v3072 = vpack.c.b16 %v2787, %v2786
        %v3073 = vpack.c.b16 %v2789, %v2788
        %v3074 = vpack.c.b16 %v2791, %v2790
        %v3075 = vpack.c.b16 %v2793, %v2792
        %v3076 = vpack.c.b16 %v2795, %v2794
        %v3077 = vpack.c.b16 %v2797, %v2796
        %v3078 = vpack.c.b16 %v2799, %v2798
        %v3079 = vpack.c.b16 %v2801, %v2800
        %v3080 = vpack.c.b16 %v2803, %v2802
        %v3081 = vpack.c.b16 %v2805, %v2804
        %v3082 = vpack.c.b16 %v2807, %v2806
        %v3083 = vpack.c.b16 %v2809, %v2808
        %v3084 = vpack.c.b16 %v2811, %v2810
        %v3085 = vpack.c.b16 %v2813, %v2812
        %v3086 = vpack.c.b16 %v2815, %v2814
        %v3087 = vpack.c.b16 %v2817, %v2816
        %v3088 = vpack.c.b16 %v2819, %v2818
        %v3089 = vpack.c.b16 %v2821, %v2820
        %v3090 = vpack.c.b16 %v2823, %v2822
        %v3091 = vpack.c.b16 %v2825, %v2824
        %v3092 = vpack.c.b16 %v2827, %v2826
        %v3093 = vpack.c.b16 %v2829, %v2828
        %v3094 = vpack.c.b16 %v2831, %v2830
        %v3095 = vpack.c.b16 %v2833, %v2832
        %v3096 = vpack.c.b16 %v2835, %v2834
        %v3097 = vpack.c.b16 %v2837, %v2836
        %v3098 = vpack.c.b16 %v2839, %v2838
        %v3099 = vpack.c.b16 %v2841, %v2840
        %v3100 = vpack.c.b16 %v2843, %v2842
        %v3101 = vpack.c.b16 %v2845, %v2844
        %v3374 = vunpack.c.l.b16 %v1806
        %v3375 = vunpack.c.l.b16 %v1807
        %v3376 = vunpack.c.l.b16 %v1808
        %v3377 = vunpack.c.l.b16 %v1809
        %v3378 = vunpack.c.l.b16 %v1810
        %v3379 = vunpack.c.l.b16 %v1811
        %v3380 = vunpack.c.l.b16 %v1812
        %v3381 = vunpack.c.l.b16 %v1813
        %v3382 = vunpack.c.l.b16 %v1814
        %v3383 = vunpack.c.l.b16 %v1815
        %v3384 = vunpack.c.l.b16 %v1816
        %v3385 = vunpack.c.l.b16 %v1817
        %v3386 = vunpack.c.l.b16 %v1818
        %v3387 = vunpack.c.l.b16 %v1819
        %v3388 = vunpack.c.l.b16 %v1820
        %v3389 = vunpack.c.l.b16 %v1821
        %v3390 = vpack.c.b16 %v3375, %v3374
        %v3391 = vpack.c.b16 %v3377, %v3376
        %v3392 = vpack.c.b16 %v3379, %v3378
        %v3393 = vpack.c.b16 %v3381, %v3380
        %v3394 = vpack.c.b16 %v3383, %v3382
        %v3395 = vpack.c.b16 %v3385, %v3384
        %v3396 = vpack.c.b16 %v3387, %v3386
        %v3397 = vpack.c.b16 %v3389, %v3388
        %3406 = vmatpush.bf16.msra.mxu0 %v3397
        %3407 = vmatpush.bf16.msra.mxu0 %v3396
        %3408 = vmatpush.bf16.msra.mxu0 %v3395
        %3409 = vmatpush.bf16.msra.mxu0 %v3394
        %3410 = vmatpush.bf16.msra.mxu0 %v3393
        %3411 = vmatpush.bf16.msra.mxu0 %v3392
        %3412 = vmatpush.bf16.msra.mxu0 %v3391
        %3413 = vmatpush.bf16.msra.mxu0 %v3390
        %3414 = vmatmul.bf16.gmra.mxu0 %v2846
        %v3415 = vpop.f32.mrf.mxu0
        %v3416 = vadd.f32 0.0, %v3415
        %v3417 = vpop.f32.mrf.mxu0
        %v3418 = vadd.f32 0.0, %v3417
        %3419 = vmatmul.bf16.gmra.mxu0 %v2847
        %v3420 = vpop.f32.mrf.mxu0
        %v3421 = vadd.f32 0.0, %v3420
        %v3422 = vpop.f32.mrf.mxu0
        %v3423 = vadd.f32 0.0, %v3422
        %3424 = vmatmul.bf16.gmra.mxu0 %v2848
        %v3425 = vpop.f32.mrf.mxu0
        %v3426 = vadd.f32 0.0, %v3425
        %v3427 = vpop.f32.mrf.mxu0
        %v3428 = vadd.f32 0.0, %v3427
        %3429 = vmatmul.bf16.gmra.mxu0 %v2849
        %v3430 = vpop.f32.mrf.mxu0
        %v3431 = vadd.f32 0.0, %v3430
        %v3432 = vpop.f32.mrf.mxu0
        %v3433 = vadd.f32 0.0, %v3432
        %3434 = vmatmul.bf16.gmra.mxu0 %v2850
        %v3435 = vpop.f32.mrf.mxu0
        %v3436 = vadd.f32 0.0, %v3435
        %v3437 = vpop.f32.mrf.mxu0
        %v3438 = vadd.f32 0.0, %v3437
        %3439 = vmatmul.bf16.gmra.mxu0 %v2851
        %v3440 = vpop.f32.mrf.mxu0
        %v3441 = vadd.f32 0.0, %v3440
        %v3442 = vpop.f32.mrf.mxu0
        %v3443 = vadd.f32 0.0, %v3442
        %3444 = vmatmul.bf16.gmra.mxu0 %v2852
        %v3445 = vpop.f32.mrf.mxu0
        %v3446 = vadd.f32 0.0, %v3445
        %v3447 = vpop.f32.mrf.mxu0
        %v3448 = vadd.f32 0.0, %v3447
        %3449 = vmatmul.bf16.gmra.mxu0 %v2853
        %v3450 = vpop.f32.mrf.mxu0
        %v3451 = vadd.f32 0.0, %v3450
        %v3452 = vpop.f32.mrf.mxu0
        %v3453 = vadd.f32 0.0, %v3452
        %3454 = vmatmul.bf16.gmra.mxu0 %v2854
        %v3455 = vpop.f32.mrf.mxu0
        %v3456 = vadd.f32 0.0, %v3455
        %v3457 = vpop.f32.mrf.mxu0
        %v3458 = vadd.f32 0.0, %v3457
        %3459 = vmatmul.bf16.gmra.mxu0 %v2855
        %v3460 = vpop.f32.mrf.mxu0
        %v3461 = vadd.f32 0.0, %v3460
        %v3462 = vpop.f32.mrf.mxu0
        %v3463 = vadd.f32 0.0, %v3462
        %3464 = vmatmul.bf16.gmra.mxu0 %v2856
        %v3465 = vpop.f32.mrf.mxu0
        %v3466 = vadd.f32 0.0, %v3465
        %v3467 = vpop.f32.mrf.mxu0
        %v3468 = vadd.f32 0.0, %v3467
        %3469 = vmatmul.bf16.gmra.mxu0 %v2857
        %v3470 = vpop.f32.mrf.mxu0
        %v3471 = vadd.f32 0.0, %v3470
        %v3472 = vpop.f32.mrf.mxu0
        %v3473 = vadd.f32 0.0, %v3472
        %3474 = vmatmul.bf16.gmra.mxu0 %v2858
        %v3475 = vpop.f32.mrf.mxu0
        %v3476 = vadd.f32 0.0, %v3475
        %v3477 = vpop.f32.mrf.mxu0
        %v3478 = vadd.f32 0.0, %v3477
        %3479 = vmatmul.bf16.gmra.mxu0 %v2859
        %v3480 = vpop.f32.mrf.mxu0
        %v3481 = vadd.f32 0.0, %v3480
        %v3482 = vpop.f32.mrf.mxu0
        %v3483 = vadd.f32 0.0, %v3482
        %3484 = vmatmul.bf16.gmra.mxu0 %v2860
        %v3485 = vpop.f32.mrf.mxu0
        %v3486 = vadd.f32 0.0, %v3485
        %v3487 = vpop.f32.mrf.mxu0
        %v3488 = vadd.f32 0.0, %v3487
        %3489 = vmatmul.bf16.gmra.mxu0 %v2861
        %v3490 = vpop.f32.mrf.mxu0
        %v3491 = vadd.f32 0.0, %v3490
        %v3492 = vpop.f32.mrf.mxu0
        %v3493 = vadd.f32 0.0, %v3492
        %3494 = vmatmul.bf16.gmra.mxu0 %v2862
        %v3495 = vpop.f32.mrf.mxu0
        %v3496 = vadd.f32 0.0, %v3495
        %v3497 = vpop.f32.mrf.mxu0
        %v3498 = vadd.f32 0.0, %v3497
        %3499 = vmatmul.bf16.gmra.mxu0 %v2863
        %v3500 = vpop.f32.mrf.mxu0
        %v3501 = vadd.f32 0.0, %v3500
        %v3502 = vpop.f32.mrf.mxu0
        %v3503 = vadd.f32 0.0, %v3502
        %3504 = vmatmul.bf16.gmra.mxu0 %v2864
        %v3505 = vpop.f32.mrf.mxu0
        %v3506 = vadd.f32 0.0, %v3505
        %v3507 = vpop.f32.mrf.mxu0
        %v3508 = vadd.f32 0.0, %v3507
        %3509 = vmatmul.bf16.gmra.mxu0 %v2865
        %v3510 = vpop.f32.mrf.mxu0
        %v3511 = vadd.f32 0.0, %v3510
        %v3512 = vpop.f32.mrf.mxu0
        %v3513 = vadd.f32 0.0, %v3512
        %3514 = vmatmul.bf16.gmra.mxu0 %v2866
        %v3515 = vpop.f32.mrf.mxu0
        %v3516 = vadd.f32 0.0, %v3515
        %v3517 = vpop.f32.mrf.mxu0
        %v3518 = vadd.f32 0.0, %v3517
        %3519 = vmatmul.bf16.gmra.mxu0 %v2867
        %v3520 = vpop.f32.mrf.mxu0
        %v3521 = vadd.f32 0.0, %v3520
        %v3522 = vpop.f32.mrf.mxu0
        %v3523 = vadd.f32 0.0, %v3522
        %3524 = vmatmul.bf16.gmra.mxu0 %v2868
        %v3525 = vpop.f32.mrf.mxu0
        %v3526 = vadd.f32 0.0, %v3525
        %v3527 = vpop.f32.mrf.mxu0
        %v3528 = vadd.f32 0.0, %v3527
        %3529 = vmatmul.bf16.gmra.mxu0 %v2869
        %v3530 = vpop.f32.mrf.mxu0
        %v3531 = vadd.f32 0.0, %v3530
        %v3532 = vpop.f32.mrf.mxu0
        %v3533 = vadd.f32 0.0, %v3532
        %3534 = vmatmul.bf16.gmra.mxu0 %v2870
        %v3535 = vpop.f32.mrf.mxu0
        %v3536 = vadd.f32 0.0, %v3535
        %v3537 = vpop.f32.mrf.mxu0
        %v3538 = vadd.f32 0.0, %v3537
        %3539 = vmatmul.bf16.gmra.mxu0 %v2871
        %v3540 = vpop.f32.mrf.mxu0
        %v3541 = vadd.f32 0.0, %v3540
        %v3542 = vpop.f32.mrf.mxu0
        %v3543 = vadd.f32 0.0, %v3542
        %3544 = vmatmul.bf16.gmra.mxu0 %v2872
        %v3545 = vpop.f32.mrf.mxu0
        %v3546 = vadd.f32 0.0, %v3545
        %v3547 = vpop.f32.mrf.mxu0
        %v3548 = vadd.f32 0.0, %v3547
        %3549 = vmatmul.bf16.gmra.mxu0 %v2873
        %v3550 = vpop.f32.mrf.mxu0
        %v3551 = vadd.f32 0.0, %v3550
        %v3552 = vpop.f32.mrf.mxu0
        %v3553 = vadd.f32 0.0, %v3552
        %3554 = vmatmul.bf16.gmra.mxu0 %v2874
        %v3555 = vpop.f32.mrf.mxu0
        %v3556 = vadd.f32 0.0, %v3555
        %v3557 = vpop.f32.mrf.mxu0
        %v3558 = vadd.f32 0.0, %v3557
        %3559 = vmatmul.bf16.gmra.mxu0 %v2875
        %v3560 = vpop.f32.mrf.mxu0
        %v3561 = vadd.f32 0.0, %v3560
        %v3562 = vpop.f32.mrf.mxu0
        %v3563 = vadd.f32 0.0, %v3562
        %3564 = vmatmul.bf16.gmra.mxu0 %v2876
        %v3565 = vpop.f32.mrf.mxu0
        %v3566 = vadd.f32 0.0, %v3565
        %v3567 = vpop.f32.mrf.mxu0
        %v3568 = vadd.f32 0.0, %v3567
        %3569 = vmatmul.bf16.gmra.mxu0 %v2877
        %v3570 = vpop.f32.mrf.mxu0
        %v3571 = vadd.f32 0.0, %v3570
        %v3572 = vpop.f32.mrf.mxu0
        %v3573 = vadd.f32 0.0, %v3572
        %3574 = vmatmul.bf16.gmra.mxu0 %v2878
        %v3575 = vpop.f32.mrf.mxu0
        %v3576 = vadd.f32 0.0, %v3575
        %v3577 = vpop.f32.mrf.mxu0
        %v3578 = vadd.f32 0.0, %v3577
        %3579 = vmatmul.bf16.gmra.mxu0 %v2879
        %v3580 = vpop.f32.mrf.mxu0
        %v3581 = vadd.f32 0.0, %v3580
        %v3582 = vpop.f32.mrf.mxu0
        %v3583 = vadd.f32 0.0, %v3582
        %3584 = vmatmul.bf16.gmra.mxu0 %v2880
        %v3585 = vpop.f32.mrf.mxu0
        %v3586 = vadd.f32 0.0, %v3585
        %v3587 = vpop.f32.mrf.mxu0
        %v3588 = vadd.f32 0.0, %v3587
        %3589 = vmatmul.bf16.gmra.mxu0 %v2881
        %v3590 = vpop.f32.mrf.mxu0
        %v3591 = vadd.f32 0.0, %v3590
        %v3592 = vpop.f32.mrf.mxu0
        %v3593 = vadd.f32 0.0, %v3592
        %3594 = vmatmul.bf16.gmra.mxu0 %v2882
        %v3595 = vpop.f32.mrf.mxu0
        %v3596 = vadd.f32 0.0, %v3595
        %v3597 = vpop.f32.mrf.mxu0
        %v3598 = vadd.f32 0.0, %v3597
        %3599 = vmatmul.bf16.gmra.mxu0 %v2883
        %v3600 = vpop.f32.mrf.mxu0
        %v3601 = vadd.f32 0.0, %v3600
        %v3602 = vpop.f32.mrf.mxu0
        %v3603 = vadd.f32 0.0, %v3602
        %3604 = vmatmul.bf16.gmra.mxu0 %v2884
        %v3605 = vpop.f32.mrf.mxu0
        %v3606 = vadd.f32 0.0, %v3605
        %v3607 = vpop.f32.mrf.mxu0
        %v3608 = vadd.f32 0.0, %v3607
        %3609 = vmatmul.bf16.gmra.mxu0 %v2885
        %v3610 = vpop.f32.mrf.mxu0
        %v3611 = vadd.f32 0.0, %v3610
        %v3612 = vpop.f32.mrf.mxu0
        %v3613 = vadd.f32 0.0, %v3612
        %3614 = vmatmul.bf16.gmra.mxu0 %v2886
        %v3615 = vpop.f32.mrf.mxu0
        %v3616 = vadd.f32 0.0, %v3615
        %v3617 = vpop.f32.mrf.mxu0
        %v3618 = vadd.f32 0.0, %v3617
        %3619 = vmatmul.bf16.gmra.mxu0 %v2887
        %v3620 = vpop.f32.mrf.mxu0
        %v3621 = vadd.f32 0.0, %v3620
        %v3622 = vpop.f32.mrf.mxu0
        %v3623 = vadd.f32 0.0, %v3622
        %3624 = vmatmul.bf16.gmra.mxu0 %v2888
        %v3625 = vpop.f32.mrf.mxu0
        %v3626 = vadd.f32 0.0, %v3625
        %v3627 = vpop.f32.mrf.mxu0
        %v3628 = vadd.f32 0.0, %v3627
        %3629 = vmatmul.bf16.gmra.mxu0 %v2889
        %v3630 = vpop.f32.mrf.mxu0
        %v3631 = vadd.f32 0.0, %v3630
        %v3632 = vpop.f32.mrf.mxu0
        %v3633 = vadd.f32 0.0, %v3632
        %3634 = vmatmul.bf16.gmra.mxu0 %v2890
        %v3635 = vpop.f32.mrf.mxu0
        %v3636 = vadd.f32 0.0, %v3635
        %v3637 = vpop.f32.mrf.mxu0
        %v3638 = vadd.f32 0.0, %v3637
        %3639 = vmatmul.bf16.gmra.mxu0 %v2891
        %v3640 = vpop.f32.mrf.mxu0
        %v3641 = vadd.f32 0.0, %v3640
        %v3642 = vpop.f32.mrf.mxu0
        %v3643 = vadd.f32 0.0, %v3642
        %3644 = vmatmul.bf16.gmra.mxu0 %v2892
        %v3645 = vpop.f32.mrf.mxu0
        %v3646 = vadd.f32 0.0, %v3645
        %v3647 = vpop.f32.mrf.mxu0
        %v3648 = vadd.f32 0.0, %v3647
        %3649 = vmatmul.bf16.gmra.mxu0 %v2893
        %v3650 = vpop.f32.mrf.mxu0
        %v3651 = vadd.f32 0.0, %v3650
        %v3652 = vpop.f32.mrf.mxu0
        %v3653 = vadd.f32 0.0, %v3652
        %3654 = vmatmul.bf16.gmra.mxu0 %v2894
        %v3655 = vpop.f32.mrf.mxu0
        %v3656 = vadd.f32 0.0, %v3655
        %v3657 = vpop.f32.mrf.mxu0
        %v3658 = vadd.f32 0.0, %v3657
        %3659 = vmatmul.bf16.gmra.mxu0 %v2895
        %v3660 = vpop.f32.mrf.mxu0
        %v3661 = vadd.f32 0.0, %v3660
        %v3662 = vpop.f32.mrf.mxu0
        %v3663 = vadd.f32 0.0, %v3662
        %3664 = vmatmul.bf16.gmra.mxu0 %v2896
        %v3665 = vpop.f32.mrf.mxu0
        %v3666 = vadd.f32 0.0, %v3665
        %v3667 = vpop.f32.mrf.mxu0
        %v3668 = vadd.f32 0.0, %v3667
        %3669 = vmatmul.bf16.gmra.mxu0 %v2897
        %v3670 = vpop.f32.mrf.mxu0
        %v3671 = vadd.f32 0.0, %v3670
        %v3672 = vpop.f32.mrf.mxu0
        %v3673 = vadd.f32 0.0, %v3672
        %3674 = vmatmul.bf16.gmra.mxu0 %v2898
        %v3675 = vpop.f32.mrf.mxu0
        %v3676 = vadd.f32 0.0, %v3675
        %v3677 = vpop.f32.mrf.mxu0
        %v3678 = vadd.f32 0.0, %v3677
        %3679 = vmatmul.bf16.gmra.mxu0 %v2899
        %v3680 = vpop.f32.mrf.mxu0
        %v3681 = vadd.f32 0.0, %v3680
        %v3682 = vpop.f32.mrf.mxu0
        %v3683 = vadd.f32 0.0, %v3682
        %3684 = vmatmul.bf16.gmra.mxu0 %v2900
        %v3685 = vpop.f32.mrf.mxu0
        %v3686 = vadd.f32 0.0, %v3685
        %v3687 = vpop.f32.mrf.mxu0
        %v3688 = vadd.f32 0.0, %v3687
        %3689 = vmatmul.bf16.gmra.mxu0 %v2901
        %v3690 = vpop.f32.mrf.mxu0
        %v3691 = vadd.f32 0.0, %v3690
        %v3692 = vpop.f32.mrf.mxu0
        %v3693 = vadd.f32 0.0, %v3692
        %3694 = vmatmul.bf16.gmra.mxu0 %v2902
        %v3695 = vpop.f32.mrf.mxu0
        %v3696 = vadd.f32 0.0, %v3695
        %v3697 = vpop.f32.mrf.mxu0
        %v3698 = vadd.f32 0.0, %v3697
        %3699 = vmatmul.bf16.gmra.mxu0 %v2903
        %v3700 = vpop.f32.mrf.mxu0
        %v3701 = vadd.f32 0.0, %v3700
        %v3702 = vpop.f32.mrf.mxu0
        %v3703 = vadd.f32 0.0, %v3702
        %3704 = vmatmul.bf16.gmra.mxu0 %v2904
        %v3705 = vpop.f32.mrf.mxu0
        %v3706 = vadd.f32 0.0, %v3705
        %v3707 = vpop.f32.mrf.mxu0
        %v3708 = vadd.f32 0.0, %v3707
        %3709 = vmatmul.bf16.gmra.mxu0 %v2905
        %v3710 = vpop.f32.mrf.mxu0
        %v3711 = vadd.f32 0.0, %v3710
        %v3712 = vpop.f32.mrf.mxu0
        %v3713 = vadd.f32 0.0, %v3712
        %3714 = vmatmul.bf16.gmra.mxu0 %v2906
        %v3715 = vpop.f32.mrf.mxu0
        %v3716 = vadd.f32 0.0, %v3715
        %v3717 = vpop.f32.mrf.mxu0
        %v3718 = vadd.f32 0.0, %v3717
        %3719 = vmatmul.bf16.gmra.mxu0 %v2907
        %v3720 = vpop.f32.mrf.mxu0
        %v3721 = vadd.f32 0.0, %v3720
        %v3722 = vpop.f32.mrf.mxu0
        %v3723 = vadd.f32 0.0, %v3722
        %3724 = vmatmul.bf16.gmra.mxu0 %v2908
        %v3725 = vpop.f32.mrf.mxu0
        %v3726 = vadd.f32 0.0, %v3725
        %v3727 = vpop.f32.mrf.mxu0
        %v3728 = vadd.f32 0.0, %v3727
        %3729 = vmatmul.bf16.gmra.mxu0 %v2909
        %v3730 = vpop.f32.mrf.mxu0
        %v3731 = vadd.f32 0.0, %v3730
        %v3732 = vpop.f32.mrf.mxu0
        %v3733 = vadd.f32 0.0, %v3732
        %3734 = vmatmul.bf16.gmra.mxu0 %v2910
        %v3735 = vpop.f32.mrf.mxu0
        %v3736 = vadd.f32 0.0, %v3735
        %v3737 = vpop.f32.mrf.mxu0
        %v3738 = vadd.f32 0.0, %v3737
        %3739 = vmatmul.bf16.gmra.mxu0 %v2911
        %v3740 = vpop.f32.mrf.mxu0
        %v3741 = vadd.f32 0.0, %v3740
        %v3742 = vpop.f32.mrf.mxu0
        %v3743 = vadd.f32 0.0, %v3742
        %3744 = vmatmul.bf16.gmra.mxu0 %v2912
        %v3745 = vpop.f32.mrf.mxu0
        %v3746 = vadd.f32 0.0, %v3745
        %v3747 = vpop.f32.mrf.mxu0
        %v3748 = vadd.f32 0.0, %v3747
        %3749 = vmatmul.bf16.gmra.mxu0 %v2913
        %v3750 = vpop.f32.mrf.mxu0
        %v3751 = vadd.f32 0.0, %v3750
        %v3752 = vpop.f32.mrf.mxu0
        %v3753 = vadd.f32 0.0, %v3752
        %3754 = vmatmul.bf16.gmra.mxu0 %v2914
        %v3755 = vpop.f32.mrf.mxu0
        %v3756 = vadd.f32 0.0, %v3755
        %v3757 = vpop.f32.mrf.mxu0
        %v3758 = vadd.f32 0.0, %v3757
        %3759 = vmatmul.bf16.gmra.mxu0 %v2915
        %v3760 = vpop.f32.mrf.mxu0
        %v3761 = vadd.f32 0.0, %v3760
        %v3762 = vpop.f32.mrf.mxu0
        %v3763 = vadd.f32 0.0, %v3762
        %3764 = vmatmul.bf16.gmra.mxu0 %v2916
        %v3765 = vpop.f32.mrf.mxu0
        %v3766 = vadd.f32 0.0, %v3765
        %v3767 = vpop.f32.mrf.mxu0
        %v3768 = vadd.f32 0.0, %v3767
        %3769 = vmatmul.bf16.gmra.mxu0 %v2917
        %v3770 = vpop.f32.mrf.mxu0
        %v3771 = vadd.f32 0.0, %v3770
        %v3772 = vpop.f32.mrf.mxu0
        %v3773 = vadd.f32 0.0, %v3772
        %3774 = vmatmul.bf16.gmra.mxu0 %v2918
        %v3775 = vpop.f32.mrf.mxu0
        %v3776 = vadd.f32 0.0, %v3775
        %v3777 = vpop.f32.mrf.mxu0
        %v3778 = vadd.f32 0.0, %v3777
        %3779 = vmatmul.bf16.gmra.mxu0 %v2919
        %v3780 = vpop.f32.mrf.mxu0
        %v3781 = vadd.f32 0.0, %v3780
        %v3782 = vpop.f32.mrf.mxu0
        %v3783 = vadd.f32 0.0, %v3782
        %3784 = vmatmul.bf16.gmra.mxu0 %v2920
        %v3785 = vpop.f32.mrf.mxu0
        %v3786 = vadd.f32 0.0, %v3785
        %v3787 = vpop.f32.mrf.mxu0
        %v3788 = vadd.f32 0.0, %v3787
        %3789 = vmatmul.bf16.gmra.mxu0 %v2921
        %v3790 = vpop.f32.mrf.mxu0
        %v3791 = vadd.f32 0.0, %v3790
        %v3792 = vpop.f32.mrf.mxu0
        %v3793 = vadd.f32 0.0, %v3792
        %3794 = vmatmul.bf16.gmra.mxu0 %v2922
        %v3795 = vpop.f32.mrf.mxu0
        %v3796 = vadd.f32 0.0, %v3795
        %v3797 = vpop.f32.mrf.mxu0
        %v3798 = vadd.f32 0.0, %v3797
        %3799 = vmatmul.bf16.gmra.mxu0 %v2923
        %v3800 = vpop.f32.mrf.mxu0
        %v3801 = vadd.f32 0.0, %v3800
        %v3802 = vpop.f32.mrf.mxu0
        %v3803 = vadd.f32 0.0, %v3802
        %3804 = vmatmul.bf16.gmra.mxu0 %v2924
        %v3805 = vpop.f32.mrf.mxu0
        %v3806 = vadd.f32 0.0, %v3805
        %v3807 = vpop.f32.mrf.mxu0
        %v3808 = vadd.f32 0.0, %v3807
        %3809 = vmatmul.bf16.gmra.mxu0 %v2925
        %v3810 = vpop.f32.mrf.mxu0
        %v3811 = vadd.f32 0.0, %v3810
        %v3812 = vpop.f32.mrf.mxu0
        %v3813 = vadd.f32 0.0, %v3812
        %3814 = vmatmul.bf16.gmra.mxu0 %v2926
        %v3815 = vpop.f32.mrf.mxu0
        %v3816 = vadd.f32 0.0, %v3815
        %v3817 = vpop.f32.mrf.mxu0
        %v3818 = vadd.f32 0.0, %v3817
        %3819 = vmatmul.bf16.gmra.mxu0 %v2927
        %v3820 = vpop.f32.mrf.mxu0
        %v3821 = vadd.f32 0.0, %v3820
        %v3822 = vpop.f32.mrf.mxu0
        %v3823 = vadd.f32 0.0, %v3822
        %3824 = vmatmul.bf16.gmra.mxu0 %v2928
        %v3825 = vpop.f32.mrf.mxu0
        %v3826 = vadd.f32 0.0, %v3825
        %v3827 = vpop.f32.mrf.mxu0
        %v3828 = vadd.f32 0.0, %v3827
        %3829 = vmatmul.bf16.gmra.mxu0 %v2929
        %v3830 = vpop.f32.mrf.mxu0
        %v3831 = vadd.f32 0.0, %v3830
        %v3832 = vpop.f32.mrf.mxu0
        %v3833 = vadd.f32 0.0, %v3832
        %3834 = vmatmul.bf16.gmra.mxu0 %v2930
        %v3835 = vpop.f32.mrf.mxu0
        %v3836 = vadd.f32 0.0, %v3835
        %v3837 = vpop.f32.mrf.mxu0
        %v3838 = vadd.f32 0.0, %v3837
        %3839 = vmatmul.bf16.gmra.mxu0 %v2931
        %v3840 = vpop.f32.mrf.mxu0
        %v3841 = vadd.f32 0.0, %v3840
        %v3842 = vpop.f32.mrf.mxu0
        %v3843 = vadd.f32 0.0, %v3842
        %3844 = vmatmul.bf16.gmra.mxu0 %v2932
        %v3845 = vpop.f32.mrf.mxu0
        %v3846 = vadd.f32 0.0, %v3845
        %v3847 = vpop.f32.mrf.mxu0
        %v3848 = vadd.f32 0.0, %v3847
        %3849 = vmatmul.bf16.gmra.mxu0 %v2933
        %v3850 = vpop.f32.mrf.mxu0
        %v3851 = vadd.f32 0.0, %v3850
        %v3852 = vpop.f32.mrf.mxu0
        %v3853 = vadd.f32 0.0, %v3852
        %3854 = vmatmul.bf16.gmra.mxu0 %v2934
        %v3855 = vpop.f32.mrf.mxu0
        %v3856 = vadd.f32 0.0, %v3855
        %v3857 = vpop.f32.mrf.mxu0
        %v3858 = vadd.f32 0.0, %v3857
        %3859 = vmatmul.bf16.gmra.mxu0 %v2935
        %v3860 = vpop.f32.mrf.mxu0
        %v3861 = vadd.f32 0.0, %v3860
        %v3862 = vpop.f32.mrf.mxu0
        %v3863 = vadd.f32 0.0, %v3862
        %3864 = vmatmul.bf16.gmra.mxu0 %v2936
        %v3865 = vpop.f32.mrf.mxu0
        %v3866 = vadd.f32 0.0, %v3865
        %v3867 = vpop.f32.mrf.mxu0
        %v3868 = vadd.f32 0.0, %v3867
        %3869 = vmatmul.bf16.gmra.mxu0 %v2937
        %v3870 = vpop.f32.mrf.mxu0
        %v3871 = vadd.f32 0.0, %v3870
        %v3872 = vpop.f32.mrf.mxu0
        %v3873 = vadd.f32 0.0, %v3872
        %3874 = vmatmul.bf16.gmra.mxu0 %v2938
        %v3875 = vpop.f32.mrf.mxu0
        %v3876 = vadd.f32 0.0, %v3875
        %v3877 = vpop.f32.mrf.mxu0
        %v3878 = vadd.f32 0.0, %v3877
        %3879 = vmatmul.bf16.gmra.mxu0 %v2939
        %v3880 = vpop.f32.mrf.mxu0
        %v3881 = vadd.f32 0.0, %v3880
        %v3882 = vpop.f32.mrf.mxu0
        %v3883 = vadd.f32 0.0, %v3882
        %3884 = vmatmul.bf16.gmra.mxu0 %v2940
        %v3885 = vpop.f32.mrf.mxu0
        %v3886 = vadd.f32 0.0, %v3885
        %v3887 = vpop.f32.mrf.mxu0
        %v3888 = vadd.f32 0.0, %v3887
        %3889 = vmatmul.bf16.gmra.mxu0 %v2941
        %v3890 = vpop.f32.mrf.mxu0
        %v3891 = vadd.f32 0.0, %v3890
        %v3892 = vpop.f32.mrf.mxu0
        %v3893 = vadd.f32 0.0, %v3892
        %3894 = vmatmul.bf16.gmra.mxu0 %v2942
        %v3895 = vpop.f32.mrf.mxu0
        %v3896 = vadd.f32 0.0, %v3895
        %v3897 = vpop.f32.mrf.mxu0
        %v3898 = vadd.f32 0.0, %v3897
        %3899 = vmatmul.bf16.gmra.mxu0 %v2943
        %v3900 = vpop.f32.mrf.mxu0
        %v3901 = vadd.f32 0.0, %v3900
        %v3902 = vpop.f32.mrf.mxu0
        %v3903 = vadd.f32 0.0, %v3902
        %3904 = vmatmul.bf16.gmra.mxu0 %v2944
        %v3905 = vpop.f32.mrf.mxu0
        %v3906 = vadd.f32 0.0, %v3905
        %v3907 = vpop.f32.mrf.mxu0
        %v3908 = vadd.f32 0.0, %v3907
        %3909 = vmatmul.bf16.gmra.mxu0 %v2945
        %v3910 = vpop.f32.mrf.mxu0
        %v3911 = vadd.f32 0.0, %v3910
        %v3912 = vpop.f32.mrf.mxu0
        %v3913 = vadd.f32 0.0, %v3912
        %3914 = vmatmul.bf16.gmra.mxu0 %v2946
        %v3915 = vpop.f32.mrf.mxu0
        %v3916 = vadd.f32 0.0, %v3915
        %v3917 = vpop.f32.mrf.mxu0
        %v3918 = vadd.f32 0.0, %v3917
        %3919 = vmatmul.bf16.gmra.mxu0 %v2947
        %v3920 = vpop.f32.mrf.mxu0
        %v3921 = vadd.f32 0.0, %v3920
        %v3922 = vpop.f32.mrf.mxu0
        %v3923 = vadd.f32 0.0, %v3922
        %3924 = vmatmul.bf16.gmra.mxu0 %v2948
        %v3925 = vpop.f32.mrf.mxu0
        %v3926 = vadd.f32 0.0, %v3925
        %v3927 = vpop.f32.mrf.mxu0
        %v3928 = vadd.f32 0.0, %v3927
        %3929 = vmatmul.bf16.gmra.mxu0 %v2949
        %v3930 = vpop.f32.mrf.mxu0
        %v3931 = vadd.f32 0.0, %v3930
        %v3932 = vpop.f32.mrf.mxu0
        %v3933 = vadd.f32 0.0, %v3932
        %3934 = vmatmul.bf16.gmra.mxu0 %v2950
        %v3935 = vpop.f32.mrf.mxu0
        %v3936 = vadd.f32 0.0, %v3935
        %v3937 = vpop.f32.mrf.mxu0
        %v3938 = vadd.f32 0.0, %v3937
        %3939 = vmatmul.bf16.gmra.mxu0 %v2951
        %v3940 = vpop.f32.mrf.mxu0
        %v3941 = vadd.f32 0.0, %v3940
        %v3942 = vpop.f32.mrf.mxu0
        %v3943 = vadd.f32 0.0, %v3942
        %3944 = vmatmul.bf16.gmra.mxu0 %v2952
        %v3945 = vpop.f32.mrf.mxu0
        %v3946 = vadd.f32 0.0, %v3945
        %v3947 = vpop.f32.mrf.mxu0
        %v3948 = vadd.f32 0.0, %v3947
        %3949 = vmatmul.bf16.gmra.mxu0 %v2953
        %v3950 = vpop.f32.mrf.mxu0
        %v3951 = vadd.f32 0.0, %v3950
        %v3952 = vpop.f32.mrf.mxu0
        %v3953 = vadd.f32 0.0, %v3952
        %3954 = vmatmul.bf16.gmra.mxu0 %v2954
        %v3955 = vpop.f32.mrf.mxu0
        %v3956 = vadd.f32 0.0, %v3955
        %v3957 = vpop.f32.mrf.mxu0
        %v3958 = vadd.f32 0.0, %v3957
        %3959 = vmatmul.bf16.gmra.mxu0 %v2955
        %v3960 = vpop.f32.mrf.mxu0
        %v3961 = vadd.f32 0.0, %v3960
        %v3962 = vpop.f32.mrf.mxu0
        %v3963 = vadd.f32 0.0, %v3962
        %3964 = vmatmul.bf16.gmra.mxu0 %v2956
        %v3965 = vpop.f32.mrf.mxu0
        %v3966 = vadd.f32 0.0, %v3965
        %v3967 = vpop.f32.mrf.mxu0
        %v3968 = vadd.f32 0.0, %v3967
        %3969 = vmatmul.bf16.gmra.mxu0 %v2957
        %v3970 = vpop.f32.mrf.mxu0
        %v3971 = vadd.f32 0.0, %v3970
        %v3972 = vpop.f32.mrf.mxu0
        %v3973 = vadd.f32 0.0, %v3972
        %3974 = vmatmul.bf16.gmra.mxu0 %v2958
        %v3975 = vpop.f32.mrf.mxu0
        %v3976 = vadd.f32 0.0, %v3975
        %v3977 = vpop.f32.mrf.mxu0
        %v3978 = vadd.f32 0.0, %v3977
        %3979 = vmatmul.bf16.gmra.mxu0 %v2959
        %v3980 = vpop.f32.mrf.mxu0
        %v3981 = vadd.f32 0.0, %v3980
        %v3982 = vpop.f32.mrf.mxu0
        %v3983 = vadd.f32 0.0, %v3982
        %3984 = vmatmul.bf16.gmra.mxu0 %v2960
        %v3985 = vpop.f32.mrf.mxu0
        %v3986 = vadd.f32 0.0, %v3985
        %v3987 = vpop.f32.mrf.mxu0
        %v3988 = vadd.f32 0.0, %v3987
        %3989 = vmatmul.bf16.gmra.mxu0 %v2961
        %v3990 = vpop.f32.mrf.mxu0
        %v3991 = vadd.f32 0.0, %v3990
        %v3992 = vpop.f32.mrf.mxu0
        %v3993 = vadd.f32 0.0, %v3992
        %3994 = vmatmul.bf16.gmra.mxu0 %v2962
        %v3995 = vpop.f32.mrf.mxu0
        %v3996 = vadd.f32 0.0, %v3995
        %v3997 = vpop.f32.mrf.mxu0
        %v3998 = vadd.f32 0.0, %v3997
        %3999 = vmatmul.bf16.gmra.mxu0 %v2963
        %v4000 = vpop.f32.mrf.mxu0
        %v4001 = vadd.f32 0.0, %v4000
        %v4002 = vpop.f32.mrf.mxu0
        %v4003 = vadd.f32 0.0, %v4002
        %4004 = vmatmul.bf16.gmra.mxu0 %v2964
        %v4005 = vpop.f32.mrf.mxu0
        %v4006 = vadd.f32 0.0, %v4005
        %v4007 = vpop.f32.mrf.mxu0
        %v4008 = vadd.f32 0.0, %v4007
        %4009 = vmatmul.bf16.gmra.mxu0 %v2965
        %v4010 = vpop.f32.mrf.mxu0
        %v4011 = vadd.f32 0.0, %v4010
        %v4012 = vpop.f32.mrf.mxu0
        %v4013 = vadd.f32 0.0, %v4012
        %4014 = vmatmul.bf16.gmra.mxu0 %v2966
        %v4015 = vpop.f32.mrf.mxu0
        %v4016 = vadd.f32 0.0, %v4015
        %v4017 = vpop.f32.mrf.mxu0
        %v4018 = vadd.f32 0.0, %v4017
        %4019 = vmatmul.bf16.gmra.mxu0 %v2967
        %v4020 = vpop.f32.mrf.mxu0
        %v4021 = vadd.f32 0.0, %v4020
        %v4022 = vpop.f32.mrf.mxu0
        %v4023 = vadd.f32 0.0, %v4022
        %4024 = vmatmul.bf16.gmra.mxu0 %v2968
        %v4025 = vpop.f32.mrf.mxu0
        %v4026 = vadd.f32 0.0, %v4025
        %v4027 = vpop.f32.mrf.mxu0
        %v4028 = vadd.f32 0.0, %v4027
        %4029 = vmatmul.bf16.gmra.mxu0 %v2969
        %v4030 = vpop.f32.mrf.mxu0
        %v4031 = vadd.f32 0.0, %v4030
        %v4032 = vpop.f32.mrf.mxu0
        %v4033 = vadd.f32 0.0, %v4032
        %4034 = vmatmul.bf16.gmra.mxu0 %v2970
        %v4035 = vpop.f32.mrf.mxu0
        %v4036 = vadd.f32 0.0, %v4035
        %v4037 = vpop.f32.mrf.mxu0
        %v4038 = vadd.f32 0.0, %v4037
        %4039 = vmatmul.bf16.gmra.mxu0 %v2971
        %v4040 = vpop.f32.mrf.mxu0
        %v4041 = vadd.f32 0.0, %v4040
        %v4042 = vpop.f32.mrf.mxu0
        %v4043 = vadd.f32 0.0, %v4042
        %4044 = vmatmul.bf16.gmra.mxu0 %v2972
        %v4045 = vpop.f32.mrf.mxu0
        %v4046 = vadd.f32 0.0, %v4045
        %v4047 = vpop.f32.mrf.mxu0
        %v4048 = vadd.f32 0.0, %v4047
        %4049 = vmatmul.bf16.gmra.mxu0 %v2973
        %v4050 = vpop.f32.mrf.mxu0
        %v4051 = vadd.f32 0.0, %v4050
        %v4052 = vpop.f32.mrf.mxu0
        %v4053 = vadd.f32 0.0, %v4052
        %4054 = vmatmul.bf16.gmra.mxu0 %v2974
        %v4055 = vpop.f32.mrf.mxu0
        %v4056 = vadd.f32 0.0, %v4055
        %v4057 = vpop.f32.mrf.mxu0
        %v4058 = vadd.f32 0.0, %v4057
        %4059 = vmatmul.bf16.gmra.mxu0 %v2975
        %v4060 = vpop.f32.mrf.mxu0
        %v4061 = vadd.f32 0.0, %v4060
        %v4062 = vpop.f32.mrf.mxu0
        %v4063 = vadd.f32 0.0, %v4062
        %4064 = vmatmul.bf16.gmra.mxu0 %v2976
        %v4065 = vpop.f32.mrf.mxu0
        %v4066 = vadd.f32 0.0, %v4065
        %v4067 = vpop.f32.mrf.mxu0
        %v4068 = vadd.f32 0.0, %v4067
        %4069 = vmatmul.bf16.gmra.mxu0 %v2977
        %v4070 = vpop.f32.mrf.mxu0
        %v4071 = vadd.f32 0.0, %v4070
        %v4072 = vpop.f32.mrf.mxu0
        %v4073 = vadd.f32 0.0, %v4072
        %4074 = vmatmul.bf16.gmra.mxu0 %v2978
        %v4075 = vpop.f32.mrf.mxu0
        %v4076 = vadd.f32 0.0, %v4075
        %v4077 = vpop.f32.mrf.mxu0
        %v4078 = vadd.f32 0.0, %v4077
        %4079 = vmatmul.bf16.gmra.mxu0 %v2979
        %v4080 = vpop.f32.mrf.mxu0
        %v4081 = vadd.f32 0.0, %v4080
        %v4082 = vpop.f32.mrf.mxu0
        %v4083 = vadd.f32 0.0, %v4082
        %4084 = vmatmul.bf16.gmra.mxu0 %v2980
        %v4085 = vpop.f32.mrf.mxu0
        %v4086 = vadd.f32 0.0, %v4085
        %v4087 = vpop.f32.mrf.mxu0
        %v4088 = vadd.f32 0.0, %v4087
        %4089 = vmatmul.bf16.gmra.mxu0 %v2981
        %v4090 = vpop.f32.mrf.mxu0
        %v4091 = vadd.f32 0.0, %v4090
        %v4092 = vpop.f32.mrf.mxu0
        %v4093 = vadd.f32 0.0, %v4092
        %4094 = vmatmul.bf16.gmra.mxu0 %v2982
        %v4095 = vpop.f32.mrf.mxu0
        %v4096 = vadd.f32 0.0, %v4095
        %v4097 = vpop.f32.mrf.mxu0
        %v4098 = vadd.f32 0.0, %v4097
        %4099 = vmatmul.bf16.gmra.mxu0 %v2983
        %v4100 = vpop.f32.mrf.mxu0
        %v4101 = vadd.f32 0.0, %v4100
        %v4102 = vpop.f32.mrf.mxu0
        %v4103 = vadd.f32 0.0, %v4102
        %4104 = vmatmul.bf16.gmra.mxu0 %v2984
        %v4105 = vpop.f32.mrf.mxu0
        %v4106 = vadd.f32 0.0, %v4105
        %v4107 = vpop.f32.mrf.mxu0
        %v4108 = vadd.f32 0.0, %v4107
        %4109 = vmatmul.bf16.gmra.mxu0 %v2985
        %v4110 = vpop.f32.mrf.mxu0
        %v4111 = vadd.f32 0.0, %v4110
        %v4112 = vpop.f32.mrf.mxu0
        %v4113 = vadd.f32 0.0, %v4112
        %4114 = vmatmul.bf16.gmra.mxu0 %v2986
        %v4115 = vpop.f32.mrf.mxu0
        %v4116 = vadd.f32 0.0, %v4115
        %v4117 = vpop.f32.mrf.mxu0
        %v4118 = vadd.f32 0.0, %v4117
        %4119 = vmatmul.bf16.gmra.mxu0 %v2987
        %v4120 = vpop.f32.mrf.mxu0
        %v4121 = vadd.f32 0.0, %v4120
        %v4122 = vpop.f32.mrf.mxu0
        %v4123 = vadd.f32 0.0, %v4122
        %4124 = vmatmul.bf16.gmra.mxu0 %v2988
        %v4125 = vpop.f32.mrf.mxu0
        %v4126 = vadd.f32 0.0, %v4125
        %v4127 = vpop.f32.mrf.mxu0
        %v4128 = vadd.f32 0.0, %v4127
        %4129 = vmatmul.bf16.gmra.mxu0 %v2989
        %v4130 = vpop.f32.mrf.mxu0
        %v4131 = vadd.f32 0.0, %v4130
        %v4132 = vpop.f32.mrf.mxu0
        %v4133 = vadd.f32 0.0, %v4132
        %4134 = vmatmul.bf16.gmra.mxu0 %v2990
        %v4135 = vpop.f32.mrf.mxu0
        %v4136 = vadd.f32 0.0, %v4135
        %v4137 = vpop.f32.mrf.mxu0
        %v4138 = vadd.f32 0.0, %v4137
        %4139 = vmatmul.bf16.gmra.mxu0 %v2991
        %v4140 = vpop.f32.mrf.mxu0
        %v4141 = vadd.f32 0.0, %v4140
        %v4142 = vpop.f32.mrf.mxu0
        %v4143 = vadd.f32 0.0, %v4142
        %4144 = vmatmul.bf16.gmra.mxu0 %v2992
        %v4145 = vpop.f32.mrf.mxu0
        %v4146 = vadd.f32 0.0, %v4145
        %v4147 = vpop.f32.mrf.mxu0
        %v4148 = vadd.f32 0.0, %v4147
        %4149 = vmatmul.bf16.gmra.mxu0 %v2993
        %v4150 = vpop.f32.mrf.mxu0
        %v4151 = vadd.f32 0.0, %v4150
        %v4152 = vpop.f32.mrf.mxu0
        %v4153 = vadd.f32 0.0, %v4152
        %4154 = vmatmul.bf16.gmra.mxu0 %v2994
        %v4155 = vpop.f32.mrf.mxu0
        %v4156 = vadd.f32 0.0, %v4155
        %v4157 = vpop.f32.mrf.mxu0
        %v4158 = vadd.f32 0.0, %v4157
        %4159 = vmatmul.bf16.gmra.mxu0 %v2995
        %v4160 = vpop.f32.mrf.mxu0
        %v4161 = vadd.f32 0.0, %v4160
        %v4162 = vpop.f32.mrf.mxu0
        %v4163 = vadd.f32 0.0, %v4162
        %4164 = vmatmul.bf16.gmra.mxu0 %v2996
        %v4165 = vpop.f32.mrf.mxu0
        %v4166 = vadd.f32 0.0, %v4165
        %v4167 = vpop.f32.mrf.mxu0
        %v4168 = vadd.f32 0.0, %v4167
        %4169 = vmatmul.bf16.gmra.mxu0 %v2997
        %v4170 = vpop.f32.mrf.mxu0
        %v4171 = vadd.f32 0.0, %v4170
        %v4172 = vpop.f32.mrf.mxu0
        %v4173 = vadd.f32 0.0, %v4172
        %4174 = vmatmul.bf16.gmra.mxu0 %v2998
        %v4175 = vpop.f32.mrf.mxu0
        %v4176 = vadd.f32 0.0, %v4175
        %v4177 = vpop.f32.mrf.mxu0
        %v4178 = vadd.f32 0.0, %v4177
        %4179 = vmatmul.bf16.gmra.mxu0 %v2999
        %v4180 = vpop.f32.mrf.mxu0
        %v4181 = vadd.f32 0.0, %v4180
        %v4182 = vpop.f32.mrf.mxu0
        %v4183 = vadd.f32 0.0, %v4182
        %4184 = vmatmul.bf16.gmra.mxu0 %v3000
        %v4185 = vpop.f32.mrf.mxu0
        %v4186 = vadd.f32 0.0, %v4185
        %v4187 = vpop.f32.mrf.mxu0
        %v4188 = vadd.f32 0.0, %v4187
        %4189 = vmatmul.bf16.gmra.mxu0 %v3001
        %v4190 = vpop.f32.mrf.mxu0
        %v4191 = vadd.f32 0.0, %v4190
        %v4192 = vpop.f32.mrf.mxu0
        %v4193 = vadd.f32 0.0, %v4192
        %4194 = vmatmul.bf16.gmra.mxu0 %v3002
        %v4195 = vpop.f32.mrf.mxu0
        %v4196 = vadd.f32 0.0, %v4195
        %v4197 = vpop.f32.mrf.mxu0
        %v4198 = vadd.f32 0.0, %v4197
        %4199 = vmatmul.bf16.gmra.mxu0 %v3003
        %v4200 = vpop.f32.mrf.mxu0
        %v4201 = vadd.f32 0.0, %v4200
        %v4202 = vpop.f32.mrf.mxu0
        %v4203 = vadd.f32 0.0, %v4202
        %4204 = vmatmul.bf16.gmra.mxu0 %v3004
        %v4205 = vpop.f32.mrf.mxu0
        %v4206 = vadd.f32 0.0, %v4205
        %v4207 = vpop.f32.mrf.mxu0
        %v4208 = vadd.f32 0.0, %v4207
        %4209 = vmatmul.bf16.gmra.mxu0 %v3005
        %v4210 = vpop.f32.mrf.mxu0
        %v4211 = vadd.f32 0.0, %v4210
        %v4212 = vpop.f32.mrf.mxu0
        %v4213 = vadd.f32 0.0, %v4212
        %4214 = vmatmul.bf16.gmra.mxu0 %v3006
        %v4215 = vpop.f32.mrf.mxu0
        %v4216 = vadd.f32 0.0, %v4215
        %v4217 = vpop.f32.mrf.mxu0
        %v4218 = vadd.f32 0.0, %v4217
        %4219 = vmatmul.bf16.gmra.mxu0 %v3007
        %v4220 = vpop.f32.mrf.mxu0
        %v4221 = vadd.f32 0.0, %v4220
        %v4222 = vpop.f32.mrf.mxu0
        %v4223 = vadd.f32 0.0, %v4222
        %4224 = vmatmul.bf16.gmra.mxu0 %v3008
        %v4225 = vpop.f32.mrf.mxu0
        %v4226 = vadd.f32 0.0, %v4225
        %v4227 = vpop.f32.mrf.mxu0
        %v4228 = vadd.f32 0.0, %v4227
        %4229 = vmatmul.bf16.gmra.mxu0 %v3009
        %v4230 = vpop.f32.mrf.mxu0
        %v4231 = vadd.f32 0.0, %v4230
        %v4232 = vpop.f32.mrf.mxu0
        %v4233 = vadd.f32 0.0, %v4232
        %4234 = vmatmul.bf16.gmra.mxu0 %v3010
        %v4235 = vpop.f32.mrf.mxu0
        %v4236 = vadd.f32 0.0, %v4235
        %v4237 = vpop.f32.mrf.mxu0
        %v4238 = vadd.f32 0.0, %v4237
        %4239 = vmatmul.bf16.gmra.mxu0 %v3011
        %v4240 = vpop.f32.mrf.mxu0
        %v4241 = vadd.f32 0.0, %v4240
        %v4242 = vpop.f32.mrf.mxu0
        %v4243 = vadd.f32 0.0, %v4242
        %4244 = vmatmul.bf16.gmra.mxu0 %v3012
        %v4245 = vpop.f32.mrf.mxu0
        %v4246 = vadd.f32 0.0, %v4245
        %v4247 = vpop.f32.mrf.mxu0
        %v4248 = vadd.f32 0.0, %v4247
        %4249 = vmatmul.bf16.gmra.mxu0 %v3013
        %v4250 = vpop.f32.mrf.mxu0
        %v4251 = vadd.f32 0.0, %v4250
        %v4252 = vpop.f32.mrf.mxu0
        %v4253 = vadd.f32 0.0, %v4252
        %4254 = vmatmul.bf16.gmra.mxu0 %v3014
        %v4255 = vpop.f32.mrf.mxu0
        %v4256 = vadd.f32 0.0, %v4255
        %v4257 = vpop.f32.mrf.mxu0
        %v4258 = vadd.f32 0.0, %v4257
        %4259 = vmatmul.bf16.gmra.mxu0 %v3015
        %v4260 = vpop.f32.mrf.mxu0
        %v4261 = vadd.f32 0.0, %v4260
        %v4262 = vpop.f32.mrf.mxu0
        %v4263 = vadd.f32 0.0, %v4262
        %4264 = vmatmul.bf16.gmra.mxu0 %v3016
        %v4265 = vpop.f32.mrf.mxu0
        %v4266 = vadd.f32 0.0, %v4265
        %v4267 = vpop.f32.mrf.mxu0
        %v4268 = vadd.f32 0.0, %v4267
        %4269 = vmatmul.bf16.gmra.mxu0 %v3017
        %v4270 = vpop.f32.mrf.mxu0
        %v4271 = vadd.f32 0.0, %v4270
        %v4272 = vpop.f32.mrf.mxu0
        %v4273 = vadd.f32 0.0, %v4272
        %4274 = vmatmul.bf16.gmra.mxu0 %v3018
        %v4275 = vpop.f32.mrf.mxu0
        %v4276 = vadd.f32 0.0, %v4275
        %v4277 = vpop.f32.mrf.mxu0
        %v4278 = vadd.f32 0.0, %v4277
        %4279 = vmatmul.bf16.gmra.mxu0 %v3019
        %v4280 = vpop.f32.mrf.mxu0
        %v4281 = vadd.f32 0.0, %v4280
        %v4282 = vpop.f32.mrf.mxu0
        %v4283 = vadd.f32 0.0, %v4282
        %4284 = vmatmul.bf16.gmra.mxu0 %v3020
        %v4285 = vpop.f32.mrf.mxu0
        %v4286 = vadd.f32 0.0, %v4285
        %v4287 = vpop.f32.mrf.mxu0
        %v4288 = vadd.f32 0.0, %v4287
        %4289 = vmatmul.bf16.gmra.mxu0 %v3021
        %v4290 = vpop.f32.mrf.mxu0
        %v4291 = vadd.f32 0.0, %v4290
        %v4292 = vpop.f32.mrf.mxu0
        %v4293 = vadd.f32 0.0, %v4292
        %4294 = vmatmul.bf16.gmra.mxu0 %v3022
        %v4295 = vpop.f32.mrf.mxu0
        %v4296 = vadd.f32 0.0, %v4295
        %v4297 = vpop.f32.mrf.mxu0
        %v4298 = vadd.f32 0.0, %v4297
        %4299 = vmatmul.bf16.gmra.mxu0 %v3023
        %v4300 = vpop.f32.mrf.mxu0
        %v4301 = vadd.f32 0.0, %v4300
        %v4302 = vpop.f32.mrf.mxu0
        %v4303 = vadd.f32 0.0, %v4302
        %4304 = vmatmul.bf16.gmra.mxu0 %v3024
        %v4305 = vpop.f32.mrf.mxu0
        %v4306 = vadd.f32 0.0, %v4305
        %v4307 = vpop.f32.mrf.mxu0
        %v4308 = vadd.f32 0.0, %v4307
        %4309 = vmatmul.bf16.gmra.mxu0 %v3025
        %v4310 = vpop.f32.mrf.mxu0
        %v4311 = vadd.f32 0.0, %v4310
        %v4312 = vpop.f32.mrf.mxu0
        %v4313 = vadd.f32 0.0, %v4312
        %4314 = vmatmul.bf16.gmra.mxu0 %v3026
        %v4315 = vpop.f32.mrf.mxu0
        %v4316 = vadd.f32 0.0, %v4315
        %v4317 = vpop.f32.mrf.mxu0
        %v4318 = vadd.f32 0.0, %v4317
        %4319 = vmatmul.bf16.gmra.mxu0 %v3027
        %v4320 = vpop.f32.mrf.mxu0
        %v4321 = vadd.f32 0.0, %v4320
        %v4322 = vpop.f32.mrf.mxu0
        %v4323 = vadd.f32 0.0, %v4322
        %4324 = vmatmul.bf16.gmra.mxu0 %v3028
        %v4325 = vpop.f32.mrf.mxu0
        %v4326 = vadd.f32 0.0, %v4325
        %v4327 = vpop.f32.mrf.mxu0
        %v4328 = vadd.f32 0.0, %v4327
        %4329 = vmatmul.bf16.gmra.mxu0 %v3029
        %v4330 = vpop.f32.mrf.mxu0
        %v4331 = vadd.f32 0.0, %v4330
        %v4332 = vpop.f32.mrf.mxu0
        %v4333 = vadd.f32 0.0, %v4332
        %4334 = vmatmul.bf16.gmra.mxu0 %v3030
        %v4335 = vpop.f32.mrf.mxu0
        %v4336 = vadd.f32 0.0, %v4335
        %v4337 = vpop.f32.mrf.mxu0
        %v4338 = vadd.f32 0.0, %v4337
        %4339 = vmatmul.bf16.gmra.mxu0 %v3031
        %v4340 = vpop.f32.mrf.mxu0
        %v4341 = vadd.f32 0.0, %v4340
        %v4342 = vpop.f32.mrf.mxu0
        %v4343 = vadd.f32 0.0, %v4342
        %4344 = vmatmul.bf16.gmra.mxu0 %v3032
        %v4345 = vpop.f32.mrf.mxu0
        %v4346 = vadd.f32 0.0, %v4345
        %v4347 = vpop.f32.mrf.mxu0
        %v4348 = vadd.f32 0.0, %v4347
        %4349 = vmatmul.bf16.gmra.mxu0 %v3033
        %v4350 = vpop.f32.mrf.mxu0
        %v4351 = vadd.f32 0.0, %v4350
        %v4352 = vpop.f32.mrf.mxu0
        %v4353 = vadd.f32 0.0, %v4352
        %4354 = vmatmul.bf16.gmra.mxu0 %v3034
        %v4355 = vpop.f32.mrf.mxu0
        %v4356 = vadd.f32 0.0, %v4355
        %v4357 = vpop.f32.mrf.mxu0
        %v4358 = vadd.f32 0.0, %v4357
        %4359 = vmatmul.bf16.gmra.mxu0 %v3035
        %v4360 = vpop.f32.mrf.mxu0
        %v4361 = vadd.f32 0.0, %v4360
        %v4362 = vpop.f32.mrf.mxu0
        %v4363 = vadd.f32 0.0, %v4362
        %4364 = vmatmul.bf16.gmra.mxu0 %v3036
        %v4365 = vpop.f32.mrf.mxu0
        %v4366 = vadd.f32 0.0, %v4365
        %v4367 = vpop.f32.mrf.mxu0
        %v4368 = vadd.f32 0.0, %v4367
        %4369 = vmatmul.bf16.gmra.mxu0 %v3037
        %v4370 = vpop.f32.mrf.mxu0
        %v4371 = vadd.f32 0.0, %v4370
        %v4372 = vpop.f32.mrf.mxu0
        %v4373 = vadd.f32 0.0, %v4372
        %4374 = vmatmul.bf16.gmra.mxu0 %v3038
        %v4375 = vpop.f32.mrf.mxu0
        %v4376 = vadd.f32 0.0, %v4375
        %v4377 = vpop.f32.mrf.mxu0
        %v4378 = vadd.f32 0.0, %v4377
        %4379 = vmatmul.bf16.gmra.mxu0 %v3039
        %v4380 = vpop.f32.mrf.mxu0
        %v4381 = vadd.f32 0.0, %v4380
        %v4382 = vpop.f32.mrf.mxu0
        %v4383 = vadd.f32 0.0, %v4382
        %4384 = vmatmul.bf16.gmra.mxu0 %v3040
        %v4385 = vpop.f32.mrf.mxu0
        %v4386 = vadd.f32 0.0, %v4385
        %v4387 = vpop.f32.mrf.mxu0
        %v4388 = vadd.f32 0.0, %v4387
        %4389 = vmatmul.bf16.gmra.mxu0 %v3041
        %v4390 = vpop.f32.mrf.mxu0
        %v4391 = vadd.f32 0.0, %v4390
        %v4392 = vpop.f32.mrf.mxu0
        %v4393 = vadd.f32 0.0, %v4392
        %4394 = vmatmul.bf16.gmra.mxu0 %v3042
        %v4395 = vpop.f32.mrf.mxu0
        %v4396 = vadd.f32 0.0, %v4395
        %v4397 = vpop.f32.mrf.mxu0
        %v4398 = vadd.f32 0.0, %v4397
        %4399 = vmatmul.bf16.gmra.mxu0 %v3043
        %v4400 = vpop.f32.mrf.mxu0
        %v4401 = vadd.f32 0.0, %v4400
        %v4402 = vpop.f32.mrf.mxu0
        %v4403 = vadd.f32 0.0, %v4402
        %4404 = vmatmul.bf16.gmra.mxu0 %v3044
        %v4405 = vpop.f32.mrf.mxu0
        %v4406 = vadd.f32 0.0, %v4405
        %v4407 = vpop.f32.mrf.mxu0
        %v4408 = vadd.f32 0.0, %v4407
        %4409 = vmatmul.bf16.gmra.mxu0 %v3045
        %v4410 = vpop.f32.mrf.mxu0
        %v4411 = vadd.f32 0.0, %v4410
        %v4412 = vpop.f32.mrf.mxu0
        %v4413 = vadd.f32 0.0, %v4412
        %4414 = vmatmul.bf16.gmra.mxu0 %v3046
        %v4415 = vpop.f32.mrf.mxu0
        %v4416 = vadd.f32 0.0, %v4415
        %v4417 = vpop.f32.mrf.mxu0
        %v4418 = vadd.f32 0.0, %v4417
        %4419 = vmatmul.bf16.gmra.mxu0 %v3047
        %v4420 = vpop.f32.mrf.mxu0
        %v4421 = vadd.f32 0.0, %v4420
        %v4422 = vpop.f32.mrf.mxu0
        %v4423 = vadd.f32 0.0, %v4422
        %4424 = vmatmul.bf16.gmra.mxu0 %v3048
        %v4425 = vpop.f32.mrf.mxu0
        %v4426 = vadd.f32 0.0, %v4425
        %v4427 = vpop.f32.mrf.mxu0
        %v4428 = vadd.f32 0.0, %v4427
        %4429 = vmatmul.bf16.gmra.mxu0 %v3049
        %v4430 = vpop.f32.mrf.mxu0
        %v4431 = vadd.f32 0.0, %v4430
        %v4432 = vpop.f32.mrf.mxu0
        %v4433 = vadd.f32 0.0, %v4432
        %4434 = vmatmul.bf16.gmra.mxu0 %v3050
        %v4435 = vpop.f32.mrf.mxu0
        %v4436 = vadd.f32 0.0, %v4435
        %v4437 = vpop.f32.mrf.mxu0
        %v4438 = vadd.f32 0.0, %v4437
        %4439 = vmatmul.bf16.gmra.mxu0 %v3051
        %v4440 = vpop.f32.mrf.mxu0
        %v4441 = vadd.f32 0.0, %v4440
        %v4442 = vpop.f32.mrf.mxu0
        %v4443 = vadd.f32 0.0, %v4442
        %4444 = vmatmul.bf16.gmra.mxu0 %v3052
        %v4445 = vpop.f32.mrf.mxu0
        %v4446 = vadd.f32 0.0, %v4445
        %v4447 = vpop.f32.mrf.mxu0
        %v4448 = vadd.f32 0.0, %v4447
        %4449 = vmatmul.bf16.gmra.mxu0 %v3053
        %v4450 = vpop.f32.mrf.mxu0
        %v4451 = vadd.f32 0.0, %v4450
        %v4452 = vpop.f32.mrf.mxu0
        %v4453 = vadd.f32 0.0, %v4452
        %4454 = vmatmul.bf16.gmra.mxu0 %v3054
        %v4455 = vpop.f32.mrf.mxu0
        %v4456 = vadd.f32 0.0, %v4455
        %v4457 = vpop.f32.mrf.mxu0
        %v4458 = vadd.f32 0.0, %v4457
        %4459 = vmatmul.bf16.gmra.mxu0 %v3055
        %v4460 = vpop.f32.mrf.mxu0
        %v4461 = vadd.f32 0.0, %v4460
        %v4462 = vpop.f32.mrf.mxu0
        %v4463 = vadd.f32 0.0, %v4462
        %4464 = vmatmul.bf16.gmra.mxu0 %v3056
        %v4465 = vpop.f32.mrf.mxu0
        %v4466 = vadd.f32 0.0, %v4465
        %v4467 = vpop.f32.mrf.mxu0
        %v4468 = vadd.f32 0.0, %v4467
        %4469 = vmatmul.bf16.gmra.mxu0 %v3057
        %v4470 = vpop.f32.mrf.mxu0
        %v4471 = vadd.f32 0.0, %v4470
        %v4472 = vpop.f32.mrf.mxu0
        %v4473 = vadd.f32 0.0, %v4472
        %4474 = vmatmul.bf16.gmra.mxu0 %v3058
        %v4475 = vpop.f32.mrf.mxu0
        %v4476 = vadd.f32 0.0, %v4475
        %v4477 = vpop.f32.mrf.mxu0
        %v4478 = vadd.f32 0.0, %v4477
        %4479 = vmatmul.bf16.gmra.mxu0 %v3059
        %v4480 = vpop.f32.mrf.mxu0
        %v4481 = vadd.f32 0.0, %v4480
        %v4482 = vpop.f32.mrf.mxu0
        %v4483 = vadd.f32 0.0, %v4482
        %4484 = vmatmul.bf16.gmra.mxu0 %v3060
        %v4485 = vpop.f32.mrf.mxu0
        %v4486 = vadd.f32 0.0, %v4485
        %v4487 = vpop.f32.mrf.mxu0
        %v4488 = vadd.f32 0.0, %v4487
        %4489 = vmatmul.bf16.gmra.mxu0 %v3061
        %v4490 = vpop.f32.mrf.mxu0
        %v4491 = vadd.f32 0.0, %v4490
        %v4492 = vpop.f32.mrf.mxu0
        %v4493 = vadd.f32 0.0, %v4492
        %4494 = vmatmul.bf16.gmra.mxu0 %v3062
        %v4495 = vpop.f32.mrf.mxu0
        %v4496 = vadd.f32 0.0, %v4495
        %v4497 = vpop.f32.mrf.mxu0
        %v4498 = vadd.f32 0.0, %v4497
        %4499 = vmatmul.bf16.gmra.mxu0 %v3063
        %v4500 = vpop.f32.mrf.mxu0
        %v4501 = vadd.f32 0.0, %v4500
        %v4502 = vpop.f32.mrf.mxu0
        %v4503 = vadd.f32 0.0, %v4502
        %4504 = vmatmul.bf16.gmra.mxu0 %v3064
        %v4505 = vpop.f32.mrf.mxu0
        %v4506 = vadd.f32 0.0, %v4505
        %v4507 = vpop.f32.mrf.mxu0
        %v4508 = vadd.f32 0.0, %v4507
        %4509 = vmatmul.bf16.gmra.mxu0 %v3065
        %v4510 = vpop.f32.mrf.mxu0
        %v4511 = vadd.f32 0.0, %v4510
        %v4512 = vpop.f32.mrf.mxu0
        %v4513 = vadd.f32 0.0, %v4512
        %4514 = vmatmul.bf16.gmra.mxu0 %v3066
        %v4515 = vpop.f32.mrf.mxu0
        %v4516 = vadd.f32 0.0, %v4515
        %v4517 = vpop.f32.mrf.mxu0
        %v4518 = vadd.f32 0.0, %v4517
        %4519 = vmatmul.bf16.gmra.mxu0 %v3067
        %v4520 = vpop.f32.mrf.mxu0
        %v4521 = vadd.f32 0.0, %v4520
        %v4522 = vpop.f32.mrf.mxu0
        %v4523 = vadd.f32 0.0, %v4522
        %4524 = vmatmul.bf16.gmra.mxu0 %v3068
        %v4525 = vpop.f32.mrf.mxu0
        %v4526 = vadd.f32 0.0, %v4525
        %v4527 = vpop.f32.mrf.mxu0
        %v4528 = vadd.f32 0.0, %v4527
        %4529 = vmatmul.bf16.gmra.mxu0 %v3069
        %v4530 = vpop.f32.mrf.mxu0
        %v4531 = vadd.f32 0.0, %v4530
        %v4532 = vpop.f32.mrf.mxu0
        %v4533 = vadd.f32 0.0, %v4532
        %4534 = vmatmul.bf16.gmra.mxu0 %v3070
        %v4535 = vpop.f32.mrf.mxu0
        %v4536 = vadd.f32 0.0, %v4535
        %v4537 = vpop.f32.mrf.mxu0
        %v4538 = vadd.f32 0.0, %v4537
        %4539 = vmatmul.bf16.gmra.mxu0 %v3071
        %v4540 = vpop.f32.mrf.mxu0
        %v4541 = vadd.f32 0.0, %v4540
        %v4542 = vpop.f32.mrf.mxu0
        %v4543 = vadd.f32 0.0, %v4542
        %4544 = vmatmul.bf16.gmra.mxu0 %v3072
        %v4545 = vpop.f32.mrf.mxu0
        %v4546 = vadd.f32 0.0, %v4545
        %v4547 = vpop.f32.mrf.mxu0
        %v4548 = vadd.f32 0.0, %v4547
        %4549 = vmatmul.bf16.gmra.mxu0 %v3073
        %v4550 = vpop.f32.mrf.mxu0
        %v4551 = vadd.f32 0.0, %v4550
        %v4552 = vpop.f32.mrf.mxu0
        %v4553 = vadd.f32 0.0, %v4552
        %4554 = vmatmul.bf16.gmra.mxu0 %v3074
        %v4555 = vpop.f32.mrf.mxu0
        %v4556 = vadd.f32 0.0, %v4555
        %v4557 = vpop.f32.mrf.mxu0
        %v4558 = vadd.f32 0.0, %v4557
        %4559 = vmatmul.bf16.gmra.mxu0 %v3075
        %v4560 = vpop.f32.mrf.mxu0
        %v4561 = vadd.f32 0.0, %v4560
        %v4562 = vpop.f32.mrf.mxu0
        %v4563 = vadd.f32 0.0, %v4562
        %4564 = vmatmul.bf16.gmra.mxu0 %v3076
        %v4565 = vpop.f32.mrf.mxu0
        %v4566 = vadd.f32 0.0, %v4565
        %v4567 = vpop.f32.mrf.mxu0
        %v4568 = vadd.f32 0.0, %v4567
        %4569 = vmatmul.bf16.gmra.mxu0 %v3077
        %v4570 = vpop.f32.mrf.mxu0
        %v4571 = vadd.f32 0.0, %v4570
        %v4572 = vpop.f32.mrf.mxu0
        %v4573 = vadd.f32 0.0, %v4572
        %4574 = vmatmul.bf16.gmra.mxu0 %v3078
        %v4575 = vpop.f32.mrf.mxu0
        %v4576 = vadd.f32 0.0, %v4575
        %v4577 = vpop.f32.mrf.mxu0
        %v4578 = vadd.f32 0.0, %v4577
        %4579 = vmatmul.bf16.gmra.mxu0 %v3079
        %v4580 = vpop.f32.mrf.mxu0
        %v4581 = vadd.f32 0.0, %v4580
        %v4582 = vpop.f32.mrf.mxu0
        %v4583 = vadd.f32 0.0, %v4582
        %4584 = vmatmul.bf16.gmra.mxu0 %v3080
        %v4585 = vpop.f32.mrf.mxu0
        %v4586 = vadd.f32 0.0, %v4585
        %v4587 = vpop.f32.mrf.mxu0
        %v4588 = vadd.f32 0.0, %v4587
        %4589 = vmatmul.bf16.gmra.mxu0 %v3081
        %v4590 = vpop.f32.mrf.mxu0
        %v4591 = vadd.f32 0.0, %v4590
        %v4592 = vpop.f32.mrf.mxu0
        %v4593 = vadd.f32 0.0, %v4592
        %4594 = vmatmul.bf16.gmra.mxu0 %v3082
        %v4595 = vpop.f32.mrf.mxu0
        %v4596 = vadd.f32 0.0, %v4595
        %v4597 = vpop.f32.mrf.mxu0
        %v4598 = vadd.f32 0.0, %v4597
        %4599 = vmatmul.bf16.gmra.mxu0 %v3083
        %v4600 = vpop.f32.mrf.mxu0
        %v4601 = vadd.f32 0.0, %v4600
        %v4602 = vpop.f32.mrf.mxu0
        %v4603 = vadd.f32 0.0, %v4602
        %4604 = vmatmul.bf16.gmra.mxu0 %v3084
        %v4605 = vpop.f32.mrf.mxu0
        %v4606 = vadd.f32 0.0, %v4605
        %v4607 = vpop.f32.mrf.mxu0
        %v4608 = vadd.f32 0.0, %v4607
        %4609 = vmatmul.bf16.gmra.mxu0 %v3085
        %v4610 = vpop.f32.mrf.mxu0
        %v4611 = vadd.f32 0.0, %v4610
        %v4612 = vpop.f32.mrf.mxu0
        %v4613 = vadd.f32 0.0, %v4612
        %4614 = vmatmul.bf16.gmra.mxu0 %v3086
        %v4615 = vpop.f32.mrf.mxu0
        %v4616 = vadd.f32 0.0, %v4615
        %v4617 = vpop.f32.mrf.mxu0
        %v4618 = vadd.f32 0.0, %v4617
        %4619 = vmatmul.bf16.gmra.mxu0 %v3087
        %v4620 = vpop.f32.mrf.mxu0
        %v4621 = vadd.f32 0.0, %v4620
        %v4622 = vpop.f32.mrf.mxu0
        %v4623 = vadd.f32 0.0, %v4622
        %4624 = vmatmul.bf16.gmra.mxu0 %v3088
        %v4625 = vpop.f32.mrf.mxu0
        %v4626 = vadd.f32 0.0, %v4625
        %v4627 = vpop.f32.mrf.mxu0
        %v4628 = vadd.f32 0.0, %v4627
        %4629 = vmatmul.bf16.gmra.mxu0 %v3089
        %v4630 = vpop.f32.mrf.mxu0
        %v4631 = vadd.f32 0.0, %v4630
        %v4632 = vpop.f32.mrf.mxu0
        %v4633 = vadd.f32 0.0, %v4632
        %4634 = vmatmul.bf16.gmra.mxu0 %v3090
        %v4635 = vpop.f32.mrf.mxu0
        %v4636 = vadd.f32 0.0, %v4635
        %v4637 = vpop.f32.mrf.mxu0
        %v4638 = vadd.f32 0.0, %v4637
        %4639 = vmatmul.bf16.gmra.mxu0 %v3091
        %v4640 = vpop.f32.mrf.mxu0
        %v4641 = vadd.f32 0.0, %v4640
        %v4642 = vpop.f32.mrf.mxu0
        %v4643 = vadd.f32 0.0, %v4642
        %4644 = vmatmul.bf16.gmra.mxu0 %v3092
        %v4645 = vpop.f32.mrf.mxu0
        %v4646 = vadd.f32 0.0, %v4645
        %v4647 = vpop.f32.mrf.mxu0
        %v4648 = vadd.f32 0.0, %v4647
        %4649 = vmatmul.bf16.gmra.mxu0 %v3093
        %v4650 = vpop.f32.mrf.mxu0
        %v4651 = vadd.f32 0.0, %v4650
        %v4652 = vpop.f32.mrf.mxu0
        %v4653 = vadd.f32 0.0, %v4652
        %4654 = vmatmul.bf16.gmra.mxu0 %v3094
        %v4655 = vpop.f32.mrf.mxu0
        %v4656 = vadd.f32 0.0, %v4655
        %v4657 = vpop.f32.mrf.mxu0
        %v4658 = vadd.f32 0.0, %v4657
        %4659 = vmatmul.bf16.gmra.mxu0 %v3095
        %v4660 = vpop.f32.mrf.mxu0
        %v4661 = vadd.f32 0.0, %v4660
        %v4662 = vpop.f32.mrf.mxu0
        %v4663 = vadd.f32 0.0, %v4662
        %4664 = vmatmul.bf16.gmra.mxu0 %v3096
        %v4665 = vpop.f32.mrf.mxu0
        %v4666 = vadd.f32 0.0, %v4665
        %v4667 = vpop.f32.mrf.mxu0
        %v4668 = vadd.f32 0.0, %v4667
        %4669 = vmatmul.bf16.gmra.mxu0 %v3097
        %v4670 = vpop.f32.mrf.mxu0
        %v4671 = vadd.f32 0.0, %v4670
        %v4672 = vpop.f32.mrf.mxu0
        %v4673 = vadd.f32 0.0, %v4672
        %4674 = vmatmul.bf16.gmra.mxu0 %v3098
        %v4675 = vpop.f32.mrf.mxu0
        %v4676 = vadd.f32 0.0, %v4675
        %v4677 = vpop.f32.mrf.mxu0
        %v4678 = vadd.f32 0.0, %v4677
        %4679 = vmatmul.bf16.gmra.mxu0 %v3099
        %v4680 = vpop.f32.mrf.mxu0
        %v4681 = vadd.f32 0.0, %v4680
        %v4682 = vpop.f32.mrf.mxu0
        %v4683 = vadd.f32 0.0, %v4682
        %4684 = vmatmul.bf16.gmra.mxu0 %v3100
        %v4685 = vpop.f32.mrf.mxu0
        %v4686 = vadd.f32 0.0, %v4685
        %v4687 = vpop.f32.mrf.mxu0
        %v4688 = vadd.f32 0.0, %v4687
        %4689 = vmatmul.bf16.gmra.mxu0 %v3101
        %v4690 = vpop.f32.mrf.mxu0
        %v4691 = vadd.f32 0.0, %v4690
        %v4692 = vpop.f32.mrf.mxu0
        %v4693 = vadd.f32 0.0, %v4692
        %4694 = vdwg.mxu0
        %v4695 = vadd.f32 %v782, %v3416
        %v4696 = vadd.f32 %v783, %v3418
        %v4697 = vadd.f32 %v784, %v3421
        %v4698 = vadd.f32 %v785, %v3423
        %v4699 = vadd.f32 %v786, %v3426
        %v4700 = vadd.f32 %v787, %v3428
        %v4701 = vadd.f32 %v788, %v3431
        %v4702 = vadd.f32 %v789, %v3433
        %v4703 = vadd.f32 %v790, %v3436
        %v4704 = vadd.f32 %v791, %v3438
        %v4705 = vadd.f32 %v792, %v3441
        %v4706 = vadd.f32 %v793, %v3443
        %v4707 = vadd.f32 %v794, %v3446
        %v4708 = vadd.f32 %v795, %v3448
        %v4709 = vadd.f32 %v796, %v3451
        %v4710 = vadd.f32 %v797, %v3453
        %v4711 = vadd.f32 %v798, %v3456
        %v4712 = vadd.f32 %v799, %v3458
        %v4713 = vadd.f32 %v800, %v3461
        %v4714 = vadd.f32 %v801, %v3463
        %v4715 = vadd.f32 %v802, %v3466
        %v4716 = vadd.f32 %v803, %v3468
        %v4717 = vadd.f32 %v804, %v3471
        %v4718 = vadd.f32 %v805, %v3473
        %v4719 = vadd.f32 %v806, %v3476
        %v4720 = vadd.f32 %v807, %v3478
        %v4721 = vadd.f32 %v808, %v3481
        %v4722 = vadd.f32 %v809, %v3483
        %v4723 = vadd.f32 %v810, %v3486
        %v4724 = vadd.f32 %v811, %v3488
        %v4725 = vadd.f32 %v812, %v3491
        %v4726 = vadd.f32 %v813, %v3493
        %v4727 = vadd.f32 %v814, %v3496
        %v4728 = vadd.f32 %v815, %v3498
        %v4729 = vadd.f32 %v816, %v3501
        %v4730 = vadd.f32 %v817, %v3503
        %v4731 = vadd.f32 %v818, %v3506
        %v4732 = vadd.f32 %v819, %v3508
        %v4733 = vadd.f32 %v820, %v3511
        %v4734 = vadd.f32 %v821, %v3513
        %v4735 = vadd.f32 %v822, %v3516
        %v4736 = vadd.f32 %v823, %v3518
        %v4737 = vadd.f32 %v824, %v3521
        %v4738 = vadd.f32 %v825, %v3523
        %v4739 = vadd.f32 %v826, %v3526
        %v4740 = vadd.f32 %v827, %v3528
        %v4741 = vadd.f32 %v828, %v3531
        %v4742 = vadd.f32 %v829, %v3533
        %v4743 = vadd.f32 %v830, %v3536
        %v4744 = vadd.f32 %v831, %v3538
        %v4745 = vadd.f32 %v832, %v3541
        %v4746 = vadd.f32 %v833, %v3543
        %v4747 = vadd.f32 %v834, %v3546
        %v4748 = vadd.f32 %v835, %v3548
        %v4749 = vadd.f32 %v836, %v3551
        %v4750 = vadd.f32 %v837, %v3553
        %v4751 = vadd.f32 %v838, %v3556
        %v4752 = vadd.f32 %v839, %v3558
        %v4753 = vadd.f32 %v840, %v3561
        %v4754 = vadd.f32 %v841, %v3563
        %v4755 = vadd.f32 %v842, %v3566
        %v4756 = vadd.f32 %v843, %v3568
        %v4757 = vadd.f32 %v844, %v3571
        %v4758 = vadd.f32 %v845, %v3573
        %v4759 = vadd.f32 %v846, %v3576
        %v4760 = vadd.f32 %v847, %v3578
        %v4761 = vadd.f32 %v848, %v3581
        %v4762 = vadd.f32 %v849, %v3583
        %v4763 = vadd.f32 %v850, %v3586
        %v4764 = vadd.f32 %v851, %v3588
        %v4765 = vadd.f32 %v852, %v3591
        %v4766 = vadd.f32 %v853, %v3593
        %v4767 = vadd.f32 %v854, %v3596
        %v4768 = vadd.f32 %v855, %v3598
        %v4769 = vadd.f32 %v856, %v3601
        %v4770 = vadd.f32 %v857, %v3603
        %v4771 = vadd.f32 %v858, %v3606
        %v4772 = vadd.f32 %v859, %v3608
        %v4773 = vadd.f32 %v860, %v3611
        %v4774 = vadd.f32 %v861, %v3613
        %v4775 = vadd.f32 %v862, %v3616
        %v4776 = vadd.f32 %v863, %v3618
        %v4777 = vadd.f32 %v864, %v3621
        %v4778 = vadd.f32 %v865, %v3623
        %v4779 = vadd.f32 %v866, %v3626
        %v4780 = vadd.f32 %v867, %v3628
        %v4781 = vadd.f32 %v868, %v3631
        %v4782 = vadd.f32 %v869, %v3633
        %v4783 = vadd.f32 %v870, %v3636
        %v4784 = vadd.f32 %v871, %v3638
        %v4785 = vadd.f32 %v872, %v3641
        %v4786 = vadd.f32 %v873, %v3643
        %v4787 = vadd.f32 %v874, %v3646
        %v4788 = vadd.f32 %v875, %v3648
        %v4789 = vadd.f32 %v876, %v3651
        %v4790 = vadd.f32 %v877, %v3653
        %v4791 = vadd.f32 %v878, %v3656
        %v4792 = vadd.f32 %v879, %v3658
        %v4793 = vadd.f32 %v880, %v3661
        %v4794 = vadd.f32 %v881, %v3663
        %v4795 = vadd.f32 %v882, %v3666
        %v4796 = vadd.f32 %v883, %v3668
        %v4797 = vadd.f32 %v884, %v3671
        %v4798 = vadd.f32 %v885, %v3673
        %v4799 = vadd.f32 %v886, %v3676
        %v4800 = vadd.f32 %v887, %v3678
        %v4801 = vadd.f32 %v888, %v3681
        %v4802 = vadd.f32 %v889, %v3683
        %v4803 = vadd.f32 %v890, %v3686
        %v4804 = vadd.f32 %v891, %v3688
        %v4805 = vadd.f32 %v892, %v3691
        %v4806 = vadd.f32 %v893, %v3693
        %v4807 = vadd.f32 %v894, %v3696
        %v4808 = vadd.f32 %v895, %v3698
        %v4809 = vadd.f32 %v896, %v3701
        %v4810 = vadd.f32 %v897, %v3703
        %v4811 = vadd.f32 %v898, %v3706
        %v4812 = vadd.f32 %v899, %v3708
        %v4813 = vadd.f32 %v900, %v3711
        %v4814 = vadd.f32 %v901, %v3713
        %v4815 = vadd.f32 %v902, %v3716
        %v4816 = vadd.f32 %v903, %v3718
        %v4817 = vadd.f32 %v904, %v3721
        %v4818 = vadd.f32 %v905, %v3723
        %v4819 = vadd.f32 %v906, %v3726
        %v4820 = vadd.f32 %v907, %v3728
        %v4821 = vadd.f32 %v908, %v3731
        %v4822 = vadd.f32 %v909, %v3733
        %v4823 = vadd.f32 %v910, %v3736
        %v4824 = vadd.f32 %v911, %v3738
        %v4825 = vadd.f32 %v912, %v3741
        %v4826 = vadd.f32 %v913, %v3743
        %v4827 = vadd.f32 %v914, %v3746
        %v4828 = vadd.f32 %v915, %v3748
        %v4829 = vadd.f32 %v916, %v3751
        %v4830 = vadd.f32 %v917, %v3753
        %v4831 = vadd.f32 %v918, %v3756
        %v4832 = vadd.f32 %v919, %v3758
        %v4833 = vadd.f32 %v920, %v3761
        %v4834 = vadd.f32 %v921, %v3763
        %v4835 = vadd.f32 %v922, %v3766
        %v4836 = vadd.f32 %v923, %v3768
        %v4837 = vadd.f32 %v924, %v3771
        %v4838 = vadd.f32 %v925, %v3773
        %v4839 = vadd.f32 %v926, %v3776
        %v4840 = vadd.f32 %v927, %v3778
        %v4841 = vadd.f32 %v928, %v3781
        %v4842 = vadd.f32 %v929, %v3783
        %v4843 = vadd.f32 %v930, %v3786
        %v4844 = vadd.f32 %v931, %v3788
        %v4845 = vadd.f32 %v932, %v3791
        %v4846 = vadd.f32 %v933, %v3793
        %v4847 = vadd.f32 %v934, %v3796
        %v4848 = vadd.f32 %v935, %v3798
        %v4849 = vadd.f32 %v936, %v3801
        %v4850 = vadd.f32 %v937, %v3803
        %v4851 = vadd.f32 %v938, %v3806
        %v4852 = vadd.f32 %v939, %v3808
        %v4853 = vadd.f32 %v940, %v3811
        %v4854 = vadd.f32 %v941, %v3813
        %v4855 = vadd.f32 %v942, %v3816
        %v4856 = vadd.f32 %v943, %v3818
        %v4857 = vadd.f32 %v944, %v3821
        %v4858 = vadd.f32 %v945, %v3823
        %v4859 = vadd.f32 %v946, %v3826
        %v4860 = vadd.f32 %v947, %v3828
        %v4861 = vadd.f32 %v948, %v3831
        %v4862 = vadd.f32 %v949, %v3833
        %v4863 = vadd.f32 %v950, %v3836
        %v4864 = vadd.f32 %v951, %v3838
        %v4865 = vadd.f32 %v952, %v3841
        %v4866 = vadd.f32 %v953, %v3843
        %v4867 = vadd.f32 %v954, %v3846
        %v4868 = vadd.f32 %v955, %v3848
        %v4869 = vadd.f32 %v956, %v3851
        %v4870 = vadd.f32 %v957, %v3853
        %v4871 = vadd.f32 %v958, %v3856
        %v4872 = vadd.f32 %v959, %v3858
        %v4873 = vadd.f32 %v960, %v3861
        %v4874 = vadd.f32 %v961, %v3863
        %v4875 = vadd.f32 %v962, %v3866
        %v4876 = vadd.f32 %v963, %v3868
        %v4877 = vadd.f32 %v964, %v3871
        %v4878 = vadd.f32 %v965, %v3873
        %v4879 = vadd.f32 %v966, %v3876
        %v4880 = vadd.f32 %v967, %v3878
        %v4881 = vadd.f32 %v968, %v3881
        %v4882 = vadd.f32 %v969, %v3883
        %v4883 = vadd.f32 %v970, %v3886
        %v4884 = vadd.f32 %v971, %v3888
        %v4885 = vadd.f32 %v972, %v3891
        %v4886 = vadd.f32 %v973, %v3893
        %v4887 = vadd.f32 %v974, %v3896
        %v4888 = vadd.f32 %v975, %v3898
        %v4889 = vadd.f32 %v976, %v3901
        %v4890 = vadd.f32 %v977, %v3903
        %v4891 = vadd.f32 %v978, %v3906
        %v4892 = vadd.f32 %v979, %v3908
        %v4893 = vadd.f32 %v980, %v3911
        %v4894 = vadd.f32 %v981, %v3913
        %v4895 = vadd.f32 %v982, %v3916
        %v4896 = vadd.f32 %v983, %v3918
        %v4897 = vadd.f32 %v984, %v3921
        %v4898 = vadd.f32 %v985, %v3923
        %v4899 = vadd.f32 %v986, %v3926
        %v4900 = vadd.f32 %v987, %v3928
        %v4901 = vadd.f32 %v988, %v3931
        %v4902 = vadd.f32 %v989, %v3933
        %v4903 = vadd.f32 %v990, %v3936
        %v4904 = vadd.f32 %v991, %v3938
        %v4905 = vadd.f32 %v992, %v3941
        %v4906 = vadd.f32 %v993, %v3943
        %v4907 = vadd.f32 %v994, %v3946
        %v4908 = vadd.f32 %v995, %v3948
        %v4909 = vadd.f32 %v996, %v3951
        %v4910 = vadd.f32 %v997, %v3953
        %v4911 = vadd.f32 %v998, %v3956
        %v4912 = vadd.f32 %v999, %v3958
        %v4913 = vadd.f32 %v1000, %v3961
        %v4914 = vadd.f32 %v1001, %v3963
        %v4915 = vadd.f32 %v1002, %v3966
        %v4916 = vadd.f32 %v1003, %v3968
        %v4917 = vadd.f32 %v1004, %v3971
        %v4918 = vadd.f32 %v1005, %v3973
        %v4919 = vadd.f32 %v1006, %v3976
        %v4920 = vadd.f32 %v1007, %v3978
        %v4921 = vadd.f32 %v1008, %v3981
        %v4922 = vadd.f32 %v1009, %v3983
        %v4923 = vadd.f32 %v1010, %v3986
        %v4924 = vadd.f32 %v1011, %v3988
        %v4925 = vadd.f32 %v1012, %v3991
        %v4926 = vadd.f32 %v1013, %v3993
        %v4927 = vadd.f32 %v1014, %v3996
        %v4928 = vadd.f32 %v1015, %v3998
        %v4929 = vadd.f32 %v1016, %v4001
        %v4930 = vadd.f32 %v1017, %v4003
        %v4931 = vadd.f32 %v1018, %v4006
        %v4932 = vadd.f32 %v1019, %v4008
        %v4933 = vadd.f32 %v1020, %v4011
        %v4934 = vadd.f32 %v1021, %v4013
        %v4935 = vadd.f32 %v1022, %v4016
        %v4936 = vadd.f32 %v1023, %v4018
        %v4937 = vadd.f32 %v1024, %v4021
        %v4938 = vadd.f32 %v1025, %v4023
        %v4939 = vadd.f32 %v1026, %v4026
        %v4940 = vadd.f32 %v1027, %v4028
        %v4941 = vadd.f32 %v1028, %v4031
        %v4942 = vadd.f32 %v1029, %v4033
        %v4943 = vadd.f32 %v1030, %v4036
        %v4944 = vadd.f32 %v1031, %v4038
        %v4945 = vadd.f32 %v1032, %v4041
        %v4946 = vadd.f32 %v1033, %v4043
        %v4947 = vadd.f32 %v1034, %v4046
        %v4948 = vadd.f32 %v1035, %v4048
        %v4949 = vadd.f32 %v1036, %v4051
        %v4950 = vadd.f32 %v1037, %v4053
        %v4951 = vadd.f32 %v1038, %v4056
        %v4952 = vadd.f32 %v1039, %v4058
        %v4953 = vadd.f32 %v1040, %v4061
        %v4954 = vadd.f32 %v1041, %v4063
        %v4955 = vadd.f32 %v1042, %v4066
        %v4956 = vadd.f32 %v1043, %v4068
        %v4957 = vadd.f32 %v1044, %v4071
        %v4958 = vadd.f32 %v1045, %v4073
        %v4959 = vadd.f32 %v1046, %v4076
        %v4960 = vadd.f32 %v1047, %v4078
        %v4961 = vadd.f32 %v1048, %v4081
        %v4962 = vadd.f32 %v1049, %v4083
        %v4963 = vadd.f32 %v1050, %v4086
        %v4964 = vadd.f32 %v1051, %v4088
        %v4965 = vadd.f32 %v1052, %v4091
        %v4966 = vadd.f32 %v1053, %v4093
        %v4967 = vadd.f32 %v1054, %v4096
        %v4968 = vadd.f32 %v1055, %v4098
        %v4969 = vadd.f32 %v1056, %v4101
        %v4970 = vadd.f32 %v1057, %v4103
        %v4971 = vadd.f32 %v1058, %v4106
        %v4972 = vadd.f32 %v1059, %v4108
        %v4973 = vadd.f32 %v1060, %v4111
        %v4974 = vadd.f32 %v1061, %v4113
        %v4975 = vadd.f32 %v1062, %v4116
        %v4976 = vadd.f32 %v1063, %v4118
        %v4977 = vadd.f32 %v1064, %v4121
        %v4978 = vadd.f32 %v1065, %v4123
        %v4979 = vadd.f32 %v1066, %v4126
        %v4980 = vadd.f32 %v1067, %v4128
        %v4981 = vadd.f32 %v1068, %v4131
        %v4982 = vadd.f32 %v1069, %v4133
        %v4983 = vadd.f32 %v1070, %v4136
        %v4984 = vadd.f32 %v1071, %v4138
        %v4985 = vadd.f32 %v1072, %v4141
        %v4986 = vadd.f32 %v1073, %v4143
        %v4987 = vadd.f32 %v1074, %v4146
        %v4988 = vadd.f32 %v1075, %v4148
        %v4989 = vadd.f32 %v1076, %v4151
        %v4990 = vadd.f32 %v1077, %v4153
        %v4991 = vadd.f32 %v1078, %v4156
        %v4992 = vadd.f32 %v1079, %v4158
        %v4993 = vadd.f32 %v1080, %v4161
        %v4994 = vadd.f32 %v1081, %v4163
        %v4995 = vadd.f32 %v1082, %v4166
        %v4996 = vadd.f32 %v1083, %v4168
        %v4997 = vadd.f32 %v1084, %v4171
        %v4998 = vadd.f32 %v1085, %v4173
        %v4999 = vadd.f32 %v1086, %v4176
        %v5000 = vadd.f32 %v1087, %v4178
        %v5001 = vadd.f32 %v1088, %v4181
        %v5002 = vadd.f32 %v1089, %v4183
        %v5003 = vadd.f32 %v1090, %v4186
        %v5004 = vadd.f32 %v1091, %v4188
        %v5005 = vadd.f32 %v1092, %v4191
        %v5006 = vadd.f32 %v1093, %v4193
        %v5007 = vadd.f32 %v1094, %v4196
        %v5008 = vadd.f32 %v1095, %v4198
        %v5009 = vadd.f32 %v1096, %v4201
        %v5010 = vadd.f32 %v1097, %v4203
        %v5011 = vadd.f32 %v1098, %v4206
        %v5012 = vadd.f32 %v1099, %v4208
        %v5013 = vadd.f32 %v1100, %v4211
        %v5014 = vadd.f32 %v1101, %v4213
        %v5015 = vadd.f32 %v1102, %v4216
        %v5016 = vadd.f32 %v1103, %v4218
        %v5017 = vadd.f32 %v1104, %v4221
        %v5018 = vadd.f32 %v1105, %v4223
        %v5019 = vadd.f32 %v1106, %v4226
        %v5020 = vadd.f32 %v1107, %v4228
        %v5021 = vadd.f32 %v1108, %v4231
        %v5022 = vadd.f32 %v1109, %v4233
        %v5023 = vadd.f32 %v1110, %v4236
        %v5024 = vadd.f32 %v1111, %v4238
        %v5025 = vadd.f32 %v1112, %v4241
        %v5026 = vadd.f32 %v1113, %v4243
        %v5027 = vadd.f32 %v1114, %v4246
        %v5028 = vadd.f32 %v1115, %v4248
        %v5029 = vadd.f32 %v1116, %v4251
        %v5030 = vadd.f32 %v1117, %v4253
        %v5031 = vadd.f32 %v1118, %v4256
        %v5032 = vadd.f32 %v1119, %v4258
        %v5033 = vadd.f32 %v1120, %v4261
        %v5034 = vadd.f32 %v1121, %v4263
        %v5035 = vadd.f32 %v1122, %v4266
        %v5036 = vadd.f32 %v1123, %v4268
        %v5037 = vadd.f32 %v1124, %v4271
        %v5038 = vadd.f32 %v1125, %v4273
        %v5039 = vadd.f32 %v1126, %v4276
        %v5040 = vadd.f32 %v1127, %v4278
        %v5041 = vadd.f32 %v1128, %v4281
        %v5042 = vadd.f32 %v1129, %v4283
        %v5043 = vadd.f32 %v1130, %v4286
        %v5044 = vadd.f32 %v1131, %v4288
        %v5045 = vadd.f32 %v1132, %v4291
        %v5046 = vadd.f32 %v1133, %v4293
        %v5047 = vadd.f32 %v1134, %v4296
        %v5048 = vadd.f32 %v1135, %v4298
        %v5049 = vadd.f32 %v1136, %v4301
        %v5050 = vadd.f32 %v1137, %v4303
        %v5051 = vadd.f32 %v1138, %v4306
        %v5052 = vadd.f32 %v1139, %v4308
        %v5053 = vadd.f32 %v1140, %v4311
        %v5054 = vadd.f32 %v1141, %v4313
        %v5055 = vadd.f32 %v1142, %v4316
        %v5056 = vadd.f32 %v1143, %v4318
        %v5057 = vadd.f32 %v1144, %v4321
        %v5058 = vadd.f32 %v1145, %v4323
        %v5059 = vadd.f32 %v1146, %v4326
        %v5060 = vadd.f32 %v1147, %v4328
        %v5061 = vadd.f32 %v1148, %v4331
        %v5062 = vadd.f32 %v1149, %v4333
        %v5063 = vadd.f32 %v1150, %v4336
        %v5064 = vadd.f32 %v1151, %v4338
        %v5065 = vadd.f32 %v1152, %v4341
        %v5066 = vadd.f32 %v1153, %v4343
        %v5067 = vadd.f32 %v1154, %v4346
        %v5068 = vadd.f32 %v1155, %v4348
        %v5069 = vadd.f32 %v1156, %v4351
        %v5070 = vadd.f32 %v1157, %v4353
        %v5071 = vadd.f32 %v1158, %v4356
        %v5072 = vadd.f32 %v1159, %v4358
        %v5073 = vadd.f32 %v1160, %v4361
        %v5074 = vadd.f32 %v1161, %v4363
        %v5075 = vadd.f32 %v1162, %v4366
        %v5076 = vadd.f32 %v1163, %v4368
        %v5077 = vadd.f32 %v1164, %v4371
        %v5078 = vadd.f32 %v1165, %v4373
        %v5079 = vadd.f32 %v1166, %v4376
        %v5080 = vadd.f32 %v1167, %v4378
        %v5081 = vadd.f32 %v1168, %v4381
        %v5082 = vadd.f32 %v1169, %v4383
        %v5083 = vadd.f32 %v1170, %v4386
        %v5084 = vadd.f32 %v1171, %v4388
        %v5085 = vadd.f32 %v1172, %v4391
        %v5086 = vadd.f32 %v1173, %v4393
        %v5087 = vadd.f32 %v1174, %v4396
        %v5088 = vadd.f32 %v1175, %v4398
        %v5089 = vadd.f32 %v1176, %v4401
        %v5090 = vadd.f32 %v1177, %v4403
        %v5091 = vadd.f32 %v1178, %v4406
        %v5092 = vadd.f32 %v1179, %v4408
        %v5093 = vadd.f32 %v1180, %v4411
        %v5094 = vadd.f32 %v1181, %v4413
        %v5095 = vadd.f32 %v1182, %v4416
        %v5096 = vadd.f32 %v1183, %v4418
        %v5097 = vadd.f32 %v1184, %v4421
        %v5098 = vadd.f32 %v1185, %v4423
        %v5099 = vadd.f32 %v1186, %v4426
        %v5100 = vadd.f32 %v1187, %v4428
        %v5101 = vadd.f32 %v1188, %v4431
        %v5102 = vadd.f32 %v1189, %v4433
        %v5103 = vadd.f32 %v1190, %v4436
        %v5104 = vadd.f32 %v1191, %v4438
        %v5105 = vadd.f32 %v1192, %v4441
        %v5106 = vadd.f32 %v1193, %v4443
        %v5107 = vadd.f32 %v1194, %v4446
        %v5108 = vadd.f32 %v1195, %v4448
        %v5109 = vadd.f32 %v1196, %v4451
        %v5110 = vadd.f32 %v1197, %v4453
        %v5111 = vadd.f32 %v1198, %v4456
        %v5112 = vadd.f32 %v1199, %v4458
        %v5113 = vadd.f32 %v1200, %v4461
        %v5114 = vadd.f32 %v1201, %v4463
        %v5115 = vadd.f32 %v1202, %v4466
        %v5116 = vadd.f32 %v1203, %v4468
        %v5117 = vadd.f32 %v1204, %v4471
        %v5118 = vadd.f32 %v1205, %v4473
        %v5119 = vadd.f32 %v1206, %v4476
        %v5120 = vadd.f32 %v1207, %v4478
        %v5121 = vadd.f32 %v1208, %v4481
        %v5122 = vadd.f32 %v1209, %v4483
        %v5123 = vadd.f32 %v1210, %v4486
        %v5124 = vadd.f32 %v1211, %v4488
        %v5125 = vadd.f32 %v1212, %v4491
        %v5126 = vadd.f32 %v1213, %v4493
        %v5127 = vadd.f32 %v1214, %v4496
        %v5128 = vadd.f32 %v1215, %v4498
        %v5129 = vadd.f32 %v1216, %v4501
        %v5130 = vadd.f32 %v1217, %v4503
        %v5131 = vadd.f32 %v1218, %v4506
        %v5132 = vadd.f32 %v1219, %v4508
        %v5133 = vadd.f32 %v1220, %v4511
        %v5134 = vadd.f32 %v1221, %v4513
        %v5135 = vadd.f32 %v1222, %v4516
        %v5136 = vadd.f32 %v1223, %v4518
        %v5137 = vadd.f32 %v1224, %v4521
        %v5138 = vadd.f32 %v1225, %v4523
        %v5139 = vadd.f32 %v1226, %v4526
        %v5140 = vadd.f32 %v1227, %v4528
        %v5141 = vadd.f32 %v1228, %v4531
        %v5142 = vadd.f32 %v1229, %v4533
        %v5143 = vadd.f32 %v1230, %v4536
        %v5144 = vadd.f32 %v1231, %v4538
        %v5145 = vadd.f32 %v1232, %v4541
        %v5146 = vadd.f32 %v1233, %v4543
        %v5147 = vadd.f32 %v1234, %v4546
        %v5148 = vadd.f32 %v1235, %v4548
        %v5149 = vadd.f32 %v1236, %v4551
        %v5150 = vadd.f32 %v1237, %v4553
        %v5151 = vadd.f32 %v1238, %v4556
        %v5152 = vadd.f32 %v1239, %v4558
        %v5153 = vadd.f32 %v1240, %v4561
        %v5154 = vadd.f32 %v1241, %v4563
        %v5155 = vadd.f32 %v1242, %v4566
        %v5156 = vadd.f32 %v1243, %v4568
        %v5157 = vadd.f32 %v1244, %v4571
        %v5158 = vadd.f32 %v1245, %v4573
        %v5159 = vadd.f32 %v1246, %v4576
        %v5160 = vadd.f32 %v1247, %v4578
        %v5161 = vadd.f32 %v1248, %v4581
        %v5162 = vadd.f32 %v1249, %v4583
        %v5163 = vadd.f32 %v1250, %v4586
        %v5164 = vadd.f32 %v1251, %v4588
        %v5165 = vadd.f32 %v1252, %v4591
        %v5166 = vadd.f32 %v1253, %v4593
        %v5167 = vadd.f32 %v1254, %v4596
        %v5168 = vadd.f32 %v1255, %v4598
        %v5169 = vadd.f32 %v1256, %v4601
        %v5170 = vadd.f32 %v1257, %v4603
        %v5171 = vadd.f32 %v1258, %v4606
        %v5172 = vadd.f32 %v1259, %v4608
        %v5173 = vadd.f32 %v1260, %v4611
        %v5174 = vadd.f32 %v1261, %v4613
        %v5175 = vadd.f32 %v1262, %v4616
        %v5176 = vadd.f32 %v1263, %v4618
        %v5177 = vadd.f32 %v1264, %v4621
        %v5178 = vadd.f32 %v1265, %v4623
        %v5179 = vadd.f32 %v1266, %v4626
        %v5180 = vadd.f32 %v1267, %v4628
        %v5181 = vadd.f32 %v1268, %v4631
        %v5182 = vadd.f32 %v1269, %v4633
        %v5183 = vadd.f32 %v1270, %v4636
        %v5184 = vadd.f32 %v1271, %v4638
        %v5185 = vadd.f32 %v1272, %v4641
        %v5186 = vadd.f32 %v1273, %v4643
        %v5187 = vadd.f32 %v1274, %v4646
        %v5188 = vadd.f32 %v1275, %v4648
        %v5189 = vadd.f32 %v1276, %v4651
        %v5190 = vadd.f32 %v1277, %v4653
        %v5191 = vadd.f32 %v1278, %v4656
        %v5192 = vadd.f32 %v1279, %v4658
        %v5193 = vadd.f32 %v1280, %v4661
        %v5194 = vadd.f32 %v1281, %v4663
        %v5195 = vadd.f32 %v1282, %v4666
        %v5196 = vadd.f32 %v1283, %v4668
        %v5197 = vadd.f32 %v1284, %v4671
        %v5198 = vadd.f32 %v1285, %v4673
        %v5199 = vadd.f32 %v1286, %v4676
        %v5200 = vadd.f32 %v1287, %v4678
        %v5201 = vadd.f32 %v1288, %v4681
        %v5202 = vadd.f32 %v1289, %v4683
        %v5203 = vadd.f32 %v1290, %v4686
        %v5204 = vadd.f32 %v1291, %v4688
        %v5205 = vadd.f32 %v1292, %v4691
        %v5206 = vadd.f32 %v1293, %v4693
        %5207 = vst [vmem:[#allocation2] sm:$0xff] %v4695
        %5208 = vst [vmem:[#allocation2 + $0x8] sm:$0xff] %v4696
        %5209 = vst [vmem:[#allocation2 + $0x10] sm:$0xff] %v4697
        %5210 = vst [vmem:[#allocation2 + $0x18] sm:$0xff] %v4698
        %5211 = vst [vmem:[#allocation2 + $0x20] sm:$0xff] %v4699
        %5212 = vst [vmem:[#allocation2 + $0x28] sm:$0xff] %v4700
        %5213 = vst [vmem:[#allocation2 + $0x30] sm:$0xff] %v4701
        %5214 = vst [vmem:[#allocation2 + $0x38] sm:$0xff] %v4702
        %5215 = vst [vmem:[#allocation2 + $0x40] sm:$0xff] %v4703
        %5216 = vst [vmem:[#allocation2 + $0x48] sm:$0xff] %v4704
        %5217 = vst [vmem:[#allocation2 + $0x50] sm:$0xff] %v4705
        %5218 = vst [vmem:[#allocation2 + $0x58] sm:$0xff] %v4706
        %5219 = vst [vmem:[#allocation2 + $0x60] sm:$0xff] %v4707
        %5220 = vst [vmem:[#allocation2 + $0x68] sm:$0xff] %v4708
        %5221 = vst [vmem:[#allocation2 + $0x70] sm:$0xff] %v4709
        %5222 = vst [vmem:[#allocation2 + $0x78] sm:$0xff] %v4710
        %5223 = vst [vmem:[#allocation2 + $0x80] sm:$0xff] %v4711
        %5224 = vst [vmem:[#allocation2 + $0x88] sm:$0xff] %v4712
        %5225 = vst [vmem:[#allocation2 + $0x90] sm:$0xff] %v4713
        %5226 = vst [vmem:[#allocation2 + $0x98] sm:$0xff] %v4714
        %5227 = vst [vmem:[#allocation2 + $0xa0] sm:$0xff] %v4715
        %5228 = vst [vmem:[#allocation2 + $0xa8] sm:$0xff] %v4716
        %5229 = vst [vmem:[#allocation2 + $0xb0] sm:$0xff] %v4717
        %5230 = vst [vmem:[#allocation2 + $0xb8] sm:$0xff] %v4718
        %5231 = vst [vmem:[#allocation2 + $0xc0] sm:$0xff] %v4719
        %5232 = vst [vmem:[#allocation2 + $0xc8] sm:$0xff] %v4720
        %5233 = vst [vmem:[#allocation2 + $0xd0] sm:$0xff] %v4721
        %5234 = vst [vmem:[#allocation2 + $0xd8] sm:$0xff] %v4722
        %5235 = vst [vmem:[#allocation2 + $0xe0] sm:$0xff] %v4723
        %5236 = vst [vmem:[#allocation2 + $0xe8] sm:$0xff] %v4724
        %5237 = vst [vmem:[#allocation2 + $0xf0] sm:$0xff] %v4725
        %5238 = vst [vmem:[#allocation2 + $0xf8] sm:$0xff] %v4726
        %5239 = vst [vmem:[#allocation2 + $0x100] sm:$0xff] %v4727
        %5240 = vst [vmem:[#allocation2 + $0x108] sm:$0xff] %v4728
        %5241 = vst [vmem:[#allocation2 + $0x110] sm:$0xff] %v4729
        %5242 = vst [vmem:[#allocation2 + $0x118] sm:$0xff] %v4730
        %5243 = vst [vmem:[#allocation2 + $0x120] sm:$0xff] %v4731
        %5244 = vst [vmem:[#allocation2 + $0x128] sm:$0xff] %v4732
        %5245 = vst [vmem:[#allocation2 + $0x130] sm:$0xff] %v4733
        %5246 = vst [vmem:[#allocation2 + $0x138] sm:$0xff] %v4734
        %5247 = vst [vmem:[#allocation2 + $0x140] sm:$0xff] %v4735
        %5248 = vst [vmem:[#allocation2 + $0x148] sm:$0xff] %v4736
        %5249 = vst [vmem:[#allocation2 + $0x150] sm:$0xff] %v4737
        %5250 = vst [vmem:[#allocation2 + $0x158] sm:$0xff] %v4738
        %5251 = vst [vmem:[#allocation2 + $0x160] sm:$0xff] %v4739
        %5252 = vst [vmem:[#allocation2 + $0x168] sm:$0xff] %v4740
        %5253 = vst [vmem:[#allocation2 + $0x170] sm:$0xff] %v4741
        %5254 = vst [vmem:[#allocation2 + $0x178] sm:$0xff] %v4742
        %5255 = vst [vmem:[#allocation2 + $0x180] sm:$0xff] %v4743
        %5256 = vst [vmem:[#allocation2 + $0x188] sm:$0xff] %v4744
        %5257 = vst [vmem:[#allocation2 + $0x190] sm:$0xff] %v4745
        %5258 = vst [vmem:[#allocation2 + $0x198] sm:$0xff] %v4746
        %5259 = vst [vmem:[#allocation2 + $0x1a0] sm:$0xff] %v4747
        %5260 = vst [vmem:[#allocation2 + $0x1a8] sm:$0xff] %v4748
        %5261 = vst [vmem:[#allocation2 + $0x1b0] sm:$0xff] %v4749
        %5262 = vst [vmem:[#allocation2 + $0x1b8] sm:$0xff] %v4750
        %5263 = vst [vmem:[#allocation2 + $0x1c0] sm:$0xff] %v4751
        %5264 = vst [vmem:[#allocation2 + $0x1c8] sm:$0xff] %v4752
        %5265 = vst [vmem:[#allocation2 + $0x1d0] sm:$0xff] %v4753
        %5266 = vst [vmem:[#allocation2 + $0x1d8] sm:$0xff] %v4754
        %5267 = vst [vmem:[#allocation2 + $0x1e0] sm:$0xff] %v4755
        %5268 = vst [vmem:[#allocation2 + $0x1e8] sm:$0xff] %v4756
        %5269 = vst [vmem:[#allocation2 + $0x1f0] sm:$0xff] %v4757
        %5270 = vst [vmem:[#allocation2 + $0x1f8] sm:$0xff] %v4758
        %5271 = vst [vmem:[#allocation2 + $0x200] sm:$0xff] %v4759
        %5272 = vst [vmem:[#allocation2 + $0x208] sm:$0xff] %v4760
        %5273 = vst [vmem:[#allocation2 + $0x210] sm:$0xff] %v4761
        %5274 = vst [vmem:[#allocation2 + $0x218] sm:$0xff] %v4762
        %5275 = vst [vmem:[#allocation2 + $0x220] sm:$0xff] %v4763
        %5276 = vst [vmem:[#allocation2 + $0x228] sm:$0xff] %v4764
        %5277 = vst [vmem:[#allocation2 + $0x230] sm:$0xff] %v4765
        %5278 = vst [vmem:[#allocation2 + $0x238] sm:$0xff] %v4766
        %5279 = vst [vmem:[#allocation2 + $0x240] sm:$0xff] %v4767
        %5280 = vst [vmem:[#allocation2 + $0x248] sm:$0xff] %v4768
        %5281 = vst [vmem:[#allocation2 + $0x250] sm:$0xff] %v4769
        %5282 = vst [vmem:[#allocation2 + $0x258] sm:$0xff] %v4770
        %5283 = vst [vmem:[#allocation2 + $0x260] sm:$0xff] %v4771
        %5284 = vst [vmem:[#allocation2 + $0x268] sm:$0xff] %v4772
        %5285 = vst [vmem:[#allocation2 + $0x270] sm:$0xff] %v4773
        %5286 = vst [vmem:[#allocation2 + $0x278] sm:$0xff] %v4774
        %5287 = vst [vmem:[#allocation2 + $0x280] sm:$0xff] %v4775
        %5288 = vst [vmem:[#allocation2 + $0x288] sm:$0xff] %v4776
        %5289 = vst [vmem:[#allocation2 + $0x290] sm:$0xff] %v4777
        %5290 = vst [vmem:[#allocation2 + $0x298] sm:$0xff] %v4778
        %5291 = vst [vmem:[#allocation2 + $0x2a0] sm:$0xff] %v4779
        %5292 = vst [vmem:[#allocation2 + $0x2a8] sm:$0xff] %v4780
        %5293 = vst [vmem:[#allocation2 + $0x2b0] sm:$0xff] %v4781
        %5294 = vst [vmem:[#allocation2 + $0x2b8] sm:$0xff] %v4782
        %5295 = vst [vmem:[#allocation2 + $0x2c0] sm:$0xff] %v4783
        %5296 = vst [vmem:[#allocation2 + $0x2c8] sm:$0xff] %v4784
        %5297 = vst [vmem:[#allocation2 + $0x2d0] sm:$0xff] %v4785
        %5298 = vst [vmem:[#allocation2 + $0x2d8] sm:$0xff] %v4786
        %5299 = vst [vmem:[#allocation2 + $0x2e0] sm:$0xff] %v4787
        %5300 = vst [vmem:[#allocation2 + $0x2e8] sm:$0xff] %v4788
        %5301 = vst [vmem:[#allocation2 + $0x2f0] sm:$0xff] %v4789
        %5302 = vst [vmem:[#allocation2 + $0x2f8] sm:$0xff] %v4790
        %5303 = vst [vmem:[#allocation2 + $0x300] sm:$0xff] %v4791
        %5304 = vst [vmem:[#allocation2 + $0x308] sm:$0xff] %v4792
        %5305 = vst [vmem:[#allocation2 + $0x310] sm:$0xff] %v4793
        %5306 = vst [vmem:[#allocation2 + $0x318] sm:$0xff] %v4794
        %5307 = vst [vmem:[#allocation2 + $0x320] sm:$0xff] %v4795
        %5308 = vst [vmem:[#allocation2 + $0x328] sm:$0xff] %v4796
        %5309 = vst [vmem:[#allocation2 + $0x330] sm:$0xff] %v4797
        %5310 = vst [vmem:[#allocation2 + $0x338] sm:$0xff] %v4798
        %5311 = vst [vmem:[#allocation2 + $0x340] sm:$0xff] %v4799
        %5312 = vst [vmem:[#allocation2 + $0x348] sm:$0xff] %v4800
        %5313 = vst [vmem:[#allocation2 + $0x350] sm:$0xff] %v4801
        %5314 = vst [vmem:[#allocation2 + $0x358] sm:$0xff] %v4802
        %5315 = vst [vmem:[#allocation2 + $0x360] sm:$0xff] %v4803
        %5316 = vst [vmem:[#allocation2 + $0x368] sm:$0xff] %v4804
        %5317 = vst [vmem:[#allocation2 + $0x370] sm:$0xff] %v4805
        %5318 = vst [vmem:[#allocation2 + $0x378] sm:$0xff] %v4806
        %5319 = vst [vmem:[#allocation2 + $0x380] sm:$0xff] %v4807
        %5320 = vst [vmem:[#allocation2 + $0x388] sm:$0xff] %v4808
        %5321 = vst [vmem:[#allocation2 + $0x390] sm:$0xff] %v4809
        %5322 = vst [vmem:[#allocation2 + $0x398] sm:$0xff] %v4810
        %5323 = vst [vmem:[#allocation2 + $0x3a0] sm:$0xff] %v4811
        %5324 = vst [vmem:[#allocation2 + $0x3a8] sm:$0xff] %v4812
        %5325 = vst [vmem:[#allocation2 + $0x3b0] sm:$0xff] %v4813
        %5326 = vst [vmem:[#allocation2 + $0x3b8] sm:$0xff] %v4814
        %5327 = vst [vmem:[#allocation2 + $0x3c0] sm:$0xff] %v4815
        %5328 = vst [vmem:[#allocation2 + $0x3c8] sm:$0xff] %v4816
        %5329 = vst [vmem:[#allocation2 + $0x3d0] sm:$0xff] %v4817
        %5330 = vst [vmem:[#allocation2 + $0x3d8] sm:$0xff] %v4818
        %5331 = vst [vmem:[#allocation2 + $0x3e0] sm:$0xff] %v4819
        %5332 = vst [vmem:[#allocation2 + $0x3e8] sm:$0xff] %v4820
        %5333 = vst [vmem:[#allocation2 + $0x3f0] sm:$0xff] %v4821
        %5334 = vst [vmem:[#allocation2 + $0x3f8] sm:$0xff] %v4822
        %5335 = vst [vmem:[#allocation2 + $0x400] sm:$0xff] %v4823
        %5336 = vst [vmem:[#allocation2 + $0x408] sm:$0xff] %v4824
        %5337 = vst [vmem:[#allocation2 + $0x410] sm:$0xff] %v4825
        %5338 = vst [vmem:[#allocation2 + $0x418] sm:$0xff] %v4826
        %5339 = vst [vmem:[#allocation2 + $0x420] sm:$0xff] %v4827
        %5340 = vst [vmem:[#allocation2 + $0x428] sm:$0xff] %v4828
        %5341 = vst [vmem:[#allocation2 + $0x430] sm:$0xff] %v4829
        %5342 = vst [vmem:[#allocation2 + $0x438] sm:$0xff] %v4830
        %5343 = vst [vmem:[#allocation2 + $0x440] sm:$0xff] %v4831
        %5344 = vst [vmem:[#allocation2 + $0x448] sm:$0xff] %v4832
        %5345 = vst [vmem:[#allocation2 + $0x450] sm:$0xff] %v4833
        %5346 = vst [vmem:[#allocation2 + $0x458] sm:$0xff] %v4834
        %5347 = vst [vmem:[#allocation2 + $0x460] sm:$0xff] %v4835
        %5348 = vst [vmem:[#allocation2 + $0x468] sm:$0xff] %v4836
        %5349 = vst [vmem:[#allocation2 + $0x470] sm:$0xff] %v4837
        %5350 = vst [vmem:[#allocation2 + $0x478] sm:$0xff] %v4838
        %5351 = vst [vmem:[#allocation2 + $0x480] sm:$0xff] %v4839
        %5352 = vst [vmem:[#allocation2 + $0x488] sm:$0xff] %v4840
        %5353 = vst [vmem:[#allocation2 + $0x490] sm:$0xff] %v4841
        %5354 = vst [vmem:[#allocation2 + $0x498] sm:$0xff] %v4842
        %5355 = vst [vmem:[#allocation2 + $0x4a0] sm:$0xff] %v4843
        %5356 = vst [vmem:[#allocation2 + $0x4a8] sm:$0xff] %v4844
        %5357 = vst [vmem:[#allocation2 + $0x4b0] sm:$0xff] %v4845
        %5358 = vst [vmem:[#allocation2 + $0x4b8] sm:$0xff] %v4846
        %5359 = vst [vmem:[#allocation2 + $0x4c0] sm:$0xff] %v4847
        %5360 = vst [vmem:[#allocation2 + $0x4c8] sm:$0xff] %v4848
        %5361 = vst [vmem:[#allocation2 + $0x4d0] sm:$0xff] %v4849
        %5362 = vst [vmem:[#allocation2 + $0x4d8] sm:$0xff] %v4850
        %5363 = vst [vmem:[#allocation2 + $0x4e0] sm:$0xff] %v4851
        %5364 = vst [vmem:[#allocation2 + $0x4e8] sm:$0xff] %v4852
        %5365 = vst [vmem:[#allocation2 + $0x4f0] sm:$0xff] %v4853
        %5366 = vst [vmem:[#allocation2 + $0x4f8] sm:$0xff] %v4854
        %5367 = vst [vmem:[#allocation2 + $0x500] sm:$0xff] %v4855
        %5368 = vst [vmem:[#allocation2 + $0x508] sm:$0xff] %v4856
        %5369 = vst [vmem:[#allocation2 + $0x510] sm:$0xff] %v4857
        %5370 = vst [vmem:[#allocation2 + $0x518] sm:$0xff] %v4858
        %5371 = vst [vmem:[#allocation2 + $0x520] sm:$0xff] %v4859
        %5372 = vst [vmem:[#allocation2 + $0x528] sm:$0xff] %v4860
        %5373 = vst [vmem:[#allocation2 + $0x530] sm:$0xff] %v4861
        %5374 = vst [vmem:[#allocation2 + $0x538] sm:$0xff] %v4862
        %5375 = vst [vmem:[#allocation2 + $0x540] sm:$0xff] %v4863
        %5376 = vst [vmem:[#allocation2 + $0x548] sm:$0xff] %v4864
        %5377 = vst [vmem:[#allocation2 + $0x550] sm:$0xff] %v4865
        %5378 = vst [vmem:[#allocation2 + $0x558] sm:$0xff] %v4866
        %5379 = vst [vmem:[#allocation2 + $0x560] sm:$0xff] %v4867
        %5380 = vst [vmem:[#allocation2 + $0x568] sm:$0xff] %v4868
        %5381 = vst [vmem:[#allocation2 + $0x570] sm:$0xff] %v4869
        %5382 = vst [vmem:[#allocation2 + $0x578] sm:$0xff] %v4870
        %5383 = vst [vmem:[#allocation2 + $0x580] sm:$0xff] %v4871
        %5384 = vst [vmem:[#allocation2 + $0x588] sm:$0xff] %v4872
        %5385 = vst [vmem:[#allocation2 + $0x590] sm:$0xff] %v4873
        %5386 = vst [vmem:[#allocation2 + $0x598] sm:$0xff] %v4874
        %5387 = vst [vmem:[#allocation2 + $0x5a0] sm:$0xff] %v4875
        %5388 = vst [vmem:[#allocation2 + $0x5a8] sm:$0xff] %v4876
        %5389 = vst [vmem:[#allocation2 + $0x5b0] sm:$0xff] %v4877
        %5390 = vst [vmem:[#allocation2 + $0x5b8] sm:$0xff] %v4878
        %5391 = vst [vmem:[#allocation2 + $0x5c0] sm:$0xff] %v4879
        %5392 = vst [vmem:[#allocation2 + $0x5c8] sm:$0xff] %v4880
        %5393 = vst [vmem:[#allocation2 + $0x5d0] sm:$0xff] %v4881
        %5394 = vst [vmem:[#allocation2 + $0x5d8] sm:$0xff] %v4882
        %5395 = vst [vmem:[#allocation2 + $0x5e0] sm:$0xff] %v4883
        %5396 = vst [vmem:[#allocation2 + $0x5e8] sm:$0xff] %v4884
        %5397 = vst [vmem:[#allocation2 + $0x5f0] sm:$0xff] %v4885
        %5398 = vst [vmem:[#allocation2 + $0x5f8] sm:$0xff] %v4886
        %5399 = vst [vmem:[#allocation2 + $0x600] sm:$0xff] %v4887
        %5400 = vst [vmem:[#allocation2 + $0x608] sm:$0xff] %v4888
        %5401 = vst [vmem:[#allocation2 + $0x610] sm:$0xff] %v4889
        %5402 = vst [vmem:[#allocation2 + $0x618] sm:$0xff] %v4890
        %5403 = vst [vmem:[#allocation2 + $0x620] sm:$0xff] %v4891
        %5404 = vst [vmem:[#allocation2 + $0x628] sm:$0xff] %v4892
        %5405 = vst [vmem:[#allocation2 + $0x630] sm:$0xff] %v4893
        %5406 = vst [vmem:[#allocation2 + $0x638] sm:$0xff] %v4894
        %5407 = vst [vmem:[#allocation2 + $0x640] sm:$0xff] %v4895
        %5408 = vst [vmem:[#allocation2 + $0x648] sm:$0xff] %v4896
        %5409 = vst [vmem:[#allocation2 + $0x650] sm:$0xff] %v4897
        %5410 = vst [vmem:[#allocation2 + $0x658] sm:$0xff] %v4898
        %5411 = vst [vmem:[#allocation2 + $0x660] sm:$0xff] %v4899
        %5412 = vst [vmem:[#allocation2 + $0x668] sm:$0xff] %v4900
        %5413 = vst [vmem:[#allocation2 + $0x670] sm:$0xff] %v4901
        %5414 = vst [vmem:[#allocation2 + $0x678] sm:$0xff] %v4902
        %5415 = vst [vmem:[#allocation2 + $0x680] sm:$0xff] %v4903
        %5416 = vst [vmem:[#allocation2 + $0x688] sm:$0xff] %v4904
        %5417 = vst [vmem:[#allocation2 + $0x690] sm:$0xff] %v4905
        %5418 = vst [vmem:[#allocation2 + $0x698] sm:$0xff] %v4906
        %5419 = vst [vmem:[#allocation2 + $0x6a0] sm:$0xff] %v4907
        %5420 = vst [vmem:[#allocation2 + $0x6a8] sm:$0xff] %v4908
        %5421 = vst [vmem:[#allocation2 + $0x6b0] sm:$0xff] %v4909
        %5422 = vst [vmem:[#allocation2 + $0x6b8] sm:$0xff] %v4910
        %5423 = vst [vmem:[#allocation2 + $0x6c0] sm:$0xff] %v4911
        %5424 = vst [vmem:[#allocation2 + $0x6c8] sm:$0xff] %v4912
        %5425 = vst [vmem:[#allocation2 + $0x6d0] sm:$0xff] %v4913
        %5426 = vst [vmem:[#allocation2 + $0x6d8] sm:$0xff] %v4914
        %5427 = vst [vmem:[#allocation2 + $0x6e0] sm:$0xff] %v4915
        %5428 = vst [vmem:[#allocation2 + $0x6e8] sm:$0xff] %v4916
        %5429 = vst [vmem:[#allocation2 + $0x6f0] sm:$0xff] %v4917
        %5430 = vst [vmem:[#allocation2 + $0x6f8] sm:$0xff] %v4918
        %5431 = vst [vmem:[#allocation2 + $0x700] sm:$0xff] %v4919
        %5432 = vst [vmem:[#allocation2 + $0x708] sm:$0xff] %v4920
        %5433 = vst [vmem:[#allocation2 + $0x710] sm:$0xff] %v4921
        %5434 = vst [vmem:[#allocation2 + $0x718] sm:$0xff] %v4922
        %5435 = vst [vmem:[#allocation2 + $0x720] sm:$0xff] %v4923
        %5436 = vst [vmem:[#allocation2 + $0x728] sm:$0xff] %v4924
        %5437 = vst [vmem:[#allocation2 + $0x730] sm:$0xff] %v4925
        %5438 = vst [vmem:[#allocation2 + $0x738] sm:$0xff] %v4926
        %5439 = vst [vmem:[#allocation2 + $0x740] sm:$0xff] %v4927
        %5440 = vst [vmem:[#allocation2 + $0x748] sm:$0xff] %v4928
        %5441 = vst [vmem:[#allocation2 + $0x750] sm:$0xff] %v4929
        %5442 = vst [vmem:[#allocation2 + $0x758] sm:$0xff] %v4930
        %5443 = vst [vmem:[#allocation2 + $0x760] sm:$0xff] %v4931
        %5444 = vst [vmem:[#allocation2 + $0x768] sm:$0xff] %v4932
        %5445 = vst [vmem:[#allocation2 + $0x770] sm:$0xff] %v4933
        %5446 = vst [vmem:[#allocation2 + $0x778] sm:$0xff] %v4934
        %5447 = vst [vmem:[#allocation2 + $0x780] sm:$0xff] %v4935
        %5448 = vst [vmem:[#allocation2 + $0x788] sm:$0xff] %v4936
        %5449 = vst [vmem:[#allocation2 + $0x790] sm:$0xff] %v4937
        %5450 = vst [vmem:[#allocation2 + $0x798] sm:$0xff] %v4938
        %5451 = vst [vmem:[#allocation2 + $0x7a0] sm:$0xff] %v4939
        %5452 = vst [vmem:[#allocation2 + $0x7a8] sm:$0xff] %v4940
        %5453 = vst [vmem:[#allocation2 + $0x7b0] sm:$0xff] %v4941
        %5454 = vst [vmem:[#allocation2 + $0x7b8] sm:$0xff] %v4942
        %5455 = vst [vmem:[#allocation2 + $0x7c0] sm:$0xff] %v4943
        %5456 = vst [vmem:[#allocation2 + $0x7c8] sm:$0xff] %v4944
        %5457 = vst [vmem:[#allocation2 + $0x7d0] sm:$0xff] %v4945
        %5458 = vst [vmem:[#allocation2 + $0x7d8] sm:$0xff] %v4946
        %5459 = vst [vmem:[#allocation2 + $0x7e0] sm:$0xff] %v4947
        %5460 = vst [vmem:[#allocation2 + $0x7e8] sm:$0xff] %v4948
        %5461 = vst [vmem:[#allocation2 + $0x7f0] sm:$0xff] %v4949
        %5462 = vst [vmem:[#allocation2 + $0x7f8] sm:$0xff] %v4950
        %5463 = vst [vmem:[#allocation2 + $0x800] sm:$0xff] %v4951
        %5464 = vst [vmem:[#allocation2 + $0x808] sm:$0xff] %v4952
        %5465 = vst [vmem:[#allocation2 + $0x810] sm:$0xff] %v4953
        %5466 = vst [vmem:[#allocation2 + $0x818] sm:$0xff] %v4954
        %5467 = vst [vmem:[#allocation2 + $0x820] sm:$0xff] %v4955
        %5468 = vst [vmem:[#allocation2 + $0x828] sm:$0xff] %v4956
        %5469 = vst [vmem:[#allocation2 + $0x830] sm:$0xff] %v4957
        %5470 = vst [vmem:[#allocation2 + $0x838] sm:$0xff] %v4958
        %5471 = vst [vmem:[#allocation2 + $0x840] sm:$0xff] %v4959
        %5472 = vst [vmem:[#allocation2 + $0x848] sm:$0xff] %v4960
        %5473 = vst [vmem:[#allocation2 + $0x850] sm:$0xff] %v4961
        %5474 = vst [vmem:[#allocation2 + $0x858] sm:$0xff] %v4962
        %5475 = vst [vmem:[#allocation2 + $0x860] sm:$0xff] %v4963
        %5476 = vst [vmem:[#allocation2 + $0x868] sm:$0xff] %v4964
        %5477 = vst [vmem:[#allocation2 + $0x870] sm:$0xff] %v4965
        %5478 = vst [vmem:[#allocation2 + $0x878] sm:$0xff] %v4966
        %5479 = vst [vmem:[#allocation2 + $0x880] sm:$0xff] %v4967
        %5480 = vst [vmem:[#allocation2 + $0x888] sm:$0xff] %v4968
        %5481 = vst [vmem:[#allocation2 + $0x890] sm:$0xff] %v4969
        %5482 = vst [vmem:[#allocation2 + $0x898] sm:$0xff] %v4970
        %5483 = vst [vmem:[#allocation2 + $0x8a0] sm:$0xff] %v4971
        %5484 = vst [vmem:[#allocation2 + $0x8a8] sm:$0xff] %v4972
        %5485 = vst [vmem:[#allocation2 + $0x8b0] sm:$0xff] %v4973
        %5486 = vst [vmem:[#allocation2 + $0x8b8] sm:$0xff] %v4974
        %5487 = vst [vmem:[#allocation2 + $0x8c0] sm:$0xff] %v4975
        %5488 = vst [vmem:[#allocation2 + $0x8c8] sm:$0xff] %v4976
        %5489 = vst [vmem:[#allocation2 + $0x8d0] sm:$0xff] %v4977
        %5490 = vst [vmem:[#allocation2 + $0x8d8] sm:$0xff] %v4978
        %5491 = vst [vmem:[#allocation2 + $0x8e0] sm:$0xff] %v4979
        %5492 = vst [vmem:[#allocation2 + $0x8e8] sm:$0xff] %v4980
        %5493 = vst [vmem:[#allocation2 + $0x8f0] sm:$0xff] %v4981
        %5494 = vst [vmem:[#allocation2 + $0x8f8] sm:$0xff] %v4982
        %5495 = vst [vmem:[#allocation2 + $0x900] sm:$0xff] %v4983
        %5496 = vst [vmem:[#allocation2 + $0x908] sm:$0xff] %v4984
        %5497 = vst [vmem:[#allocation2 + $0x910] sm:$0xff] %v4985
        %5498 = vst [vmem:[#allocation2 + $0x918] sm:$0xff] %v4986
        %5499 = vst [vmem:[#allocation2 + $0x920] sm:$0xff] %v4987
        %5500 = vst [vmem:[#allocation2 + $0x928] sm:$0xff] %v4988
        %5501 = vst [vmem:[#allocation2 + $0x930] sm:$0xff] %v4989
        %5502 = vst [vmem:[#allocation2 + $0x938] sm:$0xff] %v4990
        %5503 = vst [vmem:[#allocation2 + $0x940] sm:$0xff] %v4991
        %5504 = vst [vmem:[#allocation2 + $0x948] sm:$0xff] %v4992
        %5505 = vst [vmem:[#allocation2 + $0x950] sm:$0xff] %v4993
        %5506 = vst [vmem:[#allocation2 + $0x958] sm:$0xff] %v4994
        %5507 = vst [vmem:[#allocation2 + $0x960] sm:$0xff] %v4995
        %5508 = vst [vmem:[#allocation2 + $0x968] sm:$0xff] %v4996
        %5509 = vst [vmem:[#allocation2 + $0x970] sm:$0xff] %v4997
        %5510 = vst [vmem:[#allocation2 + $0x978] sm:$0xff] %v4998
        %5511 = vst [vmem:[#allocation2 + $0x980] sm:$0xff] %v4999
        %5512 = vst [vmem:[#allocation2 + $0x988] sm:$0xff] %v5000
        %5513 = vst [vmem:[#allocation2 + $0x990] sm:$0xff] %v5001
        %5514 = vst [vmem:[#allocation2 + $0x998] sm:$0xff] %v5002
        %5515 = vst [vmem:[#allocation2 + $0x9a0] sm:$0xff] %v5003
        %5516 = vst [vmem:[#allocation2 + $0x9a8] sm:$0xff] %v5004
        %5517 = vst [vmem:[#allocation2 + $0x9b0] sm:$0xff] %v5005
        %5518 = vst [vmem:[#allocation2 + $0x9b8] sm:$0xff] %v5006
        %5519 = vst [vmem:[#allocation2 + $0x9c0] sm:$0xff] %v5007
        %5520 = vst [vmem:[#allocation2 + $0x9c8] sm:$0xff] %v5008
        %5521 = vst [vmem:[#allocation2 + $0x9d0] sm:$0xff] %v5009
        %5522 = vst [vmem:[#allocation2 + $0x9d8] sm:$0xff] %v5010
        %5523 = vst [vmem:[#allocation2 + $0x9e0] sm:$0xff] %v5011
        %5524 = vst [vmem:[#allocation2 + $0x9e8] sm:$0xff] %v5012
        %5525 = vst [vmem:[#allocation2 + $0x9f0] sm:$0xff] %v5013
        %5526 = vst [vmem:[#allocation2 + $0x9f8] sm:$0xff] %v5014
        %5527 = vst [vmem:[#allocation2 + $0xa00] sm:$0xff] %v5015
        %5528 = vst [vmem:[#allocation2 + $0xa08] sm:$0xff] %v5016
        %5529 = vst [vmem:[#allocation2 + $0xa10] sm:$0xff] %v5017
        %5530 = vst [vmem:[#allocation2 + $0xa18] sm:$0xff] %v5018
        %5531 = vst [vmem:[#allocation2 + $0xa20] sm:$0xff] %v5019
        %5532 = vst [vmem:[#allocation2 + $0xa28] sm:$0xff] %v5020
        %5533 = vst [vmem:[#allocation2 + $0xa30] sm:$0xff] %v5021
        %5534 = vst [vmem:[#allocation2 + $0xa38] sm:$0xff] %v5022
        %5535 = vst [vmem:[#allocation2 + $0xa40] sm:$0xff] %v5023
        %5536 = vst [vmem:[#allocation2 + $0xa48] sm:$0xff] %v5024
        %5537 = vst [vmem:[#allocation2 + $0xa50] sm:$0xff] %v5025
        %5538 = vst [vmem:[#allocation2 + $0xa58] sm:$0xff] %v5026
        %5539 = vst [vmem:[#allocation2 + $0xa60] sm:$0xff] %v5027
        %5540 = vst [vmem:[#allocation2 + $0xa68] sm:$0xff] %v5028
        %5541 = vst [vmem:[#allocation2 + $0xa70] sm:$0xff] %v5029
        %5542 = vst [vmem:[#allocation2 + $0xa78] sm:$0xff] %v5030
        %5543 = vst [vmem:[#allocation2 + $0xa80] sm:$0xff] %v5031
        %5544 = vst [vmem:[#allocation2 + $0xa88] sm:$0xff] %v5032
        %5545 = vst [vmem:[#allocation2 + $0xa90] sm:$0xff] %v5033
        %5546 = vst [vmem:[#allocation2 + $0xa98] sm:$0xff] %v5034
        %5547 = vst [vmem:[#allocation2 + $0xaa0] sm:$0xff] %v5035
        %5548 = vst [vmem:[#allocation2 + $0xaa8] sm:$0xff] %v5036
        %5549 = vst [vmem:[#allocation2 + $0xab0] sm:$0xff] %v5037
        %5550 = vst [vmem:[#allocation2 + $0xab8] sm:$0xff] %v5038
        %5551 = vst [vmem:[#allocation2 + $0xac0] sm:$0xff] %v5039
        %5552 = vst [vmem:[#allocation2 + $0xac8] sm:$0xff] %v5040
        %5553 = vst [vmem:[#allocation2 + $0xad0] sm:$0xff] %v5041
        %5554 = vst [vmem:[#allocation2 + $0xad8] sm:$0xff] %v5042
        %5555 = vst [vmem:[#allocation2 + $0xae0] sm:$0xff] %v5043
        %5556 = vst [vmem:[#allocation2 + $0xae8] sm:$0xff] %v5044
        %5557 = vst [vmem:[#allocation2 + $0xaf0] sm:$0xff] %v5045
        %5558 = vst [vmem:[#allocation2 + $0xaf8] sm:$0xff] %v5046
        %5559 = vst [vmem:[#allocation2 + $0xb00] sm:$0xff] %v5047
        %5560 = vst [vmem:[#allocation2 + $0xb08] sm:$0xff] %v5048
        %5561 = vst [vmem:[#allocation2 + $0xb10] sm:$0xff] %v5049
        %5562 = vst [vmem:[#allocation2 + $0xb18] sm:$0xff] %v5050
        %5563 = vst [vmem:[#allocation2 + $0xb20] sm:$0xff] %v5051
        %5564 = vst [vmem:[#allocation2 + $0xb28] sm:$0xff] %v5052
        %5565 = vst [vmem:[#allocation2 + $0xb30] sm:$0xff] %v5053
        %5566 = vst [vmem:[#allocation2 + $0xb38] sm:$0xff] %v5054
        %5567 = vst [vmem:[#allocation2 + $0xb40] sm:$0xff] %v5055
        %5568 = vst [vmem:[#allocation2 + $0xb48] sm:$0xff] %v5056
        %5569 = vst [vmem:[#allocation2 + $0xb50] sm:$0xff] %v5057
        %5570 = vst [vmem:[#allocation2 + $0xb58] sm:$0xff] %v5058
        %5571 = vst [vmem:[#allocation2 + $0xb60] sm:$0xff] %v5059
        %5572 = vst [vmem:[#allocation2 + $0xb68] sm:$0xff] %v5060
        %5573 = vst [vmem:[#allocation2 + $0xb70] sm:$0xff] %v5061
        %5574 = vst [vmem:[#allocation2 + $0xb78] sm:$0xff] %v5062
        %5575 = vst [vmem:[#allocation2 + $0xb80] sm:$0xff] %v5063
        %5576 = vst [vmem:[#allocation2 + $0xb88] sm:$0xff] %v5064
        %5577 = vst [vmem:[#allocation2 + $0xb90] sm:$0xff] %v5065
        %5578 = vst [vmem:[#allocation2 + $0xb98] sm:$0xff] %v5066
        %5579 = vst [vmem:[#allocation2 + $0xba0] sm:$0xff] %v5067
        %5580 = vst [vmem:[#allocation2 + $0xba8] sm:$0xff] %v5068
        %5581 = vst [vmem:[#allocation2 + $0xbb0] sm:$0xff] %v5069
        %5582 = vst [vmem:[#allocation2 + $0xbb8] sm:$0xff] %v5070
        %5583 = vst [vmem:[#allocation2 + $0xbc0] sm:$0xff] %v5071
        %5584 = vst [vmem:[#allocation2 + $0xbc8] sm:$0xff] %v5072
        %5585 = vst [vmem:[#allocation2 + $0xbd0] sm:$0xff] %v5073
        %5586 = vst [vmem:[#allocation2 + $0xbd8] sm:$0xff] %v5074
        %5587 = vst [vmem:[#allocation2 + $0xbe0] sm:$0xff] %v5075
        %5588 = vst [vmem:[#allocation2 + $0xbe8] sm:$0xff] %v5076
        %5589 = vst [vmem:[#allocation2 + $0xbf0] sm:$0xff] %v5077
        %5590 = vst [vmem:[#allocation2 + $0xbf8] sm:$0xff] %v5078
        %5591 = vst [vmem:[#allocation2 + $0xc00] sm:$0xff] %v5079
        %5592 = vst [vmem:[#allocation2 + $0xc08] sm:$0xff] %v5080
        %5593 = vst [vmem:[#allocation2 + $0xc10] sm:$0xff] %v5081
        %5594 = vst [vmem:[#allocation2 + $0xc18] sm:$0xff] %v5082
        %5595 = vst [vmem:[#allocation2 + $0xc20] sm:$0xff] %v5083
        %5596 = vst [vmem:[#allocation2 + $0xc28] sm:$0xff] %v5084
        %5597 = vst [vmem:[#allocation2 + $0xc30] sm:$0xff] %v5085
        %5598 = vst [vmem:[#allocation2 + $0xc38] sm:$0xff] %v5086
        %5599 = vst [vmem:[#allocation2 + $0xc40] sm:$0xff] %v5087
        %5600 = vst [vmem:[#allocation2 + $0xc48] sm:$0xff] %v5088
        %5601 = vst [vmem:[#allocation2 + $0xc50] sm:$0xff] %v5089
        %5602 = vst [vmem:[#allocation2 + $0xc58] sm:$0xff] %v5090
        %5603 = vst [vmem:[#allocation2 + $0xc60] sm:$0xff] %v5091
        %5604 = vst [vmem:[#allocation2 + $0xc68] sm:$0xff] %v5092
        %5605 = vst [vmem:[#allocation2 + $0xc70] sm:$0xff] %v5093
        %5606 = vst [vmem:[#allocation2 + $0xc78] sm:$0xff] %v5094
        %5607 = vst [vmem:[#allocation2 + $0xc80] sm:$0xff] %v5095
        %5608 = vst [vmem:[#allocation2 + $0xc88] sm:$0xff] %v5096
        %5609 = vst [vmem:[#allocation2 + $0xc90] sm:$0xff] %v5097
        %5610 = vst [vmem:[#allocation2 + $0xc98] sm:$0xff] %v5098
        %5611 = vst [vmem:[#allocation2 + $0xca0] sm:$0xff] %v5099
        %5612 = vst [vmem:[#allocation2 + $0xca8] sm:$0xff] %v5100
        %5613 = vst [vmem:[#allocation2 + $0xcb0] sm:$0xff] %v5101
        %5614 = vst [vmem:[#allocation2 + $0xcb8] sm:$0xff] %v5102
        %5615 = vst [vmem:[#allocation2 + $0xcc0] sm:$0xff] %v5103
        %5616 = vst [vmem:[#allocation2 + $0xcc8] sm:$0xff] %v5104
        %5617 = vst [vmem:[#allocation2 + $0xcd0] sm:$0xff] %v5105
        %5618 = vst [vmem:[#allocation2 + $0xcd8] sm:$0xff] %v5106
        %5619 = vst [vmem:[#allocation2 + $0xce0] sm:$0xff] %v5107
        %5620 = vst [vmem:[#allocation2 + $0xce8] sm:$0xff] %v5108
        %5621 = vst [vmem:[#allocation2 + $0xcf0] sm:$0xff] %v5109
        %5622 = vst [vmem:[#allocation2 + $0xcf8] sm:$0xff] %v5110
        %5623 = vst [vmem:[#allocation2 + $0xd00] sm:$0xff] %v5111
        %5624 = vst [vmem:[#allocation2 + $0xd08] sm:$0xff] %v5112
        %5625 = vst [vmem:[#allocation2 + $0xd10] sm:$0xff] %v5113
        %5626 = vst [vmem:[#allocation2 + $0xd18] sm:$0xff] %v5114
        %5627 = vst [vmem:[#allocation2 + $0xd20] sm:$0xff] %v5115
        %5628 = vst [vmem:[#allocation2 + $0xd28] sm:$0xff] %v5116
        %5629 = vst [vmem:[#allocation2 + $0xd30] sm:$0xff] %v5117
        %5630 = vst [vmem:[#allocation2 + $0xd38] sm:$0xff] %v5118
        %5631 = vst [vmem:[#allocation2 + $0xd40] sm:$0xff] %v5119
        %5632 = vst [vmem:[#allocation2 + $0xd48] sm:$0xff] %v5120
        %5633 = vst [vmem:[#allocation2 + $0xd50] sm:$0xff] %v5121
        %5634 = vst [vmem:[#allocation2 + $0xd58] sm:$0xff] %v5122
        %5635 = vst [vmem:[#allocation2 + $0xd60] sm:$0xff] %v5123
        %5636 = vst [vmem:[#allocation2 + $0xd68] sm:$0xff] %v5124
        %5637 = vst [vmem:[#allocation2 + $0xd70] sm:$0xff] %v5125
        %5638 = vst [vmem:[#allocation2 + $0xd78] sm:$0xff] %v5126
        %5639 = vst [vmem:[#allocation2 + $0xd80] sm:$0xff] %v5127
        %5640 = vst [vmem:[#allocation2 + $0xd88] sm:$0xff] %v5128
        %5641 = vst [vmem:[#allocation2 + $0xd90] sm:$0xff] %v5129
        %5642 = vst [vmem:[#allocation2 + $0xd98] sm:$0xff] %v5130
        %5643 = vst [vmem:[#allocation2 + $0xda0] sm:$0xff] %v5131
        %5644 = vst [vmem:[#allocation2 + $0xda8] sm:$0xff] %v5132
        %5645 = vst [vmem:[#allocation2 + $0xdb0] sm:$0xff] %v5133
        %5646 = vst [vmem:[#allocation2 + $0xdb8] sm:$0xff] %v5134
        %5647 = vst [vmem:[#allocation2 + $0xdc0] sm:$0xff] %v5135
        %5648 = vst [vmem:[#allocation2 + $0xdc8] sm:$0xff] %v5136
        %5649 = vst [vmem:[#allocation2 + $0xdd0] sm:$0xff] %v5137
        %5650 = vst [vmem:[#allocation2 + $0xdd8] sm:$0xff] %v5138
        %5651 = vst [vmem:[#allocation2 + $0xde0] sm:$0xff] %v5139
        %5652 = vst [vmem:[#allocation2 + $0xde8] sm:$0xff] %v5140
        %5653 = vst [vmem:[#allocation2 + $0xdf0] sm:$0xff] %v5141
        %5654 = vst [vmem:[#allocation2 + $0xdf8] sm:$0xff] %v5142
        %5655 = vst [vmem:[#allocation2 + $0xe00] sm:$0xff] %v5143
        %5656 = vst [vmem:[#allocation2 + $0xe08] sm:$0xff] %v5144
        %5657 = vst [vmem:[#allocation2 + $0xe10] sm:$0xff] %v5145
        %5658 = vst [vmem:[#allocation2 + $0xe18] sm:$0xff] %v5146
        %5659 = vst [vmem:[#allocation2 + $0xe20] sm:$0xff] %v5147
        %5660 = vst [vmem:[#allocation2 + $0xe28] sm:$0xff] %v5148
        %5661 = vst [vmem:[#allocation2 + $0xe30] sm:$0xff] %v5149
        %5662 = vst [vmem:[#allocation2 + $0xe38] sm:$0xff] %v5150
        %5663 = vst [vmem:[#allocation2 + $0xe40] sm:$0xff] %v5151
        %5664 = vst [vmem:[#allocation2 + $0xe48] sm:$0xff] %v5152
        %5665 = vst [vmem:[#allocation2 + $0xe50] sm:$0xff] %v5153
        %5666 = vst [vmem:[#allocation2 + $0xe58] sm:$0xff] %v5154
        %5667 = vst [vmem:[#allocation2 + $0xe60] sm:$0xff] %v5155
        %5668 = vst [vmem:[#allocation2 + $0xe68] sm:$0xff] %v5156
        %5669 = vst [vmem:[#allocation2 + $0xe70] sm:$0xff] %v5157
        %5670 = vst [vmem:[#allocation2 + $0xe78] sm:$0xff] %v5158
        %5671 = vst [vmem:[#allocation2 + $0xe80] sm:$0xff] %v5159
        %5672 = vst [vmem:[#allocation2 + $0xe88] sm:$0xff] %v5160
        %5673 = vst [vmem:[#allocation2 + $0xe90] sm:$0xff] %v5161
        %5674 = vst [vmem:[#allocation2 + $0xe98] sm:$0xff] %v5162
        %5675 = vst [vmem:[#allocation2 + $0xea0] sm:$0xff] %v5163
        %5676 = vst [vmem:[#allocation2 + $0xea8] sm:$0xff] %v5164
        %5677 = vst [vmem:[#allocation2 + $0xeb0] sm:$0xff] %v5165
        %5678 = vst [vmem:[#allocation2 + $0xeb8] sm:$0xff] %v5166
        %5679 = vst [vmem:[#allocation2 + $0xec0] sm:$0xff] %v5167
        %5680 = vst [vmem:[#allocation2 + $0xec8] sm:$0xff] %v5168
        %5681 = vst [vmem:[#allocation2 + $0xed0] sm:$0xff] %v5169
        %5682 = vst [vmem:[#allocation2 + $0xed8] sm:$0xff] %v5170
        %5683 = vst [vmem:[#allocation2 + $0xee0] sm:$0xff] %v5171
        %5684 = vst [vmem:[#allocation2 + $0xee8] sm:$0xff] %v5172
        %5685 = vst [vmem:[#allocation2 + $0xef0] sm:$0xff] %v5173
        %5686 = vst [vmem:[#allocation2 + $0xef8] sm:$0xff] %v5174
        %5687 = vst [vmem:[#allocation2 + $0xf00] sm:$0xff] %v5175
        %5688 = vst [vmem:[#allocation2 + $0xf08] sm:$0xff] %v5176
        %5689 = vst [vmem:[#allocation2 + $0xf10] sm:$0xff] %v5177
        %5690 = vst [vmem:[#allocation2 + $0xf18] sm:$0xff] %v5178
        %5691 = vst [vmem:[#allocation2 + $0xf20] sm:$0xff] %v5179
        %5692 = vst [vmem:[#allocation2 + $0xf28] sm:$0xff] %v5180
        %5693 = vst [vmem:[#allocation2 + $0xf30] sm:$0xff] %v5181
        %5694 = vst [vmem:[#allocation2 + $0xf38] sm:$0xff] %v5182
        %5695 = vst [vmem:[#allocation2 + $0xf40] sm:$0xff] %v5183
        %5696 = vst [vmem:[#allocation2 + $0xf48] sm:$0xff] %v5184
        %5697 = vst [vmem:[#allocation2 + $0xf50] sm:$0xff] %v5185
        %5698 = vst [vmem:[#allocation2 + $0xf58] sm:$0xff] %v5186
        %5699 = vst [vmem:[#allocation2 + $0xf60] sm:$0xff] %v5187
        %5700 = vst [vmem:[#allocation2 + $0xf68] sm:$0xff] %v5188
        %5701 = vst [vmem:[#allocation2 + $0xf70] sm:$0xff] %v5189
        %5702 = vst [vmem:[#allocation2 + $0xf78] sm:$0xff] %v5190
        %5703 = vst [vmem:[#allocation2 + $0xf80] sm:$0xff] %v5191
        %5704 = vst [vmem:[#allocation2 + $0xf88] sm:$0xff] %v5192
        %5705 = vst [vmem:[#allocation2 + $0xf90] sm:$0xff] %v5193
        %5706 = vst [vmem:[#allocation2 + $0xf98] sm:$0xff] %v5194
        %5707 = vst [vmem:[#allocation2 + $0xfa0] sm:$0xff] %v5195
        %5708 = vst [vmem:[#allocation2 + $0xfa8] sm:$0xff] %v5196
        %5709 = vst [vmem:[#allocation2 + $0xfb0] sm:$0xff] %v5197
        %5710 = vst [vmem:[#allocation2 + $0xfb8] sm:$0xff] %v5198
        %5711 = vst [vmem:[#allocation2 + $0xfc0] sm:$0xff] %v5199
        %5712 = vst [vmem:[#allocation2 + $0xfc8] sm:$0xff] %v5200
        %5713 = vst [vmem:[#allocation2 + $0xfd0] sm:$0xff] %v5201
        %5714 = vst [vmem:[#allocation2 + $0xfd8] sm:$0xff] %v5202
        %5715 = vst [vmem:[#allocation2 + $0xfe0] sm:$0xff] %v5203
        %5716 = vst [vmem:[#allocation2 + $0xfe8] sm:$0xff] %v5204
        %5717 = vst [vmem:[#allocation2 + $0xff0] sm:$0xff] %v5205
        %5718 = vst [vmem:[#allocation2 + $0xff8] sm:$0xff] %v5206
        // Predicated region
        $region49: #{tpu_custom_call.1} parent=31 // pred_check
          %p5719 = pneg %p266
        $region50: #{tpu_custom_call.1} parent=31 // pred_check_branch
          %5721 = sbr.rel (%p5719) target = $region52
        $region51: #{tpu_custom_call.1} parent=31 // pred_region
          %v5722 = vld [vmem:[#allocation2] sm:$0xff]
          %v5723 = vld [vmem:[#allocation2 + $0x8] sm:$0xff]
          %v5724 = vld [vmem:[#allocation2 + $0x10] sm:$0xff]
          %v5725 = vld [vmem:[#allocation2 + $0x18] sm:$0xff]
          %v5726 = vld [vmem:[#allocation2 + $0x20] sm:$0xff]
          %v5727 = vld [vmem:[#allocation2 + $0x28] sm:$0xff]
          %v5728 = vld [vmem:[#allocation2 + $0x30] sm:$0xff]
          %v5729 = vld [vmem:[#allocation2 + $0x38] sm:$0xff]
          %v5730 = vld [vmem:[#allocation2 + $0x40] sm:$0xff]
          %v5731 = vld [vmem:[#allocation2 + $0x48] sm:$0xff]
          %v5732 = vld [vmem:[#allocation2 + $0x50] sm:$0xff]
          %v5733 = vld [vmem:[#allocation2 + $0x58] sm:$0xff]
          %v5734 = vld [vmem:[#allocation2 + $0x60] sm:$0xff]
          %v5735 = vld [vmem:[#allocation2 + $0x68] sm:$0xff]
          %v5736 = vld [vmem:[#allocation2 + $0x70] sm:$0xff]
          %v5737 = vld [vmem:[#allocation2 + $0x78] sm:$0xff]
          %v5738 = vld [vmem:[#allocation2 + $0x80] sm:$0xff]
          %v5739 = vld [vmem:[#allocation2 + $0x88] sm:$0xff]
          %v5740 = vld [vmem:[#allocation2 + $0x90] sm:$0xff]
          %v5741 = vld [vmem:[#allocation2 + $0x98] sm:$0xff]
          %v5742 = vld [vmem:[#allocation2 + $0xa0] sm:$0xff]
          %v5743 = vld [vmem:[#allocation2 + $0xa8] sm:$0xff]
          %v5744 = vld [vmem:[#allocation2 + $0xb0] sm:$0xff]
          %v5745 = vld [vmem:[#allocation2 + $0xb8] sm:$0xff]
          %v5746 = vld [vmem:[#allocation2 + $0xc0] sm:$0xff]
          %v5747 = vld [vmem:[#allocation2 + $0xc8] sm:$0xff]
          %v5748 = vld [vmem:[#allocation2 + $0xd0] sm:$0xff]
          %v5749 = vld [vmem:[#allocation2 + $0xd8] sm:$0xff]
          %v5750 = vld [vmem:[#allocation2 + $0xe0] sm:$0xff]
          %v5751 = vld [vmem:[#allocation2 + $0xe8] sm:$0xff]
          %v5752 = vld [vmem:[#allocation2 + $0xf0] sm:$0xff]
          %v5753 = vld [vmem:[#allocation2 + $0xf8] sm:$0xff]
          %v5754 = vld [vmem:[#allocation2 + $0x100] sm:$0xff]
          %v5755 = vld [vmem:[#allocation2 + $0x108] sm:$0xff]
          %v5756 = vld [vmem:[#allocation2 + $0x110] sm:$0xff]
          %v5757 = vld [vmem:[#allocation2 + $0x118] sm:$0xff]
          %v5758 = vld [vmem:[#allocation2 + $0x120] sm:$0xff]
          %v5759 = vld [vmem:[#allocation2 + $0x128] sm:$0xff]
          %v5760 = vld [vmem:[#allocation2 + $0x130] sm:$0xff]
          %v5761 = vld [vmem:[#allocation2 + $0x138] sm:$0xff]
          %v5762 = vld [vmem:[#allocation2 + $0x140] sm:$0xff]
          %v5763 = vld [vmem:[#allocation2 + $0x148] sm:$0xff]
          %v5764 = vld [vmem:[#allocation2 + $0x150] sm:$0xff]
          %v5765 = vld [vmem:[#allocation2 + $0x158] sm:$0xff]
          %v5766 = vld [vmem:[#allocation2 + $0x160] sm:$0xff]
          %v5767 = vld [vmem:[#allocation2 + $0x168] sm:$0xff]
          %v5768 = vld [vmem:[#allocation2 + $0x170] sm:$0xff]
          %v5769 = vld [vmem:[#allocation2 + $0x178] sm:$0xff]
          %v5770 = vld [vmem:[#allocation2 + $0x180] sm:$0xff]
          %v5771 = vld [vmem:[#allocation2 + $0x188] sm:$0xff]
          %v5772 = vld [vmem:[#allocation2 + $0x190] sm:$0xff]
          %v5773 = vld [vmem:[#allocation2 + $0x198] sm:$0xff]
          %v5774 = vld [vmem:[#allocation2 + $0x1a0] sm:$0xff]
          %v5775 = vld [vmem:[#allocation2 + $0x1a8] sm:$0xff]
          %v5776 = vld [vmem:[#allocation2 + $0x1b0] sm:$0xff]
          %v5777 = vld [vmem:[#allocation2 + $0x1b8] sm:$0xff]
          %v5778 = vld [vmem:[#allocation2 + $0x1c0] sm:$0xff]
          %v5779 = vld [vmem:[#allocation2 + $0x1c8] sm:$0xff]
          %v5780 = vld [vmem:[#allocation2 + $0x1d0] sm:$0xff]
          %v5781 = vld [vmem:[#allocation2 + $0x1d8] sm:$0xff]
          %v5782 = vld [vmem:[#allocation2 + $0x1e0] sm:$0xff]
          %v5783 = vld [vmem:[#allocation2 + $0x1e8] sm:$0xff]
          %v5784 = vld [vmem:[#allocation2 + $0x1f0] sm:$0xff]
          %v5785 = vld [vmem:[#allocation2 + $0x1f8] sm:$0xff]
          %v5786 = vld [vmem:[#allocation2 + $0x200] sm:$0xff]
          %v5787 = vld [vmem:[#allocation2 + $0x208] sm:$0xff]
          %v5788 = vld [vmem:[#allocation2 + $0x210] sm:$0xff]
          %v5789 = vld [vmem:[#allocation2 + $0x218] sm:$0xff]
          %v5790 = vld [vmem:[#allocation2 + $0x220] sm:$0xff]
          %v5791 = vld [vmem:[#allocation2 + $0x228] sm:$0xff]
          %v5792 = vld [vmem:[#allocation2 + $0x230] sm:$0xff]
          %v5793 = vld [vmem:[#allocation2 + $0x238] sm:$0xff]
          %v5794 = vld [vmem:[#allocation2 + $0x240] sm:$0xff]
          %v5795 = vld [vmem:[#allocation2 + $0x248] sm:$0xff]
          %v5796 = vld [vmem:[#allocation2 + $0x250] sm:$0xff]
          %v5797 = vld [vmem:[#allocation2 + $0x258] sm:$0xff]
          %v5798 = vld [vmem:[#allocation2 + $0x260] sm:$0xff]
          %v5799 = vld [vmem:[#allocation2 + $0x268] sm:$0xff]
          %v5800 = vld [vmem:[#allocation2 + $0x270] sm:$0xff]
          %v5801 = vld [vmem:[#allocation2 + $0x278] sm:$0xff]
          %v5802 = vld [vmem:[#allocation2 + $0x280] sm:$0xff]
          %v5803 = vld [vmem:[#allocation2 + $0x288] sm:$0xff]
          %v5804 = vld [vmem:[#allocation2 + $0x290] sm:$0xff]
          %v5805 = vld [vmem:[#allocation2 + $0x298] sm:$0xff]
          %v5806 = vld [vmem:[#allocation2 + $0x2a0] sm:$0xff]
          %v5807 = vld [vmem:[#allocation2 + $0x2a8] sm:$0xff]
          %v5808 = vld [vmem:[#allocation2 + $0x2b0] sm:$0xff]
          %v5809 = vld [vmem:[#allocation2 + $0x2b8] sm:$0xff]
          %v5810 = vld [vmem:[#allocation2 + $0x2c0] sm:$0xff]
          %v5811 = vld [vmem:[#allocation2 + $0x2c8] sm:$0xff]
          %v5812 = vld [vmem:[#allocation2 + $0x2d0] sm:$0xff]
          %v5813 = vld [vmem:[#allocation2 + $0x2d8] sm:$0xff]
          %v5814 = vld [vmem:[#allocation2 + $0x2e0] sm:$0xff]
          %v5815 = vld [vmem:[#allocation2 + $0x2e8] sm:$0xff]
          %v5816 = vld [vmem:[#allocation2 + $0x2f0] sm:$0xff]
          %v5817 = vld [vmem:[#allocation2 + $0x2f8] sm:$0xff]
          %v5818 = vld [vmem:[#allocation2 + $0x300] sm:$0xff]
          %v5819 = vld [vmem:[#allocation2 + $0x308] sm:$0xff]
          %v5820 = vld [vmem:[#allocation2 + $0x310] sm:$0xff]
          %v5821 = vld [vmem:[#allocation2 + $0x318] sm:$0xff]
          %v5822 = vld [vmem:[#allocation2 + $0x320] sm:$0xff]
          %v5823 = vld [vmem:[#allocation2 + $0x328] sm:$0xff]
          %v5824 = vld [vmem:[#allocation2 + $0x330] sm:$0xff]
          %v5825 = vld [vmem:[#allocation2 + $0x338] sm:$0xff]
          %v5826 = vld [vmem:[#allocation2 + $0x340] sm:$0xff]
          %v5827 = vld [vmem:[#allocation2 + $0x348] sm:$0xff]
          %v5828 = vld [vmem:[#allocation2 + $0x350] sm:$0xff]
          %v5829 = vld [vmem:[#allocation2 + $0x358] sm:$0xff]
          %v5830 = vld [vmem:[#allocation2 + $0x360] sm:$0xff]
          %v5831 = vld [vmem:[#allocation2 + $0x368] sm:$0xff]
          %v5832 = vld [vmem:[#allocation2 + $0x370] sm:$0xff]
          %v5833 = vld [vmem:[#allocation2 + $0x378] sm:$0xff]
          %v5834 = vld [vmem:[#allocation2 + $0x380] sm:$0xff]
          %v5835 = vld [vmem:[#allocation2 + $0x388] sm:$0xff]
          %v5836 = vld [vmem:[#allocation2 + $0x390] sm:$0xff]
          %v5837 = vld [vmem:[#allocation2 + $0x398] sm:$0xff]
          %v5838 = vld [vmem:[#allocation2 + $0x3a0] sm:$0xff]
          %v5839 = vld [vmem:[#allocation2 + $0x3a8] sm:$0xff]
          %v5840 = vld [vmem:[#allocation2 + $0x3b0] sm:$0xff]
          %v5841 = vld [vmem:[#allocation2 + $0x3b8] sm:$0xff]
          %v5842 = vld [vmem:[#allocation2 + $0x3c0] sm:$0xff]
          %v5843 = vld [vmem:[#allocation2 + $0x3c8] sm:$0xff]
          %v5844 = vld [vmem:[#allocation2 + $0x3d0] sm:$0xff]
          %v5845 = vld [vmem:[#allocation2 + $0x3d8] sm:$0xff]
          %v5846 = vld [vmem:[#allocation2 + $0x3e0] sm:$0xff]
          %v5847 = vld [vmem:[#allocation2 + $0x3e8] sm:$0xff]
          %v5848 = vld [vmem:[#allocation2 + $0x3f0] sm:$0xff]
          %v5849 = vld [vmem:[#allocation2 + $0x3f8] sm:$0xff]
          %v5850 = vld [vmem:[#allocation2 + $0x400] sm:$0xff]
          %v5851 = vld [vmem:[#allocation2 + $0x408] sm:$0xff]
          %v5852 = vld [vmem:[#allocation2 + $0x410] sm:$0xff]
          %v5853 = vld [vmem:[#allocation2 + $0x418] sm:$0xff]
          %v5854 = vld [vmem:[#allocation2 + $0x420] sm:$0xff]
          %v5855 = vld [vmem:[#allocation2 + $0x428] sm:$0xff]
          %v5856 = vld [vmem:[#allocation2 + $0x430] sm:$0xff]
          %v5857 = vld [vmem:[#allocation2 + $0x438] sm:$0xff]
          %v5858 = vld [vmem:[#allocation2 + $0x440] sm:$0xff]
          %v5859 = vld [vmem:[#allocation2 + $0x448] sm:$0xff]
          %v5860 = vld [vmem:[#allocation2 + $0x450] sm:$0xff]
          %v5861 = vld [vmem:[#allocation2 + $0x458] sm:$0xff]
          %v5862 = vld [vmem:[#allocation2 + $0x460] sm:$0xff]
          %v5863 = vld [vmem:[#allocation2 + $0x468] sm:$0xff]
          %v5864 = vld [vmem:[#allocation2 + $0x470] sm:$0xff]
          %v5865 = vld [vmem:[#allocation2 + $0x478] sm:$0xff]
          %v5866 = vld [vmem:[#allocation2 + $0x480] sm:$0xff]
          %v5867 = vld [vmem:[#allocation2 + $0x488] sm:$0xff]
          %v5868 = vld [vmem:[#allocation2 + $0x490] sm:$0xff]
          %v5869 = vld [vmem:[#allocation2 + $0x498] sm:$0xff]
          %v5870 = vld [vmem:[#allocation2 + $0x4a0] sm:$0xff]
          %v5871 = vld [vmem:[#allocation2 + $0x4a8] sm:$0xff]
          %v5872 = vld [vmem:[#allocation2 + $0x4b0] sm:$0xff]
          %v5873 = vld [vmem:[#allocation2 + $0x4b8] sm:$0xff]
          %v5874 = vld [vmem:[#allocation2 + $0x4c0] sm:$0xff]
          %v5875 = vld [vmem:[#allocation2 + $0x4c8] sm:$0xff]
          %v5876 = vld [vmem:[#allocation2 + $0x4d0] sm:$0xff]
          %v5877 = vld [vmem:[#allocation2 + $0x4d8] sm:$0xff]
          %v5878 = vld [vmem:[#allocation2 + $0x4e0] sm:$0xff]
          %v5879 = vld [vmem:[#allocation2 + $0x4e8] sm:$0xff]
          %v5880 = vld [vmem:[#allocation2 + $0x4f0] sm:$0xff]
          %v5881 = vld [vmem:[#allocation2 + $0x4f8] sm:$0xff]
          %v5882 = vld [vmem:[#allocation2 + $0x500] sm:$0xff]
          %v5883 = vld [vmem:[#allocation2 + $0x508] sm:$0xff]
          %v5884 = vld [vmem:[#allocation2 + $0x510] sm:$0xff]
          %v5885 = vld [vmem:[#allocation2 + $0x518] sm:$0xff]
          %v5886 = vld [vmem:[#allocation2 + $0x520] sm:$0xff]
          %v5887 = vld [vmem:[#allocation2 + $0x528] sm:$0xff]
          %v5888 = vld [vmem:[#allocation2 + $0x530] sm:$0xff]
          %v5889 = vld [vmem:[#allocation2 + $0x538] sm:$0xff]
          %v5890 = vld [vmem:[#allocation2 + $0x540] sm:$0xff]
          %v5891 = vld [vmem:[#allocation2 + $0x548] sm:$0xff]
          %v5892 = vld [vmem:[#allocation2 + $0x550] sm:$0xff]
          %v5893 = vld [vmem:[#allocation2 + $0x558] sm:$0xff]
          %v5894 = vld [vmem:[#allocation2 + $0x560] sm:$0xff]
          %v5895 = vld [vmem:[#allocation2 + $0x568] sm:$0xff]
          %v5896 = vld [vmem:[#allocation2 + $0x570] sm:$0xff]
          %v5897 = vld [vmem:[#allocation2 + $0x578] sm:$0xff]
          %v5898 = vld [vmem:[#allocation2 + $0x580] sm:$0xff]
          %v5899 = vld [vmem:[#allocation2 + $0x588] sm:$0xff]
          %v5900 = vld [vmem:[#allocation2 + $0x590] sm:$0xff]
          %v5901 = vld [vmem:[#allocation2 + $0x598] sm:$0xff]
          %v5902 = vld [vmem:[#allocation2 + $0x5a0] sm:$0xff]
          %v5903 = vld [vmem:[#allocation2 + $0x5a8] sm:$0xff]
          %v5904 = vld [vmem:[#allocation2 + $0x5b0] sm:$0xff]
          %v5905 = vld [vmem:[#allocation2 + $0x5b8] sm:$0xff]
          %v5906 = vld [vmem:[#allocation2 + $0x5c0] sm:$0xff]
          %v5907 = vld [vmem:[#allocation2 + $0x5c8] sm:$0xff]
          %v5908 = vld [vmem:[#allocation2 + $0x5d0] sm:$0xff]
          %v5909 = vld [vmem:[#allocation2 + $0x5d8] sm:$0xff]
          %v5910 = vld [vmem:[#allocation2 + $0x5e0] sm:$0xff]
          %v5911 = vld [vmem:[#allocation2 + $0x5e8] sm:$0xff]
          %v5912 = vld [vmem:[#allocation2 + $0x5f0] sm:$0xff]
          %v5913 = vld [vmem:[#allocation2 + $0x5f8] sm:$0xff]
          %v5914 = vld [vmem:[#allocation2 + $0x600] sm:$0xff]
          %v5915 = vld [vmem:[#allocation2 + $0x608] sm:$0xff]
          %v5916 = vld [vmem:[#allocation2 + $0x610] sm:$0xff]
          %v5917 = vld [vmem:[#allocation2 + $0x618] sm:$0xff]
          %v5918 = vld [vmem:[#allocation2 + $0x620] sm:$0xff]
          %v5919 = vld [vmem:[#allocation2 + $0x628] sm:$0xff]
          %v5920 = vld [vmem:[#allocation2 + $0x630] sm:$0xff]
          %v5921 = vld [vmem:[#allocation2 + $0x638] sm:$0xff]
          %v5922 = vld [vmem:[#allocation2 + $0x640] sm:$0xff]
          %v5923 = vld [vmem:[#allocation2 + $0x648] sm:$0xff]
          %v5924 = vld [vmem:[#allocation2 + $0x650] sm:$0xff]
          %v5925 = vld [vmem:[#allocation2 + $0x658] sm:$0xff]
          %v5926 = vld [vmem:[#allocation2 + $0x660] sm:$0xff]
          %v5927 = vld [vmem:[#allocation2 + $0x668] sm:$0xff]
          %v5928 = vld [vmem:[#allocation2 + $0x670] sm:$0xff]
          %v5929 = vld [vmem:[#allocation2 + $0x678] sm:$0xff]
          %v5930 = vld [vmem:[#allocation2 + $0x680] sm:$0xff]
          %v5931 = vld [vmem:[#allocation2 + $0x688] sm:$0xff]
          %v5932 = vld [vmem:[#allocation2 + $0x690] sm:$0xff]
          %v5933 = vld [vmem:[#allocation2 + $0x698] sm:$0xff]
          %v5934 = vld [vmem:[#allocation2 + $0x6a0] sm:$0xff]
          %v5935 = vld [vmem:[#allocation2 + $0x6a8] sm:$0xff]
          %v5936 = vld [vmem:[#allocation2 + $0x6b0] sm:$0xff]
          %v5937 = vld [vmem:[#allocation2 + $0x6b8] sm:$0xff]
          %v5938 = vld [vmem:[#allocation2 + $0x6c0] sm:$0xff]
          %v5939 = vld [vmem:[#allocation2 + $0x6c8] sm:$0xff]
          %v5940 = vld [vmem:[#allocation2 + $0x6d0] sm:$0xff]
          %v5941 = vld [vmem:[#allocation2 + $0x6d8] sm:$0xff]
          %v5942 = vld [vmem:[#allocation2 + $0x6e0] sm:$0xff]
          %v5943 = vld [vmem:[#allocation2 + $0x6e8] sm:$0xff]
          %v5944 = vld [vmem:[#allocation2 + $0x6f0] sm:$0xff]
          %v5945 = vld [vmem:[#allocation2 + $0x6f8] sm:$0xff]
          %v5946 = vld [vmem:[#allocation2 + $0x700] sm:$0xff]
          %v5947 = vld [vmem:[#allocation2 + $0x708] sm:$0xff]
          %v5948 = vld [vmem:[#allocation2 + $0x710] sm:$0xff]
          %v5949 = vld [vmem:[#allocation2 + $0x718] sm:$0xff]
          %v5950 = vld [vmem:[#allocation2 + $0x720] sm:$0xff]
          %v5951 = vld [vmem:[#allocation2 + $0x728] sm:$0xff]
          %v5952 = vld [vmem:[#allocation2 + $0x730] sm:$0xff]
          %v5953 = vld [vmem:[#allocation2 + $0x738] sm:$0xff]
          %v5954 = vld [vmem:[#allocation2 + $0x740] sm:$0xff]
          %v5955 = vld [vmem:[#allocation2 + $0x748] sm:$0xff]
          %v5956 = vld [vmem:[#allocation2 + $0x750] sm:$0xff]
          %v5957 = vld [vmem:[#allocation2 + $0x758] sm:$0xff]
          %v5958 = vld [vmem:[#allocation2 + $0x760] sm:$0xff]
          %v5959 = vld [vmem:[#allocation2 + $0x768] sm:$0xff]
          %v5960 = vld [vmem:[#allocation2 + $0x770] sm:$0xff]
          %v5961 = vld [vmem:[#allocation2 + $0x778] sm:$0xff]
          %v5962 = vld [vmem:[#allocation2 + $0x780] sm:$0xff]
          %v5963 = vld [vmem:[#allocation2 + $0x788] sm:$0xff]
          %v5964 = vld [vmem:[#allocation2 + $0x790] sm:$0xff]
          %v5965 = vld [vmem:[#allocation2 + $0x798] sm:$0xff]
          %v5966 = vld [vmem:[#allocation2 + $0x7a0] sm:$0xff]
          %v5967 = vld [vmem:[#allocation2 + $0x7a8] sm:$0xff]
          %v5968 = vld [vmem:[#allocation2 + $0x7b0] sm:$0xff]
          %v5969 = vld [vmem:[#allocation2 + $0x7b8] sm:$0xff]
          %v5970 = vld [vmem:[#allocation2 + $0x7c0] sm:$0xff]
          %v5971 = vld [vmem:[#allocation2 + $0x7c8] sm:$0xff]
          %v5972 = vld [vmem:[#allocation2 + $0x7d0] sm:$0xff]
          %v5973 = vld [vmem:[#allocation2 + $0x7d8] sm:$0xff]
          %v5974 = vld [vmem:[#allocation2 + $0x7e0] sm:$0xff]
          %v5975 = vld [vmem:[#allocation2 + $0x7e8] sm:$0xff]
          %v5976 = vld [vmem:[#allocation2 + $0x7f0] sm:$0xff]
          %v5977 = vld [vmem:[#allocation2 + $0x7f8] sm:$0xff]
          %v5978 = vld [vmem:[#allocation2 + $0x800] sm:$0xff]
          %v5979 = vld [vmem:[#allocation2 + $0x808] sm:$0xff]
          %v5980 = vld [vmem:[#allocation2 + $0x810] sm:$0xff]
          %v5981 = vld [vmem:[#allocation2 + $0x818] sm:$0xff]
          %v5982 = vld [vmem:[#allocation2 + $0x820] sm:$0xff]
          %v5983 = vld [vmem:[#allocation2 + $0x828] sm:$0xff]
          %v5984 = vld [vmem:[#allocation2 + $0x830] sm:$0xff]
          %v5985 = vld [vmem:[#allocation2 + $0x838] sm:$0xff]
          %v5986 = vld [vmem:[#allocation2 + $0x840] sm:$0xff]
          %v5987 = vld [vmem:[#allocation2 + $0x848] sm:$0xff]
          %v5988 = vld [vmem:[#allocation2 + $0x850] sm:$0xff]
          %v5989 = vld [vmem:[#allocation2 + $0x858] sm:$0xff]
          %v5990 = vld [vmem:[#allocation2 + $0x860] sm:$0xff]
          %v5991 = vld [vmem:[#allocation2 + $0x868] sm:$0xff]
          %v5992 = vld [vmem:[#allocation2 + $0x870] sm:$0xff]
          %v5993 = vld [vmem:[#allocation2 + $0x878] sm:$0xff]
          %v5994 = vld [vmem:[#allocation2 + $0x880] sm:$0xff]
          %v5995 = vld [vmem:[#allocation2 + $0x888] sm:$0xff]
          %v5996 = vld [vmem:[#allocation2 + $0x890] sm:$0xff]
          %v5997 = vld [vmem:[#allocation2 + $0x898] sm:$0xff]
          %v5998 = vld [vmem:[#allocation2 + $0x8a0] sm:$0xff]
          %v5999 = vld [vmem:[#allocation2 + $0x8a8] sm:$0xff]
          %v6000 = vld [vmem:[#allocation2 + $0x8b0] sm:$0xff]
          %v6001 = vld [vmem:[#allocation2 + $0x8b8] sm:$0xff]
          %v6002 = vld [vmem:[#allocation2 + $0x8c0] sm:$0xff]
          %v6003 = vld [vmem:[#allocation2 + $0x8c8] sm:$0xff]
          %v6004 = vld [vmem:[#allocation2 + $0x8d0] sm:$0xff]
          %v6005 = vld [vmem:[#allocation2 + $0x8d8] sm:$0xff]
          %v6006 = vld [vmem:[#allocation2 + $0x8e0] sm:$0xff]
          %v6007 = vld [vmem:[#allocation2 + $0x8e8] sm:$0xff]
          %v6008 = vld [vmem:[#allocation2 + $0x8f0] sm:$0xff]
          %v6009 = vld [vmem:[#allocation2 + $0x8f8] sm:$0xff]
          %v6010 = vld [vmem:[#allocation2 + $0x900] sm:$0xff]
          %v6011 = vld [vmem:[#allocation2 + $0x908] sm:$0xff]
          %v6012 = vld [vmem:[#allocation2 + $0x910] sm:$0xff]
          %v6013 = vld [vmem:[#allocation2 + $0x918] sm:$0xff]
          %v6014 = vld [vmem:[#allocation2 + $0x920] sm:$0xff]
          %v6015 = vld [vmem:[#allocation2 + $0x928] sm:$0xff]
          %v6016 = vld [vmem:[#allocation2 + $0x930] sm:$0xff]
          %v6017 = vld [vmem:[#allocation2 + $0x938] sm:$0xff]
          %v6018 = vld [vmem:[#allocation2 + $0x940] sm:$0xff]
          %v6019 = vld [vmem:[#allocation2 + $0x948] sm:$0xff]
          %v6020 = vld [vmem:[#allocation2 + $0x950] sm:$0xff]
          %v6021 = vld [vmem:[#allocation2 + $0x958] sm:$0xff]
          %v6022 = vld [vmem:[#allocation2 + $0x960] sm:$0xff]
          %v6023 = vld [vmem:[#allocation2 + $0x968] sm:$0xff]
          %v6024 = vld [vmem:[#allocation2 + $0x970] sm:$0xff]
          %v6025 = vld [vmem:[#allocation2 + $0x978] sm:$0xff]
          %v6026 = vld [vmem:[#allocation2 + $0x980] sm:$0xff]
          %v6027 = vld [vmem:[#allocation2 + $0x988] sm:$0xff]
          %v6028 = vld [vmem:[#allocation2 + $0x990] sm:$0xff]
          %v6029 = vld [vmem:[#allocation2 + $0x998] sm:$0xff]
          %v6030 = vld [vmem:[#allocation2 + $0x9a0] sm:$0xff]
          %v6031 = vld [vmem:[#allocation2 + $0x9a8] sm:$0xff]
          %v6032 = vld [vmem:[#allocation2 + $0x9b0] sm:$0xff]
          %v6033 = vld [vmem:[#allocation2 + $0x9b8] sm:$0xff]
          %v6034 = vld [vmem:[#allocation2 + $0x9c0] sm:$0xff]
          %v6035 = vld [vmem:[#allocation2 + $0x9c8] sm:$0xff]
          %v6036 = vld [vmem:[#allocation2 + $0x9d0] sm:$0xff]
          %v6037 = vld [vmem:[#allocation2 + $0x9d8] sm:$0xff]
          %v6038 = vld [vmem:[#allocation2 + $0x9e0] sm:$0xff]
          %v6039 = vld [vmem:[#allocation2 + $0x9e8] sm:$0xff]
          %v6040 = vld [vmem:[#allocation2 + $0x9f0] sm:$0xff]
          %v6041 = vld [vmem:[#allocation2 + $0x9f8] sm:$0xff]
          %v6042 = vld [vmem:[#allocation2 + $0xa00] sm:$0xff]
          %v6043 = vld [vmem:[#allocation2 + $0xa08] sm:$0xff]
          %v6044 = vld [vmem:[#allocation2 + $0xa10] sm:$0xff]
          %v6045 = vld [vmem:[#allocation2 + $0xa18] sm:$0xff]
          %v6046 = vld [vmem:[#allocation2 + $0xa20] sm:$0xff]
          %v6047 = vld [vmem:[#allocation2 + $0xa28] sm:$0xff]
          %v6048 = vld [vmem:[#allocation2 + $0xa30] sm:$0xff]
          %v6049 = vld [vmem:[#allocation2 + $0xa38] sm:$0xff]
          %v6050 = vld [vmem:[#allocation2 + $0xa40] sm:$0xff]
          %v6051 = vld [vmem:[#allocation2 + $0xa48] sm:$0xff]
          %v6052 = vld [vmem:[#allocation2 + $0xa50] sm:$0xff]
          %v6053 = vld [vmem:[#allocation2 + $0xa58] sm:$0xff]
          %v6054 = vld [vmem:[#allocation2 + $0xa60] sm:$0xff]
          %v6055 = vld [vmem:[#allocation2 + $0xa68] sm:$0xff]
          %v6056 = vld [vmem:[#allocation2 + $0xa70] sm:$0xff]
          %v6057 = vld [vmem:[#allocation2 + $0xa78] sm:$0xff]
          %v6058 = vld [vmem:[#allocation2 + $0xa80] sm:$0xff]
          %v6059 = vld [vmem:[#allocation2 + $0xa88] sm:$0xff]
          %v6060 = vld [vmem:[#allocation2 + $0xa90] sm:$0xff]
          %v6061 = vld [vmem:[#allocation2 + $0xa98] sm:$0xff]
          %v6062 = vld [vmem:[#allocation2 + $0xaa0] sm:$0xff]
          %v6063 = vld [vmem:[#allocation2 + $0xaa8] sm:$0xff]
          %v6064 = vld [vmem:[#allocation2 + $0xab0] sm:$0xff]
          %v6065 = vld [vmem:[#allocation2 + $0xab8] sm:$0xff]
          %v6066 = vld [vmem:[#allocation2 + $0xac0] sm:$0xff]
          %v6067 = vld [vmem:[#allocation2 + $0xac8] sm:$0xff]
          %v6068 = vld [vmem:[#allocation2 + $0xad0] sm:$0xff]
          %v6069 = vld [vmem:[#allocation2 + $0xad8] sm:$0xff]
          %v6070 = vld [vmem:[#allocation2 + $0xae0] sm:$0xff]
          %v6071 = vld [vmem:[#allocation2 + $0xae8] sm:$0xff]
          %v6072 = vld [vmem:[#allocation2 + $0xaf0] sm:$0xff]
          %v6073 = vld [vmem:[#allocation2 + $0xaf8] sm:$0xff]
          %v6074 = vld [vmem:[#allocation2 + $0xb00] sm:$0xff]
          %v6075 = vld [vmem:[#allocation2 + $0xb08] sm:$0xff]
          %v6076 = vld [vmem:[#allocation2 + $0xb10] sm:$0xff]
          %v6077 = vld [vmem:[#allocation2 + $0xb18] sm:$0xff]
          %v6078 = vld [vmem:[#allocation2 + $0xb20] sm:$0xff]
          %v6079 = vld [vmem:[#allocation2 + $0xb28] sm:$0xff]
          %v6080 = vld [vmem:[#allocation2 + $0xb30] sm:$0xff]
          %v6081 = vld [vmem:[#allocation2 + $0xb38] sm:$0xff]
          %v6082 = vld [vmem:[#allocation2 + $0xb40] sm:$0xff]
          %v6083 = vld [vmem:[#allocation2 + $0xb48] sm:$0xff]
          %v6084 = vld [vmem:[#allocation2 + $0xb50] sm:$0xff]
          %v6085 = vld [vmem:[#allocation2 + $0xb58] sm:$0xff]
          %v6086 = vld [vmem:[#allocation2 + $0xb60] sm:$0xff]
          %v6087 = vld [vmem:[#allocation2 + $0xb68] sm:$0xff]
          %v6088 = vld [vmem:[#allocation2 + $0xb70] sm:$0xff]
          %v6089 = vld [vmem:[#allocation2 + $0xb78] sm:$0xff]
          %v6090 = vld [vmem:[#allocation2 + $0xb80] sm:$0xff]
          %v6091 = vld [vmem:[#allocation2 + $0xb88] sm:$0xff]
          %v6092 = vld [vmem:[#allocation2 + $0xb90] sm:$0xff]
          %v6093 = vld [vmem:[#allocation2 + $0xb98] sm:$0xff]
          %v6094 = vld [vmem:[#allocation2 + $0xba0] sm:$0xff]
          %v6095 = vld [vmem:[#allocation2 + $0xba8] sm:$0xff]
          %v6096 = vld [vmem:[#allocation2 + $0xbb0] sm:$0xff]
          %v6097 = vld [vmem:[#allocation2 + $0xbb8] sm:$0xff]
          %v6098 = vld [vmem:[#allocation2 + $0xbc0] sm:$0xff]
          %v6099 = vld [vmem:[#allocation2 + $0xbc8] sm:$0xff]
          %v6100 = vld [vmem:[#allocation2 + $0xbd0] sm:$0xff]
          %v6101 = vld [vmem:[#allocation2 + $0xbd8] sm:$0xff]
          %v6102 = vld [vmem:[#allocation2 + $0xbe0] sm:$0xff]
          %v6103 = vld [vmem:[#allocation2 + $0xbe8] sm:$0xff]
          %v6104 = vld [vmem:[#allocation2 + $0xbf0] sm:$0xff]
          %v6105 = vld [vmem:[#allocation2 + $0xbf8] sm:$0xff]
          %v6106 = vld [vmem:[#allocation2 + $0xc00] sm:$0xff]
          %v6107 = vld [vmem:[#allocation2 + $0xc08] sm:$0xff]
          %v6108 = vld [vmem:[#allocation2 + $0xc10] sm:$0xff]
          %v6109 = vld [vmem:[#allocation2 + $0xc18] sm:$0xff]
          %v6110 = vld [vmem:[#allocation2 + $0xc20] sm:$0xff]
          %v6111 = vld [vmem:[#allocation2 + $0xc28] sm:$0xff]
          %v6112 = vld [vmem:[#allocation2 + $0xc30] sm:$0xff]
          %v6113 = vld [vmem:[#allocation2 + $0xc38] sm:$0xff]
          %v6114 = vld [vmem:[#allocation2 + $0xc40] sm:$0xff]
          %v6115 = vld [vmem:[#allocation2 + $0xc48] sm:$0xff]
          %v6116 = vld [vmem:[#allocation2 + $0xc50] sm:$0xff]
          %v6117 = vld [vmem:[#allocation2 + $0xc58] sm:$0xff]
          %v6118 = vld [vmem:[#allocation2 + $0xc60] sm:$0xff]
          %v6119 = vld [vmem:[#allocation2 + $0xc68] sm:$0xff]
          %v6120 = vld [vmem:[#allocation2 + $0xc70] sm:$0xff]
          %v6121 = vld [vmem:[#allocation2 + $0xc78] sm:$0xff]
          %v6122 = vld [vmem:[#allocation2 + $0xc80] sm:$0xff]
          %v6123 = vld [vmem:[#allocation2 + $0xc88] sm:$0xff]
          %v6124 = vld [vmem:[#allocation2 + $0xc90] sm:$0xff]
          %v6125 = vld [vmem:[#allocation2 + $0xc98] sm:$0xff]
          %v6126 = vld [vmem:[#allocation2 + $0xca0] sm:$0xff]
          %v6127 = vld [vmem:[#allocation2 + $0xca8] sm:$0xff]
          %v6128 = vld [vmem:[#allocation2 + $0xcb0] sm:$0xff]
          %v6129 = vld [vmem:[#allocation2 + $0xcb8] sm:$0xff]
          %v6130 = vld [vmem:[#allocation2 + $0xcc0] sm:$0xff]
          %v6131 = vld [vmem:[#allocation2 + $0xcc8] sm:$0xff]
          %v6132 = vld [vmem:[#allocation2 + $0xcd0] sm:$0xff]
          %v6133 = vld [vmem:[#allocation2 + $0xcd8] sm:$0xff]
          %v6134 = vld [vmem:[#allocation2 + $0xce0] sm:$0xff]
          %v6135 = vld [vmem:[#allocation2 + $0xce8] sm:$0xff]
          %v6136 = vld [vmem:[#allocation2 + $0xcf0] sm:$0xff]
          %v6137 = vld [vmem:[#allocation2 + $0xcf8] sm:$0xff]
          %v6138 = vld [vmem:[#allocation2 + $0xd00] sm:$0xff]
          %v6139 = vld [vmem:[#allocation2 + $0xd08] sm:$0xff]
          %v6140 = vld [vmem:[#allocation2 + $0xd10] sm:$0xff]
          %v6141 = vld [vmem:[#allocation2 + $0xd18] sm:$0xff]
          %v6142 = vld [vmem:[#allocation2 + $0xd20] sm:$0xff]
          %v6143 = vld [vmem:[#allocation2 + $0xd28] sm:$0xff]
          %v6144 = vld [vmem:[#allocation2 + $0xd30] sm:$0xff]
          %v6145 = vld [vmem:[#allocation2 + $0xd38] sm:$0xff]
          %v6146 = vld [vmem:[#allocation2 + $0xd40] sm:$0xff]
          %v6147 = vld [vmem:[#allocation2 + $0xd48] sm:$0xff]
          %v6148 = vld [vmem:[#allocation2 + $0xd50] sm:$0xff]
          %v6149 = vld [vmem:[#allocation2 + $0xd58] sm:$0xff]
          %v6150 = vld [vmem:[#allocation2 + $0xd60] sm:$0xff]
          %v6151 = vld [vmem:[#allocation2 + $0xd68] sm:$0xff]
          %v6152 = vld [vmem:[#allocation2 + $0xd70] sm:$0xff]
          %v6153 = vld [vmem:[#allocation2 + $0xd78] sm:$0xff]
          %v6154 = vld [vmem:[#allocation2 + $0xd80] sm:$0xff]
          %v6155 = vld [vmem:[#allocation2 + $0xd88] sm:$0xff]
          %v6156 = vld [vmem:[#allocation2 + $0xd90] sm:$0xff]
          %v6157 = vld [vmem:[#allocation2 + $0xd98] sm:$0xff]
          %v6158 = vld [vmem:[#allocation2 + $0xda0] sm:$0xff]
          %v6159 = vld [vmem:[#allocation2 + $0xda8] sm:$0xff]
          %v6160 = vld [vmem:[#allocation2 + $0xdb0] sm:$0xff]
          %v6161 = vld [vmem:[#allocation2 + $0xdb8] sm:$0xff]
          %v6162 = vld [vmem:[#allocation2 + $0xdc0] sm:$0xff]
          %v6163 = vld [vmem:[#allocation2 + $0xdc8] sm:$0xff]
          %v6164 = vld [vmem:[#allocation2 + $0xdd0] sm:$0xff]
          %v6165 = vld [vmem:[#allocation2 + $0xdd8] sm:$0xff]
          %v6166 = vld [vmem:[#allocation2 + $0xde0] sm:$0xff]
          %v6167 = vld [vmem:[#allocation2 + $0xde8] sm:$0xff]
          %v6168 = vld [vmem:[#allocation2 + $0xdf0] sm:$0xff]
          %v6169 = vld [vmem:[#allocation2 + $0xdf8] sm:$0xff]
          %v6170 = vld [vmem:[#allocation2 + $0xe00] sm:$0xff]
          %v6171 = vld [vmem:[#allocation2 + $0xe08] sm:$0xff]
          %v6172 = vld [vmem:[#allocation2 + $0xe10] sm:$0xff]
          %v6173 = vld [vmem:[#allocation2 + $0xe18] sm:$0xff]
          %v6174 = vld [vmem:[#allocation2 + $0xe20] sm:$0xff]
          %v6175 = vld [vmem:[#allocation2 + $0xe28] sm:$0xff]
          %v6176 = vld [vmem:[#allocation2 + $0xe30] sm:$0xff]
          %v6177 = vld [vmem:[#allocation2 + $0xe38] sm:$0xff]
          %v6178 = vld [vmem:[#allocation2 + $0xe40] sm:$0xff]
          %v6179 = vld [vmem:[#allocation2 + $0xe48] sm:$0xff]
          %v6180 = vld [vmem:[#allocation2 + $0xe50] sm:$0xff]
          %v6181 = vld [vmem:[#allocation2 + $0xe58] sm:$0xff]
          %v6182 = vld [vmem:[#allocation2 + $0xe60] sm:$0xff]
          %v6183 = vld [vmem:[#allocation2 + $0xe68] sm:$0xff]
          %v6184 = vld [vmem:[#allocation2 + $0xe70] sm:$0xff]
          %v6185 = vld [vmem:[#allocation2 + $0xe78] sm:$0xff]
          %v6186 = vld [vmem:[#allocation2 + $0xe80] sm:$0xff]
          %v6187 = vld [vmem:[#allocation2 + $0xe88] sm:$0xff]
          %v6188 = vld [vmem:[#allocation2 + $0xe90] sm:$0xff]
          %v6189 = vld [vmem:[#allocation2 + $0xe98] sm:$0xff]
          %v6190 = vld [vmem:[#allocation2 + $0xea0] sm:$0xff]
          %v6191 = vld [vmem:[#allocation2 + $0xea8] sm:$0xff]
          %v6192 = vld [vmem:[#allocation2 + $0xeb0] sm:$0xff]
          %v6193 = vld [vmem:[#allocation2 + $0xeb8] sm:$0xff]
          %v6194 = vld [vmem:[#allocation2 + $0xec0] sm:$0xff]
          %v6195 = vld [vmem:[#allocation2 + $0xec8] sm:$0xff]
          %v6196 = vld [vmem:[#allocation2 + $0xed0] sm:$0xff]
          %v6197 = vld [vmem:[#allocation2 + $0xed8] sm:$0xff]
          %v6198 = vld [vmem:[#allocation2 + $0xee0] sm:$0xff]
          %v6199 = vld [vmem:[#allocation2 + $0xee8] sm:$0xff]
          %v6200 = vld [vmem:[#allocation2 + $0xef0] sm:$0xff]
          %v6201 = vld [vmem:[#allocation2 + $0xef8] sm:$0xff]
          %v6202 = vld [vmem:[#allocation2 + $0xf00] sm:$0xff]
          %v6203 = vld [vmem:[#allocation2 + $0xf08] sm:$0xff]
          %v6204 = vld [vmem:[#allocation2 + $0xf10] sm:$0xff]
          %v6205 = vld [vmem:[#allocation2 + $0xf18] sm:$0xff]
          %v6206 = vld [vmem:[#allocation2 + $0xf20] sm:$0xff]
          %v6207 = vld [vmem:[#allocation2 + $0xf28] sm:$0xff]
          %v6208 = vld [vmem:[#allocation2 + $0xf30] sm:$0xff]
          %v6209 = vld [vmem:[#allocation2 + $0xf38] sm:$0xff]
          %v6210 = vld [vmem:[#allocation2 + $0xf40] sm:$0xff]
          %v6211 = vld [vmem:[#allocation2 + $0xf48] sm:$0xff]
          %v6212 = vld [vmem:[#allocation2 + $0xf50] sm:$0xff]
          %v6213 = vld [vmem:[#allocation2 + $0xf58] sm:$0xff]
          %v6214 = vld [vmem:[#allocation2 + $0xf60] sm:$0xff]
          %v6215 = vld [vmem:[#allocation2 + $0xf68] sm:$0xff]
          %v6216 = vld [vmem:[#allocation2 + $0xf70] sm:$0xff]
          %v6217 = vld [vmem:[#allocation2 + $0xf78] sm:$0xff]
          %v6218 = vld [vmem:[#allocation2 + $0xf80] sm:$0xff]
          %v6219 = vld [vmem:[#allocation2 + $0xf88] sm:$0xff]
          %v6220 = vld [vmem:[#allocation2 + $0xf90] sm:$0xff]
          %v6221 = vld [vmem:[#allocation2 + $0xf98] sm:$0xff]
          %v6222 = vld [vmem:[#allocation2 + $0xfa0] sm:$0xff]
          %v6223 = vld [vmem:[#allocation2 + $0xfa8] sm:$0xff]
          %v6224 = vld [vmem:[#allocation2 + $0xfb0] sm:$0xff]
          %v6225 = vld [vmem:[#allocation2 + $0xfb8] sm:$0xff]
          %v6226 = vld [vmem:[#allocation2 + $0xfc0] sm:$0xff]
          %v6227 = vld [vmem:[#allocation2 + $0xfc8] sm:$0xff]
          %v6228 = vld [vmem:[#allocation2 + $0xfd0] sm:$0xff]
          %v6229 = vld [vmem:[#allocation2 + $0xfd8] sm:$0xff]
          %v6230 = vld [vmem:[#allocation2 + $0xfe0] sm:$0xff]
          %v6231 = vld [vmem:[#allocation2 + $0xfe8] sm:$0xff]
          %v6232 = vld [vmem:[#allocation2 + $0xff0] sm:$0xff]
          %v6233 = vld [vmem:[#allocation2 + $0xff8] sm:$0xff]
          %v6234 = vld [vmem:[#allocation8] sm:$0x1]
          %v6236 = vperm.slane %v6234, 0
          %v6238 = vadd.f32 %v5722, %v6236
          %v6239 = vadd.f32 %v5723, %v6236
          %v6240 = vadd.f32 %v5724, %v6236
          %v6241 = vadd.f32 %v5725, %v6236
          %v6242 = vadd.f32 %v5726, %v6236
          %v6243 = vadd.f32 %v5727, %v6236
          %v6244 = vadd.f32 %v5728, %v6236
          %v6245 = vadd.f32 %v5729, %v6236
          %v6246 = vadd.f32 %v5730, %v6236
          %v6247 = vadd.f32 %v5731, %v6236
          %v6248 = vadd.f32 %v5732, %v6236
          %v6249 = vadd.f32 %v5733, %v6236
          %v6250 = vadd.f32 %v5734, %v6236
          %v6251 = vadd.f32 %v5735, %v6236
          %v6252 = vadd.f32 %v5736, %v6236
          %v6253 = vadd.f32 %v5737, %v6236
          %v6254 = vadd.f32 %v5738, %v6236
          %v6255 = vadd.f32 %v5739, %v6236
          %v6256 = vadd.f32 %v5740, %v6236
          %v6257 = vadd.f32 %v5741, %v6236
          %v6258 = vadd.f32 %v5742, %v6236
          %v6259 = vadd.f32 %v5743, %v6236
          %v6260 = vadd.f32 %v5744, %v6236
          %v6261 = vadd.f32 %v5745, %v6236
          %v6262 = vadd.f32 %v5746, %v6236
          %v6263 = vadd.f32 %v5747, %v6236
          %v6264 = vadd.f32 %v5748, %v6236
          %v6265 = vadd.f32 %v5749, %v6236
          %v6266 = vadd.f32 %v5750, %v6236
          %v6267 = vadd.f32 %v5751, %v6236
          %v6268 = vadd.f32 %v5752, %v6236
          %v6269 = vadd.f32 %v5753, %v6236
          %v6270 = vadd.f32 %v5754, %v6236
          %v6271 = vadd.f32 %v5755, %v6236
          %v6272 = vadd.f32 %v5756, %v6236
          %v6273 = vadd.f32 %v5757, %v6236
          %v6274 = vadd.f32 %v5758, %v6236
          %v6275 = vadd.f32 %v5759, %v6236
          %v6276 = vadd.f32 %v5760, %v6236
          %v6277 = vadd.f32 %v5761, %v6236
          %v6278 = vadd.f32 %v5762, %v6236
          %v6279 = vadd.f32 %v5763, %v6236
          %v6280 = vadd.f32 %v5764, %v6236
          %v6281 = vadd.f32 %v5765, %v6236
          %v6282 = vadd.f32 %v5766, %v6236
          %v6283 = vadd.f32 %v5767, %v6236
          %v6284 = vadd.f32 %v5768, %v6236
          %v6285 = vadd.f32 %v5769, %v6236
          %v6286 = vadd.f32 %v5770, %v6236
          %v6287 = vadd.f32 %v5771, %v6236
          %v6288 = vadd.f32 %v5772, %v6236
          %v6289 = vadd.f32 %v5773, %v6236
          %v6290 = vadd.f32 %v5774, %v6236
          %v6291 = vadd.f32 %v5775, %v6236
          %v6292 = vadd.f32 %v5776, %v6236
          %v6293 = vadd.f32 %v5777, %v6236
          %v6294 = vadd.f32 %v5778, %v6236
          %v6295 = vadd.f32 %v5779, %v6236
          %v6296 = vadd.f32 %v5780, %v6236
          %v6297 = vadd.f32 %v5781, %v6236
          %v6298 = vadd.f32 %v5782, %v6236
          %v6299 = vadd.f32 %v5783, %v6236
          %v6300 = vadd.f32 %v5784, %v6236
          %v6301 = vadd.f32 %v5785, %v6236
          %v6302 = vadd.f32 %v5786, %v6236
          %v6303 = vadd.f32 %v5787, %v6236
          %v6304 = vadd.f32 %v5788, %v6236
          %v6305 = vadd.f32 %v5789, %v6236
          %v6306 = vadd.f32 %v5790, %v6236
          %v6307 = vadd.f32 %v5791, %v6236
          %v6308 = vadd.f32 %v5792, %v6236
          %v6309 = vadd.f32 %v5793, %v6236
          %v6310 = vadd.f32 %v5794, %v6236
          %v6311 = vadd.f32 %v5795, %v6236
          %v6312 = vadd.f32 %v5796, %v6236
          %v6313 = vadd.f32 %v5797, %v6236
          %v6314 = vadd.f32 %v5798, %v6236
          %v6315 = vadd.f32 %v5799, %v6236
          %v6316 = vadd.f32 %v5800, %v6236
          %v6317 = vadd.f32 %v5801, %v6236
          %v6318 = vadd.f32 %v5802, %v6236
          %v6319 = vadd.f32 %v5803, %v6236
          %v6320 = vadd.f32 %v5804, %v6236
          %v6321 = vadd.f32 %v5805, %v6236
          %v6322 = vadd.f32 %v5806, %v6236
          %v6323 = vadd.f32 %v5807, %v6236
          %v6324 = vadd.f32 %v5808, %v6236
          %v6325 = vadd.f32 %v5809, %v6236
          %v6326 = vadd.f32 %v5810, %v6236
          %v6327 = vadd.f32 %v5811, %v6236
          %v6328 = vadd.f32 %v5812, %v6236
          %v6329 = vadd.f32 %v5813, %v6236
          %v6330 = vadd.f32 %v5814, %v6236
          %v6331 = vadd.f32 %v5815, %v6236
          %v6332 = vadd.f32 %v5816, %v6236
          %v6333 = vadd.f32 %v5817, %v6236
          %v6334 = vadd.f32 %v5818, %v6236
          %v6335 = vadd.f32 %v5819, %v6236
          %v6336 = vadd.f32 %v5820, %v6236
          %v6337 = vadd.f32 %v5821, %v6236
          %v6338 = vadd.f32 %v5822, %v6236
          %v6339 = vadd.f32 %v5823, %v6236
          %v6340 = vadd.f32 %v5824, %v6236
          %v6341 = vadd.f32 %v5825, %v6236
          %v6342 = vadd.f32 %v5826, %v6236
          %v6343 = vadd.f32 %v5827, %v6236
          %v6344 = vadd.f32 %v5828, %v6236
          %v6345 = vadd.f32 %v5829, %v6236
          %v6346 = vadd.f32 %v5830, %v6236
          %v6347 = vadd.f32 %v5831, %v6236
          %v6348 = vadd.f32 %v5832, %v6236
          %v6349 = vadd.f32 %v5833, %v6236
          %v6350 = vadd.f32 %v5834, %v6236
          %v6351 = vadd.f32 %v5835, %v6236
          %v6352 = vadd.f32 %v5836, %v6236
          %v6353 = vadd.f32 %v5837, %v6236
          %v6354 = vadd.f32 %v5838, %v6236
          %v6355 = vadd.f32 %v5839, %v6236
          %v6356 = vadd.f32 %v5840, %v6236
          %v6357 = vadd.f32 %v5841, %v6236
          %v6358 = vadd.f32 %v5842, %v6236
          %v6359 = vadd.f32 %v5843, %v6236
          %v6360 = vadd.f32 %v5844, %v6236
          %v6361 = vadd.f32 %v5845, %v6236
          %v6362 = vadd.f32 %v5846, %v6236
          %v6363 = vadd.f32 %v5847, %v6236
          %v6364 = vadd.f32 %v5848, %v6236
          %v6365 = vadd.f32 %v5849, %v6236
          %v6366 = vadd.f32 %v5850, %v6236
          %v6367 = vadd.f32 %v5851, %v6236
          %v6368 = vadd.f32 %v5852, %v6236
          %v6369 = vadd.f32 %v5853, %v6236
          %v6370 = vadd.f32 %v5854, %v6236
          %v6371 = vadd.f32 %v5855, %v6236
          %v6372 = vadd.f32 %v5856, %v6236
          %v6373 = vadd.f32 %v5857, %v6236
          %v6374 = vadd.f32 %v5858, %v6236
          %v6375 = vadd.f32 %v5859, %v6236
          %v6376 = vadd.f32 %v5860, %v6236
          %v6377 = vadd.f32 %v5861, %v6236
          %v6378 = vadd.f32 %v5862, %v6236
          %v6379 = vadd.f32 %v5863, %v6236
          %v6380 = vadd.f32 %v5864, %v6236
          %v6381 = vadd.f32 %v5865, %v6236
          %v6382 = vadd.f32 %v5866, %v6236
          %v6383 = vadd.f32 %v5867, %v6236
          %v6384 = vadd.f32 %v5868, %v6236
          %v6385 = vadd.f32 %v5869, %v6236
          %v6386 = vadd.f32 %v5870, %v6236
          %v6387 = vadd.f32 %v5871, %v6236
          %v6388 = vadd.f32 %v5872, %v6236
          %v6389 = vadd.f32 %v5873, %v6236
          %v6390 = vadd.f32 %v5874, %v6236
          %v6391 = vadd.f32 %v5875, %v6236
          %v6392 = vadd.f32 %v5876, %v6236
          %v6393 = vadd.f32 %v5877, %v6236
          %v6394 = vadd.f32 %v5878, %v6236
          %v6395 = vadd.f32 %v5879, %v6236
          %v6396 = vadd.f32 %v5880, %v6236
          %v6397 = vadd.f32 %v5881, %v6236
          %v6398 = vadd.f32 %v5882, %v6236
          %v6399 = vadd.f32 %v5883, %v6236
          %v6400 = vadd.f32 %v5884, %v6236
          %v6401 = vadd.f32 %v5885, %v6236
          %v6402 = vadd.f32 %v5886, %v6236
          %v6403 = vadd.f32 %v5887, %v6236
          %v6404 = vadd.f32 %v5888, %v6236
          %v6405 = vadd.f32 %v5889, %v6236
          %v6406 = vadd.f32 %v5890, %v6236
          %v6407 = vadd.f32 %v5891, %v6236
          %v6408 = vadd.f32 %v5892, %v6236
          %v6409 = vadd.f32 %v5893, %v6236
          %v6410 = vadd.f32 %v5894, %v6236
          %v6411 = vadd.f32 %v5895, %v6236
          %v6412 = vadd.f32 %v5896, %v6236
          %v6413 = vadd.f32 %v5897, %v6236
          %v6414 = vadd.f32 %v5898, %v6236
          %v6415 = vadd.f32 %v5899, %v6236
          %v6416 = vadd.f32 %v5900, %v6236
          %v6417 = vadd.f32 %v5901, %v6236
          %v6418 = vadd.f32 %v5902, %v6236
          %v6419 = vadd.f32 %v5903, %v6236
          %v6420 = vadd.f32 %v5904, %v6236
          %v6421 = vadd.f32 %v5905, %v6236
          %v6422 = vadd.f32 %v5906, %v6236
          %v6423 = vadd.f32 %v5907, %v6236
          %v6424 = vadd.f32 %v5908, %v6236
          %v6425 = vadd.f32 %v5909, %v6236
          %v6426 = vadd.f32 %v5910, %v6236
          %v6427 = vadd.f32 %v5911, %v6236
          %v6428 = vadd.f32 %v5912, %v6236
          %v6429 = vadd.f32 %v5913, %v6236
          %v6430 = vadd.f32 %v5914, %v6236
          %v6431 = vadd.f32 %v5915, %v6236
          %v6432 = vadd.f32 %v5916, %v6236
          %v6433 = vadd.f32 %v5917, %v6236
          %v6434 = vadd.f32 %v5918, %v6236
          %v6435 = vadd.f32 %v5919, %v6236
          %v6436 = vadd.f32 %v5920, %v6236
          %v6437 = vadd.f32 %v5921, %v6236
          %v6438 = vadd.f32 %v5922, %v6236
          %v6439 = vadd.f32 %v5923, %v6236
          %v6440 = vadd.f32 %v5924, %v6236
          %v6441 = vadd.f32 %v5925, %v6236
          %v6442 = vadd.f32 %v5926, %v6236
          %v6443 = vadd.f32 %v5927, %v6236
          %v6444 = vadd.f32 %v5928, %v6236
          %v6445 = vadd.f32 %v5929, %v6236
          %v6446 = vadd.f32 %v5930, %v6236
          %v6447 = vadd.f32 %v5931, %v6236
          %v6448 = vadd.f32 %v5932, %v6236
          %v6449 = vadd.f32 %v5933, %v6236
          %v6450 = vadd.f32 %v5934, %v6236
          %v6451 = vadd.f32 %v5935, %v6236
          %v6452 = vadd.f32 %v5936, %v6236
          %v6453 = vadd.f32 %v5937, %v6236
          %v6454 = vadd.f32 %v5938, %v6236
          %v6455 = vadd.f32 %v5939, %v6236
          %v6456 = vadd.f32 %v5940, %v6236
          %v6457 = vadd.f32 %v5941, %v6236
          %v6458 = vadd.f32 %v5942, %v6236
          %v6459 = vadd.f32 %v5943, %v6236
          %v6460 = vadd.f32 %v5944, %v6236
          %v6461 = vadd.f32 %v5945, %v6236
          %v6462 = vadd.f32 %v5946, %v6236
          %v6463 = vadd.f32 %v5947, %v6236
          %v6464 = vadd.f32 %v5948, %v6236
          %v6465 = vadd.f32 %v5949, %v6236
          %v6466 = vadd.f32 %v5950, %v6236
          %v6467 = vadd.f32 %v5951, %v6236
          %v6468 = vadd.f32 %v5952, %v6236
          %v6469 = vadd.f32 %v5953, %v6236
          %v6470 = vadd.f32 %v5954, %v6236
          %v6471 = vadd.f32 %v5955, %v6236
          %v6472 = vadd.f32 %v5956, %v6236
          %v6473 = vadd.f32 %v5957, %v6236
          %v6474 = vadd.f32 %v5958, %v6236
          %v6475 = vadd.f32 %v5959, %v6236
          %v6476 = vadd.f32 %v5960, %v6236
          %v6477 = vadd.f32 %v5961, %v6236
          %v6478 = vadd.f32 %v5962, %v6236
          %v6479 = vadd.f32 %v5963, %v6236
          %v6480 = vadd.f32 %v5964, %v6236
          %v6481 = vadd.f32 %v5965, %v6236
          %v6482 = vadd.f32 %v5966, %v6236
          %v6483 = vadd.f32 %v5967, %v6236
          %v6484 = vadd.f32 %v5968, %v6236
          %v6485 = vadd.f32 %v5969, %v6236
          %v6486 = vadd.f32 %v5970, %v6236
          %v6487 = vadd.f32 %v5971, %v6236
          %v6488 = vadd.f32 %v5972, %v6236
          %v6489 = vadd.f32 %v5973, %v6236
          %v6490 = vadd.f32 %v5974, %v6236
          %v6491 = vadd.f32 %v5975, %v6236
          %v6492 = vadd.f32 %v5976, %v6236
          %v6493 = vadd.f32 %v5977, %v6236
          %v6494 = vadd.f32 %v5978, %v6236
          %v6495 = vadd.f32 %v5979, %v6236
          %v6496 = vadd.f32 %v5980, %v6236
          %v6497 = vadd.f32 %v5981, %v6236
          %v6498 = vadd.f32 %v5982, %v6236
          %v6499 = vadd.f32 %v5983, %v6236
          %v6500 = vadd.f32 %v5984, %v6236
          %v6501 = vadd.f32 %v5985, %v6236
          %v6502 = vadd.f32 %v5986, %v6236
          %v6503 = vadd.f32 %v5987, %v6236
          %v6504 = vadd.f32 %v5988, %v6236
          %v6505 = vadd.f32 %v5989, %v6236
          %v6506 = vadd.f32 %v5990, %v6236
          %v6507 = vadd.f32 %v5991, %v6236
          %v6508 = vadd.f32 %v5992, %v6236
          %v6509 = vadd.f32 %v5993, %v6236
          %v6510 = vadd.f32 %v5994, %v6236
          %v6511 = vadd.f32 %v5995, %v6236
          %v6512 = vadd.f32 %v5996, %v6236
          %v6513 = vadd.f32 %v5997, %v6236
          %v6514 = vadd.f32 %v5998, %v6236
          %v6515 = vadd.f32 %v5999, %v6236
          %v6516 = vadd.f32 %v6000, %v6236
          %v6517 = vadd.f32 %v6001, %v6236
          %v6518 = vadd.f32 %v6002, %v6236
          %v6519 = vadd.f32 %v6003, %v6236
          %v6520 = vadd.f32 %v6004, %v6236
          %v6521 = vadd.f32 %v6005, %v6236
          %v6522 = vadd.f32 %v6006, %v6236
          %v6523 = vadd.f32 %v6007, %v6236
          %v6524 = vadd.f32 %v6008, %v6236
          %v6525 = vadd.f32 %v6009, %v6236
          %v6526 = vadd.f32 %v6010, %v6236
          %v6527 = vadd.f32 %v6011, %v6236
          %v6528 = vadd.f32 %v6012, %v6236
          %v6529 = vadd.f32 %v6013, %v6236
          %v6530 = vadd.f32 %v6014, %v6236
          %v6531 = vadd.f32 %v6015, %v6236
          %v6532 = vadd.f32 %v6016, %v6236
          %v6533 = vadd.f32 %v6017, %v6236
          %v6534 = vadd.f32 %v6018, %v6236
          %v6535 = vadd.f32 %v6019, %v6236
          %v6536 = vadd.f32 %v6020, %v6236
          %v6537 = vadd.f32 %v6021, %v6236
          %v6538 = vadd.f32 %v6022, %v6236
          %v6539 = vadd.f32 %v6023, %v6236
          %v6540 = vadd.f32 %v6024, %v6236
          %v6541 = vadd.f32 %v6025, %v6236
          %v6542 = vadd.f32 %v6026, %v6236
          %v6543 = vadd.f32 %v6027, %v6236
          %v6544 = vadd.f32 %v6028, %v6236
          %v6545 = vadd.f32 %v6029, %v6236
          %v6546 = vadd.f32 %v6030, %v6236
          %v6547 = vadd.f32 %v6031, %v6236
          %v6548 = vadd.f32 %v6032, %v6236
          %v6549 = vadd.f32 %v6033, %v6236
          %v6550 = vadd.f32 %v6034, %v6236
          %v6551 = vadd.f32 %v6035, %v6236
          %v6552 = vadd.f32 %v6036, %v6236
          %v6553 = vadd.f32 %v6037, %v6236
          %v6554 = vadd.f32 %v6038, %v6236
          %v6555 = vadd.f32 %v6039, %v6236
          %v6556 = vadd.f32 %v6040, %v6236
          %v6557 = vadd.f32 %v6041, %v6236
          %v6558 = vadd.f32 %v6042, %v6236
          %v6559 = vadd.f32 %v6043, %v6236
          %v6560 = vadd.f32 %v6044, %v6236
          %v6561 = vadd.f32 %v6045, %v6236
          %v6562 = vadd.f32 %v6046, %v6236
          %v6563 = vadd.f32 %v6047, %v6236
          %v6564 = vadd.f32 %v6048, %v6236
          %v6565 = vadd.f32 %v6049, %v6236
          %v6566 = vadd.f32 %v6050, %v6236
          %v6567 = vadd.f32 %v6051, %v6236
          %v6568 = vadd.f32 %v6052, %v6236
          %v6569 = vadd.f32 %v6053, %v6236
          %v6570 = vadd.f32 %v6054, %v6236
          %v6571 = vadd.f32 %v6055, %v6236
          %v6572 = vadd.f32 %v6056, %v6236
          %v6573 = vadd.f32 %v6057, %v6236
          %v6574 = vadd.f32 %v6058, %v6236
          %v6575 = vadd.f32 %v6059, %v6236
          %v6576 = vadd.f32 %v6060, %v6236
          %v6577 = vadd.f32 %v6061, %v6236
          %v6578 = vadd.f32 %v6062, %v6236
          %v6579 = vadd.f32 %v6063, %v6236
          %v6580 = vadd.f32 %v6064, %v6236
          %v6581 = vadd.f32 %v6065, %v6236
          %v6582 = vadd.f32 %v6066, %v6236
          %v6583 = vadd.f32 %v6067, %v6236
          %v6584 = vadd.f32 %v6068, %v6236
          %v6585 = vadd.f32 %v6069, %v6236
          %v6586 = vadd.f32 %v6070, %v6236
          %v6587 = vadd.f32 %v6071, %v6236
          %v6588 = vadd.f32 %v6072, %v6236
          %v6589 = vadd.f32 %v6073, %v6236
          %v6590 = vadd.f32 %v6074, %v6236
          %v6591 = vadd.f32 %v6075, %v6236
          %v6592 = vadd.f32 %v6076, %v6236
          %v6593 = vadd.f32 %v6077, %v6236
          %v6594 = vadd.f32 %v6078, %v6236
          %v6595 = vadd.f32 %v6079, %v6236
          %v6596 = vadd.f32 %v6080, %v6236
          %v6597 = vadd.f32 %v6081, %v6236
          %v6598 = vadd.f32 %v6082, %v6236
          %v6599 = vadd.f32 %v6083, %v6236
          %v6600 = vadd.f32 %v6084, %v6236
          %v6601 = vadd.f32 %v6085, %v6236
          %v6602 = vadd.f32 %v6086, %v6236
          %v6603 = vadd.f32 %v6087, %v6236
          %v6604 = vadd.f32 %v6088, %v6236
          %v6605 = vadd.f32 %v6089, %v6236
          %v6606 = vadd.f32 %v6090, %v6236
          %v6607 = vadd.f32 %v6091, %v6236
          %v6608 = vadd.f32 %v6092, %v6236
          %v6609 = vadd.f32 %v6093, %v6236
          %v6610 = vadd.f32 %v6094, %v6236
          %v6611 = vadd.f32 %v6095, %v6236
          %v6612 = vadd.f32 %v6096, %v6236
          %v6613 = vadd.f32 %v6097, %v6236
          %v6614 = vadd.f32 %v6098, %v6236
          %v6615 = vadd.f32 %v6099, %v6236
          %v6616 = vadd.f32 %v6100, %v6236
          %v6617 = vadd.f32 %v6101, %v6236
          %v6618 = vadd.f32 %v6102, %v6236
          %v6619 = vadd.f32 %v6103, %v6236
          %v6620 = vadd.f32 %v6104, %v6236
          %v6621 = vadd.f32 %v6105, %v6236
          %v6622 = vadd.f32 %v6106, %v6236
          %v6623 = vadd.f32 %v6107, %v6236
          %v6624 = vadd.f32 %v6108, %v6236
          %v6625 = vadd.f32 %v6109, %v6236
          %v6626 = vadd.f32 %v6110, %v6236
          %v6627 = vadd.f32 %v6111, %v6236
          %v6628 = vadd.f32 %v6112, %v6236
          %v6629 = vadd.f32 %v6113, %v6236
          %v6630 = vadd.f32 %v6114, %v6236
          %v6631 = vadd.f32 %v6115, %v6236
          %v6632 = vadd.f32 %v6116, %v6236
          %v6633 = vadd.f32 %v6117, %v6236
          %v6634 = vadd.f32 %v6118, %v6236
          %v6635 = vadd.f32 %v6119, %v6236
          %v6636 = vadd.f32 %v6120, %v6236
          %v6637 = vadd.f32 %v6121, %v6236
          %v6638 = vadd.f32 %v6122, %v6236
          %v6639 = vadd.f32 %v6123, %v6236
          %v6640 = vadd.f32 %v6124, %v6236
          %v6641 = vadd.f32 %v6125, %v6236
          %v6642 = vadd.f32 %v6126, %v6236
          %v6643 = vadd.f32 %v6127, %v6236
          %v6644 = vadd.f32 %v6128, %v6236
          %v6645 = vadd.f32 %v6129, %v6236
          %v6646 = vadd.f32 %v6130, %v6236
          %v6647 = vadd.f32 %v6131, %v6236
          %v6648 = vadd.f32 %v6132, %v6236
          %v6649 = vadd.f32 %v6133, %v6236
          %v6650 = vadd.f32 %v6134, %v6236
          %v6651 = vadd.f32 %v6135, %v6236
          %v6652 = vadd.f32 %v6136, %v6236
          %v6653 = vadd.f32 %v6137, %v6236
          %v6654 = vadd.f32 %v6138, %v6236
          %v6655 = vadd.f32 %v6139, %v6236
          %v6656 = vadd.f32 %v6140, %v6236
          %v6657 = vadd.f32 %v6141, %v6236
          %v6658 = vadd.f32 %v6142, %v6236
          %v6659 = vadd.f32 %v6143, %v6236
          %v6660 = vadd.f32 %v6144, %v6236
          %v6661 = vadd.f32 %v6145, %v6236
          %v6662 = vadd.f32 %v6146, %v6236
          %v6663 = vadd.f32 %v6147, %v6236
          %v6664 = vadd.f32 %v6148, %v6236
          %v6665 = vadd.f32 %v6149, %v6236
          %v6666 = vadd.f32 %v6150, %v6236
          %v6667 = vadd.f32 %v6151, %v6236
          %v6668 = vadd.f32 %v6152, %v6236
          %v6669 = vadd.f32 %v6153, %v6236
          %v6670 = vadd.f32 %v6154, %v6236
          %v6671 = vadd.f32 %v6155, %v6236
          %v6672 = vadd.f32 %v6156, %v6236
          %v6673 = vadd.f32 %v6157, %v6236
          %v6674 = vadd.f32 %v6158, %v6236
          %v6675 = vadd.f32 %v6159, %v6236
          %v6676 = vadd.f32 %v6160, %v6236
          %v6677 = vadd.f32 %v6161, %v6236
          %v6678 = vadd.f32 %v6162, %v6236
          %v6679 = vadd.f32 %v6163, %v6236
          %v6680 = vadd.f32 %v6164, %v6236
          %v6681 = vadd.f32 %v6165, %v6236
          %v6682 = vadd.f32 %v6166, %v6236
          %v6683 = vadd.f32 %v6167, %v6236
          %v6684 = vadd.f32 %v6168, %v6236
          %v6685 = vadd.f32 %v6169, %v6236
          %v6686 = vadd.f32 %v6170, %v6236
          %v6687 = vadd.f32 %v6171, %v6236
          %v6688 = vadd.f32 %v6172, %v6236
          %v6689 = vadd.f32 %v6173, %v6236
          %v6690 = vadd.f32 %v6174, %v6236
          %v6691 = vadd.f32 %v6175, %v6236
          %v6692 = vadd.f32 %v6176, %v6236
          %v6693 = vadd.f32 %v6177, %v6236
          %v6694 = vadd.f32 %v6178, %v6236
          %v6695 = vadd.f32 %v6179, %v6236
          %v6696 = vadd.f32 %v6180, %v6236
          %v6697 = vadd.f32 %v6181, %v6236
          %v6698 = vadd.f32 %v6182, %v6236
          %v6699 = vadd.f32 %v6183, %v6236
          %v6700 = vadd.f32 %v6184, %v6236
          %v6701 = vadd.f32 %v6185, %v6236
          %v6702 = vadd.f32 %v6186, %v6236
          %v6703 = vadd.f32 %v6187, %v6236
          %v6704 = vadd.f32 %v6188, %v6236
          %v6705 = vadd.f32 %v6189, %v6236
          %v6706 = vadd.f32 %v6190, %v6236
          %v6707 = vadd.f32 %v6191, %v6236
          %v6708 = vadd.f32 %v6192, %v6236
          %v6709 = vadd.f32 %v6193, %v6236
          %v6710 = vadd.f32 %v6194, %v6236
          %v6711 = vadd.f32 %v6195, %v6236
          %v6712 = vadd.f32 %v6196, %v6236
          %v6713 = vadd.f32 %v6197, %v6236
          %v6714 = vadd.f32 %v6198, %v6236
          %v6715 = vadd.f32 %v6199, %v6236
          %v6716 = vadd.f32 %v6200, %v6236
          %v6717 = vadd.f32 %v6201, %v6236
          %v6718 = vadd.f32 %v6202, %v6236
          %v6719 = vadd.f32 %v6203, %v6236
          %v6720 = vadd.f32 %v6204, %v6236
          %v6721 = vadd.f32 %v6205, %v6236
          %v6722 = vadd.f32 %v6206, %v6236
          %v6723 = vadd.f32 %v6207, %v6236
          %v6724 = vadd.f32 %v6208, %v6236
          %v6725 = vadd.f32 %v6209, %v6236
          %v6726 = vadd.f32 %v6210, %v6236
          %v6727 = vadd.f32 %v6211, %v6236
          %v6728 = vadd.f32 %v6212, %v6236
          %v6729 = vadd.f32 %v6213, %v6236
          %v6730 = vadd.f32 %v6214, %v6236
          %v6731 = vadd.f32 %v6215, %v6236
          %v6732 = vadd.f32 %v6216, %v6236
          %v6733 = vadd.f32 %v6217, %v6236
          %v6734 = vadd.f32 %v6218, %v6236
          %v6735 = vadd.f32 %v6219, %v6236
          %v6736 = vadd.f32 %v6220, %v6236
          %v6737 = vadd.f32 %v6221, %v6236
          %v6738 = vadd.f32 %v6222, %v6236
          %v6739 = vadd.f32 %v6223, %v6236
          %v6740 = vadd.f32 %v6224, %v6236
          %v6741 = vadd.f32 %v6225, %v6236
          %v6742 = vadd.f32 %v6226, %v6236
          %v6743 = vadd.f32 %v6227, %v6236
          %v6744 = vadd.f32 %v6228, %v6236
          %v6745 = vadd.f32 %v6229, %v6236
          %v6746 = vadd.f32 %v6230, %v6236
          %v6747 = vadd.f32 %v6231, %v6236
          %v6748 = vadd.f32 %v6232, %v6236
          %v6749 = vadd.f32 %v6233, %v6236
          %v6750 = vmax.f32 %v6238, 0.0
          %v6751 = vmax.f32 %v6239, 0.0
          %v6752 = vmax.f32 %v6240, 0.0
          %v6753 = vmax.f32 %v6241, 0.0
          %v6754 = vmax.f32 %v6242, 0.0
          %v6755 = vmax.f32 %v6243, 0.0
          %v6756 = vmax.f32 %v6244, 0.0
          %v6757 = vmax.f32 %v6245, 0.0
          %v6758 = vmax.f32 %v6246, 0.0
          %v6759 = vmax.f32 %v6247, 0.0
          %v6760 = vmax.f32 %v6248, 0.0
          %v6761 = vmax.f32 %v6249, 0.0
          %v6762 = vmax.f32 %v6250, 0.0
          %v6763 = vmax.f32 %v6251, 0.0
          %v6764 = vmax.f32 %v6252, 0.0
          %v6765 = vmax.f32 %v6253, 0.0
          %v6766 = vmax.f32 %v6254, 0.0
          %v6767 = vmax.f32 %v6255, 0.0
          %v6768 = vmax.f32 %v6256, 0.0
          %v6769 = vmax.f32 %v6257, 0.0
          %v6770 = vmax.f32 %v6258, 0.0
          %v6771 = vmax.f32 %v6259, 0.0
          %v6772 = vmax.f32 %v6260, 0.0
          %v6773 = vmax.f32 %v6261, 0.0
          %v6774 = vmax.f32 %v6262, 0.0
          %v6775 = vmax.f32 %v6263, 0.0
          %v6776 = vmax.f32 %v6264, 0.0
          %v6777 = vmax.f32 %v6265, 0.0
          %v6778 = vmax.f32 %v6266, 0.0
          %v6779 = vmax.f32 %v6267, 0.0
          %v6780 = vmax.f32 %v6268, 0.0
          %v6781 = vmax.f32 %v6269, 0.0
          %v6782 = vmax.f32 %v6270, 0.0
          %v6783 = vmax.f32 %v6271, 0.0
          %v6784 = vmax.f32 %v6272, 0.0
          %v6785 = vmax.f32 %v6273, 0.0
          %v6786 = vmax.f32 %v6274, 0.0
          %v6787 = vmax.f32 %v6275, 0.0
          %v6788 = vmax.f32 %v6276, 0.0
          %v6789 = vmax.f32 %v6277, 0.0
          %v6790 = vmax.f32 %v6278, 0.0
          %v6791 = vmax.f32 %v6279, 0.0
          %v6792 = vmax.f32 %v6280, 0.0
          %v6793 = vmax.f32 %v6281, 0.0
          %v6794 = vmax.f32 %v6282, 0.0
          %v6795 = vmax.f32 %v6283, 0.0
          %v6796 = vmax.f32 %v6284, 0.0
          %v6797 = vmax.f32 %v6285, 0.0
          %v6798 = vmax.f32 %v6286, 0.0
          %v6799 = vmax.f32 %v6287, 0.0
          %v6800 = vmax.f32 %v6288, 0.0
          %v6801 = vmax.f32 %v6289, 0.0
          %v6802 = vmax.f32 %v6290, 0.0
          %v6803 = vmax.f32 %v6291, 0.0
          %v6804 = vmax.f32 %v6292, 0.0
          %v6805 = vmax.f32 %v6293, 0.0
          %v6806 = vmax.f32 %v6294, 0.0
          %v6807 = vmax.f32 %v6295, 0.0
          %v6808 = vmax.f32 %v6296, 0.0
          %v6809 = vmax.f32 %v6297, 0.0
          %v6810 = vmax.f32 %v6298, 0.0
          %v6811 = vmax.f32 %v6299, 0.0
          %v6812 = vmax.f32 %v6300, 0.0
          %v6813 = vmax.f32 %v6301, 0.0
          %v6814 = vmax.f32 %v6302, 0.0
          %v6815 = vmax.f32 %v6303, 0.0
          %v6816 = vmax.f32 %v6304, 0.0
          %v6817 = vmax.f32 %v6305, 0.0
          %v6818 = vmax.f32 %v6306, 0.0
          %v6819 = vmax.f32 %v6307, 0.0
          %v6820 = vmax.f32 %v6308, 0.0
          %v6821 = vmax.f32 %v6309, 0.0
          %v6822 = vmax.f32 %v6310, 0.0
          %v6823 = vmax.f32 %v6311, 0.0
          %v6824 = vmax.f32 %v6312, 0.0
          %v6825 = vmax.f32 %v6313, 0.0
          %v6826 = vmax.f32 %v6314, 0.0
          %v6827 = vmax.f32 %v6315, 0.0
          %v6828 = vmax.f32 %v6316, 0.0
          %v6829 = vmax.f32 %v6317, 0.0
          %v6830 = vmax.f32 %v6318, 0.0
          %v6831 = vmax.f32 %v6319, 0.0
          %v6832 = vmax.f32 %v6320, 0.0
          %v6833 = vmax.f32 %v6321, 0.0
          %v6834 = vmax.f32 %v6322, 0.0
          %v6835 = vmax.f32 %v6323, 0.0
          %v6836 = vmax.f32 %v6324, 0.0
          %v6837 = vmax.f32 %v6325, 0.0
          %v6838 = vmax.f32 %v6326, 0.0
          %v6839 = vmax.f32 %v6327, 0.0
          %v6840 = vmax.f32 %v6328, 0.0
          %v6841 = vmax.f32 %v6329, 0.0
          %v6842 = vmax.f32 %v6330, 0.0
          %v6843 = vmax.f32 %v6331, 0.0
          %v6844 = vmax.f32 %v6332, 0.0
          %v6845 = vmax.f32 %v6333, 0.0
          %v6846 = vmax.f32 %v6334, 0.0
          %v6847 = vmax.f32 %v6335, 0.0
          %v6848 = vmax.f32 %v6336, 0.0
          %v6849 = vmax.f32 %v6337, 0.0
          %v6850 = vmax.f32 %v6338, 0.0
          %v6851 = vmax.f32 %v6339, 0.0
          %v6852 = vmax.f32 %v6340, 0.0
          %v6853 = vmax.f32 %v6341, 0.0
          %v6854 = vmax.f32 %v6342, 0.0
          %v6855 = vmax.f32 %v6343, 0.0
          %v6856 = vmax.f32 %v6344, 0.0
          %v6857 = vmax.f32 %v6345, 0.0
          %v6858 = vmax.f32 %v6346, 0.0
          %v6859 = vmax.f32 %v6347, 0.0
          %v6860 = vmax.f32 %v6348, 0.0
          %v6861 = vmax.f32 %v6349, 0.0
          %v6862 = vmax.f32 %v6350, 0.0
          %v6863 = vmax.f32 %v6351, 0.0
          %v6864 = vmax.f32 %v6352, 0.0
          %v6865 = vmax.f32 %v6353, 0.0
          %v6866 = vmax.f32 %v6354, 0.0
          %v6867 = vmax.f32 %v6355, 0.0
          %v6868 = vmax.f32 %v6356, 0.0
          %v6869 = vmax.f32 %v6357, 0.0
          %v6870 = vmax.f32 %v6358, 0.0
          %v6871 = vmax.f32 %v6359, 0.0
          %v6872 = vmax.f32 %v6360, 0.0
          %v6873 = vmax.f32 %v6361, 0.0
          %v6874 = vmax.f32 %v6362, 0.0
          %v6875 = vmax.f32 %v6363, 0.0
          %v6876 = vmax.f32 %v6364, 0.0
          %v6877 = vmax.f32 %v6365, 0.0
          %v6878 = vmax.f32 %v6366, 0.0
          %v6879 = vmax.f32 %v6367, 0.0
          %v6880 = vmax.f32 %v6368, 0.0
          %v6881 = vmax.f32 %v6369, 0.0
          %v6882 = vmax.f32 %v6370, 0.0
          %v6883 = vmax.f32 %v6371, 0.0
          %v6884 = vmax.f32 %v6372, 0.0
          %v6885 = vmax.f32 %v6373, 0.0
          %v6886 = vmax.f32 %v6374, 0.0
          %v6887 = vmax.f32 %v6375, 0.0
          %v6888 = vmax.f32 %v6376, 0.0
          %v6889 = vmax.f32 %v6377, 0.0
          %v6890 = vmax.f32 %v6378, 0.0
          %v6891 = vmax.f32 %v6379, 0.0
          %v6892 = vmax.f32 %v6380, 0.0
          %v6893 = vmax.f32 %v6381, 0.0
          %v6894 = vmax.f32 %v6382, 0.0
          %v6895 = vmax.f32 %v6383, 0.0
          %v6896 = vmax.f32 %v6384, 0.0
          %v6897 = vmax.f32 %v6385, 0.0
          %v6898 = vmax.f32 %v6386, 0.0
          %v6899 = vmax.f32 %v6387, 0.0
          %v6900 = vmax.f32 %v6388, 0.0
          %v6901 = vmax.f32 %v6389, 0.0
          %v6902 = vmax.f32 %v6390, 0.0
          %v6903 = vmax.f32 %v6391, 0.0
          %v6904 = vmax.f32 %v6392, 0.0
          %v6905 = vmax.f32 %v6393, 0.0
          %v6906 = vmax.f32 %v6394, 0.0
          %v6907 = vmax.f32 %v6395, 0.0
          %v6908 = vmax.f32 %v6396, 0.0
          %v6909 = vmax.f32 %v6397, 0.0
          %v6910 = vmax.f32 %v6398, 0.0
          %v6911 = vmax.f32 %v6399, 0.0
          %v6912 = vmax.f32 %v6400, 0.0
          %v6913 = vmax.f32 %v6401, 0.0
          %v6914 = vmax.f32 %v6402, 0.0
          %v6915 = vmax.f32 %v6403, 0.0
          %v6916 = vmax.f32 %v6404, 0.0
          %v6917 = vmax.f32 %v6405, 0.0
          %v6918 = vmax.f32 %v6406, 0.0
          %v6919 = vmax.f32 %v6407, 0.0
          %v6920 = vmax.f32 %v6408, 0.0
          %v6921 = vmax.f32 %v6409, 0.0
          %v6922 = vmax.f32 %v6410, 0.0
          %v6923 = vmax.f32 %v6411, 0.0
          %v6924 = vmax.f32 %v6412, 0.0
          %v6925 = vmax.f32 %v6413, 0.0
          %v6926 = vmax.f32 %v6414, 0.0
          %v6927 = vmax.f32 %v6415, 0.0
          %v6928 = vmax.f32 %v6416, 0.0
          %v6929 = vmax.f32 %v6417, 0.0
          %v6930 = vmax.f32 %v6418, 0.0
          %v6931 = vmax.f32 %v6419, 0.0
          %v6932 = vmax.f32 %v6420, 0.0
          %v6933 = vmax.f32 %v6421, 0.0
          %v6934 = vmax.f32 %v6422, 0.0
          %v6935 = vmax.f32 %v6423, 0.0
          %v6936 = vmax.f32 %v6424, 0.0
          %v6937 = vmax.f32 %v6425, 0.0
          %v6938 = vmax.f32 %v6426, 0.0
          %v6939 = vmax.f32 %v6427, 0.0
          %v6940 = vmax.f32 %v6428, 0.0
          %v6941 = vmax.f32 %v6429, 0.0
          %v6942 = vmax.f32 %v6430, 0.0
          %v6943 = vmax.f32 %v6431, 0.0
          %v6944 = vmax.f32 %v6432, 0.0
          %v6945 = vmax.f32 %v6433, 0.0
          %v6946 = vmax.f32 %v6434, 0.0
          %v6947 = vmax.f32 %v6435, 0.0
          %v6948 = vmax.f32 %v6436, 0.0
          %v6949 = vmax.f32 %v6437, 0.0
          %v6950 = vmax.f32 %v6438, 0.0
          %v6951 = vmax.f32 %v6439, 0.0
          %v6952 = vmax.f32 %v6440, 0.0
          %v6953 = vmax.f32 %v6441, 0.0
          %v6954 = vmax.f32 %v6442, 0.0
          %v6955 = vmax.f32 %v6443, 0.0
          %v6956 = vmax.f32 %v6444, 0.0
          %v6957 = vmax.f32 %v6445, 0.0
          %v6958 = vmax.f32 %v6446, 0.0
          %v6959 = vmax.f32 %v6447, 0.0
          %v6960 = vmax.f32 %v6448, 0.0
          %v6961 = vmax.f32 %v6449, 0.0
          %v6962 = vmax.f32 %v6450, 0.0
          %v6963 = vmax.f32 %v6451, 0.0
          %v6964 = vmax.f32 %v6452, 0.0
          %v6965 = vmax.f32 %v6453, 0.0
          %v6966 = vmax.f32 %v6454, 0.0
          %v6967 = vmax.f32 %v6455, 0.0
          %v6968 = vmax.f32 %v6456, 0.0
          %v6969 = vmax.f32 %v6457, 0.0
          %v6970 = vmax.f32 %v6458, 0.0
          %v6971 = vmax.f32 %v6459, 0.0
          %v6972 = vmax.f32 %v6460, 0.0
          %v6973 = vmax.f32 %v6461, 0.0
          %v6974 = vmax.f32 %v6462, 0.0
          %v6975 = vmax.f32 %v6463, 0.0
          %v6976 = vmax.f32 %v6464, 0.0
          %v6977 = vmax.f32 %v6465, 0.0
          %v6978 = vmax.f32 %v6466, 0.0
          %v6979 = vmax.f32 %v6467, 0.0
          %v6980 = vmax.f32 %v6468, 0.0
          %v6981 = vmax.f32 %v6469, 0.0
          %v6982 = vmax.f32 %v6470, 0.0
          %v6983 = vmax.f32 %v6471, 0.0
          %v6984 = vmax.f32 %v6472, 0.0
          %v6985 = vmax.f32 %v6473, 0.0
          %v6986 = vmax.f32 %v6474, 0.0
          %v6987 = vmax.f32 %v6475, 0.0
          %v6988 = vmax.f32 %v6476, 0.0
          %v6989 = vmax.f32 %v6477, 0.0
          %v6990 = vmax.f32 %v6478, 0.0
          %v6991 = vmax.f32 %v6479, 0.0
          %v6992 = vmax.f32 %v6480, 0.0
          %v6993 = vmax.f32 %v6481, 0.0
          %v6994 = vmax.f32 %v6482, 0.0
          %v6995 = vmax.f32 %v6483, 0.0
          %v6996 = vmax.f32 %v6484, 0.0
          %v6997 = vmax.f32 %v6485, 0.0
          %v6998 = vmax.f32 %v6486, 0.0
          %v6999 = vmax.f32 %v6487, 0.0
          %v7000 = vmax.f32 %v6488, 0.0
          %v7001 = vmax.f32 %v6489, 0.0
          %v7002 = vmax.f32 %v6490, 0.0
          %v7003 = vmax.f32 %v6491, 0.0
          %v7004 = vmax.f32 %v6492, 0.0
          %v7005 = vmax.f32 %v6493, 0.0
          %v7006 = vmax.f32 %v6494, 0.0
          %v7007 = vmax.f32 %v6495, 0.0
          %v7008 = vmax.f32 %v6496, 0.0
          %v7009 = vmax.f32 %v6497, 0.0
          %v7010 = vmax.f32 %v6498, 0.0
          %v7011 = vmax.f32 %v6499, 0.0
          %v7012 = vmax.f32 %v6500, 0.0
          %v7013 = vmax.f32 %v6501, 0.0
          %v7014 = vmax.f32 %v6502, 0.0
          %v7015 = vmax.f32 %v6503, 0.0
          %v7016 = vmax.f32 %v6504, 0.0
          %v7017 = vmax.f32 %v6505, 0.0
          %v7018 = vmax.f32 %v6506, 0.0
          %v7019 = vmax.f32 %v6507, 0.0
          %v7020 = vmax.f32 %v6508, 0.0
          %v7021 = vmax.f32 %v6509, 0.0
          %v7022 = vmax.f32 %v6510, 0.0
          %v7023 = vmax.f32 %v6511, 0.0
          %v7024 = vmax.f32 %v6512, 0.0
          %v7025 = vmax.f32 %v6513, 0.0
          %v7026 = vmax.f32 %v6514, 0.0
          %v7027 = vmax.f32 %v6515, 0.0
          %v7028 = vmax.f32 %v6516, 0.0
          %v7029 = vmax.f32 %v6517, 0.0
          %v7030 = vmax.f32 %v6518, 0.0
          %v7031 = vmax.f32 %v6519, 0.0
          %v7032 = vmax.f32 %v6520, 0.0
          %v7033 = vmax.f32 %v6521, 0.0
          %v7034 = vmax.f32 %v6522, 0.0
          %v7035 = vmax.f32 %v6523, 0.0
          %v7036 = vmax.f32 %v6524, 0.0
          %v7037 = vmax.f32 %v6525, 0.0
          %v7038 = vmax.f32 %v6526, 0.0
          %v7039 = vmax.f32 %v6527, 0.0
          %v7040 = vmax.f32 %v6528, 0.0
          %v7041 = vmax.f32 %v6529, 0.0
          %v7042 = vmax.f32 %v6530, 0.0
          %v7043 = vmax.f32 %v6531, 0.0
          %v7044 = vmax.f32 %v6532, 0.0
          %v7045 = vmax.f32 %v6533, 0.0
          %v7046 = vmax.f32 %v6534, 0.0
          %v7047 = vmax.f32 %v6535, 0.0
          %v7048 = vmax.f32 %v6536, 0.0
          %v7049 = vmax.f32 %v6537, 0.0
          %v7050 = vmax.f32 %v6538, 0.0
          %v7051 = vmax.f32 %v6539, 0.0
          %v7052 = vmax.f32 %v6540, 0.0
          %v7053 = vmax.f32 %v6541, 0.0
          %v7054 = vmax.f32 %v6542, 0.0
          %v7055 = vmax.f32 %v6543, 0.0
          %v7056 = vmax.f32 %v6544, 0.0
          %v7057 = vmax.f32 %v6545, 0.0
          %v7058 = vmax.f32 %v6546, 0.0
          %v7059 = vmax.f32 %v6547, 0.0
          %v7060 = vmax.f32 %v6548, 0.0
          %v7061 = vmax.f32 %v6549, 0.0
          %v7062 = vmax.f32 %v6550, 0.0
          %v7063 = vmax.f32 %v6551, 0.0
          %v7064 = vmax.f32 %v6552, 0.0
          %v7065 = vmax.f32 %v6553, 0.0
          %v7066 = vmax.f32 %v6554, 0.0
          %v7067 = vmax.f32 %v6555, 0.0
          %v7068 = vmax.f32 %v6556, 0.0
          %v7069 = vmax.f32 %v6557, 0.0
          %v7070 = vmax.f32 %v6558, 0.0
          %v7071 = vmax.f32 %v6559, 0.0
          %v7072 = vmax.f32 %v6560, 0.0
          %v7073 = vmax.f32 %v6561, 0.0
          %v7074 = vmax.f32 %v6562, 0.0
          %v7075 = vmax.f32 %v6563, 0.0
          %v7076 = vmax.f32 %v6564, 0.0
          %v7077 = vmax.f32 %v6565, 0.0
          %v7078 = vmax.f32 %v6566, 0.0
          %v7079 = vmax.f32 %v6567, 0.0
          %v7080 = vmax.f32 %v6568, 0.0
          %v7081 = vmax.f32 %v6569, 0.0
          %v7082 = vmax.f32 %v6570, 0.0
          %v7083 = vmax.f32 %v6571, 0.0
          %v7084 = vmax.f32 %v6572, 0.0
          %v7085 = vmax.f32 %v6573, 0.0
          %v7086 = vmax.f32 %v6574, 0.0
          %v7087 = vmax.f32 %v6575, 0.0
          %v7088 = vmax.f32 %v6576, 0.0
          %v7089 = vmax.f32 %v6577, 0.0
          %v7090 = vmax.f32 %v6578, 0.0
          %v7091 = vmax.f32 %v6579, 0.0
          %v7092 = vmax.f32 %v6580, 0.0
          %v7093 = vmax.f32 %v6581, 0.0
          %v7094 = vmax.f32 %v6582, 0.0
          %v7095 = vmax.f32 %v6583, 0.0
          %v7096 = vmax.f32 %v6584, 0.0
          %v7097 = vmax.f32 %v6585, 0.0
          %v7098 = vmax.f32 %v6586, 0.0
          %v7099 = vmax.f32 %v6587, 0.0
          %v7100 = vmax.f32 %v6588, 0.0
          %v7101 = vmax.f32 %v6589, 0.0
          %v7102 = vmax.f32 %v6590, 0.0
          %v7103 = vmax.f32 %v6591, 0.0
          %v7104 = vmax.f32 %v6592, 0.0
          %v7105 = vmax.f32 %v6593, 0.0
          %v7106 = vmax.f32 %v6594, 0.0
          %v7107 = vmax.f32 %v6595, 0.0
          %v7108 = vmax.f32 %v6596, 0.0
          %v7109 = vmax.f32 %v6597, 0.0
          %v7110 = vmax.f32 %v6598, 0.0
          %v7111 = vmax.f32 %v6599, 0.0
          %v7112 = vmax.f32 %v6600, 0.0
          %v7113 = vmax.f32 %v6601, 0.0
          %v7114 = vmax.f32 %v6602, 0.0
          %v7115 = vmax.f32 %v6603, 0.0
          %v7116 = vmax.f32 %v6604, 0.0
          %v7117 = vmax.f32 %v6605, 0.0
          %v7118 = vmax.f32 %v6606, 0.0
          %v7119 = vmax.f32 %v6607, 0.0
          %v7120 = vmax.f32 %v6608, 0.0
          %v7121 = vmax.f32 %v6609, 0.0
          %v7122 = vmax.f32 %v6610, 0.0
          %v7123 = vmax.f32 %v6611, 0.0
          %v7124 = vmax.f32 %v6612, 0.0
          %v7125 = vmax.f32 %v6613, 0.0
          %v7126 = vmax.f32 %v6614, 0.0
          %v7127 = vmax.f32 %v6615, 0.0
          %v7128 = vmax.f32 %v6616, 0.0
          %v7129 = vmax.f32 %v6617, 0.0
          %v7130 = vmax.f32 %v6618, 0.0
          %v7131 = vmax.f32 %v6619, 0.0
          %v7132 = vmax.f32 %v6620, 0.0
          %v7133 = vmax.f32 %v6621, 0.0
          %v7134 = vmax.f32 %v6622, 0.0
          %v7135 = vmax.f32 %v6623, 0.0
          %v7136 = vmax.f32 %v6624, 0.0
          %v7137 = vmax.f32 %v6625, 0.0
          %v7138 = vmax.f32 %v6626, 0.0
          %v7139 = vmax.f32 %v6627, 0.0
          %v7140 = vmax.f32 %v6628, 0.0
          %v7141 = vmax.f32 %v6629, 0.0
          %v7142 = vmax.f32 %v6630, 0.0
          %v7143 = vmax.f32 %v6631, 0.0
          %v7144 = vmax.f32 %v6632, 0.0
          %v7145 = vmax.f32 %v6633, 0.0
          %v7146 = vmax.f32 %v6634, 0.0
          %v7147 = vmax.f32 %v6635, 0.0
          %v7148 = vmax.f32 %v6636, 0.0
          %v7149 = vmax.f32 %v6637, 0.0
          %v7150 = vmax.f32 %v6638, 0.0
          %v7151 = vmax.f32 %v6639, 0.0
          %v7152 = vmax.f32 %v6640, 0.0
          %v7153 = vmax.f32 %v6641, 0.0
          %v7154 = vmax.f32 %v6642, 0.0
          %v7155 = vmax.f32 %v6643, 0.0
          %v7156 = vmax.f32 %v6644, 0.0
          %v7157 = vmax.f32 %v6645, 0.0
          %v7158 = vmax.f32 %v6646, 0.0
          %v7159 = vmax.f32 %v6647, 0.0
          %v7160 = vmax.f32 %v6648, 0.0
          %v7161 = vmax.f32 %v6649, 0.0
          %v7162 = vmax.f32 %v6650, 0.0
          %v7163 = vmax.f32 %v6651, 0.0
          %v7164 = vmax.f32 %v6652, 0.0
          %v7165 = vmax.f32 %v6653, 0.0
          %v7166 = vmax.f32 %v6654, 0.0
          %v7167 = vmax.f32 %v6655, 0.0
          %v7168 = vmax.f32 %v6656, 0.0
          %v7169 = vmax.f32 %v6657, 0.0
          %v7170 = vmax.f32 %v6658, 0.0
          %v7171 = vmax.f32 %v6659, 0.0
          %v7172 = vmax.f32 %v6660, 0.0
          %v7173 = vmax.f32 %v6661, 0.0
          %v7174 = vmax.f32 %v6662, 0.0
          %v7175 = vmax.f32 %v6663, 0.0
          %v7176 = vmax.f32 %v6664, 0.0
          %v7177 = vmax.f32 %v6665, 0.0
          %v7178 = vmax.f32 %v6666, 0.0
          %v7179 = vmax.f32 %v6667, 0.0
          %v7180 = vmax.f32 %v6668, 0.0
          %v7181 = vmax.f32 %v6669, 0.0
          %v7182 = vmax.f32 %v6670, 0.0
          %v7183 = vmax.f32 %v6671, 0.0
          %v7184 = vmax.f32 %v6672, 0.0
          %v7185 = vmax.f32 %v6673, 0.0
          %v7186 = vmax.f32 %v6674, 0.0
          %v7187 = vmax.f32 %v6675, 0.0
          %v7188 = vmax.f32 %v6676, 0.0
          %v7189 = vmax.f32 %v6677, 0.0
          %v7190 = vmax.f32 %v6678, 0.0
          %v7191 = vmax.f32 %v6679, 0.0
          %v7192 = vmax.f32 %v6680, 0.0
          %v7193 = vmax.f32 %v6681, 0.0
          %v7194 = vmax.f32 %v6682, 0.0
          %v7195 = vmax.f32 %v6683, 0.0
          %v7196 = vmax.f32 %v6684, 0.0
          %v7197 = vmax.f32 %v6685, 0.0
          %v7198 = vmax.f32 %v6686, 0.0
          %v7199 = vmax.f32 %v6687, 0.0
          %v7200 = vmax.f32 %v6688, 0.0
          %v7201 = vmax.f32 %v6689, 0.0
          %v7202 = vmax.f32 %v6690, 0.0
          %v7203 = vmax.f32 %v6691, 0.0
          %v7204 = vmax.f32 %v6692, 0.0
          %v7205 = vmax.f32 %v6693, 0.0
          %v7206 = vmax.f32 %v6694, 0.0
          %v7207 = vmax.f32 %v6695, 0.0
          %v7208 = vmax.f32 %v6696, 0.0
          %v7209 = vmax.f32 %v6697, 0.0
          %v7210 = vmax.f32 %v6698, 0.0
          %v7211 = vmax.f32 %v6699, 0.0
          %v7212 = vmax.f32 %v6700, 0.0
          %v7213 = vmax.f32 %v6701, 0.0
          %v7214 = vmax.f32 %v6702, 0.0
          %v7215 = vmax.f32 %v6703, 0.0
          %v7216 = vmax.f32 %v6704, 0.0
          %v7217 = vmax.f32 %v6705, 0.0
          %v7218 = vmax.f32 %v6706, 0.0
          %v7219 = vmax.f32 %v6707, 0.0
          %v7220 = vmax.f32 %v6708, 0.0
          %v7221 = vmax.f32 %v6709, 0.0
          %v7222 = vmax.f32 %v6710, 0.0
          %v7223 = vmax.f32 %v6711, 0.0
          %v7224 = vmax.f32 %v6712, 0.0
          %v7225 = vmax.f32 %v6713, 0.0
          %v7226 = vmax.f32 %v6714, 0.0
          %v7227 = vmax.f32 %v6715, 0.0
          %v7228 = vmax.f32 %v6716, 0.0
          %v7229 = vmax.f32 %v6717, 0.0
          %v7230 = vmax.f32 %v6718, 0.0
          %v7231 = vmax.f32 %v6719, 0.0
          %v7232 = vmax.f32 %v6720, 0.0
          %v7233 = vmax.f32 %v6721, 0.0
          %v7234 = vmax.f32 %v6722, 0.0
          %v7235 = vmax.f32 %v6723, 0.0
          %v7236 = vmax.f32 %v6724, 0.0
          %v7237 = vmax.f32 %v6725, 0.0
          %v7238 = vmax.f32 %v6726, 0.0
          %v7239 = vmax.f32 %v6727, 0.0
          %v7240 = vmax.f32 %v6728, 0.0
          %v7241 = vmax.f32 %v6729, 0.0
          %v7242 = vmax.f32 %v6730, 0.0
          %v7243 = vmax.f32 %v6731, 0.0
          %v7244 = vmax.f32 %v6732, 0.0
          %v7245 = vmax.f32 %v6733, 0.0
          %v7246 = vmax.f32 %v6734, 0.0
          %v7247 = vmax.f32 %v6735, 0.0
          %v7248 = vmax.f32 %v6736, 0.0
          %v7249 = vmax.f32 %v6737, 0.0
          %v7250 = vmax.f32 %v6738, 0.0
          %v7251 = vmax.f32 %v6739, 0.0
          %v7252 = vmax.f32 %v6740, 0.0
          %v7253 = vmax.f32 %v6741, 0.0
          %v7254 = vmax.f32 %v6742, 0.0
          %v7255 = vmax.f32 %v6743, 0.0
          %v7256 = vmax.f32 %v6744, 0.0
          %v7257 = vmax.f32 %v6745, 0.0
          %v7258 = vmax.f32 %v6746, 0.0
          %v7259 = vmax.f32 %v6747, 0.0
          %v7260 = vmax.f32 %v6748, 0.0
          %v7261 = vmax.f32 %v6749, 0.0
          %v7262 = vpack.c.bf16 %v6750, %v6750
          %v7263 = vpack.c.bf16 %v6751, %v6751
          %v7264 = vpack.c.bf16 %v6752, %v6752
          %v7265 = vpack.c.bf16 %v6753, %v6753
          %v7266 = vpack.c.bf16 %v6754, %v6754
          %v7267 = vpack.c.bf16 %v6755, %v6755
          %v7268 = vpack.c.bf16 %v6756, %v6756
          %v7269 = vpack.c.bf16 %v6757, %v6757
          %v7270 = vpack.c.bf16 %v6758, %v6758
          %v7271 = vpack.c.bf16 %v6759, %v6759
          %v7272 = vpack.c.bf16 %v6760, %v6760
          %v7273 = vpack.c.bf16 %v6761, %v6761
          %v7274 = vpack.c.bf16 %v6762, %v6762
          %v7275 = vpack.c.bf16 %v6763, %v6763
          %v7276 = vpack.c.bf16 %v6764, %v6764
          %v7277 = vpack.c.bf16 %v6765, %v6765
          %v7278 = vpack.c.bf16 %v6766, %v6766
          %v7279 = vpack.c.bf16 %v6767, %v6767
          %v7280 = vpack.c.bf16 %v6768, %v6768
          %v7281 = vpack.c.bf16 %v6769, %v6769
          %v7282 = vpack.c.bf16 %v6770, %v6770
          %v7283 = vpack.c.bf16 %v6771, %v6771
          %v7284 = vpack.c.bf16 %v6772, %v6772
          %v7285 = vpack.c.bf16 %v6773, %v6773
          %v7286 = vpack.c.bf16 %v6774, %v6774
          %v7287 = vpack.c.bf16 %v6775, %v6775
          %v7288 = vpack.c.bf16 %v6776, %v6776
          %v7289 = vpack.c.bf16 %v6777, %v6777
          %v7290 = vpack.c.bf16 %v6778, %v6778
          %v7291 = vpack.c.bf16 %v6779, %v6779
          %v7292 = vpack.c.bf16 %v6780, %v6780
          %v7293 = vpack.c.bf16 %v6781, %v6781
          %v7294 = vpack.c.bf16 %v6782, %v6782
          %v7295 = vpack.c.bf16 %v6783, %v6783
          %v7296 = vpack.c.bf16 %v6784, %v6784
          %v7297 = vpack.c.bf16 %v6785, %v6785
          %v7298 = vpack.c.bf16 %v6786, %v6786
          %v7299 = vpack.c.bf16 %v6787, %v6787
          %v7300 = vpack.c.bf16 %v6788, %v6788
          %v7301 = vpack.c.bf16 %v6789, %v6789
          %v7302 = vpack.c.bf16 %v6790, %v6790
          %v7303 = vpack.c.bf16 %v6791, %v6791
          %v7304 = vpack.c.bf16 %v6792, %v6792
          %v7305 = vpack.c.bf16 %v6793, %v6793
          %v7306 = vpack.c.bf16 %v6794, %v6794
          %v7307 = vpack.c.bf16 %v6795, %v6795
          %v7308 = vpack.c.bf16 %v6796, %v6796
          %v7309 = vpack.c.bf16 %v6797, %v6797
          %v7310 = vpack.c.bf16 %v6798, %v6798
          %v7311 = vpack.c.bf16 %v6799, %v6799
          %v7312 = vpack.c.bf16 %v6800, %v6800
          %v7313 = vpack.c.bf16 %v6801, %v6801
          %v7314 = vpack.c.bf16 %v6802, %v6802
          %v7315 = vpack.c.bf16 %v6803, %v6803
          %v7316 = vpack.c.bf16 %v6804, %v6804
          %v7317 = vpack.c.bf16 %v6805, %v6805
          %v7318 = vpack.c.bf16 %v6806, %v6806
          %v7319 = vpack.c.bf16 %v6807, %v6807
          %v7320 = vpack.c.bf16 %v6808, %v6808
          %v7321 = vpack.c.bf16 %v6809, %v6809
          %v7322 = vpack.c.bf16 %v6810, %v6810
          %v7323 = vpack.c.bf16 %v6811, %v6811
          %v7324 = vpack.c.bf16 %v6812, %v6812
          %v7325 = vpack.c.bf16 %v6813, %v6813
          %v7326 = vpack.c.bf16 %v6814, %v6814
          %v7327 = vpack.c.bf16 %v6815, %v6815
          %v7328 = vpack.c.bf16 %v6816, %v6816
          %v7329 = vpack.c.bf16 %v6817, %v6817
          %v7330 = vpack.c.bf16 %v6818, %v6818
          %v7331 = vpack.c.bf16 %v6819, %v6819
          %v7332 = vpack.c.bf16 %v6820, %v6820
          %v7333 = vpack.c.bf16 %v6821, %v6821
          %v7334 = vpack.c.bf16 %v6822, %v6822
          %v7335 = vpack.c.bf16 %v6823, %v6823
          %v7336 = vpack.c.bf16 %v6824, %v6824
          %v7337 = vpack.c.bf16 %v6825, %v6825
          %v7338 = vpack.c.bf16 %v6826, %v6826
          %v7339 = vpack.c.bf16 %v6827, %v6827
          %v7340 = vpack.c.bf16 %v6828, %v6828
          %v7341 = vpack.c.bf16 %v6829, %v6829
          %v7342 = vpack.c.bf16 %v6830, %v6830
          %v7343 = vpack.c.bf16 %v6831, %v6831
          %v7344 = vpack.c.bf16 %v6832, %v6832
          %v7345 = vpack.c.bf16 %v6833, %v6833
          %v7346 = vpack.c.bf16 %v6834, %v6834
          %v7347 = vpack.c.bf16 %v6835, %v6835
          %v7348 = vpack.c.bf16 %v6836, %v6836
          %v7349 = vpack.c.bf16 %v6837, %v6837
          %v7350 = vpack.c.bf16 %v6838, %v6838
          %v7351 = vpack.c.bf16 %v6839, %v6839
          %v7352 = vpack.c.bf16 %v6840, %v6840
          %v7353 = vpack.c.bf16 %v6841, %v6841
          %v7354 = vpack.c.bf16 %v6842, %v6842
          %v7355 = vpack.c.bf16 %v6843, %v6843
          %v7356 = vpack.c.bf16 %v6844, %v6844
          %v7357 = vpack.c.bf16 %v6845, %v6845
          %v7358 = vpack.c.bf16 %v6846, %v6846
          %v7359 = vpack.c.bf16 %v6847, %v6847
          %v7360 = vpack.c.bf16 %v6848, %v6848
          %v7361 = vpack.c.bf16 %v6849, %v6849
          %v7362 = vpack.c.bf16 %v6850, %v6850
          %v7363 = vpack.c.bf16 %v6851, %v6851
          %v7364 = vpack.c.bf16 %v6852, %v6852
          %v7365 = vpack.c.bf16 %v6853, %v6853
          %v7366 = vpack.c.bf16 %v6854, %v6854
          %v7367 = vpack.c.bf16 %v6855, %v6855
          %v7368 = vpack.c.bf16 %v6856, %v6856
          %v7369 = vpack.c.bf16 %v6857, %v6857
          %v7370 = vpack.c.bf16 %v6858, %v6858
          %v7371 = vpack.c.bf16 %v6859, %v6859
          %v7372 = vpack.c.bf16 %v6860, %v6860
          %v7373 = vpack.c.bf16 %v6861, %v6861
          %v7374 = vpack.c.bf16 %v6862, %v6862
          %v7375 = vpack.c.bf16 %v6863, %v6863
          %v7376 = vpack.c.bf16 %v6864, %v6864
          %v7377 = vpack.c.bf16 %v6865, %v6865
          %v7378 = vpack.c.bf16 %v6866, %v6866
          %v7379 = vpack.c.bf16 %v6867, %v6867
          %v7380 = vpack.c.bf16 %v6868, %v6868
          %v7381 = vpack.c.bf16 %v6869, %v6869
          %v7382 = vpack.c.bf16 %v6870, %v6870
          %v7383 = vpack.c.bf16 %v6871, %v6871
          %v7384 = vpack.c.bf16 %v6872, %v6872
          %v7385 = vpack.c.bf16 %v6873, %v6873
          %v7386 = vpack.c.bf16 %v6874, %v6874
          %v7387 = vpack.c.bf16 %v6875, %v6875
          %v7388 = vpack.c.bf16 %v6876, %v6876
          %v7389 = vpack.c.bf16 %v6877, %v6877
          %v7390 = vpack.c.bf16 %v6878, %v6878
          %v7391 = vpack.c.bf16 %v6879, %v6879
          %v7392 = vpack.c.bf16 %v6880, %v6880
          %v7393 = vpack.c.bf16 %v6881, %v6881
          %v7394 = vpack.c.bf16 %v6882, %v6882
          %v7395 = vpack.c.bf16 %v6883, %v6883
          %v7396 = vpack.c.bf16 %v6884, %v6884
          %v7397 = vpack.c.bf16 %v6885, %v6885
          %v7398 = vpack.c.bf16 %v6886, %v6886
          %v7399 = vpack.c.bf16 %v6887, %v6887
          %v7400 = vpack.c.bf16 %v6888, %v6888
          %v7401 = vpack.c.bf16 %v6889, %v6889
          %v7402 = vpack.c.bf16 %v6890, %v6890
          %v7403 = vpack.c.bf16 %v6891, %v6891
          %v7404 = vpack.c.bf16 %v6892, %v6892
          %v7405 = vpack.c.bf16 %v6893, %v6893
          %v7406 = vpack.c.bf16 %v6894, %v6894
          %v7407 = vpack.c.bf16 %v6895, %v6895
          %v7408 = vpack.c.bf16 %v6896, %v6896
          %v7409 = vpack.c.bf16 %v6897, %v6897
          %v7410 = vpack.c.bf16 %v6898, %v6898
          %v7411 = vpack.c.bf16 %v6899, %v6899
          %v7412 = vpack.c.bf16 %v6900, %v6900
          %v7413 = vpack.c.bf16 %v6901, %v6901
          %v7414 = vpack.c.bf16 %v6902, %v6902
          %v7415 = vpack.c.bf16 %v6903, %v6903
          %v7416 = vpack.c.bf16 %v6904, %v6904
          %v7417 = vpack.c.bf16 %v6905, %v6905
          %v7418 = vpack.c.bf16 %v6906, %v6906
          %v7419 = vpack.c.bf16 %v6907, %v6907
          %v7420 = vpack.c.bf16 %v6908, %v6908
          %v7421 = vpack.c.bf16 %v6909, %v6909
          %v7422 = vpack.c.bf16 %v6910, %v6910
          %v7423 = vpack.c.bf16 %v6911, %v6911
          %v7424 = vpack.c.bf16 %v6912, %v6912
          %v7425 = vpack.c.bf16 %v6913, %v6913
          %v7426 = vpack.c.bf16 %v6914, %v6914
          %v7427 = vpack.c.bf16 %v6915, %v6915
          %v7428 = vpack.c.bf16 %v6916, %v6916
          %v7429 = vpack.c.bf16 %v6917, %v6917
          %v7430 = vpack.c.bf16 %v6918, %v6918
          %v7431 = vpack.c.bf16 %v6919, %v6919
          %v7432 = vpack.c.bf16 %v6920, %v6920
          %v7433 = vpack.c.bf16 %v6921, %v6921
          %v7434 = vpack.c.bf16 %v6922, %v6922
          %v7435 = vpack.c.bf16 %v6923, %v6923
          %v7436 = vpack.c.bf16 %v6924, %v6924
          %v7437 = vpack.c.bf16 %v6925, %v6925
          %v7438 = vpack.c.bf16 %v6926, %v6926
          %v7439 = vpack.c.bf16 %v6927, %v6927
          %v7440 = vpack.c.bf16 %v6928, %v6928
          %v7441 = vpack.c.bf16 %v6929, %v6929
          %v7442 = vpack.c.bf16 %v6930, %v6930
          %v7443 = vpack.c.bf16 %v6931, %v6931
          %v7444 = vpack.c.bf16 %v6932, %v6932
          %v7445 = vpack.c.bf16 %v6933, %v6933
          %v7446 = vpack.c.bf16 %v6934, %v6934
          %v7447 = vpack.c.bf16 %v6935, %v6935
          %v7448 = vpack.c.bf16 %v6936, %v6936
          %v7449 = vpack.c.bf16 %v6937, %v6937
          %v7450 = vpack.c.bf16 %v6938, %v6938
          %v7451 = vpack.c.bf16 %v6939, %v6939
          %v7452 = vpack.c.bf16 %v6940, %v6940
          %v7453 = vpack.c.bf16 %v6941, %v6941
          %v7454 = vpack.c.bf16 %v6942, %v6942
          %v7455 = vpack.c.bf16 %v6943, %v6943
          %v7456 = vpack.c.bf16 %v6944, %v6944
          %v7457 = vpack.c.bf16 %v6945, %v6945
          %v7458 = vpack.c.bf16 %v6946, %v6946
          %v7459 = vpack.c.bf16 %v6947, %v6947
          %v7460 = vpack.c.bf16 %v6948, %v6948
          %v7461 = vpack.c.bf16 %v6949, %v6949
          %v7462 = vpack.c.bf16 %v6950, %v6950
          %v7463 = vpack.c.bf16 %v6951, %v6951
          %v7464 = vpack.c.bf16 %v6952, %v6952
          %v7465 = vpack.c.bf16 %v6953, %v6953
          %v7466 = vpack.c.bf16 %v6954, %v6954
          %v7467 = vpack.c.bf16 %v6955, %v6955
          %v7468 = vpack.c.bf16 %v6956, %v6956
          %v7469 = vpack.c.bf16 %v6957, %v6957
          %v7470 = vpack.c.bf16 %v6958, %v6958
          %v7471 = vpack.c.bf16 %v6959, %v6959
          %v7472 = vpack.c.bf16 %v6960, %v6960
          %v7473 = vpack.c.bf16 %v6961, %v6961
          %v7474 = vpack.c.bf16 %v6962, %v6962
          %v7475 = vpack.c.bf16 %v6963, %v6963
          %v7476 = vpack.c.bf16 %v6964, %v6964
          %v7477 = vpack.c.bf16 %v6965, %v6965
          %v7478 = vpack.c.bf16 %v6966, %v6966
          %v7479 = vpack.c.bf16 %v6967, %v6967
          %v7480 = vpack.c.bf16 %v6968, %v6968
          %v7481 = vpack.c.bf16 %v6969, %v6969
          %v7482 = vpack.c.bf16 %v6970, %v6970
          %v7483 = vpack.c.bf16 %v6971, %v6971
          %v7484 = vpack.c.bf16 %v6972, %v6972
          %v7485 = vpack.c.bf16 %v6973, %v6973
          %v7486 = vpack.c.bf16 %v6974, %v6974
          %v7487 = vpack.c.bf16 %v6975, %v6975
          %v7488 = vpack.c.bf16 %v6976, %v6976
          %v7489 = vpack.c.bf16 %v6977, %v6977
          %v7490 = vpack.c.bf16 %v6978, %v6978
          %v7491 = vpack.c.bf16 %v6979, %v6979
          %v7492 = vpack.c.bf16 %v6980, %v6980
          %v7493 = vpack.c.bf16 %v6981, %v6981
          %v7494 = vpack.c.bf16 %v6982, %v6982
          %v7495 = vpack.c.bf16 %v6983, %v6983
          %v7496 = vpack.c.bf16 %v6984, %v6984
          %v7497 = vpack.c.bf16 %v6985, %v6985
          %v7498 = vpack.c.bf16 %v6986, %v6986
          %v7499 = vpack.c.bf16 %v6987, %v6987
          %v7500 = vpack.c.bf16 %v6988, %v6988
          %v7501 = vpack.c.bf16 %v6989, %v6989
          %v7502 = vpack.c.bf16 %v6990, %v6990
          %v7503 = vpack.c.bf16 %v6991, %v6991
          %v7504 = vpack.c.bf16 %v6992, %v6992
          %v7505 = vpack.c.bf16 %v6993, %v6993
          %v7506 = vpack.c.bf16 %v6994, %v6994
          %v7507 = vpack.c.bf16 %v6995, %v6995
          %v7508 = vpack.c.bf16 %v6996, %v6996
          %v7509 = vpack.c.bf16 %v6997, %v6997
          %v7510 = vpack.c.bf16 %v6998, %v6998
          %v7511 = vpack.c.bf16 %v6999, %v6999
          %v7512 = vpack.c.bf16 %v7000, %v7000
          %v7513 = vpack.c.bf16 %v7001, %v7001
          %v7514 = vpack.c.bf16 %v7002, %v7002
          %v7515 = vpack.c.bf16 %v7003, %v7003
          %v7516 = vpack.c.bf16 %v7004, %v7004
          %v7517 = vpack.c.bf16 %v7005, %v7005
          %v7518 = vpack.c.bf16 %v7006, %v7006
          %v7519 = vpack.c.bf16 %v7007, %v7007
          %v7520 = vpack.c.bf16 %v7008, %v7008
          %v7521 = vpack.c.bf16 %v7009, %v7009
          %v7522 = vpack.c.bf16 %v7010, %v7010
          %v7523 = vpack.c.bf16 %v7011, %v7011
          %v7524 = vpack.c.bf16 %v7012, %v7012
          %v7525 = vpack.c.bf16 %v7013, %v7013
          %v7526 = vpack.c.bf16 %v7014, %v7014
          %v7527 = vpack.c.bf16 %v7015, %v7015
          %v7528 = vpack.c.bf16 %v7016, %v7016
          %v7529 = vpack.c.bf16 %v7017, %v7017
          %v7530 = vpack.c.bf16 %v7018, %v7018
          %v7531 = vpack.c.bf16 %v7019, %v7019
          %v7532 = vpack.c.bf16 %v7020, %v7020
          %v7533 = vpack.c.bf16 %v7021, %v7021
          %v7534 = vpack.c.bf16 %v7022, %v7022
          %v7535 = vpack.c.bf16 %v7023, %v7023
          %v7536 = vpack.c.bf16 %v7024, %v7024
          %v7537 = vpack.c.bf16 %v7025, %v7025
          %v7538 = vpack.c.bf16 %v7026, %v7026
          %v7539 = vpack.c.bf16 %v7027, %v7027
          %v7540 = vpack.c.bf16 %v7028, %v7028
          %v7541 = vpack.c.bf16 %v7029, %v7029
          %v7542 = vpack.c.bf16 %v7030, %v7030
          %v7543 = vpack.c.bf16 %v7031, %v7031
          %v7544 = vpack.c.bf16 %v7032, %v7032
          %v7545 = vpack.c.bf16 %v7033, %v7033
          %v7546 = vpack.c.bf16 %v7034, %v7034
          %v7547 = vpack.c.bf16 %v7035, %v7035
          %v7548 = vpack.c.bf16 %v7036, %v7036
          %v7549 = vpack.c.bf16 %v7037, %v7037
          %v7550 = vpack.c.bf16 %v7038, %v7038
          %v7551 = vpack.c.bf16 %v7039, %v7039
          %v7552 = vpack.c.bf16 %v7040, %v7040
          %v7553 = vpack.c.bf16 %v7041, %v7041
          %v7554 = vpack.c.bf16 %v7042, %v7042
          %v7555 = vpack.c.bf16 %v7043, %v7043
          %v7556 = vpack.c.bf16 %v7044, %v7044
          %v7557 = vpack.c.bf16 %v7045, %v7045
          %v7558 = vpack.c.bf16 %v7046, %v7046
          %v7559 = vpack.c.bf16 %v7047, %v7047
          %v7560 = vpack.c.bf16 %v7048, %v7048
          %v7561 = vpack.c.bf16 %v7049, %v7049
          %v7562 = vpack.c.bf16 %v7050, %v7050
          %v7563 = vpack.c.bf16 %v7051, %v7051
          %v7564 = vpack.c.bf16 %v7052, %v7052
          %v7565 = vpack.c.bf16 %v7053, %v7053
          %v7566 = vpack.c.bf16 %v7054, %v7054
          %v7567 = vpack.c.bf16 %v7055, %v7055
          %v7568 = vpack.c.bf16 %v7056, %v7056
          %v7569 = vpack.c.bf16 %v7057, %v7057
          %v7570 = vpack.c.bf16 %v7058, %v7058
          %v7571 = vpack.c.bf16 %v7059, %v7059
          %v7572 = vpack.c.bf16 %v7060, %v7060
          %v7573 = vpack.c.bf16 %v7061, %v7061
          %v7574 = vpack.c.bf16 %v7062, %v7062
          %v7575 = vpack.c.bf16 %v7063, %v7063
          %v7576 = vpack.c.bf16 %v7064, %v7064
          %v7577 = vpack.c.bf16 %v7065, %v7065
          %v7578 = vpack.c.bf16 %v7066, %v7066
          %v7579 = vpack.c.bf16 %v7067, %v7067
          %v7580 = vpack.c.bf16 %v7068, %v7068
          %v7581 = vpack.c.bf16 %v7069, %v7069
          %v7582 = vpack.c.bf16 %v7070, %v7070
          %v7583 = vpack.c.bf16 %v7071, %v7071
          %v7584 = vpack.c.bf16 %v7072, %v7072
          %v7585 = vpack.c.bf16 %v7073, %v7073
          %v7586 = vpack.c.bf16 %v7074, %v7074
          %v7587 = vpack.c.bf16 %v7075, %v7075
          %v7588 = vpack.c.bf16 %v7076, %v7076
          %v7589 = vpack.c.bf16 %v7077, %v7077
          %v7590 = vpack.c.bf16 %v7078, %v7078
          %v7591 = vpack.c.bf16 %v7079, %v7079
          %v7592 = vpack.c.bf16 %v7080, %v7080
          %v7593 = vpack.c.bf16 %v7081, %v7081
          %v7594 = vpack.c.bf16 %v7082, %v7082
          %v7595 = vpack.c.bf16 %v7083, %v7083
          %v7596 = vpack.c.bf16 %v7084, %v7084
          %v7597 = vpack.c.bf16 %v7085, %v7085
          %v7598 = vpack.c.bf16 %v7086, %v7086
          %v7599 = vpack.c.bf16 %v7087, %v7087
          %v7600 = vpack.c.bf16 %v7088, %v7088
          %v7601 = vpack.c.bf16 %v7089, %v7089
          %v7602 = vpack.c.bf16 %v7090, %v7090
          %v7603 = vpack.c.bf16 %v7091, %v7091
          %v7604 = vpack.c.bf16 %v7092, %v7092
          %v7605 = vpack.c.bf16 %v7093, %v7093
          %v7606 = vpack.c.bf16 %v7094, %v7094
          %v7607 = vpack.c.bf16 %v7095, %v7095
          %v7608 = vpack.c.bf16 %v7096, %v7096
          %v7609 = vpack.c.bf16 %v7097, %v7097
          %v7610 = vpack.c.bf16 %v7098, %v7098
          %v7611 = vpack.c.bf16 %v7099, %v7099
          %v7612 = vpack.c.bf16 %v7100, %v7100
          %v7613 = vpack.c.bf16 %v7101, %v7101
          %v7614 = vpack.c.bf16 %v7102, %v7102
          %v7615 = vpack.c.bf16 %v7103, %v7103
          %v7616 = vpack.c.bf16 %v7104, %v7104
          %v7617 = vpack.c.bf16 %v7105, %v7105
          %v7618 = vpack.c.bf16 %v7106, %v7106
          %v7619 = vpack.c.bf16 %v7107, %v7107
          %v7620 = vpack.c.bf16 %v7108, %v7108
          %v7621 = vpack.c.bf16 %v7109, %v7109
          %v7622 = vpack.c.bf16 %v7110, %v7110
          %v7623 = vpack.c.bf16 %v7111, %v7111
          %v7624 = vpack.c.bf16 %v7112, %v7112
          %v7625 = vpack.c.bf16 %v7113, %v7113
          %v7626 = vpack.c.bf16 %v7114, %v7114
          %v7627 = vpack.c.bf16 %v7115, %v7115
          %v7628 = vpack.c.bf16 %v7116, %v7116
          %v7629 = vpack.c.bf16 %v7117, %v7117
          %v7630 = vpack.c.bf16 %v7118, %v7118
          %v7631 = vpack.c.bf16 %v7119, %v7119
          %v7632 = vpack.c.bf16 %v7120, %v7120
          %v7633 = vpack.c.bf16 %v7121, %v7121
          %v7634 = vpack.c.bf16 %v7122, %v7122
          %v7635 = vpack.c.bf16 %v7123, %v7123
          %v7636 = vpack.c.bf16 %v7124, %v7124
          %v7637 = vpack.c.bf16 %v7125, %v7125
          %v7638 = vpack.c.bf16 %v7126, %v7126
          %v7639 = vpack.c.bf16 %v7127, %v7127
          %v7640 = vpack.c.bf16 %v7128, %v7128
          %v7641 = vpack.c.bf16 %v7129, %v7129
          %v7642 = vpack.c.bf16 %v7130, %v7130
          %v7643 = vpack.c.bf16 %v7131, %v7131
          %v7644 = vpack.c.bf16 %v7132, %v7132
          %v7645 = vpack.c.bf16 %v7133, %v7133
          %v7646 = vpack.c.bf16 %v7134, %v7134
          %v7647 = vpack.c.bf16 %v7135, %v7135
          %v7648 = vpack.c.bf16 %v7136, %v7136
          %v7649 = vpack.c.bf16 %v7137, %v7137
          %v7650 = vpack.c.bf16 %v7138, %v7138
          %v7651 = vpack.c.bf16 %v7139, %v7139
          %v7652 = vpack.c.bf16 %v7140, %v7140
          %v7653 = vpack.c.bf16 %v7141, %v7141
          %v7654 = vpack.c.bf16 %v7142, %v7142
          %v7655 = vpack.c.bf16 %v7143, %v7143
          %v7656 = vpack.c.bf16 %v7144, %v7144
          %v7657 = vpack.c.bf16 %v7145, %v7145
          %v7658 = vpack.c.bf16 %v7146, %v7146
          %v7659 = vpack.c.bf16 %v7147, %v7147
          %v7660 = vpack.c.bf16 %v7148, %v7148
          %v7661 = vpack.c.bf16 %v7149, %v7149
          %v7662 = vpack.c.bf16 %v7150, %v7150
          %v7663 = vpack.c.bf16 %v7151, %v7151
          %v7664 = vpack.c.bf16 %v7152, %v7152
          %v7665 = vpack.c.bf16 %v7153, %v7153
          %v7666 = vpack.c.bf16 %v7154, %v7154
          %v7667 = vpack.c.bf16 %v7155, %v7155
          %v7668 = vpack.c.bf16 %v7156, %v7156
          %v7669 = vpack.c.bf16 %v7157, %v7157
          %v7670 = vpack.c.bf16 %v7158, %v7158
          %v7671 = vpack.c.bf16 %v7159, %v7159
          %v7672 = vpack.c.bf16 %v7160, %v7160
          %v7673 = vpack.c.bf16 %v7161, %v7161
          %v7674 = vpack.c.bf16 %v7162, %v7162
          %v7675 = vpack.c.bf16 %v7163, %v7163
          %v7676 = vpack.c.bf16 %v7164, %v7164
          %v7677 = vpack.c.bf16 %v7165, %v7165
          %v7678 = vpack.c.bf16 %v7166, %v7166
          %v7679 = vpack.c.bf16 %v7167, %v7167
          %v7680 = vpack.c.bf16 %v7168, %v7168
          %v7681 = vpack.c.bf16 %v7169, %v7169
          %v7682 = vpack.c.bf16 %v7170, %v7170
          %v7683 = vpack.c.bf16 %v7171, %v7171
          %v7684 = vpack.c.bf16 %v7172, %v7172
          %v7685 = vpack.c.bf16 %v7173, %v7173
          %v7686 = vpack.c.bf16 %v7174, %v7174
          %v7687 = vpack.c.bf16 %v7175, %v7175
          %v7688 = vpack.c.bf16 %v7176, %v7176
          %v7689 = vpack.c.bf16 %v7177, %v7177
          %v7690 = vpack.c.bf16 %v7178, %v7178
          %v7691 = vpack.c.bf16 %v7179, %v7179
          %v7692 = vpack.c.bf16 %v7180, %v7180
          %v7693 = vpack.c.bf16 %v7181, %v7181
          %v7694 = vpack.c.bf16 %v7182, %v7182
          %v7695 = vpack.c.bf16 %v7183, %v7183
          %v7696 = vpack.c.bf16 %v7184, %v7184
          %v7697 = vpack.c.bf16 %v7185, %v7185
          %v7698 = vpack.c.bf16 %v7186, %v7186
          %v7699 = vpack.c.bf16 %v7187, %v7187
          %v7700 = vpack.c.bf16 %v7188, %v7188
          %v7701 = vpack.c.bf16 %v7189, %v7189
          %v7702 = vpack.c.bf16 %v7190, %v7190
          %v7703 = vpack.c.bf16 %v7191, %v7191
          %v7704 = vpack.c.bf16 %v7192, %v7192
          %v7705 = vpack.c.bf16 %v7193, %v7193
          %v7706 = vpack.c.bf16 %v7194, %v7194
          %v7707 = vpack.c.bf16 %v7195, %v7195
          %v7708 = vpack.c.bf16 %v7196, %v7196
          %v7709 = vpack.c.bf16 %v7197, %v7197
          %v7710 = vpack.c.bf16 %v7198, %v7198
          %v7711 = vpack.c.bf16 %v7199, %v7199
          %v7712 = vpack.c.bf16 %v7200, %v7200
          %v7713 = vpack.c.bf16 %v7201, %v7201
          %v7714 = vpack.c.bf16 %v7202, %v7202
          %v7715 = vpack.c.bf16 %v7203, %v7203
          %v7716 = vpack.c.bf16 %v7204, %v7204
          %v7717 = vpack.c.bf16 %v7205, %v7205
          %v7718 = vpack.c.bf16 %v7206, %v7206
          %v7719 = vpack.c.bf16 %v7207, %v7207
          %v7720 = vpack.c.bf16 %v7208, %v7208
          %v7721 = vpack.c.bf16 %v7209, %v7209
          %v7722 = vpack.c.bf16 %v7210, %v7210
          %v7723 = vpack.c.bf16 %v7211, %v7211
          %v7724 = vpack.c.bf16 %v7212, %v7212
          %v7725 = vpack.c.bf16 %v7213, %v7213
          %v7726 = vpack.c.bf16 %v7214, %v7214
          %v7727 = vpack.c.bf16 %v7215, %v7215
          %v7728 = vpack.c.bf16 %v7216, %v7216
          %v7729 = vpack.c.bf16 %v7217, %v7217
          %v7730 = vpack.c.bf16 %v7218, %v7218
          %v7731 = vpack.c.bf16 %v7219, %v7219
          %v7732 = vpack.c.bf16 %v7220, %v7220
          %v7733 = vpack.c.bf16 %v7221, %v7221
          %v7734 = vpack.c.bf16 %v7222, %v7222
          %v7735 = vpack.c.bf16 %v7223, %v7223
          %v7736 = vpack.c.bf16 %v7224, %v7224
          %v7737 = vpack.c.bf16 %v7225, %v7225
          %v7738 = vpack.c.bf16 %v7226, %v7226
          %v7739 = vpack.c.bf16 %v7227, %v7227
          %v7740 = vpack.c.bf16 %v7228, %v7228
          %v7741 = vpack.c.bf16 %v7229, %v7229
          %v7742 = vpack.c.bf16 %v7230, %v7230
          %v7743 = vpack.c.bf16 %v7231, %v7231
          %v7744 = vpack.c.bf16 %v7232, %v7232
          %v7745 = vpack.c.bf16 %v7233, %v7233
          %v7746 = vpack.c.bf16 %v7234, %v7234
          %v7747 = vpack.c.bf16 %v7235, %v7235
          %v7748 = vpack.c.bf16 %v7236, %v7236
          %v7749 = vpack.c.bf16 %v7237, %v7237
          %v7750 = vpack.c.bf16 %v7238, %v7238
          %v7751 = vpack.c.bf16 %v7239, %v7239
          %v7752 = vpack.c.bf16 %v7240, %v7240
          %v7753 = vpack.c.bf16 %v7241, %v7241
          %v7754 = vpack.c.bf16 %v7242, %v7242
          %v7755 = vpack.c.bf16 %v7243, %v7243
          %v7756 = vpack.c.bf16 %v7244, %v7244
          %v7757 = vpack.c.bf16 %v7245, %v7245
          %v7758 = vpack.c.bf16 %v7246, %v7246
          %v7759 = vpack.c.bf16 %v7247, %v7247
          %v7760 = vpack.c.bf16 %v7248, %v7248
          %v7761 = vpack.c.bf16 %v7249, %v7249
          %v7762 = vpack.c.bf16 %v7250, %v7250
          %v7763 = vpack.c.bf16 %v7251, %v7251
          %v7764 = vpack.c.bf16 %v7252, %v7252
          %v7765 = vpack.c.bf16 %v7253, %v7253
          %v7766 = vpack.c.bf16 %v7254, %v7254
          %v7767 = vpack.c.bf16 %v7255, %v7255
          %v7768 = vpack.c.bf16 %v7256, %v7256
          %v7769 = vpack.c.bf16 %v7257, %v7257
          %v7770 = vpack.c.bf16 %v7258, %v7258
          %v7771 = vpack.c.bf16 %v7259, %v7259
          %v7772 = vpack.c.bf16 %v7260, %v7260
          %v7773 = vpack.c.bf16 %v7261, %v7261
          %7774 = vst [vmem:[%s262] sm:$0xf] %v7262
          %7775 = vst [vmem:[%s262 + $0x4] sm:$0xf] %v7263
          %7776 = vst [vmem:[%s262 + $0x8] sm:$0xf] %v7264
          %7777 = vst [vmem:[%s262 + $0xc] sm:$0xf] %v7265
          %7778 = vst [vmem:[%s262 + $0x10] sm:$0xf] %v7266
          %7779 = vst [vmem:[%s262 + $0x14] sm:$0xf] %v7267
          %7780 = vst [vmem:[%s262 + $0x18] sm:$0xf] %v7268
          %7781 = vst [vmem:[%s262 + $0x1c] sm:$0xf] %v7269
          %7782 = vst [vmem:[%s262 + $0x20] sm:$0xf] %v7270
          %7783 = vst [vmem:[%s262 + $0x24] sm:$0xf] %v7271
          %7784 = vst [vmem:[%s262 + $0x28] sm:$0xf] %v7272
          %7785 = vst [vmem:[%s262 + $0x2c] sm:$0xf] %v7273
          %7786 = vst [vmem:[%s262 + $0x30] sm:$0xf] %v7274
          %7787 = vst [vmem:[%s262 + $0x34] sm:$0xf] %v7275
          %7788 = vst [vmem:[%s262 + $0x38] sm:$0xf] %v7276
          %7789 = vst [vmem:[%s262 + $0x3c] sm:$0xf] %v7277
          %7790 = vst [vmem:[%s262 + $0x40] sm:$0xf] %v7278
          %7791 = vst [vmem:[%s262 + $0x44] sm:$0xf] %v7279
          %7792 = vst [vmem:[%s262 + $0x48] sm:$0xf] %v7280
          %7793 = vst [vmem:[%s262 + $0x4c] sm:$0xf] %v7281
          %7794 = vst [vmem:[%s262 + $0x50] sm:$0xf] %v7282
          %7795 = vst [vmem:[%s262 + $0x54] sm:$0xf] %v7283
          %7796 = vst [vmem:[%s262 + $0x58] sm:$0xf] %v7284
          %7797 = vst [vmem:[%s262 + $0x5c] sm:$0xf] %v7285
          %7798 = vst [vmem:[%s262 + $0x60] sm:$0xf] %v7286
          %7799 = vst [vmem:[%s262 + $0x64] sm:$0xf] %v7287
          %7800 = vst [vmem:[%s262 + $0x68] sm:$0xf] %v7288
          %7801 = vst [vmem:[%s262 + $0x6c] sm:$0xf] %v7289
          %7802 = vst [vmem:[%s262 + $0x70] sm:$0xf] %v7290
          %7803 = vst [vmem:[%s262 + $0x74] sm:$0xf] %v7291
          %7804 = vst [vmem:[%s262 + $0x78] sm:$0xf] %v7292
          %7805 = vst [vmem:[%s262 + $0x7c] sm:$0xf] %v7293
          %7806 = vst [vmem:[%s262 + $0x80] sm:$0xf] %v7294
          %7807 = vst [vmem:[%s262 + $0x84] sm:$0xf] %v7295
          %7808 = vst [vmem:[%s262 + $0x88] sm:$0xf] %v7296
          %7809 = vst [vmem:[%s262 + $0x8c] sm:$0xf] %v7297
          %7810 = vst [vmem:[%s262 + $0x90] sm:$0xf] %v7298
          %7811 = vst [vmem:[%s262 + $0x94] sm:$0xf] %v7299
          %7812 = vst [vmem:[%s262 + $0x98] sm:$0xf] %v7300
          %7813 = vst [vmem:[%s262 + $0x9c] sm:$0xf] %v7301
          %7814 = vst [vmem:[%s262 + $0xa0] sm:$0xf] %v7302
          %7815 = vst [vmem:[%s262 + $0xa4] sm:$0xf] %v7303
          %7816 = vst [vmem:[%s262 + $0xa8] sm:$0xf] %v7304
          %7817 = vst [vmem:[%s262 + $0xac] sm:$0xf] %v7305
          %7818 = vst [vmem:[%s262 + $0xb0] sm:$0xf] %v7306
          %7819 = vst [vmem:[%s262 + $0xb4] sm:$0xf] %v7307
          %7820 = vst [vmem:[%s262 + $0xb8] sm:$0xf] %v7308
          %7821 = vst [vmem:[%s262 + $0xbc] sm:$0xf] %v7309
          %7822 = vst [vmem:[%s262 + $0xc0] sm:$0xf] %v7310
          %7823 = vst [vmem:[%s262 + $0xc4] sm:$0xf] %v7311
          %7824 = vst [vmem:[%s262 + $0xc8] sm:$0xf] %v7312
          %7825 = vst [vmem:[%s262 + $0xcc] sm:$0xf] %v7313
          %7826 = vst [vmem:[%s262 + $0xd0] sm:$0xf] %v7314
          %7827 = vst [vmem:[%s262 + $0xd4] sm:$0xf] %v7315
          %7828 = vst [vmem:[%s262 + $0xd8] sm:$0xf] %v7316
          %7829 = vst [vmem:[%s262 + $0xdc] sm:$0xf] %v7317
          %7830 = vst [vmem:[%s262 + $0xe0] sm:$0xf] %v7318
          %7831 = vst [vmem:[%s262 + $0xe4] sm:$0xf] %v7319
          %7832 = vst [vmem:[%s262 + $0xe8] sm:$0xf] %v7320
          %7833 = vst [vmem:[%s262 + $0xec] sm:$0xf] %v7321
          %7834 = vst [vmem:[%s262 + $0xf0] sm:$0xf] %v7322
          %7835 = vst [vmem:[%s262 + $0xf4] sm:$0xf] %v7323
          %7836 = vst [vmem:[%s262 + $0xf8] sm:$0xf] %v7324
          %7837 = vst [vmem:[%s262 + $0xfc] sm:$0xf] %v7325
          %7838 = vst [vmem:[%s262 + $0x100] sm:$0xf] %v7326
          %7839 = vst [vmem:[%s262 + $0x104] sm:$0xf] %v7327
          %7840 = vst [vmem:[%s262 + $0x108] sm:$0xf] %v7328
          %7841 = vst [vmem:[%s262 + $0x10c] sm:$0xf] %v7329
          %7842 = vst [vmem:[%s262 + $0x110] sm:$0xf] %v7330
          %7843 = vst [vmem:[%s262 + $0x114] sm:$0xf] %v7331
          %7844 = vst [vmem:[%s262 + $0x118] sm:$0xf] %v7332
          %7845 = vst [vmem:[%s262 + $0x11c] sm:$0xf] %v7333
          %7846 = vst [vmem:[%s262 + $0x120] sm:$0xf] %v7334
          %7847 = vst [vmem:[%s262 + $0x124] sm:$0xf] %v7335
          %7848 = vst [vmem:[%s262 + $0x128] sm:$0xf] %v7336
          %7849 = vst [vmem:[%s262 + $0x12c] sm:$0xf] %v7337
          %7850 = vst [vmem:[%s262 + $0x130] sm:$0xf] %v7338
          %7851 = vst [vmem:[%s262 + $0x134] sm:$0xf] %v7339
          %7852 = vst [vmem:[%s262 + $0x138] sm:$0xf] %v7340
          %7853 = vst [vmem:[%s262 + $0x13c] sm:$0xf] %v7341
          %7854 = vst [vmem:[%s262 + $0x140] sm:$0xf] %v7342
          %7855 = vst [vmem:[%s262 + $0x144] sm:$0xf] %v7343
          %7856 = vst [vmem:[%s262 + $0x148] sm:$0xf] %v7344
          %7857 = vst [vmem:[%s262 + $0x14c] sm:$0xf] %v7345
          %7858 = vst [vmem:[%s262 + $0x150] sm:$0xf] %v7346
          %7859 = vst [vmem:[%s262 + $0x154] sm:$0xf] %v7347
          %7860 = vst [vmem:[%s262 + $0x158] sm:$0xf] %v7348
          %7861 = vst [vmem:[%s262 + $0x15c] sm:$0xf] %v7349
          %7862 = vst [vmem:[%s262 + $0x160] sm:$0xf] %v7350
          %7863 = vst [vmem:[%s262 + $0x164] sm:$0xf] %v7351
          %7864 = vst [vmem:[%s262 + $0x168] sm:$0xf] %v7352
          %7865 = vst [vmem:[%s262 + $0x16c] sm:$0xf] %v7353
          %7866 = vst [vmem:[%s262 + $0x170] sm:$0xf] %v7354
          %7867 = vst [vmem:[%s262 + $0x174] sm:$0xf] %v7355
          %7868 = vst [vmem:[%s262 + $0x178] sm:$0xf] %v7356
          %7869 = vst [vmem:[%s262 + $0x17c] sm:$0xf] %v7357
          %7870 = vst [vmem:[%s262 + $0x180] sm:$0xf] %v7358
          %7871 = vst [vmem:[%s262 + $0x184] sm:$0xf] %v7359
          %7872 = vst [vmem:[%s262 + $0x188] sm:$0xf] %v7360
          %7873 = vst [vmem:[%s262 + $0x18c] sm:$0xf] %v7361
          %7874 = vst [vmem:[%s262 + $0x190] sm:$0xf] %v7362
          %7875 = vst [vmem:[%s262 + $0x194] sm:$0xf] %v7363
          %7876 = vst [vmem:[%s262 + $0x198] sm:$0xf] %v7364
          %7877 = vst [vmem:[%s262 + $0x19c] sm:$0xf] %v7365
          %7878 = vst [vmem:[%s262 + $0x1a0] sm:$0xf] %v7366
          %7879 = vst [vmem:[%s262 + $0x1a4] sm:$0xf] %v7367
          %7880 = vst [vmem:[%s262 + $0x1a8] sm:$0xf] %v7368
          %7881 = vst [vmem:[%s262 + $0x1ac] sm:$0xf] %v7369
          %7882 = vst [vmem:[%s262 + $0x1b0] sm:$0xf] %v7370
          %7883 = vst [vmem:[%s262 + $0x1b4] sm:$0xf] %v7371
          %7884 = vst [vmem:[%s262 + $0x1b8] sm:$0xf] %v7372
          %7885 = vst [vmem:[%s262 + $0x1bc] sm:$0xf] %v7373
          %7886 = vst [vmem:[%s262 + $0x1c0] sm:$0xf] %v7374
          %7887 = vst [vmem:[%s262 + $0x1c4] sm:$0xf] %v7375
          %7888 = vst [vmem:[%s262 + $0x1c8] sm:$0xf] %v7376
          %7889 = vst [vmem:[%s262 + $0x1cc] sm:$0xf] %v7377
          %7890 = vst [vmem:[%s262 + $0x1d0] sm:$0xf] %v7378
          %7891 = vst [vmem:[%s262 + $0x1d4] sm:$0xf] %v7379
          %7892 = vst [vmem:[%s262 + $0x1d8] sm:$0xf] %v7380
          %7893 = vst [vmem:[%s262 + $0x1dc] sm:$0xf] %v7381
          %7894 = vst [vmem:[%s262 + $0x1e0] sm:$0xf] %v7382
          %7895 = vst [vmem:[%s262 + $0x1e4] sm:$0xf] %v7383
          %7896 = vst [vmem:[%s262 + $0x1e8] sm:$0xf] %v7384
          %7897 = vst [vmem:[%s262 + $0x1ec] sm:$0xf] %v7385
          %7898 = vst [vmem:[%s262 + $0x1f0] sm:$0xf] %v7386
          %7899 = vst [vmem:[%s262 + $0x1f4] sm:$0xf] %v7387
          %7900 = vst [vmem:[%s262 + $0x1f8] sm:$0xf] %v7388
          %7901 = vst [vmem:[%s262 + $0x1fc] sm:$0xf] %v7389
          %7902 = vst [vmem:[%s262 + $0x200] sm:$0xf] %v7390
          %7903 = vst [vmem:[%s262 + $0x204] sm:$0xf] %v7391
          %7904 = vst [vmem:[%s262 + $0x208] sm:$0xf] %v7392
          %7905 = vst [vmem:[%s262 + $0x20c] sm:$0xf] %v7393
          %7906 = vst [vmem:[%s262 + $0x210] sm:$0xf] %v7394
          %7907 = vst [vmem:[%s262 + $0x214] sm:$0xf] %v7395
          %7908 = vst [vmem:[%s262 + $0x218] sm:$0xf] %v7396
          %7909 = vst [vmem:[%s262 + $0x21c] sm:$0xf] %v7397
          %7910 = vst [vmem:[%s262 + $0x220] sm:$0xf] %v7398
          %7911 = vst [vmem:[%s262 + $0x224] sm:$0xf] %v7399
          %7912 = vst [vmem:[%s262 + $0x228] sm:$0xf] %v7400
          %7913 = vst [vmem:[%s262 + $0x22c] sm:$0xf] %v7401
          %7914 = vst [vmem:[%s262 + $0x230] sm:$0xf] %v7402
          %7915 = vst [vmem:[%s262 + $0x234] sm:$0xf] %v7403
          %7916 = vst [vmem:[%s262 + $0x238] sm:$0xf] %v7404
          %7917 = vst [vmem:[%s262 + $0x23c] sm:$0xf] %v7405
          %7918 = vst [vmem:[%s262 + $0x240] sm:$0xf] %v7406
          %7919 = vst [vmem:[%s262 + $0x244] sm:$0xf] %v7407
          %7920 = vst [vmem:[%s262 + $0x248] sm:$0xf] %v7408
          %7921 = vst [vmem:[%s262 + $0x24c] sm:$0xf] %v7409
          %7922 = vst [vmem:[%s262 + $0x250] sm:$0xf] %v7410
          %7923 = vst [vmem:[%s262 + $0x254] sm:$0xf] %v7411
          %7924 = vst [vmem:[%s262 + $0x258] sm:$0xf] %v7412
          %7925 = vst [vmem:[%s262 + $0x25c] sm:$0xf] %v7413
          %7926 = vst [vmem:[%s262 + $0x260] sm:$0xf] %v7414
          %7927 = vst [vmem:[%s262 + $0x264] sm:$0xf] %v7415
          %7928 = vst [vmem:[%s262 + $0x268] sm:$0xf] %v7416
          %7929 = vst [vmem:[%s262 + $0x26c] sm:$0xf] %v7417
          %7930 = vst [vmem:[%s262 + $0x270] sm:$0xf] %v7418
          %7931 = vst [vmem:[%s262 + $0x274] sm:$0xf] %v7419
          %7932 = vst [vmem:[%s262 + $0x278] sm:$0xf] %v7420
          %7933 = vst [vmem:[%s262 + $0x27c] sm:$0xf] %v7421
          %7934 = vst [vmem:[%s262 + $0x280] sm:$0xf] %v7422
          %7935 = vst [vmem:[%s262 + $0x284] sm:$0xf] %v7423
          %7936 = vst [vmem:[%s262 + $0x288] sm:$0xf] %v7424
          %7937 = vst [vmem:[%s262 + $0x28c] sm:$0xf] %v7425
          %7938 = vst [vmem:[%s262 + $0x290] sm:$0xf] %v7426
          %7939 = vst [vmem:[%s262 + $0x294] sm:$0xf] %v7427
          %7940 = vst [vmem:[%s262 + $0x298] sm:$0xf] %v7428
          %7941 = vst [vmem:[%s262 + $0x29c] sm:$0xf] %v7429
          %7942 = vst [vmem:[%s262 + $0x2a0] sm:$0xf] %v7430
          %7943 = vst [vmem:[%s262 + $0x2a4] sm:$0xf] %v7431
          %7944 = vst [vmem:[%s262 + $0x2a8] sm:$0xf] %v7432
          %7945 = vst [vmem:[%s262 + $0x2ac] sm:$0xf] %v7433
          %7946 = vst [vmem:[%s262 + $0x2b0] sm:$0xf] %v7434
          %7947 = vst [vmem:[%s262 + $0x2b4] sm:$0xf] %v7435
          %7948 = vst [vmem:[%s262 + $0x2b8] sm:$0xf] %v7436
          %7949 = vst [vmem:[%s262 + $0x2bc] sm:$0xf] %v7437
          %7950 = vst [vmem:[%s262 + $0x2c0] sm:$0xf] %v7438
          %7951 = vst [vmem:[%s262 + $0x2c4] sm:$0xf] %v7439
          %7952 = vst [vmem:[%s262 + $0x2c8] sm:$0xf] %v7440
          %7953 = vst [vmem:[%s262 + $0x2cc] sm:$0xf] %v7441
          %7954 = vst [vmem:[%s262 + $0x2d0] sm:$0xf] %v7442
          %7955 = vst [vmem:[%s262 + $0x2d4] sm:$0xf] %v7443
          %7956 = vst [vmem:[%s262 + $0x2d8] sm:$0xf] %v7444
          %7957 = vst [vmem:[%s262 + $0x2dc] sm:$0xf] %v7445
          %7958 = vst [vmem:[%s262 + $0x2e0] sm:$0xf] %v7446
          %7959 = vst [vmem:[%s262 + $0x2e4] sm:$0xf] %v7447
          %7960 = vst [vmem:[%s262 + $0x2e8] sm:$0xf] %v7448
          %7961 = vst [vmem:[%s262 + $0x2ec] sm:$0xf] %v7449
          %7962 = vst [vmem:[%s262 + $0x2f0] sm:$0xf] %v7450
          %7963 = vst [vmem:[%s262 + $0x2f4] sm:$0xf] %v7451
          %7964 = vst [vmem:[%s262 + $0x2f8] sm:$0xf] %v7452
          %7965 = vst [vmem:[%s262 + $0x2fc] sm:$0xf] %v7453
          %7966 = vst [vmem:[%s262 + $0x300] sm:$0xf] %v7454
          %7967 = vst [vmem:[%s262 + $0x304] sm:$0xf] %v7455
          %7968 = vst [vmem:[%s262 + $0x308] sm:$0xf] %v7456
          %7969 = vst [vmem:[%s262 + $0x30c] sm:$0xf] %v7457
          %7970 = vst [vmem:[%s262 + $0x310] sm:$0xf] %v7458
          %7971 = vst [vmem:[%s262 + $0x314] sm:$0xf] %v7459
          %7972 = vst [vmem:[%s262 + $0x318] sm:$0xf] %v7460
          %7973 = vst [vmem:[%s262 + $0x31c] sm:$0xf] %v7461
          %7974 = vst [vmem:[%s262 + $0x320] sm:$0xf] %v7462
          %7975 = vst [vmem:[%s262 + $0x324] sm:$0xf] %v7463
          %7976 = vst [vmem:[%s262 + $0x328] sm:$0xf] %v7464
          %7977 = vst [vmem:[%s262 + $0x32c] sm:$0xf] %v7465
          %7978 = vst [vmem:[%s262 + $0x330] sm:$0xf] %v7466
          %7979 = vst [vmem:[%s262 + $0x334] sm:$0xf] %v7467
          %7980 = vst [vmem:[%s262 + $0x338] sm:$0xf] %v7468
          %7981 = vst [vmem:[%s262 + $0x33c] sm:$0xf] %v7469
          %7982 = vst [vmem:[%s262 + $0x340] sm:$0xf] %v7470
          %7983 = vst [vmem:[%s262 + $0x344] sm:$0xf] %v7471
          %7984 = vst [vmem:[%s262 + $0x348] sm:$0xf] %v7472
          %7985 = vst [vmem:[%s262 + $0x34c] sm:$0xf] %v7473
          %7986 = vst [vmem:[%s262 + $0x350] sm:$0xf] %v7474
          %7987 = vst [vmem:[%s262 + $0x354] sm:$0xf] %v7475
          %7988 = vst [vmem:[%s262 + $0x358] sm:$0xf] %v7476
          %7989 = vst [vmem:[%s262 + $0x35c] sm:$0xf] %v7477
          %7990 = vst [vmem:[%s262 + $0x360] sm:$0xf] %v7478
          %7991 = vst [vmem:[%s262 + $0x364] sm:$0xf] %v7479
          %7992 = vst [vmem:[%s262 + $0x368] sm:$0xf] %v7480
          %7993 = vst [vmem:[%s262 + $0x36c] sm:$0xf] %v7481
          %7994 = vst [vmem:[%s262 + $0x370] sm:$0xf] %v7482
          %7995 = vst [vmem:[%s262 + $0x374] sm:$0xf] %v7483
          %7996 = vst [vmem:[%s262 + $0x378] sm:$0xf] %v7484
          %7997 = vst [vmem:[%s262 + $0x37c] sm:$0xf] %v7485
          %7998 = vst [vmem:[%s262 + $0x380] sm:$0xf] %v7486
          %7999 = vst [vmem:[%s262 + $0x384] sm:$0xf] %v7487
          %8000 = vst [vmem:[%s262 + $0x388] sm:$0xf] %v7488
          %8001 = vst [vmem:[%s262 + $0x38c] sm:$0xf] %v7489
          %8002 = vst [vmem:[%s262 + $0x390] sm:$0xf] %v7490
          %8003 = vst [vmem:[%s262 + $0x394] sm:$0xf] %v7491
          %8004 = vst [vmem:[%s262 + $0x398] sm:$0xf] %v7492
          %8005 = vst [vmem:[%s262 + $0x39c] sm:$0xf] %v7493
          %8006 = vst [vmem:[%s262 + $0x3a0] sm:$0xf] %v7494
          %8007 = vst [vmem:[%s262 + $0x3a4] sm:$0xf] %v7495
          %8008 = vst [vmem:[%s262 + $0x3a8] sm:$0xf] %v7496
          %8009 = vst [vmem:[%s262 + $0x3ac] sm:$0xf] %v7497
          %8010 = vst [vmem:[%s262 + $0x3b0] sm:$0xf] %v7498
          %8011 = vst [vmem:[%s262 + $0x3b4] sm:$0xf] %v7499
          %8012 = vst [vmem:[%s262 + $0x3b8] sm:$0xf] %v7500
          %8013 = vst [vmem:[%s262 + $0x3bc] sm:$0xf] %v7501
          %8014 = vst [vmem:[%s262 + $0x3c0] sm:$0xf] %v7502
          %8015 = vst [vmem:[%s262 + $0x3c4] sm:$0xf] %v7503
          %8016 = vst [vmem:[%s262 + $0x3c8] sm:$0xf] %v7504
          %8017 = vst [vmem:[%s262 + $0x3cc] sm:$0xf] %v7505
          %8018 = vst [vmem:[%s262 + $0x3d0] sm:$0xf] %v7506
          %8019 = vst [vmem:[%s262 + $0x3d4] sm:$0xf] %v7507
          %8020 = vst [vmem:[%s262 + $0x3d8] sm:$0xf] %v7508
          %8021 = vst [vmem:[%s262 + $0x3dc] sm:$0xf] %v7509
          %8022 = vst [vmem:[%s262 + $0x3e0] sm:$0xf] %v7510
          %8023 = vst [vmem:[%s262 + $0x3e4] sm:$0xf] %v7511
          %8024 = vst [vmem:[%s262 + $0x3e8] sm:$0xf] %v7512
          %8025 = vst [vmem:[%s262 + $0x3ec] sm:$0xf] %v7513
          %8026 = vst [vmem:[%s262 + $0x3f0] sm:$0xf] %v7514
          %8027 = vst [vmem:[%s262 + $0x3f4] sm:$0xf] %v7515
          %8028 = vst [vmem:[%s262 + $0x3f8] sm:$0xf] %v7516
          %8029 = vst [vmem:[%s262 + $0x3fc] sm:$0xf] %v7517
          %8030 = vst [vmem:[%s262 + $0x400] sm:$0xf] %v7518
          %8031 = vst [vmem:[%s262 + $0x404] sm:$0xf] %v7519
          %8032 = vst [vmem:[%s262 + $0x408] sm:$0xf] %v7520
          %8033 = vst [vmem:[%s262 + $0x40c] sm:$0xf] %v7521
          %8034 = vst [vmem:[%s262 + $0x410] sm:$0xf] %v7522
          %8035 = vst [vmem:[%s262 + $0x414] sm:$0xf] %v7523
          %8036 = vst [vmem:[%s262 + $0x418] sm:$0xf] %v7524
          %8037 = vst [vmem:[%s262 + $0x41c] sm:$0xf] %v7525
          %8038 = vst [vmem:[%s262 + $0x420] sm:$0xf] %v7526
          %8039 = vst [vmem:[%s262 + $0x424] sm:$0xf] %v7527
          %8040 = vst [vmem:[%s262 + $0x428] sm:$0xf] %v7528
          %8041 = vst [vmem:[%s262 + $0x42c] sm:$0xf] %v7529
          %8042 = vst [vmem:[%s262 + $0x430] sm:$0xf] %v7530
          %8043 = vst [vmem:[%s262 + $0x434] sm:$0xf] %v7531
          %8044 = vst [vmem:[%s262 + $0x438] sm:$0xf] %v7532
          %8045 = vst [vmem:[%s262 + $0x43c] sm:$0xf] %v7533
          %8046 = vst [vmem:[%s262 + $0x440] sm:$0xf] %v7534
          %8047 = vst [vmem:[%s262 + $0x444] sm:$0xf] %v7535
          %8048 = vst [vmem:[%s262 + $0x448] sm:$0xf] %v7536
          %8049 = vst [vmem:[%s262 + $0x44c] sm:$0xf] %v7537
          %8050 = vst [vmem:[%s262 + $0x450] sm:$0xf] %v7538
          %8051 = vst [vmem:[%s262 + $0x454] sm:$0xf] %v7539
          %8052 = vst [vmem:[%s262 + $0x458] sm:$0xf] %v7540
          %8053 = vst [vmem:[%s262 + $0x45c] sm:$0xf] %v7541
          %8054 = vst [vmem:[%s262 + $0x460] sm:$0xf] %v7542
          %8055 = vst [vmem:[%s262 + $0x464] sm:$0xf] %v7543
          %8056 = vst [vmem:[%s262 + $0x468] sm:$0xf] %v7544
          %8057 = vst [vmem:[%s262 + $0x46c] sm:$0xf] %v7545
          %8058 = vst [vmem:[%s262 + $0x470] sm:$0xf] %v7546
          %8059 = vst [vmem:[%s262 + $0x474] sm:$0xf] %v7547
          %8060 = vst [vmem:[%s262 + $0x478] sm:$0xf] %v7548
          %8061 = vst [vmem:[%s262 + $0x47c] sm:$0xf] %v7549
          %8062 = vst [vmem:[%s262 + $0x480] sm:$0xf] %v7550
          %8063 = vst [vmem:[%s262 + $0x484] sm:$0xf] %v7551
          %8064 = vst [vmem:[%s262 + $0x488] sm:$0xf] %v7552
          %8065 = vst [vmem:[%s262 + $0x48c] sm:$0xf] %v7553
          %8066 = vst [vmem:[%s262 + $0x490] sm:$0xf] %v7554
          %8067 = vst [vmem:[%s262 + $0x494] sm:$0xf] %v7555
          %8068 = vst [vmem:[%s262 + $0x498] sm:$0xf] %v7556
          %8069 = vst [vmem:[%s262 + $0x49c] sm:$0xf] %v7557
          %8070 = vst [vmem:[%s262 + $0x4a0] sm:$0xf] %v7558
          %8071 = vst [vmem:[%s262 + $0x4a4] sm:$0xf] %v7559
          %8072 = vst [vmem:[%s262 + $0x4a8] sm:$0xf] %v7560
          %8073 = vst [vmem:[%s262 + $0x4ac] sm:$0xf] %v7561
          %8074 = vst [vmem:[%s262 + $0x4b0] sm:$0xf] %v7562
          %8075 = vst [vmem:[%s262 + $0x4b4] sm:$0xf] %v7563
          %8076 = vst [vmem:[%s262 + $0x4b8] sm:$0xf] %v7564
          %8077 = vst [vmem:[%s262 + $0x4bc] sm:$0xf] %v7565
          %8078 = vst [vmem:[%s262 + $0x4c0] sm:$0xf] %v7566
          %8079 = vst [vmem:[%s262 + $0x4c4] sm:$0xf] %v7567
          %8080 = vst [vmem:[%s262 + $0x4c8] sm:$0xf] %v7568
          %8081 = vst [vmem:[%s262 + $0x4cc] sm:$0xf] %v7569
          %8082 = vst [vmem:[%s262 + $0x4d0] sm:$0xf] %v7570
          %8083 = vst [vmem:[%s262 + $0x4d4] sm:$0xf] %v7571
          %8084 = vst [vmem:[%s262 + $0x4d8] sm:$0xf] %v7572
          %8085 = vst [vmem:[%s262 + $0x4dc] sm:$0xf] %v7573
          %8086 = vst [vmem:[%s262 + $0x4e0] sm:$0xf] %v7574
          %8087 = vst [vmem:[%s262 + $0x4e4] sm:$0xf] %v7575
          %8088 = vst [vmem:[%s262 + $0x4e8] sm:$0xf] %v7576
          %8089 = vst [vmem:[%s262 + $0x4ec] sm:$0xf] %v7577
          %8090 = vst [vmem:[%s262 + $0x4f0] sm:$0xf] %v7578
          %8091 = vst [vmem:[%s262 + $0x4f4] sm:$0xf] %v7579
          %8092 = vst [vmem:[%s262 + $0x4f8] sm:$0xf] %v7580
          %8093 = vst [vmem:[%s262 + $0x4fc] sm:$0xf] %v7581
          %8094 = vst [vmem:[%s262 + $0x500] sm:$0xf] %v7582
          %8095 = vst [vmem:[%s262 + $0x504] sm:$0xf] %v7583
          %8096 = vst [vmem:[%s262 + $0x508] sm:$0xf] %v7584
          %8097 = vst [vmem:[%s262 + $0x50c] sm:$0xf] %v7585
          %8098 = vst [vmem:[%s262 + $0x510] sm:$0xf] %v7586
          %8099 = vst [vmem:[%s262 + $0x514] sm:$0xf] %v7587
          %8100 = vst [vmem:[%s262 + $0x518] sm:$0xf] %v7588
          %8101 = vst [vmem:[%s262 + $0x51c] sm:$0xf] %v7589
          %8102 = vst [vmem:[%s262 + $0x520] sm:$0xf] %v7590
          %8103 = vst [vmem:[%s262 + $0x524] sm:$0xf] %v7591
          %8104 = vst [vmem:[%s262 + $0x528] sm:$0xf] %v7592
          %8105 = vst [vmem:[%s262 + $0x52c] sm:$0xf] %v7593
          %8106 = vst [vmem:[%s262 + $0x530] sm:$0xf] %v7594
          %8107 = vst [vmem:[%s262 + $0x534] sm:$0xf] %v7595
          %8108 = vst [vmem:[%s262 + $0x538] sm:$0xf] %v7596
          %8109 = vst [vmem:[%s262 + $0x53c] sm:$0xf] %v7597
          %8110 = vst [vmem:[%s262 + $0x540] sm:$0xf] %v7598
          %8111 = vst [vmem:[%s262 + $0x544] sm:$0xf] %v7599
          %8112 = vst [vmem:[%s262 + $0x548] sm:$0xf] %v7600
          %8113 = vst [vmem:[%s262 + $0x54c] sm:$0xf] %v7601
          %8114 = vst [vmem:[%s262 + $0x550] sm:$0xf] %v7602
          %8115 = vst [vmem:[%s262 + $0x554] sm:$0xf] %v7603
          %8116 = vst [vmem:[%s262 + $0x558] sm:$0xf] %v7604
          %8117 = vst [vmem:[%s262 + $0x55c] sm:$0xf] %v7605
          %8118 = vst [vmem:[%s262 + $0x560] sm:$0xf] %v7606
          %8119 = vst [vmem:[%s262 + $0x564] sm:$0xf] %v7607
          %8120 = vst [vmem:[%s262 + $0x568] sm:$0xf] %v7608
          %8121 = vst [vmem:[%s262 + $0x56c] sm:$0xf] %v7609
          %8122 = vst [vmem:[%s262 + $0x570] sm:$0xf] %v7610
          %8123 = vst [vmem:[%s262 + $0x574] sm:$0xf] %v7611
          %8124 = vst [vmem:[%s262 + $0x578] sm:$0xf] %v7612
          %8125 = vst [vmem:[%s262 + $0x57c] sm:$0xf] %v7613
          %8126 = vst [vmem:[%s262 + $0x580] sm:$0xf] %v7614
          %8127 = vst [vmem:[%s262 + $0x584] sm:$0xf] %v7615
          %8128 = vst [vmem:[%s262 + $0x588] sm:$0xf] %v7616
          %8129 = vst [vmem:[%s262 + $0x58c] sm:$0xf] %v7617
          %8130 = vst [vmem:[%s262 + $0x590] sm:$0xf] %v7618
          %8131 = vst [vmem:[%s262 + $0x594] sm:$0xf] %v7619
          %8132 = vst [vmem:[%s262 + $0x598] sm:$0xf] %v7620
          %8133 = vst [vmem:[%s262 + $0x59c] sm:$0xf] %v7621
          %8134 = vst [vmem:[%s262 + $0x5a0] sm:$0xf] %v7622
          %8135 = vst [vmem:[%s262 + $0x5a4] sm:$0xf] %v7623
          %8136 = vst [vmem:[%s262 + $0x5a8] sm:$0xf] %v7624
          %8137 = vst [vmem:[%s262 + $0x5ac] sm:$0xf] %v7625
          %8138 = vst [vmem:[%s262 + $0x5b0] sm:$0xf] %v7626
          %8139 = vst [vmem:[%s262 + $0x5b4] sm:$0xf] %v7627
          %8140 = vst [vmem:[%s262 + $0x5b8] sm:$0xf] %v7628
          %8141 = vst [vmem:[%s262 + $0x5bc] sm:$0xf] %v7629
          %8142 = vst [vmem:[%s262 + $0x5c0] sm:$0xf] %v7630
          %8143 = vst [vmem:[%s262 + $0x5c4] sm:$0xf] %v7631
          %8144 = vst [vmem:[%s262 + $0x5c8] sm:$0xf] %v7632
          %8145 = vst [vmem:[%s262 + $0x5cc] sm:$0xf] %v7633
          %8146 = vst [vmem:[%s262 + $0x5d0] sm:$0xf] %v7634
          %8147 = vst [vmem:[%s262 + $0x5d4] sm:$0xf] %v7635
          %8148 = vst [vmem:[%s262 + $0x5d8] sm:$0xf] %v7636
          %8149 = vst [vmem:[%s262 + $0x5dc] sm:$0xf] %v7637
          %8150 = vst [vmem:[%s262 + $0x5e0] sm:$0xf] %v7638
          %8151 = vst [vmem:[%s262 + $0x5e4] sm:$0xf] %v7639
          %8152 = vst [vmem:[%s262 + $0x5e8] sm:$0xf] %v7640
          %8153 = vst [vmem:[%s262 + $0x5ec] sm:$0xf] %v7641
          %8154 = vst [vmem:[%s262 + $0x5f0] sm:$0xf] %v7642
          %8155 = vst [vmem:[%s262 + $0x5f4] sm:$0xf] %v7643
          %8156 = vst [vmem:[%s262 + $0x5f8] sm:$0xf] %v7644
          %8157 = vst [vmem:[%s262 + $0x5fc] sm:$0xf] %v7645
          %8158 = vst [vmem:[%s262 + $0x600] sm:$0xf] %v7646
          %8159 = vst [vmem:[%s262 + $0x604] sm:$0xf] %v7647
          %8160 = vst [vmem:[%s262 + $0x608] sm:$0xf] %v7648
          %8161 = vst [vmem:[%s262 + $0x60c] sm:$0xf] %v7649
          %8162 = vst [vmem:[%s262 + $0x610] sm:$0xf] %v7650
          %8163 = vst [vmem:[%s262 + $0x614] sm:$0xf] %v7651
          %8164 = vst [vmem:[%s262 + $0x618] sm:$0xf] %v7652
          %8165 = vst [vmem:[%s262 + $0x61c] sm:$0xf] %v7653
          %8166 = vst [vmem:[%s262 + $0x620] sm:$0xf] %v7654
          %8167 = vst [vmem:[%s262 + $0x624] sm:$0xf] %v7655
          %8168 = vst [vmem:[%s262 + $0x628] sm:$0xf] %v7656
          %8169 = vst [vmem:[%s262 + $0x62c] sm:$0xf] %v7657
          %8170 = vst [vmem:[%s262 + $0x630] sm:$0xf] %v7658
          %8171 = vst [vmem:[%s262 + $0x634] sm:$0xf] %v7659
          %8172 = vst [vmem:[%s262 + $0x638] sm:$0xf] %v7660
          %8173 = vst [vmem:[%s262 + $0x63c] sm:$0xf] %v7661
          %8174 = vst [vmem:[%s262 + $0x640] sm:$0xf] %v7662
          %8175 = vst [vmem:[%s262 + $0x644] sm:$0xf] %v7663
          %8176 = vst [vmem:[%s262 + $0x648] sm:$0xf] %v7664
          %8177 = vst [vmem:[%s262 + $0x64c] sm:$0xf] %v7665
          %8178 = vst [vmem:[%s262 + $0x650] sm:$0xf] %v7666
          %8179 = vst [vmem:[%s262 + $0x654] sm:$0xf] %v7667
          %8180 = vst [vmem:[%s262 + $0x658] sm:$0xf] %v7668
          %8181 = vst [vmem:[%s262 + $0x65c] sm:$0xf] %v7669
          %8182 = vst [vmem:[%s262 + $0x660] sm:$0xf] %v7670
          %8183 = vst [vmem:[%s262 + $0x664] sm:$0xf] %v7671
          %8184 = vst [vmem:[%s262 + $0x668] sm:$0xf] %v7672
          %8185 = vst [vmem:[%s262 + $0x66c] sm:$0xf] %v7673
          %8186 = vst [vmem:[%s262 + $0x670] sm:$0xf] %v7674
          %8187 = vst [vmem:[%s262 + $0x674] sm:$0xf] %v7675
          %8188 = vst [vmem:[%s262 + $0x678] sm:$0xf] %v7676
          %8189 = vst [vmem:[%s262 + $0x67c] sm:$0xf] %v7677
          %8190 = vst [vmem:[%s262 + $0x680] sm:$0xf] %v7678
          %8191 = vst [vmem:[%s262 + $0x684] sm:$0xf] %v7679
          %8192 = vst [vmem:[%s262 + $0x688] sm:$0xf] %v7680
          %8193 = vst [vmem:[%s262 + $0x68c] sm:$0xf] %v7681
          %8194 = vst [vmem:[%s262 + $0x690] sm:$0xf] %v7682
          %8195 = vst [vmem:[%s262 + $0x694] sm:$0xf] %v7683
          %8196 = vst [vmem:[%s262 + $0x698] sm:$0xf] %v7684
          %8197 = vst [vmem:[%s262 + $0x69c] sm:$0xf] %v7685
          %8198 = vst [vmem:[%s262 + $0x6a0] sm:$0xf] %v7686
          %8199 = vst [vmem:[%s262 + $0x6a4] sm:$0xf] %v7687
          %8200 = vst [vmem:[%s262 + $0x6a8] sm:$0xf] %v7688
          %8201 = vst [vmem:[%s262 + $0x6ac] sm:$0xf] %v7689
          %8202 = vst [vmem:[%s262 + $0x6b0] sm:$0xf] %v7690
          %8203 = vst [vmem:[%s262 + $0x6b4] sm:$0xf] %v7691
          %8204 = vst [vmem:[%s262 + $0x6b8] sm:$0xf] %v7692
          %8205 = vst [vmem:[%s262 + $0x6bc] sm:$0xf] %v7693
          %8206 = vst [vmem:[%s262 + $0x6c0] sm:$0xf] %v7694
          %8207 = vst [vmem:[%s262 + $0x6c4] sm:$0xf] %v7695
          %8208 = vst [vmem:[%s262 + $0x6c8] sm:$0xf] %v7696
          %8209 = vst [vmem:[%s262 + $0x6cc] sm:$0xf] %v7697
          %8210 = vst [vmem:[%s262 + $0x6d0] sm:$0xf] %v7698
          %8211 = vst [vmem:[%s262 + $0x6d4] sm:$0xf] %v7699
          %8212 = vst [vmem:[%s262 + $0x6d8] sm:$0xf] %v7700
          %8213 = vst [vmem:[%s262 + $0x6dc] sm:$0xf] %v7701
          %8214 = vst [vmem:[%s262 + $0x6e0] sm:$0xf] %v7702
          %8215 = vst [vmem:[%s262 + $0x6e4] sm:$0xf] %v7703
          %8216 = vst [vmem:[%s262 + $0x6e8] sm:$0xf] %v7704
          %8217 = vst [vmem:[%s262 + $0x6ec] sm:$0xf] %v7705
          %8218 = vst [vmem:[%s262 + $0x6f0] sm:$0xf] %v7706
          %8219 = vst [vmem:[%s262 + $0x6f4] sm:$0xf] %v7707
          %8220 = vst [vmem:[%s262 + $0x6f8] sm:$0xf] %v7708
          %8221 = vst [vmem:[%s262 + $0x6fc] sm:$0xf] %v7709
          %8222 = vst [vmem:[%s262 + $0x700] sm:$0xf] %v7710
          %8223 = vst [vmem:[%s262 + $0x704] sm:$0xf] %v7711
          %8224 = vst [vmem:[%s262 + $0x708] sm:$0xf] %v7712
          %8225 = vst [vmem:[%s262 + $0x70c] sm:$0xf] %v7713
          %8226 = vst [vmem:[%s262 + $0x710] sm:$0xf] %v7714
          %8227 = vst [vmem:[%s262 + $0x714] sm:$0xf] %v7715
          %8228 = vst [vmem:[%s262 + $0x718] sm:$0xf] %v7716
          %8229 = vst [vmem:[%s262 + $0x71c] sm:$0xf] %v7717
          %8230 = vst [vmem:[%s262 + $0x720] sm:$0xf] %v7718
          %8231 = vst [vmem:[%s262 + $0x724] sm:$0xf] %v7719
          %8232 = vst [vmem:[%s262 + $0x728] sm:$0xf] %v7720
          %8233 = vst [vmem:[%s262 + $0x72c] sm:$0xf] %v7721
          %8234 = vst [vmem:[%s262 + $0x730] sm:$0xf] %v7722
          %8235 = vst [vmem:[%s262 + $0x734] sm:$0xf] %v7723
          %8236 = vst [vmem:[%s262 + $0x738] sm:$0xf] %v7724
          %8237 = vst [vmem:[%s262 + $0x73c] sm:$0xf] %v7725
          %8238 = vst [vmem:[%s262 + $0x740] sm:$0xf] %v7726
          %8239 = vst [vmem:[%s262 + $0x744] sm:$0xf] %v7727
          %8240 = vst [vmem:[%s262 + $0x748] sm:$0xf] %v7728
          %8241 = vst [vmem:[%s262 + $0x74c] sm:$0xf] %v7729
          %8242 = vst [vmem:[%s262 + $0x750] sm:$0xf] %v7730
          %8243 = vst [vmem:[%s262 + $0x754] sm:$0xf] %v7731
          %8244 = vst [vmem:[%s262 + $0x758] sm:$0xf] %v7732
          %8245 = vst [vmem:[%s262 + $0x75c] sm:$0xf] %v7733
          %8246 = vst [vmem:[%s262 + $0x760] sm:$0xf] %v7734
          %8247 = vst [vmem:[%s262 + $0x764] sm:$0xf] %v7735
          %8248 = vst [vmem:[%s262 + $0x768] sm:$0xf] %v7736
          %8249 = vst [vmem:[%s262 + $0x76c] sm:$0xf] %v7737
          %8250 = vst [vmem:[%s262 + $0x770] sm:$0xf] %v7738
          %8251 = vst [vmem:[%s262 + $0x774] sm:$0xf] %v7739
          %8252 = vst [vmem:[%s262 + $0x778] sm:$0xf] %v7740
          %8253 = vst [vmem:[%s262 + $0x77c] sm:$0xf] %v7741
          %8254 = vst [vmem:[%s262 + $0x780] sm:$0xf] %v7742
          %8255 = vst [vmem:[%s262 + $0x784] sm:$0xf] %v7743
          %8256 = vst [vmem:[%s262 + $0x788] sm:$0xf] %v7744
          %8257 = vst [vmem:[%s262 + $0x78c] sm:$0xf] %v7745
          %8258 = vst [vmem:[%s262 + $0x790] sm:$0xf] %v7746
          %8259 = vst [vmem:[%s262 + $0x794] sm:$0xf] %v7747
          %8260 = vst [vmem:[%s262 + $0x798] sm:$0xf] %v7748
          %8261 = vst [vmem:[%s262 + $0x79c] sm:$0xf] %v7749
          %8262 = vst [vmem:[%s262 + $0x7a0] sm:$0xf] %v7750
          %8263 = vst [vmem:[%s262 + $0x7a4] sm:$0xf] %v7751
          %8264 = vst [vmem:[%s262 + $0x7a8] sm:$0xf] %v7752
          %8265 = vst [vmem:[%s262 + $0x7ac] sm:$0xf] %v7753
          %8266 = vst [vmem:[%s262 + $0x7b0] sm:$0xf] %v7754
          %8267 = vst [vmem:[%s262 + $0x7b4] sm:$0xf] %v7755
          %8268 = vst [vmem:[%s262 + $0x7b8] sm:$0xf] %v7756
          %8269 = vst [vmem:[%s262 + $0x7bc] sm:$0xf] %v7757
          %8270 = vst [vmem:[%s262 + $0x7c0] sm:$0xf] %v7758
          %8271 = vst [vmem:[%s262 + $0x7c4] sm:$0xf] %v7759
          %8272 = vst [vmem:[%s262 + $0x7c8] sm:$0xf] %v7760
          %8273 = vst [vmem:[%s262 + $0x7cc] sm:$0xf] %v7761
          %8274 = vst [vmem:[%s262 + $0x7d0] sm:$0xf] %v7762
          %8275 = vst [vmem:[%s262 + $0x7d4] sm:$0xf] %v7763
          %8276 = vst [vmem:[%s262 + $0x7d8] sm:$0xf] %v7764
          %8277 = vst [vmem:[%s262 + $0x7dc] sm:$0xf] %v7765
          %8278 = vst [vmem:[%s262 + $0x7e0] sm:$0xf] %v7766
          %8279 = vst [vmem:[%s262 + $0x7e4] sm:$0xf] %v7767
          %8280 = vst [vmem:[%s262 + $0x7e8] sm:$0xf] %v7768
          %8281 = vst [vmem:[%s262 + $0x7ec] sm:$0xf] %v7769
          %8282 = vst [vmem:[%s262 + $0x7f0] sm:$0xf] %v7770
          %8283 = vst [vmem:[%s262 + $0x7f4] sm:$0xf] %v7771
          %8284 = vst [vmem:[%s262 + $0x7f8] sm:$0xf] %v7772
          %8285 = vst [vmem:[%s262 + $0x7fc] sm:$0xf] %v7773
        $region52: #{tpu_custom_call.1} parent=31 // pred_fallthru
          _
        %s8286 = sand.u32 %s132, 1
        %s8287 = scalar_lea.sflag [#allocation5], %s8286
        %s8288 = sand.u32 %s132, 1
        %s8289 = smul.addr %s8288, 2048
        %s8290 = scalar_lea.vmem [#allocation9], %s8289
        // Predicated region
        $region53: #{tpu_custom_call.1} parent=31 // pred_check
          %p8291 = pneg %p142
        $region54: #{tpu_custom_call.1} parent=31 // pred_check_branch
          %8293 = sbr.rel (%p8291) target = $region56
        $region55: #{tpu_custom_call.1} parent=31 // pred_region
          %s8294 = smul.u32 512, %s26
          %8296 = vsyncadd %s8287, 0
          %s8297 = sadd.s32 %s27, %s8294
          %s8298 = smul.addr %s8297, 4
          %s8299 = scalar_lea.hbm %s3, %s8298
          %s8300 = sshll.u32 %s8290, 4
          %s8301 = int_to_ptr.vmem [resolvable:$true] %s8300
          %s8302 = sshll.u32 %s8299, 4
          %s8303 = int_to_ptr.hbm [resolvable:$true] %s8302
          %8308 = dma.vmem_to_hbm [thread:$0]  %s8301, 32768, %s8303, %s8287, 64, 64, 4
        $region56: #{tpu_custom_call.1} parent=31 // pred_fallthru
          _
      $region32: #{tpu_custom_call.1} parent=5 // pred_fallthru
        _
      %p8309 = scmp.le.s32.totalorder 2, %s16
      // Predicated region
      $region57: #{tpu_custom_call.1} parent=5 // pred_check
        %p8310 = pneg %p8309
      $region58: #{tpu_custom_call.1} parent=5 // pred_check_branch
        %8312 = sbr.rel (%p8310) target = $region60
      $region59: #{tpu_custom_call.1} parent=5 // pred_region
        %s8313 = ssub.s32 %s16, 2
        // Predicated region
        $region61: #{tpu_custom_call.1} parent=59 // pred_check
          %p8314 = pneg %p148
        $region62: #{tpu_custom_call.1} parent=59 // pred_check_branch
          %8316 = sbr.rel (%p8314) target = $region64
        $region63: #{tpu_custom_call.1} parent=59 // pred_region
          %s8317 = sand.u32 %s133, 1
          %s8318 = scalar_lea.sflag [#allocation5], %s8317
          %s8319 = sand.u32 %s133, 1
          %s8320 = smul.addr %s8319, 2048
          %s8321 = scalar_lea.vmem [#allocation9], %s8320
          %8323 = dma.done %s8318, 32768
        $region64: #{tpu_custom_call.1} parent=59 // pred_fallthru
          _
      $region60: #{tpu_custom_call.1} parent=5 // pred_fallthru
        _
    $region6: #{tpu_custom_call.1} parent=1 // loop_footer
      %s20 = sadd.s32 1, %s16
    $region7: #{tpu_custom_call.1} parent=1 // loop_footer_branch
      %15 = sbr.rel target = $region3
    $region8: #{tpu_custom_call.1} parent=1 // loop_exit
      _
    %8324 = vsyncpa [#allocation4], 1
    %s8325 = scalar_lea.sflag [#allocation4], 1
    %8326 = vsyncpa %s8325, 1
    %8327 = vsyncpa [#allocation7], 1
    %8328 = vsyncpa [#allocation5], 1
    %s8329 = scalar_lea.sflag [#allocation5], 1
    %8330 = vsyncpa %s8329, 1

</llo_original>
